<compile_context>
chip_gen: v5e
topology: v5e:2x2
jax: 0.10.0
libtpu: 0.0.40
codegen_flags: <defaults>
</compile_context>

<pallas_src>
import jax
import jax.numpy as jnp
from jax.experimental import pallas as pl
from jax.experimental.pallas import tpu as pltpu

J = 21  # wrist + 20 joints (ndim=20 after dropping wrist)


# ----------------------------- Pallas kernel ------------------------------- #
def _dist_kernel(x_ref, jm2_ref, jsq_ref, o_ref):
    # x_ref:   (nb, 3,  tileP)  coords, lane-dense P, pre-masked per batch
    # jm2_ref: (nb, Jn, 3)      -2 * joints, pre-masked
    # jsq_ref: (nb, Jn, 1)      ||joint||^2, pre-masked
    # o_ref:   (nb, Jn, tileP)
    x = x_ref[...]                                           # (nb, 3, tileP)
    xsq = jnp.sum(x * x, axis=1, keepdims=True)              # (nb, 1, tileP)  tiny
    # Cross term on the MXU; HIGHEST keeps effective f32 accuracy (cancellation near joints).
    cross = jnp.einsum('bjc,bcp->bjp', jm2_ref[...], x,
                       preferred_element_type=jnp.float32,
                       precision=jax.lax.Precision.HIGHEST)  # (nb, Jn, tileP)
    # Two broadcast adds are hidden under the output store DMA (store-bound kernel).
    o_ref[...] = (cross + jsq_ref[...] + xsq).astype(o_ref.dtype)


def distance_field_pallas(nXyz_cp, nJoints, mask, *, max_tile_p=65536,
                          out_dtype=jnp.float32,
                          target_out_bytes_per_step=4 << 20):
    """nXyz_cp: (N,3,P) f32, nJoints: (N,Jn,3) f32, mask: (N,) bool -> (N,Jn,P) out_dtype."""
    N, C, P = nXyz_cp.shape
    assert C == 3
    Jn = nJoints.shape[1]

    # Fold the zero-hand mask into the operands: x, -2j and ||j||^2 all zero -> output zero.
    mask_f = mask.astype(jnp.float32)
    nJoints = nJoints.astype(jnp.float32) * mask_f[:, None, None]
    jm2 = (-2.0) * nJoints                                       # (N, Jn, 3)
    jsq = jnp.sum(nJoints * nJoints, axis=-1, keepdims=True)     # (N, Jn, 1)
    x = nXyz_cp.astype(jnp.float32) * mask_f[:, None, None]      # (N, 3, P) (fuses upstream)

    # Lane-dense tile; no padding of P — Pallas clips/masks the trailing partial block.
    p128 = ((P + 127) // 128) * 128
    tile_p = min(p128, max_tile_p)
    num_p = pl.cdiv(P, tile_p)

    # Pack several batch elements per step when the per-step output is small, so the
    # ~0.35 us/step overhead is amortized; bounded by a per-step output-byte target.
    out_isize = jnp.dtype(out_dtype).itemsize
    per_batch_bytes = Jn * tile_p * out_isize
    nb = int(max(1, min(N, target_out_bytes_per_step // max(per_batch_bytes, 1))))
    while N % nb:
        nb -= 1
    num_b = N // nb

    # v7x has 2 TensorCores: keep at least 2 "parallel" grid steps whenever possible.
    if num_b * num_p < 2:
        if nb > 1:
            nb = nb // 2
            while N % nb:
                nb -= 1
            num_b = N // nb
        elif p128 >= 256:
            tile_p = ((p128 // 2 + 127) // 128) * 128
            num_p = pl.cdiv(P, tile_p)

    out = pl.pallas_call(
        _dist_kernel,
        out_shape=jax.ShapeDtypeStruct((N, Jn, P), out_dtype),
        grid_spec=pltpu.PrefetchScalarGridSpec(
            num_scalar_prefetch=0,
            grid=(num_b, num_p),
            in_specs=[
                pl.BlockSpec((nb, 3, tile_p), lambda b, p: (b, 0, p)),
                pl.BlockSpec((nb, Jn, 3),     lambda b, p: (b, 0, 0)),
                pl.BlockSpec((nb, Jn, 1),     lambda b, p: (b, 0, 0)),
            ],
            out_specs=pl.BlockSpec((nb, Jn, tile_p), lambda b, p: (b, 0, p)),
        ),
        compiler_params=pltpu.CompilerParams(
            dimension_semantics=("parallel", "parallel"),
            vmem_limit_bytes=32 * 1024 * 1024),
    )(x, jm2, jsq)
    return out


# ------------------------------ JAX glue ------------------------------------ #
def synthetic_mano_joints(hA, W_j, b_j):
    # Deterministic stand-in for self.hand_wrapper(None, hA) -> hJoints (N,21,3)
    # TODO(synk): real MANO forward kinematics (ManopthWrapper) not reproducible here.
    N = hA.shape[0]
    return (hA @ W_j + b_j).reshape(N, J, 3)


def get_nTh_synth(hJoints, scale=5.0):
    # Synthetic stand-in for hand_utils.get_nTh: uniform scale + centering on joint 5.
    # TODO(synk): real get_nTh uses MANO palm geometry; this keeps the same algebraic form.
    N = hJoints.shape[0]
    center = hJoints[:, 5]                              # (N,3)
    R = jnp.broadcast_to(jnp.eye(3) * scale, (N, 3, 3))
    t = -scale * center
    top = jnp.concatenate([R, t[:, :, None]], axis=-1)  # (N,3,4)
    bot = jnp.broadcast_to(jnp.array([[0.0, 0.0, 0.0, 1.0]]), (N, 1, 4))
    return jnp.concatenate([top, bot], axis=1)          # (N,4,4)


def apply_transform(points, T):
    # points (N,K,3), T (N,4,4) homogeneous
    R, t = T[:, :3, :3], T[:, :3, 3]
    return jnp.einsum('nij,nkj->nki', R, points) + t[:, None, :]


def distance_field_forward(hA, H, nXyz, W_j, b_j, rtn_wrist=True, nTh_left=None,
                           out_dtype=jnp.float32):
    N = hA.shape[0]
    # n d h w c -> n c d h w ; trilinear resize to (H,H,H)  (glue)
    # TODO(synk): jax.image.resize 'trilinear' differs slightly from F.interpolate's
    # align_corners=False convention; glue only, not the hot path.
    x = jnp.transpose(nXyz, (0, 4, 1, 2, 3)).astype(jnp.float32)
    x = jax.image.resize(x, (N, 3, H, H, H), method='trilinear')
    x = x.reshape(N, 3, H * H * H)                       # lane-dense P last

    hJoints = synthetic_mano_joints(hA, W_j, b_j)
    nTh = get_nTh_synth(hJoints)
    if nTh_left is None:
        nJoints = apply_transform(hJoints, nTh)
    else:
        nJoints = apply_transform(hJoints, nTh_left[:, 0])

    if not rtn_wrist:
        nJoints = nJoints[:, 1:]                         # drop wrist BEFORE the kernel

    mask = jnp.any(hA != 0, axis=-1)                     # zero-hand batches -> output 0

    nDist = distance_field_pallas(x, nJoints, mask, out_dtype=out_dtype)
    Jout = nJoints.shape[1]
    return nDist.reshape(N, Jout, H, H, H)


def distance_field_reference(hA, H, nXyz, W_j, b_j, rtn_wrist=True, nTh_left=None):
    # Pure-jnp reference mirroring the PyTorch code path (direct (x - j)^2 form).
    N = hA.shape[0]
    x = jnp.transpose(nXyz, (0, 4, 1, 2, 3)).astype(jnp.float32)
    x = jax.image.resize(x, (N, 3, H, H, H), method='trilinear')
    x = jnp.transpose(x.reshape(N, 3, -1), (0, 2, 1))[:, None]        # (N,1,P,3)
    hJoints = synthetic_mano_joints(hA, W_j, b_j)
    nTh = get_nTh_synth(hJoints)
    nJ = apply_transform(hJoints, nTh if nTh_left is None else nTh_left[:, 0])
    nJ = nJ[:, :, None]                                                # (N,J,1,3)
    d2 = ((x - nJ) ** 2).sum(-1).reshape(N, J, H, H, H)
    zero_mask = (jnp.sum(hA != 0, axis=-1) == 0).astype(jnp.float32)
    d2 = d2 * (1.0 - zero_mask.reshape(N, 1, 1, 1, 1))
    if not rtn_wrist:
        d2 = d2[:, 1:]
    return d2


if __name__ == "__main__":
    key = jax.random.PRNGKey(0)
    k1, k2, k3 = jax.random.split(key, 3)

    N, H = 2, 16
    Din = 8  # input grid resolution (resized to H)

    # hA: (N, 45) MANO articulation params; make second batch element all-zero
    # to exercise the zero-hand mask path.
    hA = jax.random.normal(k1, (N, 45), dtype=jnp.float32) * 0.1
    hA = hA.at[1].set(0.0)

    # Deterministic synthetic "joint regressor" parameters.
    W_j = jax.random.normal(k2, (45, J * 3), dtype=jnp.float32) * 0.02
    b_j = jax.random.normal(k3, (J * 3,), dtype=jnp.float32) * 0.05

    # nXyz: (N, D, H, W, 3) coordinate grid in [-1, 1] (like create_sdf_grid).
    lin = jnp.linspace(-1.0, 1.0, Din, dtype=jnp.float32)
    gz, gy, gx = jnp.meshgrid(lin, lin, lin, indexing='ij')
    grid = jnp.stack([gz, gy, gx], axis=-1)                  # (Din,Din,Din,3)
    nXyz = jnp.broadcast_to(grid, (N, Din, Din, Din, 3))

    # rtn_wrist=True path, f32 output (module-faithful default)
    out = distance_field_forward(hA, H, nXyz, W_j, b_j, rtn_wrist=True)
    out = jax.block_until_ready(out)
    assert out.shape == (N, J, H, H, H), out.shape
    ref = distance_field_reference(hA, H, nXyz, W_j, b_j, rtn_wrist=True)
    assert jnp.allclose(out, ref, atol=2e-4, rtol=2e-4)

    # rtn_wrist=False path (output materialized directly without the wrist joint)
    out_nw = distance_field_forward(hA, H, nXyz, W_j, b_j, rtn_wrist=False)
    out_nw = jax.block_until_ready(out_nw)
    assert out_nw.shape == (N, J - 1, H, H, H), out_nw.shape
    ref_nw = distance_field_reference(hA, H, nXyz, W_j, b_j, rtn_wrist=False)
    assert jnp.allclose(out_nw, ref_nw, atol=2e-4, rtol=2e-4)

    # Non-lane-multiple H exercises the clipped trailing lane-block (H^3 = 1000, no pad/slice).
    H2 = 10
    out2 = distance_field_forward(hA, H2, nXyz, W_j, b_j, rtn_wrist=True)
    out2 = jax.block_until_ready(out2)
    assert out2.shape == (N, J, H2, H2, H2), out2.shape
    ref2 = distance_field_reference(hA, H2, nXyz, W_j, b_j, rtn_wrist=True)
    assert jnp.allclose(out2, ref2, atol=2e-4, rtol=2e-4)

    # bf16 output option (halves the dominant HBM write stream); loose tolerance vs f32 ref.
    out_bf = distance_field_forward(hA, H, nXyz, W_j, b_j, rtn_wrist=True,
                                    out_dtype=jnp.bfloat16)
    out_bf = jax.block_until_ready(out_bf)
    assert out_bf.dtype == jnp.bfloat16 and out_bf.shape == (N, J, H, H, H)
    assert jnp.allclose(out_bf.astype(jnp.float32), ref, atol=5e-2, rtol=2e-2)

    print("KERNEL_OK")
</pallas_src>

<mosaic_0001>
module attributes {stable_mosaic.version = 11 : i64} {
  func.func @_dist_kernel(%arg0: i32, %arg1: i32, %arg2: memref<1x3x4096xf32, #tpu.memory_space<vmem>>, %arg3: memref<1x21x3xf32, #tpu.memory_space<vmem>>, %arg4: memref<1x21x1xf32, #tpu.memory_space<vmem>>, %arg5: memref<1x21x4096xf32, #tpu.memory_space<vmem>>) attributes {dimension_semantics = [#tpu.dimension_semantics<parallel>, #tpu.dimension_semantics<parallel>], iteration_bounds = array<i64: 2, 1>, scalar_prefetch = 0 : i64, scratch_operands = 0 : i64, tpu.core_type = #tpu.core_type<tc>, window_params = [{transform_indices = @transform_0, window_bounds = array<i64: 1, 3, 4096>}, {transform_indices = @transform_1, window_bounds = array<i64: 1, 21, 3>}, {transform_indices = @transform_2, window_bounds = array<i64: 1, 21, 1>}, {transform_indices = @transform_3, window_bounds = array<i64: 1, 21, 4096>}]} {
    %c0 = arith.constant 0 : index
    %c0_0 = arith.constant 0 : index
    %c0_1 = arith.constant 0 : index
    %0 = vector.load %arg2[%c0, %c0_0, %c0_1] : memref<1x3x4096xf32, #tpu.memory_space<vmem>>, vector<1x3x4096xf32>
    %1 = arith.mulf %0, %0 : vector<1x3x4096xf32>
    %cst = arith.constant dense<0.000000e+00> : vector<1x4096xf32>
    %2 = vector.multi_reduction <add>, %1, %cst [1] : vector<1x3x4096xf32> to vector<1x4096xf32>
    %3 = vector.shape_cast %2 : vector<1x4096xf32> to vector<1x1x4096xf32>
    %c0_2 = arith.constant 0 : index
    %c0_3 = arith.constant 0 : index
    %c0_4 = arith.constant 0 : index
    %4 = vector.load %arg3[%c0_2, %c0_3, %c0_4] : memref<1x21x3xf32, #tpu.memory_space<vmem>>, vector<1x21x3xf32>
    "tpu.trace_start"() <{level = 10 : i32, message = "bjc,bcp->bjp"}> : () -> ()
    %cst_5 = arith.constant dense<0.000000e+00> : vector<1x21x4096xf32>
    %5 = tpu.matmul %4, %0, %cst_5 {dimension_numbers = #tpu.dot_dimension_numbers<[2], [1], [1], [2], [0, 0, 0, 1, 1, 2], [0], [0]>, precision = #tpu.contract_precision<fp32>} : vector<1x21x3xf32>, vector<1x3x4096xf32>, vector<1x21x4096xf32> -> vector<1x21x4096xf32>
    "tpu.trace_stop"() : () -> ()
    %c0_6 = arith.constant 0 : index
    %c0_7 = arith.constant 0 : index
    %c0_8 = arith.constant 0 : index
    %6 = vector.load %arg4[%c0_6, %c0_7, %c0_8] : memref<1x21x1xf32, #tpu.memory_space<vmem>>, vector<1x21x1xf32>
    %7 = vector.broadcast %6 : vector<1x21x1xf32> to vector<1x21x4096xf32>
    %8 = arith.addf %5, %7 : vector<1x21x4096xf32>
    %9 = vector.broadcast %3 : vector<1x1x4096xf32> to vector<1x21x4096xf32>
    %10 = arith.addf %8, %9 : vector<1x21x4096xf32>
    %c0_9 = arith.constant 0 : index
    %c0_10 = arith.constant 0 : index
    %c0_11 = arith.constant 0 : index
    %11 = vector.load %arg5[%c0_9, %c0_10, %c0_11] : memref<1x21x4096xf32, #tpu.memory_space<vmem>>, vector<1x21x4096xf32>
    tpu.vector_store %arg5[%c0_9, %c0_10, %c0_11], %10 {strides = array<i32>} : memref<1x21x4096xf32, #tpu.memory_space<vmem>>, vector<1x21x4096xf32>,
    return
  }
  func.func @transform_0(%arg0: i32, %arg1: i32) -> (i32, i32, i32) {
    %c0_i32 = arith.constant 0 : i32
    %c0_i32_0 = arith.constant 0 : i32
    return %arg0, %c0_i32, %arg1 : i32, i32, i32
  }
  func.func @transform_1(%arg0: i32, %arg1: i32) -> (i32, i32, i32) {
    %c0_i32 = arith.constant 0 : i32
    %c0_i32_0 = arith.constant 0 : i32
    %c0_i32_1 = arith.constant 0 : i32
    return %arg0, %c0_i32, %c0_i32_0 : i32, i32, i32
  }
  func.func @transform_2(%arg0: i32, %arg1: i32) -> (i32, i32, i32) {
    %c0_i32 = arith.constant 0 : i32
    %c0_i32_0 = arith.constant 0 : i32
    %c0_i32_1 = arith.constant 0 : i32
    return %arg0, %c0_i32, %c0_i32_0 : i32, i32, i32
  }
  func.func @transform_3(%arg0: i32, %arg1: i32) -> (i32, i32, i32) {
    %c0_i32 = arith.constant 0 : i32
    %c0_i32_0 = arith.constant 0 : i32
    return %arg0, %c0_i32, %arg1 : i32, i32, i32
  }
}

</mosaic_0001>

<llo_original>
// kernel: tpu_custom_call.1
$region0: #{tpu_custom_call.1}
  #allocation0 [shape = 'u32[]', space=smem, size = 0x4, offset = 0x4, fixed_abs, tag = 'smem constant byte address 0x4 - core index']
  #allocation1 [shape = 'u32[72,128]{1,0:T(1,128)}', space=vmem, size = 0x9000, scoped, tag = 'internal scratch']
  %s0 = inlined_call_operand.vmem [shape: f32[2,3,4096], index: 0, kind: input, shape index: {}]
  %s1 = inlined_call_operand.vmem [shape: f32[2,21,3], index: 1, kind: input, shape index: {}]
  %s2 = inlined_call_operand.vmem [shape: f32[2,21,1], index: 2, kind: input, shape index: {}]
  %s3 = inlined_call_operand.vmem [shape: f32[2,21,4096], index: 3, kind: output, shape index: {}]
  %s4 = sld [smem:[#allocation0]]
  $region45: #{tpu_custom_call.1} parent=0
    _
  %s6 = ssub.s32 1, %s4
  %s7 = scalar_select 0, %s6, %s4
  loop: start=0, step=1, limit=4
  $region2: #{tpu_custom_call.1} parent=0 // loop_pre_header
    _
  $region3: #{tpu_custom_call.1} parent=0 // loop_header
    %s9 = sphi 0, %s13
    %p10 = scmp.ge.s32.totalorder %s9, 4
    %s16 = sphi 0, %s28
    %s17 = sphi 0, %s24
    %s18 = sphi 0, %s16
    %s19 = sphi 0, %s17
    %s20 = sphi 0, %s18
    %s21 = sphi 0, %s19
    %s33 = sphi 0, %s35
    %s36 = sphi 0, %s33
    %s37 = sphi 0, %s36
    %s53 = sphi 0, %s37
    %s59 = sphi 0, %s61
    %s62 = sphi 0, %s59
    %s63 = sphi 0, %s62
    %s79 = sphi 0, %s63
    %s85 = sphi 0, %s87
    %s88 = sphi 0, %s85
    %s89 = sphi 0, %s88
    %s105 = sphi 0, %s89
    %s113 = sphi 0, %s115
    %s116 = sphi 0, %s113
    %s117 = sphi 0, %s116
    %s133 = sphi 0, %s117
  $region4: #{tpu_custom_call.1} parent=0 // loop_header_branch
    %12 = sbr.rel (%p10) target = $region8
  $region5: #{tpu_custom_call.1} parent=0 // loop_body
    %s14 = ssub.s32 %s9, 1
    %s15 = ssub.s32 %s9, 2
    %s22 = sadd.s32 1, %s17
    %p23 = scmp.ge.s32.totalorder %s22, 1
    %s24 = scalar_select %p23, 0, %s22
    %s25 = sadd.s32 1, %s16
    %s26 = scalar_select %p23, %s25, %s16
    %p27 = scmp.ge.s32.totalorder %s26, 2
    %s28 = scalar_select %p27, 0, %s26
    %s29 = ssub.s32 %s16, %s28
    %s30 = ssub.s32 %s17, %s24
    %s31 = sor.u32 %s29, %s30
    %p32 = scmp.eq.s32.totalorder %s31, 0
    %s34 = sadd.s32 %s33, 1
    %s35 = scalar_select %p32, %s33, %s34
    %p38 = pneg %p32
    %p39 = scmp.eq.s32.totalorder %s9, 1
    %p40 = por %p38, %p39
    %p41 = scmp.ne.s32.totalorder %s33, %s36
    %p42 = scmp.eq.s32.totalorder %s9, 0
    %p43 = por %p41, %p42
    %p44 = scmp.ne.s32.totalorder %s33, %s36
    %p45 = scmp.eq.s32.totalorder %s14, 1
    %p46 = por %p44, %p45
    %p47 = scmp.ne.s32.totalorder %s36, %s37
    %p48 = scmp.eq.s32.totalorder %s14, 0
    %p49 = por %p47, %p48
    %p50 = scmp.ne.s32.totalorder %s36, %s37
    %p51 = scmp.eq.s32.totalorder %s15, 1
    %p52 = por %p50, %p51
    %p54 = scmp.ne.s32.totalorder %s37, %s53
    %p55 = scmp.eq.s32.totalorder %s15, 0
    %p56 = por %p54, %p55
    %s57 = ssub.s32 %s16, %s28
    %p58 = scmp.eq.s32.totalorder %s57, 0
    %s60 = sadd.s32 %s59, 1
    %s61 = scalar_select %p58, %s59, %s60
    %p64 = pneg %p58
    %p65 = scmp.eq.s32.totalorder %s9, 1
    %p66 = por %p64, %p65
    %p67 = scmp.ne.s32.totalorder %s59, %s62
    %p68 = scmp.eq.s32.totalorder %s9, 0
    %p69 = por %p67, %p68
    %p70 = scmp.ne.s32.totalorder %s59, %s62
    %p71 = scmp.eq.s32.totalorder %s14, 1
    %p72 = por %p70, %p71
    %p73 = scmp.ne.s32.totalorder %s62, %s63
    %p74 = scmp.eq.s32.totalorder %s14, 0
    %p75 = por %p73, %p74
    %p76 = scmp.ne.s32.totalorder %s62, %s63
    %p77 = scmp.eq.s32.totalorder %s15, 1
    %p78 = por %p76, %p77
    %p80 = scmp.ne.s32.totalorder %s63, %s79
    %p81 = scmp.eq.s32.totalorder %s15, 0
    %p82 = por %p80, %p81
    %s83 = ssub.s32 %s16, %s28
    %p84 = scmp.eq.s32.totalorder %s83, 0
    %s86 = sadd.s32 %s85, 1
    %s87 = scalar_select %p84, %s85, %s86
    %p90 = pneg %p84
    %p91 = scmp.eq.s32.totalorder %s9, 1
    %p92 = por %p90, %p91
    %p93 = scmp.ne.s32.totalorder %s85, %s88
    %p94 = scmp.eq.s32.totalorder %s9, 0
    %p95 = por %p93, %p94
    %p96 = scmp.ne.s32.totalorder %s85, %s88
    %p97 = scmp.eq.s32.totalorder %s14, 1
    %p98 = por %p96, %p97
    %p99 = scmp.ne.s32.totalorder %s88, %s89
    %p100 = scmp.eq.s32.totalorder %s14, 0
    %p101 = por %p99, %p100
    %p102 = scmp.ne.s32.totalorder %s88, %s89
    %p103 = scmp.eq.s32.totalorder %s15, 1
    %p104 = por %p102, %p103
    %p106 = scmp.ne.s32.totalorder %s89, %s105
    %p107 = scmp.eq.s32.totalorder %s15, 0
    %p108 = por %p106, %p107
    %s109 = ssub.s32 %s16, %s28
    %s110 = ssub.s32 %s17, %s24
    %s111 = sor.u32 %s109, %s110
    %p112 = scmp.eq.s32.totalorder %s111, 0
    %s114 = sadd.s32 %s113, 1
    %s115 = scalar_select %p112, %s113, %s114
    %p118 = pneg %p112
    %p119 = scmp.eq.s32.totalorder %s9, 1
    %p120 = por %p118, %p119
    %p121 = scmp.ne.s32.totalorder %s113, %s116
    %p122 = scmp.eq.s32.totalorder %s9, 0
    %p123 = por %p121, %p122
    %p124 = scmp.ne.s32.totalorder %s113, %s116
    %p125 = scmp.eq.s32.totalorder %s14, 1
    %p126 = por %p124, %p125
    %p127 = scmp.ne.s32.totalorder %s116, %s117
    %p128 = scmp.eq.s32.totalorder %s14, 0
    %p129 = por %p127, %p128
    %p130 = scmp.ne.s32.totalorder %s116, %s117
    %p131 = scmp.eq.s32.totalorder %s15, 1
    %p132 = por %p130, %p131
    %p134 = scmp.ne.s32.totalorder %s117, %s133
    %p135 = scmp.eq.s32.totalorder %s15, 0
    %p136 = por %p134, %p135
    %p137 = scmp.le.s32.totalorder 1, %s9
    %p138 = scmp.lt.s32.totalorder %s9, 3
    %p139 = pnand %p137, %p138
    %p140 = pneg %p139
    // Predicated region
    $region9: #{tpu_custom_call.1} parent=5 // pred_check
      _
    $region10: #{tpu_custom_call.1} parent=5 // pred_check_branch
      %142 = sbr.rel (%p139) target = $region12
    $region11: #{tpu_custom_call.1} parent=5 // pred_region
      %s143 = ssub.s32 %s9, 1
    $region12: #{tpu_custom_call.1} parent=5 // pred_fallthru
      _
    %p144 = scmp.lt.s32.totalorder %s9, 2
    // Predicated region
    $region13: #{tpu_custom_call.1} parent=5 // pred_check
      %p145 = pneg %p144
    $region14: #{tpu_custom_call.1} parent=5 // pred_check_branch
      %147 = sbr.rel (%p145) target = $region16
    $region15: #{tpu_custom_call.1} parent=5 // pred_region
      // Predicated region
      $region17: #{tpu_custom_call.1} parent=15 // pred_check
        %p148 = pneg %p43
      $region18: #{tpu_custom_call.1} parent=15 // pred_check_branch
        %150 = sbr.rel (%p148) target = $region20
      $region19: #{tpu_custom_call.1} parent=15 // pred_region
        %s151 = smul.u32 32, %s17
        %p152 = scmp.lt.s32.totalorder %s16, 1
        %s153 = scalar_select %p152, %s16, 1
        %p154 = scmp.lt.s32.totalorder %s151, 31
        %s155 = scalar_select %p154, %s151, 31
        %s156 = smul.addr %s153, 32
        %s157 = sadd.s32 %s155, %s156
        %s158 = smul.addr %s157, 4
        %s159 = scalar_lea.vmem %s0, %s158
        %s160 = smul.u32 32, %s17
      $region20: #{tpu_custom_call.1} parent=15 // pred_fallthru
        _
      // Predicated region
      $region21: #{tpu_custom_call.1} parent=15 // pred_check
        %p161 = pneg %p69
      $region22: #{tpu_custom_call.1} parent=15 // pred_check_branch
        %163 = sbr.rel (%p161) target = $region24
      $region23: #{tpu_custom_call.1} parent=15 // pred_region
        %p164 = scmp.lt.s32.totalorder %s16, 1
        %s165 = scalar_select %p164, %s16, 1
        %s166 = smul.addr %s165, 3
        %s167 = smul.addr %s166, 8
        %s168 = scalar_lea.vmem %s1, %s167
      $region24: #{tpu_custom_call.1} parent=15 // pred_fallthru
        _
      // Predicated region
      $region25: #{tpu_custom_call.1} parent=15 // pred_check
        %p169 = pneg %p95
      $region26: #{tpu_custom_call.1} parent=15 // pred_check_branch
        %171 = sbr.rel (%p169) target = $region28
      $region27: #{tpu_custom_call.1} parent=15 // pred_region
        %p172 = scmp.lt.s32.totalorder %s16, 1
        %s173 = scalar_select %p172, %s16, 1
        %s174 = smul.addr %s173, 3
        %s175 = smul.addr %s174, 8
        %s176 = scalar_lea.vmem %s2, %s175
      $region28: #{tpu_custom_call.1} parent=15 // pred_fallthru
        _
    $region16: #{tpu_custom_call.1} parent=5 // pred_fallthru
      _
    %p177 = scmp.le.s32.totalorder 1, %s9
    %p178 = scmp.lt.s32.totalorder %s9, 3
    %p179 = pnand %p177, %p178
    %p180 = pneg %p179
    // Predicated region
    $region29: #{tpu_custom_call.1} parent=5 // pred_check
      _
    $region30: #{tpu_custom_call.1} parent=5 // pred_check_branch
      %182 = sbr.rel (%p179) target = $region32
    $region31: #{tpu_custom_call.1} parent=5 // pred_region
      %s183 = ssub.s32 %s9, 1
      %s184 = smul.u32 32, %s19
      %p185 = scmp.lt.s32.totalorder %s18, 1
      %s186 = scalar_select %p185, %s18, 1
      %p187 = scmp.lt.s32.totalorder %s184, 31
      %s188 = scalar_select %p187, %s184, 31
      %s189 = smul.addr %s186, 32
      %s190 = sadd.s32 %s188, %s189
      %s191 = smul.addr %s190, 4
      %s192 = scalar_lea.vmem %s0, %s191
      %p193 = pneg %p49
      %p194 = pneg %p46
      %p195 = scmp.lt.s32.totalorder %s18, 1
      %s196 = scalar_select %p195, %s18, 1
      %s197 = smul.addr %s196, 3
      %s198 = smul.addr %s197, 8
      %s199 = scalar_lea.vmem %s1, %s198
      %p200 = pneg %p75
      %p201 = pneg %p72
      %p202 = scmp.lt.s32.totalorder %s18, 1
      %s203 = scalar_select %p202, %s18, 1
      %s204 = smul.addr %s203, 3
      %s205 = smul.addr %s204, 8
      %s206 = scalar_lea.vmem %s2, %s205
      %p207 = pneg %p101
      %p208 = pneg %p98
      %p209 = pneg %p129
      %p210 = pneg %p126
      %s211 = smul.u32 32, %s19
      %p212 = scmp.lt.s32.totalorder %s18, 1
      %s213 = scalar_select %p212, %s18, 1
      %p214 = scmp.lt.s32.totalorder %s211, 31
      %s215 = scalar_select %p214, %s211, 31
      %s216 = smul.addr %s213, 96
      %s217 = sadd.s32 %s215, %s216
      %s218 = smul.addr %s217, 8
      %s219 = scalar_lea.vmem %s3, %s218
      %s220 = smul.u32 32, %s19
      %p221 = scmp.lt.s32.totalorder %s18, 1
      %s222 = scalar_select %p221, %s18, 1
      %p223 = scmp.lt.s32.totalorder %s220, 31
      %s224 = scalar_select %p223, %s220, 31
      %s225 = smul.addr %s222, 32
      %s226 = sadd.s32 %s224, %s225
      %s227 = smul.addr %s226, 4
      %s228 = scalar_lea.vmem %s0, %s227
      %s229 = smul.u32 32, %s19
      %p230 = scmp.lt.s32.totalorder %s18, 1
      %s231 = scalar_select %p230, %s18, 1
      %s232 = smul.addr %s231, 3
      %s233 = smul.addr %s232, 8
      %s234 = scalar_lea.vmem %s1, %s233
      %p235 = scmp.lt.s32.totalorder %s18, 1
      %s236 = scalar_select %p235, %s18, 1
      %s237 = smul.addr %s236, 3
      %s238 = smul.addr %s237, 8
      %s239 = scalar_lea.vmem %s2, %s238
      %s240 = smul.u32 32, %s19
      %p241 = scmp.lt.s32.totalorder %s18, 1
      %s242 = scalar_select %p241, %s18, 1
      %p243 = scmp.lt.s32.totalorder %s240, 31
      %s244 = scalar_select %p243, %s240, 31
      %s245 = smul.addr %s242, 96
      %s246 = sadd.s32 %s244, %s245
      %s247 = smul.addr %s246, 8
      %s248 = scalar_lea.vmem %s3, %s247
      %s249 = smul.u32 32, %s19
      %v250 = vld [vmem:[%s228] sm:$0x77]
      %v251 = vld [vmem:[%s228 + $0x8] sm:$0x77]
      %v252 = vld [vmem:[%s228 + $0x10] sm:$0x77]
      %v253 = vld [vmem:[%s228 + $0x18] sm:$0x77]
      %v254 = vld [vmem:[%s228 + $0x20] sm:$0x77]
      %v255 = vld [vmem:[%s228 + $0x28] sm:$0x77]
      %v256 = vld [vmem:[%s228 + $0x30] sm:$0x77]
      %v257 = vld [vmem:[%s228 + $0x38] sm:$0x77]
      %v258 = vld [vmem:[%s228 + $0x40] sm:$0x77]
      %v259 = vld [vmem:[%s228 + $0x48] sm:$0x77]
      %v260 = vld [vmem:[%s228 + $0x50] sm:$0x77]
      %v261 = vld [vmem:[%s228 + $0x58] sm:$0x77]
      %v262 = vld [vmem:[%s228 + $0x60] sm:$0x77]
      %v263 = vld [vmem:[%s228 + $0x68] sm:$0x77]
      %v264 = vld [vmem:[%s228 + $0x70] sm:$0x77]
      %v265 = vld [vmem:[%s228 + $0x78] sm:$0x77]
      %v266 = vmul.f32 %v250, %v250
      %v267 = vmul.f32 %v251, %v251
      %v268 = vmul.f32 %v252, %v252
      %v269 = vmul.f32 %v253, %v253
      %v270 = vmul.f32 %v254, %v254
      %v271 = vmul.f32 %v255, %v255
      %v272 = vmul.f32 %v256, %v256
      %v273 = vmul.f32 %v257, %v257
      %v274 = vmul.f32 %v258, %v258
      %v275 = vmul.f32 %v259, %v259
      %v276 = vmul.f32 %v260, %v260
      %v277 = vmul.f32 %v261, %v261
      %v278 = vmul.f32 %v262, %v262
      %v279 = vmul.f32 %v263, %v263
      %v280 = vmul.f32 %v264, %v264
      %v281 = vmul.f32 %v265, %v265
      %298 = vst [vmem:[#allocation1] ss:$2 sm:$0xff] %v266
      %s299 = scalar_lea.vmem [#allocation1], 16
      %300 = vst [vmem:[%s299] ss:$2 sm:$0xff] %v267
      %s301 = scalar_lea.vmem [#allocation1], 32
      %302 = vst [vmem:[%s301] ss:$2 sm:$0xff] %v268
      %s303 = scalar_lea.vmem [#allocation1], 48
      %304 = vst [vmem:[%s303] ss:$2 sm:$0xff] %v269
      %v305 = vld.sshfl [vmem:[#allocation1] sm:$0xff pattern:$0x75316420]
      %v306 = vld.sshfl [vmem:[#allocation1 + $0x8] sm:$0xff pattern:$0x75316420]
      %v307 = vld.sshfl [vmem:[#allocation1 + $0x10] sm:$0xff pattern:$0x75316420]
      %v308 = vld.sshfl [vmem:[#allocation1 + $0x18] sm:$0xff pattern:$0x75316420]
      %v309 = vld.sshfl [vmem:[#allocation1 + $0x20] sm:$0xff pattern:$0x75316420]
      %v310 = vld.sshfl [vmem:[#allocation1 + $0x28] sm:$0xff pattern:$0x75316420]
      %v311 = vld.sshfl [vmem:[#allocation1 + $0x30] sm:$0xff pattern:$0x75316420]
      %v312 = vld.sshfl [vmem:[#allocation1 + $0x38] sm:$0xff pattern:$0x75316420]
      %313 = vst [vmem:[#allocation1] ss:$2 sm:$0xff] %v270
      %314 = vst [vmem:[%s299] ss:$2 sm:$0xff] %v271
      %315 = vst [vmem:[%s301] ss:$2 sm:$0xff] %v272
      %316 = vst [vmem:[%s303] ss:$2 sm:$0xff] %v273
      %v317 = vld.sshfl [vmem:[#allocation1] sm:$0xff pattern:$0x75316420]
      %v318 = vld.sshfl [vmem:[#allocation1 + $0x8] sm:$0xff pattern:$0x75316420]
      %v319 = vld.sshfl [vmem:[#allocation1 + $0x10] sm:$0xff pattern:$0x75316420]
      %v320 = vld.sshfl [vmem:[#allocation1 + $0x18] sm:$0xff pattern:$0x75316420]
      %v321 = vld.sshfl [vmem:[#allocation1 + $0x20] sm:$0xff pattern:$0x75316420]
      %v322 = vld.sshfl [vmem:[#allocation1 + $0x28] sm:$0xff pattern:$0x75316420]
      %v323 = vld.sshfl [vmem:[#allocation1 + $0x30] sm:$0xff pattern:$0x75316420]
      %v324 = vld.sshfl [vmem:[#allocation1 + $0x38] sm:$0xff pattern:$0x75316420]
      %325 = vst [vmem:[#allocation1] ss:$2 sm:$0xff] %v274
      %326 = vst [vmem:[%s299] ss:$2 sm:$0xff] %v275
      %327 = vst [vmem:[%s301] ss:$2 sm:$0xff] %v276
      %328 = vst [vmem:[%s303] ss:$2 sm:$0xff] %v277
      %v329 = vld.sshfl [vmem:[#allocation1] sm:$0xff pattern:$0x75316420]
      %v330 = vld.sshfl [vmem:[#allocation1 + $0x8] sm:$0xff pattern:$0x75316420]
      %v331 = vld.sshfl [vmem:[#allocation1 + $0x10] sm:$0xff pattern:$0x75316420]
      %v332 = vld.sshfl [vmem:[#allocation1 + $0x18] sm:$0xff pattern:$0x75316420]
      %v333 = vld.sshfl [vmem:[#allocation1 + $0x20] sm:$0xff pattern:$0x75316420]
      %v334 = vld.sshfl [vmem:[#allocation1 + $0x28] sm:$0xff pattern:$0x75316420]
      %v335 = vld.sshfl [vmem:[#allocation1 + $0x30] sm:$0xff pattern:$0x75316420]
      %v336 = vld.sshfl [vmem:[#allocation1 + $0x38] sm:$0xff pattern:$0x75316420]
      %337 = vst [vmem:[#allocation1] ss:$2 sm:$0xff] %v278
      %338 = vst [vmem:[%s299] ss:$2 sm:$0xff] %v279
      %339 = vst [vmem:[%s301] ss:$2 sm:$0xff] %v280
      %340 = vst [vmem:[%s303] ss:$2 sm:$0xff] %v281
      %v341 = vld.sshfl [vmem:[#allocation1] sm:$0xff pattern:$0x75316420]
      %v342 = vld.sshfl [vmem:[#allocation1 + $0x8] sm:$0xff pattern:$0x75316420]
      %v343 = vld.sshfl [vmem:[#allocation1 + $0x10] sm:$0xff pattern:$0x75316420]
      %v344 = vld.sshfl [vmem:[#allocation1 + $0x18] sm:$0xff pattern:$0x75316420]
      %v345 = vld.sshfl [vmem:[#allocation1 + $0x20] sm:$0xff pattern:$0x75316420]
      %v346 = vld.sshfl [vmem:[#allocation1 + $0x28] sm:$0xff pattern:$0x75316420]
      %v347 = vld.sshfl [vmem:[#allocation1 + $0x30] sm:$0xff pattern:$0x75316420]
      %v348 = vld.sshfl [vmem:[#allocation1 + $0x38] sm:$0xff pattern:$0x75316420]
      %vm381 = vcmask 1042432
      %v382 = vsel %vm381, %v305, 0.0
      %v383 = vrot.slane %v382, 4
      %v384 = vadd.f32 %v382, %v383
      %v385 = vrot.slane %v384, 2
      %v386 = vadd.f32 %v384, %v385
      %v387 = vrot.slane %v386, 1
      %v388 = vadd.f32 %v386, %v387
      %v389 = vsel %vm381, %v306, 0.0
      %v390 = vrot.slane %v389, 4
      %v391 = vadd.f32 %v389, %v390
      %v392 = vrot.slane %v391, 2
      %v393 = vadd.f32 %v391, %v392
      %v394 = vrot.slane %v393, 1
      %v395 = vadd.f32 %v393, %v394
      %v396 = vsel %vm381, %v307, 0.0
      %v397 = vrot.slane %v396, 4
      %v398 = vadd.f32 %v396, %v397
      %v399 = vrot.slane %v398, 2
      %v400 = vadd.f32 %v398, %v399
      %v401 = vrot.slane %v400, 1
      %v402 = vadd.f32 %v400, %v401
      %v403 = vsel %vm381, %v308, 0.0
      %v404 = vrot.slane %v403, 4
      %v405 = vadd.f32 %v403, %v404
      %v406 = vrot.slane %v405, 2
      %v407 = vadd.f32 %v405, %v406
      %v408 = vrot.slane %v407, 1
      %v409 = vadd.f32 %v407, %v408
      %v410 = vsel %vm381, %v309, 0.0
      %v411 = vrot.slane %v410, 4
      %v412 = vadd.f32 %v410, %v411
      %v413 = vrot.slane %v412, 2
      %v414 = vadd.f32 %v412, %v413
      %v415 = vrot.slane %v414, 1
      %v416 = vadd.f32 %v414, %v415
      %v417 = vsel %vm381, %v310, 0.0
      %v418 = vrot.slane %v417, 4
      %v419 = vadd.f32 %v417, %v418
      %v420 = vrot.slane %v419, 2
      %v421 = vadd.f32 %v419, %v420
      %v422 = vrot.slane %v421, 1
      %v423 = vadd.f32 %v421, %v422
      %v424 = vsel %vm381, %v311, 0.0
      %v425 = vrot.slane %v424, 4
      %v426 = vadd.f32 %v424, %v425
      %v427 = vrot.slane %v426, 2
      %v428 = vadd.f32 %v426, %v427
      %v429 = vrot.slane %v428, 1
      %v430 = vadd.f32 %v428, %v429
      %v431 = vsel %vm381, %v312, 0.0
      %v432 = vrot.slane %v431, 4
      %v433 = vadd.f32 %v431, %v432
      %v434 = vrot.slane %v433, 2
      %v435 = vadd.f32 %v433, %v434
      %v436 = vrot.slane %v435, 1
      %v437 = vadd.f32 %v435, %v436
      %v438 = vsel %vm381, %v317, 0.0
      %v439 = vrot.slane %v438, 4
      %v440 = vadd.f32 %v438, %v439
      %v441 = vrot.slane %v440, 2
      %v442 = vadd.f32 %v440, %v441
      %v443 = vrot.slane %v442, 1
      %v444 = vadd.f32 %v442, %v443
      %v445 = vsel %vm381, %v318, 0.0
      %v446 = vrot.slane %v445, 4
      %v447 = vadd.f32 %v445, %v446
      %v448 = vrot.slane %v447, 2
      %v449 = vadd.f32 %v447, %v448
      %v450 = vrot.slane %v449, 1
      %v451 = vadd.f32 %v449, %v450
      %v452 = vsel %vm381, %v319, 0.0
      %v453 = vrot.slane %v452, 4
      %v454 = vadd.f32 %v452, %v453
      %v455 = vrot.slane %v454, 2
      %v456 = vadd.f32 %v454, %v455
      %v457 = vrot.slane %v456, 1
      %v458 = vadd.f32 %v456, %v457
      %v459 = vsel %vm381, %v320, 0.0
      %v460 = vrot.slane %v459, 4
      %v461 = vadd.f32 %v459, %v460
      %v462 = vrot.slane %v461, 2
      %v463 = vadd.f32 %v461, %v462
      %v464 = vrot.slane %v463, 1
      %v465 = vadd.f32 %v463, %v464
      %v466 = vsel %vm381, %v321, 0.0
      %v467 = vrot.slane %v466, 4
      %v468 = vadd.f32 %v466, %v467
      %v469 = vrot.slane %v468, 2
      %v470 = vadd.f32 %v468, %v469
      %v471 = vrot.slane %v470, 1
      %v472 = vadd.f32 %v470, %v471
      %v473 = vsel %vm381, %v322, 0.0
      %v474 = vrot.slane %v473, 4
      %v475 = vadd.f32 %v473, %v474
      %v476 = vrot.slane %v475, 2
      %v477 = vadd.f32 %v475, %v476
      %v478 = vrot.slane %v477, 1
      %v479 = vadd.f32 %v477, %v478
      %v480 = vsel %vm381, %v323, 0.0
      %v481 = vrot.slane %v480, 4
      %v482 = vadd.f32 %v480, %v481
      %v483 = vrot.slane %v482, 2
      %v484 = vadd.f32 %v482, %v483
      %v485 = vrot.slane %v484, 1
      %v486 = vadd.f32 %v484, %v485
      %v487 = vsel %vm381, %v324, 0.0
      %v488 = vrot.slane %v487, 4
      %v489 = vadd.f32 %v487, %v488
      %v490 = vrot.slane %v489, 2
      %v491 = vadd.f32 %v489, %v490
      %v492 = vrot.slane %v491, 1
      %v493 = vadd.f32 %v491, %v492
      %v494 = vsel %vm381, %v329, 0.0
      %v495 = vrot.slane %v494, 4
      %v496 = vadd.f32 %v494, %v495
      %v497 = vrot.slane %v496, 2
      %v498 = vadd.f32 %v496, %v497
      %v499 = vrot.slane %v498, 1
      %v500 = vadd.f32 %v498, %v499
      %v501 = vsel %vm381, %v330, 0.0
      %v502 = vrot.slane %v501, 4
      %v503 = vadd.f32 %v501, %v502
      %v504 = vrot.slane %v503, 2
      %v505 = vadd.f32 %v503, %v504
      %v506 = vrot.slane %v505, 1
      %v507 = vadd.f32 %v505, %v506
      %v508 = vsel %vm381, %v331, 0.0
      %v509 = vrot.slane %v508, 4
      %v510 = vadd.f32 %v508, %v509
      %v511 = vrot.slane %v510, 2
      %v512 = vadd.f32 %v510, %v511
      %v513 = vrot.slane %v512, 1
      %v514 = vadd.f32 %v512, %v513
      %v515 = vsel %vm381, %v332, 0.0
      %v516 = vrot.slane %v515, 4
      %v517 = vadd.f32 %v515, %v516
      %v518 = vrot.slane %v517, 2
      %v519 = vadd.f32 %v517, %v518
      %v520 = vrot.slane %v519, 1
      %v521 = vadd.f32 %v519, %v520
      %v522 = vsel %vm381, %v333, 0.0
      %v523 = vrot.slane %v522, 4
      %v524 = vadd.f32 %v522, %v523
      %v525 = vrot.slane %v524, 2
      %v526 = vadd.f32 %v524, %v525
      %v527 = vrot.slane %v526, 1
      %v528 = vadd.f32 %v526, %v527
      %v529 = vsel %vm381, %v334, 0.0
      %v530 = vrot.slane %v529, 4
      %v531 = vadd.f32 %v529, %v530
      %v532 = vrot.slane %v531, 2
      %v533 = vadd.f32 %v531, %v532
      %v534 = vrot.slane %v533, 1
      %v535 = vadd.f32 %v533, %v534
      %v536 = vsel %vm381, %v335, 0.0
      %v537 = vrot.slane %v536, 4
      %v538 = vadd.f32 %v536, %v537
      %v539 = vrot.slane %v538, 2
      %v540 = vadd.f32 %v538, %v539
      %v541 = vrot.slane %v540, 1
      %v542 = vadd.f32 %v540, %v541
      %v543 = vsel %vm381, %v336, 0.0
      %v544 = vrot.slane %v543, 4
      %v545 = vadd.f32 %v543, %v544
      %v546 = vrot.slane %v545, 2
      %v547 = vadd.f32 %v545, %v546
      %v548 = vrot.slane %v547, 1
      %v549 = vadd.f32 %v547, %v548
      %v550 = vsel %vm381, %v341, 0.0
      %v551 = vrot.slane %v550, 4
      %v552 = vadd.f32 %v550, %v551
      %v553 = vrot.slane %v552, 2
      %v554 = vadd.f32 %v552, %v553
      %v555 = vrot.slane %v554, 1
      %v556 = vadd.f32 %v554, %v555
      %v557 = vsel %vm381, %v342, 0.0
      %v558 = vrot.slane %v557, 4
      %v559 = vadd.f32 %v557, %v558
      %v560 = vrot.slane %v559, 2
      %v561 = vadd.f32 %v559, %v560
      %v562 = vrot.slane %v561, 1
      %v563 = vadd.f32 %v561, %v562
      %v564 = vsel %vm381, %v343, 0.0
      %v565 = vrot.slane %v564, 4
      %v566 = vadd.f32 %v564, %v565
      %v567 = vrot.slane %v566, 2
      %v568 = vadd.f32 %v566, %v567
      %v569 = vrot.slane %v568, 1
      %v570 = vadd.f32 %v568, %v569
      %v571 = vsel %vm381, %v344, 0.0
      %v572 = vrot.slane %v571, 4
      %v573 = vadd.f32 %v571, %v572
      %v574 = vrot.slane %v573, 2
      %v575 = vadd.f32 %v573, %v574
      %v576 = vrot.slane %v575, 1
      %v577 = vadd.f32 %v575, %v576
      %v578 = vsel %vm381, %v345, 0.0
      %v579 = vrot.slane %v578, 4
      %v580 = vadd.f32 %v578, %v579
      %v581 = vrot.slane %v580, 2
      %v582 = vadd.f32 %v580, %v581
      %v583 = vrot.slane %v582, 1
      %v584 = vadd.f32 %v582, %v583
      %v585 = vsel %vm381, %v346, 0.0
      %v586 = vrot.slane %v585, 4
      %v587 = vadd.f32 %v585, %v586
      %v588 = vrot.slane %v587, 2
      %v589 = vadd.f32 %v587, %v588
      %v590 = vrot.slane %v589, 1
      %v591 = vadd.f32 %v589, %v590
      %v592 = vsel %vm381, %v347, 0.0
      %v593 = vrot.slane %v592, 4
      %v594 = vadd.f32 %v592, %v593
      %v595 = vrot.slane %v594, 2
      %v596 = vadd.f32 %v594, %v595
      %v597 = vrot.slane %v596, 1
      %v598 = vadd.f32 %v596, %v597
      %v599 = vsel %vm381, %v348, 0.0
      %v600 = vrot.slane %v599, 4
      %v601 = vadd.f32 %v599, %v600
      %v602 = vrot.slane %v601, 2
      %v603 = vadd.f32 %v601, %v602
      %v604 = vrot.slane %v603, 1
      %v605 = vadd.f32 %v603, %v604
      %v606 = vld [vmem:[%s234] sm:$0xff]
      %v607 = vld [vmem:[%s234 + $0x8] sm:$0xff]
      %v608 = vld [vmem:[%s234 + $0x10] sm:$0x1f]
      %v609 = vld [vmem:[%s239] sm:$0xff]
      %v610 = vld [vmem:[%s239 + $0x8] sm:$0xff]
      %v611 = vld [vmem:[%s239 + $0x10] sm:$0x1f]
      %613 = vset.pattern.permute.xlu0 0
      %614 = vperm.xlu0 %613, %v609
      %v615 = vpop.permute.xlu0 %614
      %618 = vset.pattern.permute.xlu0 0
      %619 = vperm.xlu0 %618, %v610
      %v620 = vpop.permute.xlu0 %619
      %623 = vset.pattern.permute.xlu0 0
      %624 = vperm.xlu0 %623, %v611
      %v625 = vpop.permute.xlu0 %624
      %643 = vst [vmem:[#allocation1] ss:$2 sm:$0xff] %v250
      %s644 = scalar_lea.vmem [#allocation1], 16
      %645 = vst [vmem:[%s644] ss:$2 sm:$0xff] %v251
      %s646 = scalar_lea.vmem [#allocation1], 32
      %647 = vst [vmem:[%s646] ss:$2 sm:$0xff] %v252
      %s648 = scalar_lea.vmem [#allocation1], 48
      %649 = vst [vmem:[%s648] ss:$2 sm:$0xff] %v253
      %v650 = vld.sshfl [vmem:[#allocation1] sm:$0xff pattern:$0x75316420]
      %v651 = vld.sshfl [vmem:[#allocation1 + $0x8] sm:$0xff pattern:$0x75316420]
      %v652 = vld.sshfl [vmem:[#allocation1 + $0x10] sm:$0xff pattern:$0x75316420]
      %v653 = vld.sshfl [vmem:[#allocation1 + $0x18] sm:$0xff pattern:$0x75316420]
      %v654 = vld.sshfl [vmem:[#allocation1 + $0x20] sm:$0xff pattern:$0x75316420]
      %v655 = vld.sshfl [vmem:[#allocation1 + $0x28] sm:$0xff pattern:$0x75316420]
      %v656 = vld.sshfl [vmem:[#allocation1 + $0x30] sm:$0xff pattern:$0x75316420]
      %v657 = vld.sshfl [vmem:[#allocation1 + $0x38] sm:$0xff pattern:$0x75316420]
      %658 = vst [vmem:[#allocation1] ss:$2 sm:$0xff] %v254
      %659 = vst [vmem:[%s644] ss:$2 sm:$0xff] %v255
      %660 = vst [vmem:[%s646] ss:$2 sm:$0xff] %v256
      %661 = vst [vmem:[%s648] ss:$2 sm:$0xff] %v257
      %v662 = vld.sshfl [vmem:[#allocation1] sm:$0xff pattern:$0x75316420]
      %v663 = vld.sshfl [vmem:[#allocation1 + $0x8] sm:$0xff pattern:$0x75316420]
      %v664 = vld.sshfl [vmem:[#allocation1 + $0x10] sm:$0xff pattern:$0x75316420]
      %v665 = vld.sshfl [vmem:[#allocation1 + $0x18] sm:$0xff pattern:$0x75316420]
      %v666 = vld.sshfl [vmem:[#allocation1 + $0x20] sm:$0xff pattern:$0x75316420]
      %v667 = vld.sshfl [vmem:[#allocation1 + $0x28] sm:$0xff pattern:$0x75316420]
      %v668 = vld.sshfl [vmem:[#allocation1 + $0x30] sm:$0xff pattern:$0x75316420]
      %v669 = vld.sshfl [vmem:[#allocation1 + $0x38] sm:$0xff pattern:$0x75316420]
      %670 = vst [vmem:[#allocation1] ss:$2 sm:$0xff] %v258
      %671 = vst [vmem:[%s644] ss:$2 sm:$0xff] %v259
      %672 = vst [vmem:[%s646] ss:$2 sm:$0xff] %v260
      %673 = vst [vmem:[%s648] ss:$2 sm:$0xff] %v261
      %v674 = vld.sshfl [vmem:[#allocation1] sm:$0xff pattern:$0x75316420]
      %v675 = vld.sshfl [vmem:[#allocation1 + $0x8] sm:$0xff pattern:$0x75316420]
      %v676 = vld.sshfl [vmem:[#allocation1 + $0x10] sm:$0xff pattern:$0x75316420]
      %v677 = vld.sshfl [vmem:[#allocation1 + $0x18] sm:$0xff pattern:$0x75316420]
      %v678 = vld.sshfl [vmem:[#allocation1 + $0x20] sm:$0xff pattern:$0x75316420]
      %v679 = vld.sshfl [vmem:[#allocation1 + $0x28] sm:$0xff pattern:$0x75316420]
      %v680 = vld.sshfl [vmem:[#allocation1 + $0x30] sm:$0xff pattern:$0x75316420]
      %v681 = vld.sshfl [vmem:[#allocation1 + $0x38] sm:$0xff pattern:$0x75316420]
      %682 = vst [vmem:[#allocation1] ss:$2 sm:$0xff] %v262
      %683 = vst [vmem:[%s644] ss:$2 sm:$0xff] %v263
      %684 = vst [vmem:[%s646] ss:$2 sm:$0xff] %v264
      %685 = vst [vmem:[%s648] ss:$2 sm:$0xff] %v265
      %v686 = vld.sshfl [vmem:[#allocation1] sm:$0xff pattern:$0x75316420]
      %v687 = vld.sshfl [vmem:[#allocation1 + $0x8] sm:$0xff pattern:$0x75316420]
      %v688 = vld.sshfl [vmem:[#allocation1 + $0x10] sm:$0xff pattern:$0x75316420]
      %v689 = vld.sshfl [vmem:[#allocation1 + $0x18] sm:$0xff pattern:$0x75316420]
      %v690 = vld.sshfl [vmem:[#allocation1 + $0x20] sm:$0xff pattern:$0x75316420]
      %v691 = vld.sshfl [vmem:[#allocation1 + $0x28] sm:$0xff pattern:$0x75316420]
      %v692 = vld.sshfl [vmem:[#allocation1 + $0x30] sm:$0xff pattern:$0x75316420]
      %v693 = vld.sshfl [vmem:[#allocation1 + $0x38] sm:$0xff pattern:$0x75316420]
      %vm694 = vcmask 23552
      %v696 = vsel %vm694, %v606, 0
      %v699 = vsel %vm694, %v607, 0
      %v702 = vsel %vm694, %v608, 0
      %v704 = vsel %vm381, %v650, 0
      %v706 = vsel %vm381, %v651, 0
      %v708 = vsel %vm381, %v652, 0
      %v710 = vsel %vm381, %v653, 0
      %v712 = vsel %vm381, %v654, 0
      %v714 = vsel %vm381, %v655, 0
      %v716 = vsel %vm381, %v656, 0
      %v718 = vsel %vm381, %v657, 0
      %v720 = vsel %vm381, %v662, 0
      %v722 = vsel %vm381, %v663, 0
      %v724 = vsel %vm381, %v664, 0
      %v726 = vsel %vm381, %v665, 0
      %v728 = vsel %vm381, %v666, 0
      %v730 = vsel %vm381, %v667, 0
      %v732 = vsel %vm381, %v668, 0
      %v734 = vsel %vm381, %v669, 0
      %v736 = vsel %vm381, %v674, 0
      %v738 = vsel %vm381, %v675, 0
      %v740 = vsel %vm381, %v676, 0
      %v742 = vsel %vm381, %v677, 0
      %v744 = vsel %vm381, %v678, 0
      %v746 = vsel %vm381, %v679, 0
      %v748 = vsel %vm381, %v680, 0
      %v750 = vsel %vm381, %v681, 0
      %v752 = vsel %vm381, %v686, 0
      %v754 = vsel %vm381, %v687, 0
      %v756 = vsel %vm381, %v688, 0
      %v758 = vsel %vm381, %v689, 0
      %v760 = vsel %vm381, %v690, 0
      %v762 = vsel %vm381, %v691, 0
      %v764 = vsel %vm381, %v692, 0
      %v766 = vsel %vm381, %v693, 0
      %768 = vmatpush.msra.mxu0 0.0
      %769 = vmatpush.msra.mxu0 0.0
      %770 = vmatpush.msra.mxu0 0.0
      %771 = vmatpush.msra.mxu0 0.0
      %772 = vmatpush.msra.mxu0 0.0
      %773 = vmatpush.msra.mxu0 0.0
      %774 = vmatpush.msra.mxu0 0.0
      %775 = vmatpush.msra.mxu0 0.0
      %776 = vmatpush.msra.mxu0 0.0
      %777 = vmatpush.msra.mxu0 0.0
      %778 = vmatpush.msra.mxu0 0.0
      %779 = vmatpush.msra.mxu0 0.0
      %780 = vmatpush.msra.mxu0 0.0
      %781 = vmatpush.msra.mxu0 0.0
      %782 = vmatpush.msra.mxu0 0.0
      %v783 = vand.u32 %v704, 4294901760
      %784 = vmatpush.msra.mxu0 %v783
      %v785 = vand.u32 %v696, 4294901760
      %v786 = vsub.f32 %v696, %v785
      %v787 = vand.u32 %v786, 4294901760
      %v788 = vsub.f32 %v786, %v787
      %v789 = vand.u32 %v788, 4294901760
      %790 = vmatmul.f32.gmra.mxu0 %v789
      %v791 = vpop.f32.mrf.mxu0
      %v792 = vadd.f32 %v615, %v791
      %v793 = vand.u32 %v699, 4294901760
      %v794 = vsub.f32 %v699, %v793
      %v795 = vand.u32 %v794, 4294901760
      %v796 = vsub.f32 %v794, %v795
      %v797 = vand.u32 %v796, 4294901760
      %798 = vmatmul.f32.gmra.mxu0 %v797
      %v799 = vpop.f32.mrf.mxu0
      %v800 = vadd.f32 %v620, %v799
      %v801 = vand.u32 %v702, 4294901760
      %v802 = vsub.f32 %v702, %v801
      %v803 = vand.u32 %v802, 4294901760
      %v804 = vsub.f32 %v802, %v803
      %v805 = vand.u32 %v804, 4294901760
      %806 = vmatmul.f32.gmra.mxu0 %v805
      %v807 = vpop.f32.mrf.mxu0
      %v808 = vadd.f32 %v625, %v807
      %809 = vdwg.mxu0
      %810 = vmatpush.msra.mxu0 0.0
      %811 = vmatpush.msra.mxu0 0.0
      %812 = vmatpush.msra.mxu0 0.0
      %813 = vmatpush.msra.mxu0 0.0
      %814 = vmatpush.msra.mxu0 0.0
      %815 = vmatpush.msra.mxu0 0.0
      %816 = vmatpush.msra.mxu0 0.0
      %817 = vmatpush.msra.mxu0 0.0
      %818 = vmatpush.msra.mxu0 0.0
      %819 = vmatpush.msra.mxu0 0.0
      %820 = vmatpush.msra.mxu0 0.0
      %821 = vmatpush.msra.mxu0 0.0
      %822 = vmatpush.msra.mxu0 0.0
      %823 = vmatpush.msra.mxu0 0.0
      %824 = vmatpush.msra.mxu0 0.0
      %v825 = vand.u32 %v704, 4294901760
      %v826 = vsub.f32 %v704, %v825
      %v827 = vand.u32 %v826, 4294901760
      %v828 = vsub.f32 %v826, %v827
      %v829 = vand.u32 %v828, 4294901760
      %830 = vmatpush.msra.mxu0 %v829
      %v831 = vand.u32 %v696, 4294901760
      %832 = vmatmul.f32.gmra.mxu0 %v831
      %v833 = vpop.f32.mrf.mxu0
      %v834 = vadd.f32 %v792, %v833
      %v835 = vand.u32 %v699, 4294901760
      %836 = vmatmul.f32.gmra.mxu0 %v835
      %v837 = vpop.f32.mrf.mxu0
      %v838 = vadd.f32 %v800, %v837
      %v839 = vand.u32 %v702, 4294901760
      %840 = vmatmul.f32.gmra.mxu0 %v839
      %v841 = vpop.f32.mrf.mxu0
      %v842 = vadd.f32 %v808, %v841
      %843 = vdwg.mxu0
      %844 = vmatpush.msra.mxu0 0.0
      %845 = vmatpush.msra.mxu0 0.0
      %846 = vmatpush.msra.mxu0 0.0
      %847 = vmatpush.msra.mxu0 0.0
      %848 = vmatpush.msra.mxu0 0.0
      %849 = vmatpush.msra.mxu0 0.0
      %850 = vmatpush.msra.mxu0 0.0
      %851 = vmatpush.msra.mxu0 0.0
      %852 = vmatpush.msra.mxu0 0.0
      %853 = vmatpush.msra.mxu0 0.0
      %854 = vmatpush.msra.mxu0 0.0
      %855 = vmatpush.msra.mxu0 0.0
      %856 = vmatpush.msra.mxu0 0.0
      %857 = vmatpush.msra.mxu0 0.0
      %858 = vmatpush.msra.mxu0 0.0
      %v859 = vand.u32 %v704, 4294901760
      %v860 = vsub.f32 %v704, %v859
      %861 = vmatpush.msra.mxu0 %v860
      %v862 = vand.u32 %v696, 4294901760
      %v863 = vsub.f32 %v696, %v862
      %864 = vmatmul.f32.gmra.mxu0 %v863
      %v865 = vpop.f32.mrf.mxu0
      %v866 = vadd.f32 %v834, %v865
      %v867 = vand.u32 %v699, 4294901760
      %v868 = vsub.f32 %v699, %v867
      %869 = vmatmul.f32.gmra.mxu0 %v868
      %v870 = vpop.f32.mrf.mxu0
      %v871 = vadd.f32 %v838, %v870
      %v872 = vand.u32 %v702, 4294901760
      %v873 = vsub.f32 %v702, %v872
      %874 = vmatmul.f32.gmra.mxu0 %v873
      %v875 = vpop.f32.mrf.mxu0
      %v876 = vadd.f32 %v842, %v875
      %877 = vdwg.mxu0
      %878 = vmatpush.msra.mxu0 0.0
      %879 = vmatpush.msra.mxu0 0.0
      %880 = vmatpush.msra.mxu0 0.0
      %881 = vmatpush.msra.mxu0 0.0
      %882 = vmatpush.msra.mxu0 0.0
      %883 = vmatpush.msra.mxu0 0.0
      %884 = vmatpush.msra.mxu0 0.0
      %885 = vmatpush.msra.mxu0 0.0
      %886 = vmatpush.msra.mxu0 0.0
      %887 = vmatpush.msra.mxu0 0.0
      %888 = vmatpush.msra.mxu0 0.0
      %889 = vmatpush.msra.mxu0 0.0
      %890 = vmatpush.msra.mxu0 0.0
      %891 = vmatpush.msra.mxu0 0.0
      %892 = vmatpush.msra.mxu0 0.0
      %v893 = vand.u32 %v704, 4294901760
      %894 = vmatpush.msra.mxu0 %v893
      %v895 = vand.u32 %v696, 4294901760
      %v896 = vsub.f32 %v696, %v895
      %v897 = vand.u32 %v896, 4294901760
      %898 = vmatmul.f32.gmra.mxu0 %v897
      %v899 = vpop.f32.mrf.mxu0
      %v900 = vadd.f32 %v866, %v899
      %v901 = vand.u32 %v699, 4294901760
      %v902 = vsub.f32 %v699, %v901
      %v903 = vand.u32 %v902, 4294901760
      %904 = vmatmul.f32.gmra.mxu0 %v903
      %v905 = vpop.f32.mrf.mxu0
      %v906 = vadd.f32 %v871, %v905
      %v907 = vand.u32 %v702, 4294901760
      %v908 = vsub.f32 %v702, %v907
      %v909 = vand.u32 %v908, 4294901760
      %910 = vmatmul.f32.gmra.mxu0 %v909
      %v911 = vpop.f32.mrf.mxu0
      %v912 = vadd.f32 %v876, %v911
      %913 = vdwg.mxu0
      %914 = vmatpush.msra.mxu0 0.0
      %915 = vmatpush.msra.mxu0 0.0
      %916 = vmatpush.msra.mxu0 0.0
      %917 = vmatpush.msra.mxu0 0.0
      %918 = vmatpush.msra.mxu0 0.0
      %919 = vmatpush.msra.mxu0 0.0
      %920 = vmatpush.msra.mxu0 0.0
      %921 = vmatpush.msra.mxu0 0.0
      %922 = vmatpush.msra.mxu0 0.0
      %923 = vmatpush.msra.mxu0 0.0
      %924 = vmatpush.msra.mxu0 0.0
      %925 = vmatpush.msra.mxu0 0.0
      %926 = vmatpush.msra.mxu0 0.0
      %927 = vmatpush.msra.mxu0 0.0
      %928 = vmatpush.msra.mxu0 0.0
      %v929 = vand.u32 %v704, 4294901760
      %v930 = vsub.f32 %v704, %v929
      %v931 = vand.u32 %v930, 4294901760
      %932 = vmatpush.msra.mxu0 %v931
      %v933 = vand.u32 %v696, 4294901760
      %934 = vmatmul.f32.gmra.mxu0 %v933
      %v935 = vpop.f32.mrf.mxu0
      %v936 = vadd.f32 %v900, %v935
      %v937 = vand.u32 %v699, 4294901760
      %938 = vmatmul.f32.gmra.mxu0 %v937
      %v939 = vpop.f32.mrf.mxu0
      %v940 = vadd.f32 %v906, %v939
      %v941 = vand.u32 %v702, 4294901760
      %942 = vmatmul.f32.gmra.mxu0 %v941
      %v943 = vpop.f32.mrf.mxu0
      %v944 = vadd.f32 %v912, %v943
      %945 = vdwg.mxu0
      %946 = vmatpush.msra.mxu0 0.0
      %947 = vmatpush.msra.mxu0 0.0
      %948 = vmatpush.msra.mxu0 0.0
      %949 = vmatpush.msra.mxu0 0.0
      %950 = vmatpush.msra.mxu0 0.0
      %951 = vmatpush.msra.mxu0 0.0
      %952 = vmatpush.msra.mxu0 0.0
      %953 = vmatpush.msra.mxu0 0.0
      %954 = vmatpush.msra.mxu0 0.0
      %955 = vmatpush.msra.mxu0 0.0
      %956 = vmatpush.msra.mxu0 0.0
      %957 = vmatpush.msra.mxu0 0.0
      %958 = vmatpush.msra.mxu0 0.0
      %959 = vmatpush.msra.mxu0 0.0
      %960 = vmatpush.msra.mxu0 0.0
      %v961 = vand.u32 %v704, 4294901760
      %962 = vmatpush.msra.mxu0 %v961
      %v963 = vand.u32 %v696, 4294901760
      %964 = vmatmul.f32.gmra.mxu0 %v963
      %v965 = vpop.f32.mrf.mxu0
      %v966 = vadd.f32 %v936, %v965
      %v967 = vand.u32 %v699, 4294901760
      %968 = vmatmul.f32.gmra.mxu0 %v967
      %v969 = vpop.f32.mrf.mxu0
      %v970 = vadd.f32 %v940, %v969
      %v971 = vand.u32 %v702, 4294901760
      %972 = vmatmul.f32.gmra.mxu0 %v971
      %v973 = vpop.f32.mrf.mxu0
      %v974 = vadd.f32 %v944, %v973
      %975 = vdwg.mxu0
      %976 = vmatpush.msra.mxu0 0.0
      %977 = vmatpush.msra.mxu0 0.0
      %978 = vmatpush.msra.mxu0 0.0
      %979 = vmatpush.msra.mxu0 0.0
      %980 = vmatpush.msra.mxu0 0.0
      %981 = vmatpush.msra.mxu0 0.0
      %982 = vmatpush.msra.mxu0 0.0
      %983 = vmatpush.msra.mxu0 0.0
      %984 = vmatpush.msra.mxu0 0.0
      %985 = vmatpush.msra.mxu0 0.0
      %986 = vmatpush.msra.mxu0 0.0
      %987 = vmatpush.msra.mxu0 0.0
      %988 = vmatpush.msra.mxu0 0.0
      %989 = vmatpush.msra.mxu0 0.0
      %990 = vmatpush.msra.mxu0 0.0
      %v991 = vand.u32 %v706, 4294901760
      %992 = vmatpush.msra.mxu0 %v991
      %v993 = vand.u32 %v696, 4294901760
      %v994 = vsub.f32 %v696, %v993
      %v995 = vand.u32 %v994, 4294901760
      %v996 = vsub.f32 %v994, %v995
      %v997 = vand.u32 %v996, 4294901760
      %998 = vmatmul.f32.gmra.mxu0 %v997
      %v999 = vpop.f32.mrf.mxu0
      %v1000 = vadd.f32 %v615, %v999
      %v1001 = vand.u32 %v699, 4294901760
      %v1002 = vsub.f32 %v699, %v1001
      %v1003 = vand.u32 %v1002, 4294901760
      %v1004 = vsub.f32 %v1002, %v1003
      %v1005 = vand.u32 %v1004, 4294901760
      %1006 = vmatmul.f32.gmra.mxu0 %v1005
      %v1007 = vpop.f32.mrf.mxu0
      %v1008 = vadd.f32 %v620, %v1007
      %v1009 = vand.u32 %v702, 4294901760
      %v1010 = vsub.f32 %v702, %v1009
      %v1011 = vand.u32 %v1010, 4294901760
      %v1012 = vsub.f32 %v1010, %v1011
      %v1013 = vand.u32 %v1012, 4294901760
      %1014 = vmatmul.f32.gmra.mxu0 %v1013
      %v1015 = vpop.f32.mrf.mxu0
      %v1016 = vadd.f32 %v625, %v1015
      %1017 = vdwg.mxu0
      %1018 = vmatpush.msra.mxu0 0.0
      %1019 = vmatpush.msra.mxu0 0.0
      %1020 = vmatpush.msra.mxu0 0.0
      %1021 = vmatpush.msra.mxu0 0.0
      %1022 = vmatpush.msra.mxu0 0.0
      %1023 = vmatpush.msra.mxu0 0.0
      %1024 = vmatpush.msra.mxu0 0.0
      %1025 = vmatpush.msra.mxu0 0.0
      %1026 = vmatpush.msra.mxu0 0.0
      %1027 = vmatpush.msra.mxu0 0.0
      %1028 = vmatpush.msra.mxu0 0.0
      %1029 = vmatpush.msra.mxu0 0.0
      %1030 = vmatpush.msra.mxu0 0.0
      %1031 = vmatpush.msra.mxu0 0.0
      %1032 = vmatpush.msra.mxu0 0.0
      %v1033 = vand.u32 %v706, 4294901760
      %v1034 = vsub.f32 %v706, %v1033
      %v1035 = vand.u32 %v1034, 4294901760
      %v1036 = vsub.f32 %v1034, %v1035
      %v1037 = vand.u32 %v1036, 4294901760
      %1038 = vmatpush.msra.mxu0 %v1037
      %v1039 = vand.u32 %v696, 4294901760
      %1040 = vmatmul.f32.gmra.mxu0 %v1039
      %v1041 = vpop.f32.mrf.mxu0
      %v1042 = vadd.f32 %v1000, %v1041
      %v1043 = vand.u32 %v699, 4294901760
      %1044 = vmatmul.f32.gmra.mxu0 %v1043
      %v1045 = vpop.f32.mrf.mxu0
      %v1046 = vadd.f32 %v1008, %v1045
      %v1047 = vand.u32 %v702, 4294901760
      %1048 = vmatmul.f32.gmra.mxu0 %v1047
      %v1049 = vpop.f32.mrf.mxu0
      %v1050 = vadd.f32 %v1016, %v1049
      %1051 = vdwg.mxu0
      %1052 = vmatpush.msra.mxu0 0.0
      %1053 = vmatpush.msra.mxu0 0.0
      %1054 = vmatpush.msra.mxu0 0.0
      %1055 = vmatpush.msra.mxu0 0.0
      %1056 = vmatpush.msra.mxu0 0.0
      %1057 = vmatpush.msra.mxu0 0.0
      %1058 = vmatpush.msra.mxu0 0.0
      %1059 = vmatpush.msra.mxu0 0.0
      %1060 = vmatpush.msra.mxu0 0.0
      %1061 = vmatpush.msra.mxu0 0.0
      %1062 = vmatpush.msra.mxu0 0.0
      %1063 = vmatpush.msra.mxu0 0.0
      %1064 = vmatpush.msra.mxu0 0.0
      %1065 = vmatpush.msra.mxu0 0.0
      %1066 = vmatpush.msra.mxu0 0.0
      %v1067 = vand.u32 %v706, 4294901760
      %v1068 = vsub.f32 %v706, %v1067
      %1069 = vmatpush.msra.mxu0 %v1068
      %v1070 = vand.u32 %v696, 4294901760
      %v1071 = vsub.f32 %v696, %v1070
      %1072 = vmatmul.f32.gmra.mxu0 %v1071
      %v1073 = vpop.f32.mrf.mxu0
      %v1074 = vadd.f32 %v1042, %v1073
      %v1075 = vand.u32 %v699, 4294901760
      %v1076 = vsub.f32 %v699, %v1075
      %1077 = vmatmul.f32.gmra.mxu0 %v1076
      %v1078 = vpop.f32.mrf.mxu0
      %v1079 = vadd.f32 %v1046, %v1078
      %v1080 = vand.u32 %v702, 4294901760
      %v1081 = vsub.f32 %v702, %v1080
      %1082 = vmatmul.f32.gmra.mxu0 %v1081
      %v1083 = vpop.f32.mrf.mxu0
      %v1084 = vadd.f32 %v1050, %v1083
      %1085 = vdwg.mxu0
      %1086 = vmatpush.msra.mxu0 0.0
      %1087 = vmatpush.msra.mxu0 0.0
      %1088 = vmatpush.msra.mxu0 0.0
      %1089 = vmatpush.msra.mxu0 0.0
      %1090 = vmatpush.msra.mxu0 0.0
      %1091 = vmatpush.msra.mxu0 0.0
      %1092 = vmatpush.msra.mxu0 0.0
      %1093 = vmatpush.msra.mxu0 0.0
      %1094 = vmatpush.msra.mxu0 0.0
      %1095 = vmatpush.msra.mxu0 0.0
      %1096 = vmatpush.msra.mxu0 0.0
      %1097 = vmatpush.msra.mxu0 0.0
      %1098 = vmatpush.msra.mxu0 0.0
      %1099 = vmatpush.msra.mxu0 0.0
      %1100 = vmatpush.msra.mxu0 0.0
      %v1101 = vand.u32 %v706, 4294901760
      %1102 = vmatpush.msra.mxu0 %v1101
      %v1103 = vand.u32 %v696, 4294901760
      %v1104 = vsub.f32 %v696, %v1103
      %v1105 = vand.u32 %v1104, 4294901760
      %1106 = vmatmul.f32.gmra.mxu0 %v1105
      %v1107 = vpop.f32.mrf.mxu0
      %v1108 = vadd.f32 %v1074, %v1107
      %v1109 = vand.u32 %v699, 4294901760
      %v1110 = vsub.f32 %v699, %v1109
      %v1111 = vand.u32 %v1110, 4294901760
      %1112 = vmatmul.f32.gmra.mxu0 %v1111
      %v1113 = vpop.f32.mrf.mxu0
      %v1114 = vadd.f32 %v1079, %v1113
      %v1115 = vand.u32 %v702, 4294901760
      %v1116 = vsub.f32 %v702, %v1115
      %v1117 = vand.u32 %v1116, 4294901760
      %1118 = vmatmul.f32.gmra.mxu0 %v1117
      %v1119 = vpop.f32.mrf.mxu0
      %v1120 = vadd.f32 %v1084, %v1119
      %1121 = vdwg.mxu0
      %1122 = vmatpush.msra.mxu0 0.0
      %1123 = vmatpush.msra.mxu0 0.0
      %1124 = vmatpush.msra.mxu0 0.0
      %1125 = vmatpush.msra.mxu0 0.0
      %1126 = vmatpush.msra.mxu0 0.0
      %1127 = vmatpush.msra.mxu0 0.0
      %1128 = vmatpush.msra.mxu0 0.0
      %1129 = vmatpush.msra.mxu0 0.0
      %1130 = vmatpush.msra.mxu0 0.0
      %1131 = vmatpush.msra.mxu0 0.0
      %1132 = vmatpush.msra.mxu0 0.0
      %1133 = vmatpush.msra.mxu0 0.0
      %1134 = vmatpush.msra.mxu0 0.0
      %1135 = vmatpush.msra.mxu0 0.0
      %1136 = vmatpush.msra.mxu0 0.0
      %v1137 = vand.u32 %v706, 4294901760
      %v1138 = vsub.f32 %v706, %v1137
      %v1139 = vand.u32 %v1138, 4294901760
      %1140 = vmatpush.msra.mxu0 %v1139
      %v1141 = vand.u32 %v696, 4294901760
      %1142 = vmatmul.f32.gmra.mxu0 %v1141
      %v1143 = vpop.f32.mrf.mxu0
      %v1144 = vadd.f32 %v1108, %v1143
      %v1145 = vand.u32 %v699, 4294901760
      %1146 = vmatmul.f32.gmra.mxu0 %v1145
      %v1147 = vpop.f32.mrf.mxu0
      %v1148 = vadd.f32 %v1114, %v1147
      %v1149 = vand.u32 %v702, 4294901760
      %1150 = vmatmul.f32.gmra.mxu0 %v1149
      %v1151 = vpop.f32.mrf.mxu0
      %v1152 = vadd.f32 %v1120, %v1151
      %1153 = vdwg.mxu0
      %1154 = vmatpush.msra.mxu0 0.0
      %1155 = vmatpush.msra.mxu0 0.0
      %1156 = vmatpush.msra.mxu0 0.0
      %1157 = vmatpush.msra.mxu0 0.0
      %1158 = vmatpush.msra.mxu0 0.0
      %1159 = vmatpush.msra.mxu0 0.0
      %1160 = vmatpush.msra.mxu0 0.0
      %1161 = vmatpush.msra.mxu0 0.0
      %1162 = vmatpush.msra.mxu0 0.0
      %1163 = vmatpush.msra.mxu0 0.0
      %1164 = vmatpush.msra.mxu0 0.0
      %1165 = vmatpush.msra.mxu0 0.0
      %1166 = vmatpush.msra.mxu0 0.0
      %1167 = vmatpush.msra.mxu0 0.0
      %1168 = vmatpush.msra.mxu0 0.0
      %v1169 = vand.u32 %v706, 4294901760
      %1170 = vmatpush.msra.mxu0 %v1169
      %v1171 = vand.u32 %v696, 4294901760
      %1172 = vmatmul.f32.gmra.mxu0 %v1171
      %v1173 = vpop.f32.mrf.mxu0
      %v1174 = vadd.f32 %v1144, %v1173
      %v1175 = vand.u32 %v699, 4294901760
      %1176 = vmatmul.f32.gmra.mxu0 %v1175
      %v1177 = vpop.f32.mrf.mxu0
      %v1178 = vadd.f32 %v1148, %v1177
      %v1179 = vand.u32 %v702, 4294901760
      %1180 = vmatmul.f32.gmra.mxu0 %v1179
      %v1181 = vpop.f32.mrf.mxu0
      %v1182 = vadd.f32 %v1152, %v1181
      %1183 = vdwg.mxu0
      %1184 = vmatpush.msra.mxu0 0.0
      %1185 = vmatpush.msra.mxu0 0.0
      %1186 = vmatpush.msra.mxu0 0.0
      %1187 = vmatpush.msra.mxu0 0.0
      %1188 = vmatpush.msra.mxu0 0.0
      %1189 = vmatpush.msra.mxu0 0.0
      %1190 = vmatpush.msra.mxu0 0.0
      %1191 = vmatpush.msra.mxu0 0.0
      %1192 = vmatpush.msra.mxu0 0.0
      %1193 = vmatpush.msra.mxu0 0.0
      %1194 = vmatpush.msra.mxu0 0.0
      %1195 = vmatpush.msra.mxu0 0.0
      %1196 = vmatpush.msra.mxu0 0.0
      %1197 = vmatpush.msra.mxu0 0.0
      %1198 = vmatpush.msra.mxu0 0.0
      %v1199 = vand.u32 %v708, 4294901760
      %1200 = vmatpush.msra.mxu0 %v1199
      %v1201 = vand.u32 %v696, 4294901760
      %v1202 = vsub.f32 %v696, %v1201
      %v1203 = vand.u32 %v1202, 4294901760
      %v1204 = vsub.f32 %v1202, %v1203
      %v1205 = vand.u32 %v1204, 4294901760
      %1206 = vmatmul.f32.gmra.mxu0 %v1205
      %v1207 = vpop.f32.mrf.mxu0
      %v1208 = vadd.f32 %v615, %v1207
      %v1209 = vand.u32 %v699, 4294901760
      %v1210 = vsub.f32 %v699, %v1209
      %v1211 = vand.u32 %v1210, 4294901760
      %v1212 = vsub.f32 %v1210, %v1211
      %v1213 = vand.u32 %v1212, 4294901760
      %1214 = vmatmul.f32.gmra.mxu0 %v1213
      %v1215 = vpop.f32.mrf.mxu0
      %v1216 = vadd.f32 %v620, %v1215
      %v1217 = vand.u32 %v702, 4294901760
      %v1218 = vsub.f32 %v702, %v1217
      %v1219 = vand.u32 %v1218, 4294901760
      %v1220 = vsub.f32 %v1218, %v1219
      %v1221 = vand.u32 %v1220, 4294901760
      %1222 = vmatmul.f32.gmra.mxu0 %v1221
      %v1223 = vpop.f32.mrf.mxu0
      %v1224 = vadd.f32 %v625, %v1223
      %1225 = vdwg.mxu0
      %1226 = vmatpush.msra.mxu0 0.0
      %1227 = vmatpush.msra.mxu0 0.0
      %1228 = vmatpush.msra.mxu0 0.0
      %1229 = vmatpush.msra.mxu0 0.0
      %1230 = vmatpush.msra.mxu0 0.0
      %1231 = vmatpush.msra.mxu0 0.0
      %1232 = vmatpush.msra.mxu0 0.0
      %1233 = vmatpush.msra.mxu0 0.0
      %1234 = vmatpush.msra.mxu0 0.0
      %1235 = vmatpush.msra.mxu0 0.0
      %1236 = vmatpush.msra.mxu0 0.0
      %1237 = vmatpush.msra.mxu0 0.0
      %1238 = vmatpush.msra.mxu0 0.0
      %1239 = vmatpush.msra.mxu0 0.0
      %1240 = vmatpush.msra.mxu0 0.0
      %v1241 = vand.u32 %v708, 4294901760
      %v1242 = vsub.f32 %v708, %v1241
      %v1243 = vand.u32 %v1242, 4294901760
      %v1244 = vsub.f32 %v1242, %v1243
      %v1245 = vand.u32 %v1244, 4294901760
      %1246 = vmatpush.msra.mxu0 %v1245
      %v1247 = vand.u32 %v696, 4294901760
      %1248 = vmatmul.f32.gmra.mxu0 %v1247
      %v1249 = vpop.f32.mrf.mxu0
      %v1250 = vadd.f32 %v1208, %v1249
      %v1251 = vand.u32 %v699, 4294901760
      %1252 = vmatmul.f32.gmra.mxu0 %v1251
      %v1253 = vpop.f32.mrf.mxu0
      %v1254 = vadd.f32 %v1216, %v1253
      %v1255 = vand.u32 %v702, 4294901760
      %1256 = vmatmul.f32.gmra.mxu0 %v1255
      %v1257 = vpop.f32.mrf.mxu0
      %v1258 = vadd.f32 %v1224, %v1257
      %1259 = vdwg.mxu0
      %1260 = vmatpush.msra.mxu0 0.0
      %1261 = vmatpush.msra.mxu0 0.0
      %1262 = vmatpush.msra.mxu0 0.0
      %1263 = vmatpush.msra.mxu0 0.0
      %1264 = vmatpush.msra.mxu0 0.0
      %1265 = vmatpush.msra.mxu0 0.0
      %1266 = vmatpush.msra.mxu0 0.0
      %1267 = vmatpush.msra.mxu0 0.0
      %1268 = vmatpush.msra.mxu0 0.0
      %1269 = vmatpush.msra.mxu0 0.0
      %1270 = vmatpush.msra.mxu0 0.0
      %1271 = vmatpush.msra.mxu0 0.0
      %1272 = vmatpush.msra.mxu0 0.0
      %1273 = vmatpush.msra.mxu0 0.0
      %1274 = vmatpush.msra.mxu0 0.0
      %v1275 = vand.u32 %v708, 4294901760
      %v1276 = vsub.f32 %v708, %v1275
      %1277 = vmatpush.msra.mxu0 %v1276
      %v1278 = vand.u32 %v696, 4294901760
      %v1279 = vsub.f32 %v696, %v1278
      %1280 = vmatmul.f32.gmra.mxu0 %v1279
      %v1281 = vpop.f32.mrf.mxu0
      %v1282 = vadd.f32 %v1250, %v1281
      %v1283 = vand.u32 %v699, 4294901760
      %v1284 = vsub.f32 %v699, %v1283
      %1285 = vmatmul.f32.gmra.mxu0 %v1284
      %v1286 = vpop.f32.mrf.mxu0
      %v1287 = vadd.f32 %v1254, %v1286
      %v1288 = vand.u32 %v702, 4294901760
      %v1289 = vsub.f32 %v702, %v1288
      %1290 = vmatmul.f32.gmra.mxu0 %v1289
      %v1291 = vpop.f32.mrf.mxu0
      %v1292 = vadd.f32 %v1258, %v1291
      %1293 = vdwg.mxu0
      %1294 = vmatpush.msra.mxu0 0.0
      %1295 = vmatpush.msra.mxu0 0.0
      %1296 = vmatpush.msra.mxu0 0.0
      %1297 = vmatpush.msra.mxu0 0.0
      %1298 = vmatpush.msra.mxu0 0.0
      %1299 = vmatpush.msra.mxu0 0.0
      %1300 = vmatpush.msra.mxu0 0.0
      %1301 = vmatpush.msra.mxu0 0.0
      %1302 = vmatpush.msra.mxu0 0.0
      %1303 = vmatpush.msra.mxu0 0.0
      %1304 = vmatpush.msra.mxu0 0.0
      %1305 = vmatpush.msra.mxu0 0.0
      %1306 = vmatpush.msra.mxu0 0.0
      %1307 = vmatpush.msra.mxu0 0.0
      %1308 = vmatpush.msra.mxu0 0.0
      %v1309 = vand.u32 %v708, 4294901760
      %1310 = vmatpush.msra.mxu0 %v1309
      %v1311 = vand.u32 %v696, 4294901760
      %v1312 = vsub.f32 %v696, %v1311
      %v1313 = vand.u32 %v1312, 4294901760
      %1314 = vmatmul.f32.gmra.mxu0 %v1313
      %v1315 = vpop.f32.mrf.mxu0
      %v1316 = vadd.f32 %v1282, %v1315
      %v1317 = vand.u32 %v699, 4294901760
      %v1318 = vsub.f32 %v699, %v1317
      %v1319 = vand.u32 %v1318, 4294901760
      %1320 = vmatmul.f32.gmra.mxu0 %v1319
      %v1321 = vpop.f32.mrf.mxu0
      %v1322 = vadd.f32 %v1287, %v1321
      %v1323 = vand.u32 %v702, 4294901760
      %v1324 = vsub.f32 %v702, %v1323
      %v1325 = vand.u32 %v1324, 4294901760
      %1326 = vmatmul.f32.gmra.mxu0 %v1325
      %v1327 = vpop.f32.mrf.mxu0
      %v1328 = vadd.f32 %v1292, %v1327
      %1329 = vdwg.mxu0
      %1330 = vmatpush.msra.mxu0 0.0
      %1331 = vmatpush.msra.mxu0 0.0
      %1332 = vmatpush.msra.mxu0 0.0
      %1333 = vmatpush.msra.mxu0 0.0
      %1334 = vmatpush.msra.mxu0 0.0
      %1335 = vmatpush.msra.mxu0 0.0
      %1336 = vmatpush.msra.mxu0 0.0
      %1337 = vmatpush.msra.mxu0 0.0
      %1338 = vmatpush.msra.mxu0 0.0
      %1339 = vmatpush.msra.mxu0 0.0
      %1340 = vmatpush.msra.mxu0 0.0
      %1341 = vmatpush.msra.mxu0 0.0
      %1342 = vmatpush.msra.mxu0 0.0
      %1343 = vmatpush.msra.mxu0 0.0
      %1344 = vmatpush.msra.mxu0 0.0
      %v1345 = vand.u32 %v708, 4294901760
      %v1346 = vsub.f32 %v708, %v1345
      %v1347 = vand.u32 %v1346, 4294901760
      %1348 = vmatpush.msra.mxu0 %v1347
      %v1349 = vand.u32 %v696, 4294901760
      %1350 = vmatmul.f32.gmra.mxu0 %v1349
      %v1351 = vpop.f32.mrf.mxu0
      %v1352 = vadd.f32 %v1316, %v1351
      %v1353 = vand.u32 %v699, 4294901760
      %1354 = vmatmul.f32.gmra.mxu0 %v1353
      %v1355 = vpop.f32.mrf.mxu0
      %v1356 = vadd.f32 %v1322, %v1355
      %v1357 = vand.u32 %v702, 4294901760
      %1358 = vmatmul.f32.gmra.mxu0 %v1357
      %v1359 = vpop.f32.mrf.mxu0
      %v1360 = vadd.f32 %v1328, %v1359
      %1361 = vdwg.mxu0
      %1362 = vmatpush.msra.mxu0 0.0
      %1363 = vmatpush.msra.mxu0 0.0
      %1364 = vmatpush.msra.mxu0 0.0
      %1365 = vmatpush.msra.mxu0 0.0
      %1366 = vmatpush.msra.mxu0 0.0
      %1367 = vmatpush.msra.mxu0 0.0
      %1368 = vmatpush.msra.mxu0 0.0
      %1369 = vmatpush.msra.mxu0 0.0
      %1370 = vmatpush.msra.mxu0 0.0
      %1371 = vmatpush.msra.mxu0 0.0
      %1372 = vmatpush.msra.mxu0 0.0
      %1373 = vmatpush.msra.mxu0 0.0
      %1374 = vmatpush.msra.mxu0 0.0
      %1375 = vmatpush.msra.mxu0 0.0
      %1376 = vmatpush.msra.mxu0 0.0
      %v1377 = vand.u32 %v708, 4294901760
      %1378 = vmatpush.msra.mxu0 %v1377
      %v1379 = vand.u32 %v696, 4294901760
      %1380 = vmatmul.f32.gmra.mxu0 %v1379
      %v1381 = vpop.f32.mrf.mxu0
      %v1382 = vadd.f32 %v1352, %v1381
      %v1383 = vand.u32 %v699, 4294901760
      %1384 = vmatmul.f32.gmra.mxu0 %v1383
      %v1385 = vpop.f32.mrf.mxu0
      %v1386 = vadd.f32 %v1356, %v1385
      %v1387 = vand.u32 %v702, 4294901760
      %1388 = vmatmul.f32.gmra.mxu0 %v1387
      %v1389 = vpop.f32.mrf.mxu0
      %v1390 = vadd.f32 %v1360, %v1389
      %1391 = vdwg.mxu0
      %1392 = vmatpush.msra.mxu0 0.0
      %1393 = vmatpush.msra.mxu0 0.0
      %1394 = vmatpush.msra.mxu0 0.0
      %1395 = vmatpush.msra.mxu0 0.0
      %1396 = vmatpush.msra.mxu0 0.0
      %1397 = vmatpush.msra.mxu0 0.0
      %1398 = vmatpush.msra.mxu0 0.0
      %1399 = vmatpush.msra.mxu0 0.0
      %1400 = vmatpush.msra.mxu0 0.0
      %1401 = vmatpush.msra.mxu0 0.0
      %1402 = vmatpush.msra.mxu0 0.0
      %1403 = vmatpush.msra.mxu0 0.0
      %1404 = vmatpush.msra.mxu0 0.0
      %1405 = vmatpush.msra.mxu0 0.0
      %1406 = vmatpush.msra.mxu0 0.0
      %v1407 = vand.u32 %v710, 4294901760
      %1408 = vmatpush.msra.mxu0 %v1407
      %v1409 = vand.u32 %v696, 4294901760
      %v1410 = vsub.f32 %v696, %v1409
      %v1411 = vand.u32 %v1410, 4294901760
      %v1412 = vsub.f32 %v1410, %v1411
      %v1413 = vand.u32 %v1412, 4294901760
      %1414 = vmatmul.f32.gmra.mxu0 %v1413
      %v1415 = vpop.f32.mrf.mxu0
      %v1416 = vadd.f32 %v615, %v1415
      %v1417 = vand.u32 %v699, 4294901760
      %v1418 = vsub.f32 %v699, %v1417
      %v1419 = vand.u32 %v1418, 4294901760
      %v1420 = vsub.f32 %v1418, %v1419
      %v1421 = vand.u32 %v1420, 4294901760
      %1422 = vmatmul.f32.gmra.mxu0 %v1421
      %v1423 = vpop.f32.mrf.mxu0
      %v1424 = vadd.f32 %v620, %v1423
      %v1425 = vand.u32 %v702, 4294901760
      %v1426 = vsub.f32 %v702, %v1425
      %v1427 = vand.u32 %v1426, 4294901760
      %v1428 = vsub.f32 %v1426, %v1427
      %v1429 = vand.u32 %v1428, 4294901760
      %1430 = vmatmul.f32.gmra.mxu0 %v1429
      %v1431 = vpop.f32.mrf.mxu0
      %v1432 = vadd.f32 %v625, %v1431
      %1433 = vdwg.mxu0
      %1434 = vmatpush.msra.mxu0 0.0
      %1435 = vmatpush.msra.mxu0 0.0
      %1436 = vmatpush.msra.mxu0 0.0
      %1437 = vmatpush.msra.mxu0 0.0
      %1438 = vmatpush.msra.mxu0 0.0
      %1439 = vmatpush.msra.mxu0 0.0
      %1440 = vmatpush.msra.mxu0 0.0
      %1441 = vmatpush.msra.mxu0 0.0
      %1442 = vmatpush.msra.mxu0 0.0
      %1443 = vmatpush.msra.mxu0 0.0
      %1444 = vmatpush.msra.mxu0 0.0
      %1445 = vmatpush.msra.mxu0 0.0
      %1446 = vmatpush.msra.mxu0 0.0
      %1447 = vmatpush.msra.mxu0 0.0
      %1448 = vmatpush.msra.mxu0 0.0
      %v1449 = vand.u32 %v710, 4294901760
      %v1450 = vsub.f32 %v710, %v1449
      %v1451 = vand.u32 %v1450, 4294901760
      %v1452 = vsub.f32 %v1450, %v1451
      %v1453 = vand.u32 %v1452, 4294901760
      %1454 = vmatpush.msra.mxu0 %v1453
      %v1455 = vand.u32 %v696, 4294901760
      %1456 = vmatmul.f32.gmra.mxu0 %v1455
      %v1457 = vpop.f32.mrf.mxu0
      %v1458 = vadd.f32 %v1416, %v1457
      %v1459 = vand.u32 %v699, 4294901760
      %1460 = vmatmul.f32.gmra.mxu0 %v1459
      %v1461 = vpop.f32.mrf.mxu0
      %v1462 = vadd.f32 %v1424, %v1461
      %v1463 = vand.u32 %v702, 4294901760
      %1464 = vmatmul.f32.gmra.mxu0 %v1463
      %v1465 = vpop.f32.mrf.mxu0
      %v1466 = vadd.f32 %v1432, %v1465
      %1467 = vdwg.mxu0
      %1468 = vmatpush.msra.mxu0 0.0
      %1469 = vmatpush.msra.mxu0 0.0
      %1470 = vmatpush.msra.mxu0 0.0
      %1471 = vmatpush.msra.mxu0 0.0
      %1472 = vmatpush.msra.mxu0 0.0
      %1473 = vmatpush.msra.mxu0 0.0
      %1474 = vmatpush.msra.mxu0 0.0
      %1475 = vmatpush.msra.mxu0 0.0
      %1476 = vmatpush.msra.mxu0 0.0
      %1477 = vmatpush.msra.mxu0 0.0
      %1478 = vmatpush.msra.mxu0 0.0
      %1479 = vmatpush.msra.mxu0 0.0
      %1480 = vmatpush.msra.mxu0 0.0
      %1481 = vmatpush.msra.mxu0 0.0
      %1482 = vmatpush.msra.mxu0 0.0
      %v1483 = vand.u32 %v710, 4294901760
      %v1484 = vsub.f32 %v710, %v1483
      %1485 = vmatpush.msra.mxu0 %v1484
      %v1486 = vand.u32 %v696, 4294901760
      %v1487 = vsub.f32 %v696, %v1486
      %1488 = vmatmul.f32.gmra.mxu0 %v1487
      %v1489 = vpop.f32.mrf.mxu0
      %v1490 = vadd.f32 %v1458, %v1489
      %v1491 = vand.u32 %v699, 4294901760
      %v1492 = vsub.f32 %v699, %v1491
      %1493 = vmatmul.f32.gmra.mxu0 %v1492
      %v1494 = vpop.f32.mrf.mxu0
      %v1495 = vadd.f32 %v1462, %v1494
      %v1496 = vand.u32 %v702, 4294901760
      %v1497 = vsub.f32 %v702, %v1496
      %1498 = vmatmul.f32.gmra.mxu0 %v1497
      %v1499 = vpop.f32.mrf.mxu0
      %v1500 = vadd.f32 %v1466, %v1499
      %1501 = vdwg.mxu0
      %1502 = vmatpush.msra.mxu0 0.0
      %1503 = vmatpush.msra.mxu0 0.0
      %1504 = vmatpush.msra.mxu0 0.0
      %1505 = vmatpush.msra.mxu0 0.0
      %1506 = vmatpush.msra.mxu0 0.0
      %1507 = vmatpush.msra.mxu0 0.0
      %1508 = vmatpush.msra.mxu0 0.0
      %1509 = vmatpush.msra.mxu0 0.0
      %1510 = vmatpush.msra.mxu0 0.0
      %1511 = vmatpush.msra.mxu0 0.0
      %1512 = vmatpush.msra.mxu0 0.0
      %1513 = vmatpush.msra.mxu0 0.0
      %1514 = vmatpush.msra.mxu0 0.0
      %1515 = vmatpush.msra.mxu0 0.0
      %1516 = vmatpush.msra.mxu0 0.0
      %v1517 = vand.u32 %v710, 4294901760
      %1518 = vmatpush.msra.mxu0 %v1517
      %v1519 = vand.u32 %v696, 4294901760
      %v1520 = vsub.f32 %v696, %v1519
      %v1521 = vand.u32 %v1520, 4294901760
      %1522 = vmatmul.f32.gmra.mxu0 %v1521
      %v1523 = vpop.f32.mrf.mxu0
      %v1524 = vadd.f32 %v1490, %v1523
      %v1525 = vand.u32 %v699, 4294901760
      %v1526 = vsub.f32 %v699, %v1525
      %v1527 = vand.u32 %v1526, 4294901760
      %1528 = vmatmul.f32.gmra.mxu0 %v1527
      %v1529 = vpop.f32.mrf.mxu0
      %v1530 = vadd.f32 %v1495, %v1529
      %v1531 = vand.u32 %v702, 4294901760
      %v1532 = vsub.f32 %v702, %v1531
      %v1533 = vand.u32 %v1532, 4294901760
      %1534 = vmatmul.f32.gmra.mxu0 %v1533
      %v1535 = vpop.f32.mrf.mxu0
      %v1536 = vadd.f32 %v1500, %v1535
      %1537 = vdwg.mxu0
      %1538 = vmatpush.msra.mxu0 0.0
      %1539 = vmatpush.msra.mxu0 0.0
      %1540 = vmatpush.msra.mxu0 0.0
      %1541 = vmatpush.msra.mxu0 0.0
      %1542 = vmatpush.msra.mxu0 0.0
      %1543 = vmatpush.msra.mxu0 0.0
      %1544 = vmatpush.msra.mxu0 0.0
      %1545 = vmatpush.msra.mxu0 0.0
      %1546 = vmatpush.msra.mxu0 0.0
      %1547 = vmatpush.msra.mxu0 0.0
      %1548 = vmatpush.msra.mxu0 0.0
      %1549 = vmatpush.msra.mxu0 0.0
      %1550 = vmatpush.msra.mxu0 0.0
      %1551 = vmatpush.msra.mxu0 0.0
      %1552 = vmatpush.msra.mxu0 0.0
      %v1553 = vand.u32 %v710, 4294901760
      %v1554 = vsub.f32 %v710, %v1553
      %v1555 = vand.u32 %v1554, 4294901760
      %1556 = vmatpush.msra.mxu0 %v1555
      %v1557 = vand.u32 %v696, 4294901760
      %1558 = vmatmul.f32.gmra.mxu0 %v1557
      %v1559 = vpop.f32.mrf.mxu0
      %v1560 = vadd.f32 %v1524, %v1559
      %v1561 = vand.u32 %v699, 4294901760
      %1562 = vmatmul.f32.gmra.mxu0 %v1561
      %v1563 = vpop.f32.mrf.mxu0
      %v1564 = vadd.f32 %v1530, %v1563
      %v1565 = vand.u32 %v702, 4294901760
      %1566 = vmatmul.f32.gmra.mxu0 %v1565
      %v1567 = vpop.f32.mrf.mxu0
      %v1568 = vadd.f32 %v1536, %v1567
      %1569 = vdwg.mxu0
      %1570 = vmatpush.msra.mxu0 0.0
      %1571 = vmatpush.msra.mxu0 0.0
      %1572 = vmatpush.msra.mxu0 0.0
      %1573 = vmatpush.msra.mxu0 0.0
      %1574 = vmatpush.msra.mxu0 0.0
      %1575 = vmatpush.msra.mxu0 0.0
      %1576 = vmatpush.msra.mxu0 0.0
      %1577 = vmatpush.msra.mxu0 0.0
      %1578 = vmatpush.msra.mxu0 0.0
      %1579 = vmatpush.msra.mxu0 0.0
      %1580 = vmatpush.msra.mxu0 0.0
      %1581 = vmatpush.msra.mxu0 0.0
      %1582 = vmatpush.msra.mxu0 0.0
      %1583 = vmatpush.msra.mxu0 0.0
      %1584 = vmatpush.msra.mxu0 0.0
      %v1585 = vand.u32 %v710, 4294901760
      %1586 = vmatpush.msra.mxu0 %v1585
      %v1587 = vand.u32 %v696, 4294901760
      %1588 = vmatmul.f32.gmra.mxu0 %v1587
      %v1589 = vpop.f32.mrf.mxu0
      %v1590 = vadd.f32 %v1560, %v1589
      %v1591 = vand.u32 %v699, 4294901760
      %1592 = vmatmul.f32.gmra.mxu0 %v1591
      %v1593 = vpop.f32.mrf.mxu0
      %v1594 = vadd.f32 %v1564, %v1593
      %v1595 = vand.u32 %v702, 4294901760
      %1596 = vmatmul.f32.gmra.mxu0 %v1595
      %v1597 = vpop.f32.mrf.mxu0
      %v1598 = vadd.f32 %v1568, %v1597
      %1599 = vdwg.mxu0
      %1600 = vmatpush.msra.mxu0 0.0
      %1601 = vmatpush.msra.mxu0 0.0
      %1602 = vmatpush.msra.mxu0 0.0
      %1603 = vmatpush.msra.mxu0 0.0
      %1604 = vmatpush.msra.mxu0 0.0
      %1605 = vmatpush.msra.mxu0 0.0
      %1606 = vmatpush.msra.mxu0 0.0
      %1607 = vmatpush.msra.mxu0 0.0
      %1608 = vmatpush.msra.mxu0 0.0
      %1609 = vmatpush.msra.mxu0 0.0
      %1610 = vmatpush.msra.mxu0 0.0
      %1611 = vmatpush.msra.mxu0 0.0
      %1612 = vmatpush.msra.mxu0 0.0
      %1613 = vmatpush.msra.mxu0 0.0
      %1614 = vmatpush.msra.mxu0 0.0
      %v1615 = vand.u32 %v712, 4294901760
      %1616 = vmatpush.msra.mxu0 %v1615
      %v1617 = vand.u32 %v696, 4294901760
      %v1618 = vsub.f32 %v696, %v1617
      %v1619 = vand.u32 %v1618, 4294901760
      %v1620 = vsub.f32 %v1618, %v1619
      %v1621 = vand.u32 %v1620, 4294901760
      %1622 = vmatmul.f32.gmra.mxu0 %v1621
      %v1623 = vpop.f32.mrf.mxu0
      %v1624 = vadd.f32 %v615, %v1623
      %v1625 = vand.u32 %v699, 4294901760
      %v1626 = vsub.f32 %v699, %v1625
      %v1627 = vand.u32 %v1626, 4294901760
      %v1628 = vsub.f32 %v1626, %v1627
      %v1629 = vand.u32 %v1628, 4294901760
      %1630 = vmatmul.f32.gmra.mxu0 %v1629
      %v1631 = vpop.f32.mrf.mxu0
      %v1632 = vadd.f32 %v620, %v1631
      %v1633 = vand.u32 %v702, 4294901760
      %v1634 = vsub.f32 %v702, %v1633
      %v1635 = vand.u32 %v1634, 4294901760
      %v1636 = vsub.f32 %v1634, %v1635
      %v1637 = vand.u32 %v1636, 4294901760
      %1638 = vmatmul.f32.gmra.mxu0 %v1637
      %v1639 = vpop.f32.mrf.mxu0
      %v1640 = vadd.f32 %v625, %v1639
      %1641 = vdwg.mxu0
      %1642 = vmatpush.msra.mxu0 0.0
      %1643 = vmatpush.msra.mxu0 0.0
      %1644 = vmatpush.msra.mxu0 0.0
      %1645 = vmatpush.msra.mxu0 0.0
      %1646 = vmatpush.msra.mxu0 0.0
      %1647 = vmatpush.msra.mxu0 0.0
      %1648 = vmatpush.msra.mxu0 0.0
      %1649 = vmatpush.msra.mxu0 0.0
      %1650 = vmatpush.msra.mxu0 0.0
      %1651 = vmatpush.msra.mxu0 0.0
      %1652 = vmatpush.msra.mxu0 0.0
      %1653 = vmatpush.msra.mxu0 0.0
      %1654 = vmatpush.msra.mxu0 0.0
      %1655 = vmatpush.msra.mxu0 0.0
      %1656 = vmatpush.msra.mxu0 0.0
      %v1657 = vand.u32 %v712, 4294901760
      %v1658 = vsub.f32 %v712, %v1657
      %v1659 = vand.u32 %v1658, 4294901760
      %v1660 = vsub.f32 %v1658, %v1659
      %v1661 = vand.u32 %v1660, 4294901760
      %1662 = vmatpush.msra.mxu0 %v1661
      %v1663 = vand.u32 %v696, 4294901760
      %1664 = vmatmul.f32.gmra.mxu0 %v1663
      %v1665 = vpop.f32.mrf.mxu0
      %v1666 = vadd.f32 %v1624, %v1665
      %v1667 = vand.u32 %v699, 4294901760
      %1668 = vmatmul.f32.gmra.mxu0 %v1667
      %v1669 = vpop.f32.mrf.mxu0
      %v1670 = vadd.f32 %v1632, %v1669
      %v1671 = vand.u32 %v702, 4294901760
      %1672 = vmatmul.f32.gmra.mxu0 %v1671
      %v1673 = vpop.f32.mrf.mxu0
      %v1674 = vadd.f32 %v1640, %v1673
      %1675 = vdwg.mxu0
      %1676 = vmatpush.msra.mxu0 0.0
      %1677 = vmatpush.msra.mxu0 0.0
      %1678 = vmatpush.msra.mxu0 0.0
      %1679 = vmatpush.msra.mxu0 0.0
      %1680 = vmatpush.msra.mxu0 0.0
      %1681 = vmatpush.msra.mxu0 0.0
      %1682 = vmatpush.msra.mxu0 0.0
      %1683 = vmatpush.msra.mxu0 0.0
      %1684 = vmatpush.msra.mxu0 0.0
      %1685 = vmatpush.msra.mxu0 0.0
      %1686 = vmatpush.msra.mxu0 0.0
      %1687 = vmatpush.msra.mxu0 0.0
      %1688 = vmatpush.msra.mxu0 0.0
      %1689 = vmatpush.msra.mxu0 0.0
      %1690 = vmatpush.msra.mxu0 0.0
      %v1691 = vand.u32 %v712, 4294901760
      %v1692 = vsub.f32 %v712, %v1691
      %1693 = vmatpush.msra.mxu0 %v1692
      %v1694 = vand.u32 %v696, 4294901760
      %v1695 = vsub.f32 %v696, %v1694
      %1696 = vmatmul.f32.gmra.mxu0 %v1695
      %v1697 = vpop.f32.mrf.mxu0
      %v1698 = vadd.f32 %v1666, %v1697
      %v1699 = vand.u32 %v699, 4294901760
      %v1700 = vsub.f32 %v699, %v1699
      %1701 = vmatmul.f32.gmra.mxu0 %v1700
      %v1702 = vpop.f32.mrf.mxu0
      %v1703 = vadd.f32 %v1670, %v1702
      %v1704 = vand.u32 %v702, 4294901760
      %v1705 = vsub.f32 %v702, %v1704
      %1706 = vmatmul.f32.gmra.mxu0 %v1705
      %v1707 = vpop.f32.mrf.mxu0
      %v1708 = vadd.f32 %v1674, %v1707
      %1709 = vdwg.mxu0
      %1710 = vmatpush.msra.mxu0 0.0
      %1711 = vmatpush.msra.mxu0 0.0
      %1712 = vmatpush.msra.mxu0 0.0
      %1713 = vmatpush.msra.mxu0 0.0
      %1714 = vmatpush.msra.mxu0 0.0
      %1715 = vmatpush.msra.mxu0 0.0
      %1716 = vmatpush.msra.mxu0 0.0
      %1717 = vmatpush.msra.mxu0 0.0
      %1718 = vmatpush.msra.mxu0 0.0
      %1719 = vmatpush.msra.mxu0 0.0
      %1720 = vmatpush.msra.mxu0 0.0
      %1721 = vmatpush.msra.mxu0 0.0
      %1722 = vmatpush.msra.mxu0 0.0
      %1723 = vmatpush.msra.mxu0 0.0
      %1724 = vmatpush.msra.mxu0 0.0
      %v1725 = vand.u32 %v712, 4294901760
      %1726 = vmatpush.msra.mxu0 %v1725
      %v1727 = vand.u32 %v696, 4294901760
      %v1728 = vsub.f32 %v696, %v1727
      %v1729 = vand.u32 %v1728, 4294901760
      %1730 = vmatmul.f32.gmra.mxu0 %v1729
      %v1731 = vpop.f32.mrf.mxu0
      %v1732 = vadd.f32 %v1698, %v1731
      %v1733 = vand.u32 %v699, 4294901760
      %v1734 = vsub.f32 %v699, %v1733
      %v1735 = vand.u32 %v1734, 4294901760
      %1736 = vmatmul.f32.gmra.mxu0 %v1735
      %v1737 = vpop.f32.mrf.mxu0
      %v1738 = vadd.f32 %v1703, %v1737
      %v1739 = vand.u32 %v702, 4294901760
      %v1740 = vsub.f32 %v702, %v1739
      %v1741 = vand.u32 %v1740, 4294901760
      %1742 = vmatmul.f32.gmra.mxu0 %v1741
      %v1743 = vpop.f32.mrf.mxu0
      %v1744 = vadd.f32 %v1708, %v1743
      %1745 = vdwg.mxu0
      %1746 = vmatpush.msra.mxu0 0.0
      %1747 = vmatpush.msra.mxu0 0.0
      %1748 = vmatpush.msra.mxu0 0.0
      %1749 = vmatpush.msra.mxu0 0.0
      %1750 = vmatpush.msra.mxu0 0.0
      %1751 = vmatpush.msra.mxu0 0.0
      %1752 = vmatpush.msra.mxu0 0.0
      %1753 = vmatpush.msra.mxu0 0.0
      %1754 = vmatpush.msra.mxu0 0.0
      %1755 = vmatpush.msra.mxu0 0.0
      %1756 = vmatpush.msra.mxu0 0.0
      %1757 = vmatpush.msra.mxu0 0.0
      %1758 = vmatpush.msra.mxu0 0.0
      %1759 = vmatpush.msra.mxu0 0.0
      %1760 = vmatpush.msra.mxu0 0.0
      %v1761 = vand.u32 %v712, 4294901760
      %v1762 = vsub.f32 %v712, %v1761
      %v1763 = vand.u32 %v1762, 4294901760
      %1764 = vmatpush.msra.mxu0 %v1763
      %v1765 = vand.u32 %v696, 4294901760
      %1766 = vmatmul.f32.gmra.mxu0 %v1765
      %v1767 = vpop.f32.mrf.mxu0
      %v1768 = vadd.f32 %v1732, %v1767
      %v1769 = vand.u32 %v699, 4294901760
      %1770 = vmatmul.f32.gmra.mxu0 %v1769
      %v1771 = vpop.f32.mrf.mxu0
      %v1772 = vadd.f32 %v1738, %v1771
      %v1773 = vand.u32 %v702, 4294901760
      %1774 = vmatmul.f32.gmra.mxu0 %v1773
      %v1775 = vpop.f32.mrf.mxu0
      %v1776 = vadd.f32 %v1744, %v1775
      %1777 = vdwg.mxu0
      %1778 = vmatpush.msra.mxu0 0.0
      %1779 = vmatpush.msra.mxu0 0.0
      %1780 = vmatpush.msra.mxu0 0.0
      %1781 = vmatpush.msra.mxu0 0.0
      %1782 = vmatpush.msra.mxu0 0.0
      %1783 = vmatpush.msra.mxu0 0.0
      %1784 = vmatpush.msra.mxu0 0.0
      %1785 = vmatpush.msra.mxu0 0.0
      %1786 = vmatpush.msra.mxu0 0.0
      %1787 = vmatpush.msra.mxu0 0.0
      %1788 = vmatpush.msra.mxu0 0.0
      %1789 = vmatpush.msra.mxu0 0.0
      %1790 = vmatpush.msra.mxu0 0.0
      %1791 = vmatpush.msra.mxu0 0.0
      %1792 = vmatpush.msra.mxu0 0.0
      %v1793 = vand.u32 %v712, 4294901760
      %1794 = vmatpush.msra.mxu0 %v1793
      %v1795 = vand.u32 %v696, 4294901760
      %1796 = vmatmul.f32.gmra.mxu0 %v1795
      %v1797 = vpop.f32.mrf.mxu0
      %v1798 = vadd.f32 %v1768, %v1797
      %v1799 = vand.u32 %v699, 4294901760
      %1800 = vmatmul.f32.gmra.mxu0 %v1799
      %v1801 = vpop.f32.mrf.mxu0
      %v1802 = vadd.f32 %v1772, %v1801
      %v1803 = vand.u32 %v702, 4294901760
      %1804 = vmatmul.f32.gmra.mxu0 %v1803
      %v1805 = vpop.f32.mrf.mxu0
      %v1806 = vadd.f32 %v1776, %v1805
      %1807 = vdwg.mxu0
      %1808 = vmatpush.msra.mxu0 0.0
      %1809 = vmatpush.msra.mxu0 0.0
      %1810 = vmatpush.msra.mxu0 0.0
      %1811 = vmatpush.msra.mxu0 0.0
      %1812 = vmatpush.msra.mxu0 0.0
      %1813 = vmatpush.msra.mxu0 0.0
      %1814 = vmatpush.msra.mxu0 0.0
      %1815 = vmatpush.msra.mxu0 0.0
      %1816 = vmatpush.msra.mxu0 0.0
      %1817 = vmatpush.msra.mxu0 0.0
      %1818 = vmatpush.msra.mxu0 0.0
      %1819 = vmatpush.msra.mxu0 0.0
      %1820 = vmatpush.msra.mxu0 0.0
      %1821 = vmatpush.msra.mxu0 0.0
      %1822 = vmatpush.msra.mxu0 0.0
      %v1823 = vand.u32 %v714, 4294901760
      %1824 = vmatpush.msra.mxu0 %v1823
      %v1825 = vand.u32 %v696, 4294901760
      %v1826 = vsub.f32 %v696, %v1825
      %v1827 = vand.u32 %v1826, 4294901760
      %v1828 = vsub.f32 %v1826, %v1827
      %v1829 = vand.u32 %v1828, 4294901760
      %1830 = vmatmul.f32.gmra.mxu0 %v1829
      %v1831 = vpop.f32.mrf.mxu0
      %v1832 = vadd.f32 %v615, %v1831
      %v1833 = vand.u32 %v699, 4294901760
      %v1834 = vsub.f32 %v699, %v1833
      %v1835 = vand.u32 %v1834, 4294901760
      %v1836 = vsub.f32 %v1834, %v1835
      %v1837 = vand.u32 %v1836, 4294901760
      %1838 = vmatmul.f32.gmra.mxu0 %v1837
      %v1839 = vpop.f32.mrf.mxu0
      %v1840 = vadd.f32 %v620, %v1839
      %v1841 = vand.u32 %v702, 4294901760
      %v1842 = vsub.f32 %v702, %v1841
      %v1843 = vand.u32 %v1842, 4294901760
      %v1844 = vsub.f32 %v1842, %v1843
      %v1845 = vand.u32 %v1844, 4294901760
      %1846 = vmatmul.f32.gmra.mxu0 %v1845
      %v1847 = vpop.f32.mrf.mxu0
      %v1848 = vadd.f32 %v625, %v1847
      %1849 = vdwg.mxu0
      %1850 = vmatpush.msra.mxu0 0.0
      %1851 = vmatpush.msra.mxu0 0.0
      %1852 = vmatpush.msra.mxu0 0.0
      %1853 = vmatpush.msra.mxu0 0.0
      %1854 = vmatpush.msra.mxu0 0.0
      %1855 = vmatpush.msra.mxu0 0.0
      %1856 = vmatpush.msra.mxu0 0.0
      %1857 = vmatpush.msra.mxu0 0.0
      %1858 = vmatpush.msra.mxu0 0.0
      %1859 = vmatpush.msra.mxu0 0.0
      %1860 = vmatpush.msra.mxu0 0.0
      %1861 = vmatpush.msra.mxu0 0.0
      %1862 = vmatpush.msra.mxu0 0.0
      %1863 = vmatpush.msra.mxu0 0.0
      %1864 = vmatpush.msra.mxu0 0.0
      %v1865 = vand.u32 %v714, 4294901760
      %v1866 = vsub.f32 %v714, %v1865
      %v1867 = vand.u32 %v1866, 4294901760
      %v1868 = vsub.f32 %v1866, %v1867
      %v1869 = vand.u32 %v1868, 4294901760
      %1870 = vmatpush.msra.mxu0 %v1869
      %v1871 = vand.u32 %v696, 4294901760
      %1872 = vmatmul.f32.gmra.mxu0 %v1871
      %v1873 = vpop.f32.mrf.mxu0
      %v1874 = vadd.f32 %v1832, %v1873
      %v1875 = vand.u32 %v699, 4294901760
      %1876 = vmatmul.f32.gmra.mxu0 %v1875
      %v1877 = vpop.f32.mrf.mxu0
      %v1878 = vadd.f32 %v1840, %v1877
      %v1879 = vand.u32 %v702, 4294901760
      %1880 = vmatmul.f32.gmra.mxu0 %v1879
      %v1881 = vpop.f32.mrf.mxu0
      %v1882 = vadd.f32 %v1848, %v1881
      %1883 = vdwg.mxu0
      %1884 = vmatpush.msra.mxu0 0.0
      %1885 = vmatpush.msra.mxu0 0.0
      %1886 = vmatpush.msra.mxu0 0.0
      %1887 = vmatpush.msra.mxu0 0.0
      %1888 = vmatpush.msra.mxu0 0.0
      %1889 = vmatpush.msra.mxu0 0.0
      %1890 = vmatpush.msra.mxu0 0.0
      %1891 = vmatpush.msra.mxu0 0.0
      %1892 = vmatpush.msra.mxu0 0.0
      %1893 = vmatpush.msra.mxu0 0.0
      %1894 = vmatpush.msra.mxu0 0.0
      %1895 = vmatpush.msra.mxu0 0.0
      %1896 = vmatpush.msra.mxu0 0.0
      %1897 = vmatpush.msra.mxu0 0.0
      %1898 = vmatpush.msra.mxu0 0.0
      %v1899 = vand.u32 %v714, 4294901760
      %v1900 = vsub.f32 %v714, %v1899
      %1901 = vmatpush.msra.mxu0 %v1900
      %v1902 = vand.u32 %v696, 4294901760
      %v1903 = vsub.f32 %v696, %v1902
      %1904 = vmatmul.f32.gmra.mxu0 %v1903
      %v1905 = vpop.f32.mrf.mxu0
      %v1906 = vadd.f32 %v1874, %v1905
      %v1907 = vand.u32 %v699, 4294901760
      %v1908 = vsub.f32 %v699, %v1907
      %1909 = vmatmul.f32.gmra.mxu0 %v1908
      %v1910 = vpop.f32.mrf.mxu0
      %v1911 = vadd.f32 %v1878, %v1910
      %v1912 = vand.u32 %v702, 4294901760
      %v1913 = vsub.f32 %v702, %v1912
      %1914 = vmatmul.f32.gmra.mxu0 %v1913
      %v1915 = vpop.f32.mrf.mxu0
      %v1916 = vadd.f32 %v1882, %v1915
      %1917 = vdwg.mxu0
      %1918 = vmatpush.msra.mxu0 0.0
      %1919 = vmatpush.msra.mxu0 0.0
      %1920 = vmatpush.msra.mxu0 0.0
      %1921 = vmatpush.msra.mxu0 0.0
      %1922 = vmatpush.msra.mxu0 0.0
      %1923 = vmatpush.msra.mxu0 0.0
      %1924 = vmatpush.msra.mxu0 0.0
      %1925 = vmatpush.msra.mxu0 0.0
      %1926 = vmatpush.msra.mxu0 0.0
      %1927 = vmatpush.msra.mxu0 0.0
      %1928 = vmatpush.msra.mxu0 0.0
      %1929 = vmatpush.msra.mxu0 0.0
      %1930 = vmatpush.msra.mxu0 0.0
      %1931 = vmatpush.msra.mxu0 0.0
      %1932 = vmatpush.msra.mxu0 0.0
      %v1933 = vand.u32 %v714, 4294901760
      %1934 = vmatpush.msra.mxu0 %v1933
      %v1935 = vand.u32 %v696, 4294901760
      %v1936 = vsub.f32 %v696, %v1935
      %v1937 = vand.u32 %v1936, 4294901760
      %1938 = vmatmul.f32.gmra.mxu0 %v1937
      %v1939 = vpop.f32.mrf.mxu0
      %v1940 = vadd.f32 %v1906, %v1939
      %v1941 = vand.u32 %v699, 4294901760
      %v1942 = vsub.f32 %v699, %v1941
      %v1943 = vand.u32 %v1942, 4294901760
      %1944 = vmatmul.f32.gmra.mxu0 %v1943
      %v1945 = vpop.f32.mrf.mxu0
      %v1946 = vadd.f32 %v1911, %v1945
      %v1947 = vand.u32 %v702, 4294901760
      %v1948 = vsub.f32 %v702, %v1947
      %v1949 = vand.u32 %v1948, 4294901760
      %1950 = vmatmul.f32.gmra.mxu0 %v1949
      %v1951 = vpop.f32.mrf.mxu0
      %v1952 = vadd.f32 %v1916, %v1951
      %1953 = vdwg.mxu0
      %1954 = vmatpush.msra.mxu0 0.0
      %1955 = vmatpush.msra.mxu0 0.0
      %1956 = vmatpush.msra.mxu0 0.0
      %1957 = vmatpush.msra.mxu0 0.0
      %1958 = vmatpush.msra.mxu0 0.0
      %1959 = vmatpush.msra.mxu0 0.0
      %1960 = vmatpush.msra.mxu0 0.0
      %1961 = vmatpush.msra.mxu0 0.0
      %1962 = vmatpush.msra.mxu0 0.0
      %1963 = vmatpush.msra.mxu0 0.0
      %1964 = vmatpush.msra.mxu0 0.0
      %1965 = vmatpush.msra.mxu0 0.0
      %1966 = vmatpush.msra.mxu0 0.0
      %1967 = vmatpush.msra.mxu0 0.0
      %1968 = vmatpush.msra.mxu0 0.0
      %v1969 = vand.u32 %v714, 4294901760
      %v1970 = vsub.f32 %v714, %v1969
      %v1971 = vand.u32 %v1970, 4294901760
      %1972 = vmatpush.msra.mxu0 %v1971
      %v1973 = vand.u32 %v696, 4294901760
      %1974 = vmatmul.f32.gmra.mxu0 %v1973
      %v1975 = vpop.f32.mrf.mxu0
      %v1976 = vadd.f32 %v1940, %v1975
      %v1977 = vand.u32 %v699, 4294901760
      %1978 = vmatmul.f32.gmra.mxu0 %v1977
      %v1979 = vpop.f32.mrf.mxu0
      %v1980 = vadd.f32 %v1946, %v1979
      %v1981 = vand.u32 %v702, 4294901760
      %1982 = vmatmul.f32.gmra.mxu0 %v1981
      %v1983 = vpop.f32.mrf.mxu0
      %v1984 = vadd.f32 %v1952, %v1983
      %1985 = vdwg.mxu0
      %1986 = vmatpush.msra.mxu0 0.0
      %1987 = vmatpush.msra.mxu0 0.0
      %1988 = vmatpush.msra.mxu0 0.0
      %1989 = vmatpush.msra.mxu0 0.0
      %1990 = vmatpush.msra.mxu0 0.0
      %1991 = vmatpush.msra.mxu0 0.0
      %1992 = vmatpush.msra.mxu0 0.0
      %1993 = vmatpush.msra.mxu0 0.0
      %1994 = vmatpush.msra.mxu0 0.0
      %1995 = vmatpush.msra.mxu0 0.0
      %1996 = vmatpush.msra.mxu0 0.0
      %1997 = vmatpush.msra.mxu0 0.0
      %1998 = vmatpush.msra.mxu0 0.0
      %1999 = vmatpush.msra.mxu0 0.0
      %2000 = vmatpush.msra.mxu0 0.0
      %v2001 = vand.u32 %v714, 4294901760
      %2002 = vmatpush.msra.mxu0 %v2001
      %v2003 = vand.u32 %v696, 4294901760
      %2004 = vmatmul.f32.gmra.mxu0 %v2003
      %v2005 = vpop.f32.mrf.mxu0
      %v2006 = vadd.f32 %v1976, %v2005
      %v2007 = vand.u32 %v699, 4294901760
      %2008 = vmatmul.f32.gmra.mxu0 %v2007
      %v2009 = vpop.f32.mrf.mxu0
      %v2010 = vadd.f32 %v1980, %v2009
      %v2011 = vand.u32 %v702, 4294901760
      %2012 = vmatmul.f32.gmra.mxu0 %v2011
      %v2013 = vpop.f32.mrf.mxu0
      %v2014 = vadd.f32 %v1984, %v2013
      %2015 = vdwg.mxu0
      %2016 = vmatpush.msra.mxu0 0.0
      %2017 = vmatpush.msra.mxu0 0.0
      %2018 = vmatpush.msra.mxu0 0.0
      %2019 = vmatpush.msra.mxu0 0.0
      %2020 = vmatpush.msra.mxu0 0.0
      %2021 = vmatpush.msra.mxu0 0.0
      %2022 = vmatpush.msra.mxu0 0.0
      %2023 = vmatpush.msra.mxu0 0.0
      %2024 = vmatpush.msra.mxu0 0.0
      %2025 = vmatpush.msra.mxu0 0.0
      %2026 = vmatpush.msra.mxu0 0.0
      %2027 = vmatpush.msra.mxu0 0.0
      %2028 = vmatpush.msra.mxu0 0.0
      %2029 = vmatpush.msra.mxu0 0.0
      %2030 = vmatpush.msra.mxu0 0.0
      %v2031 = vand.u32 %v716, 4294901760
      %2032 = vmatpush.msra.mxu0 %v2031
      %v2033 = vand.u32 %v696, 4294901760
      %v2034 = vsub.f32 %v696, %v2033
      %v2035 = vand.u32 %v2034, 4294901760
      %v2036 = vsub.f32 %v2034, %v2035
      %v2037 = vand.u32 %v2036, 4294901760
      %2038 = vmatmul.f32.gmra.mxu0 %v2037
      %v2039 = vpop.f32.mrf.mxu0
      %v2040 = vadd.f32 %v615, %v2039
      %v2041 = vand.u32 %v699, 4294901760
      %v2042 = vsub.f32 %v699, %v2041
      %v2043 = vand.u32 %v2042, 4294901760
      %v2044 = vsub.f32 %v2042, %v2043
      %v2045 = vand.u32 %v2044, 4294901760
      %2046 = vmatmul.f32.gmra.mxu0 %v2045
      %v2047 = vpop.f32.mrf.mxu0
      %v2048 = vadd.f32 %v620, %v2047
      %v2049 = vand.u32 %v702, 4294901760
      %v2050 = vsub.f32 %v702, %v2049
      %v2051 = vand.u32 %v2050, 4294901760
      %v2052 = vsub.f32 %v2050, %v2051
      %v2053 = vand.u32 %v2052, 4294901760
      %2054 = vmatmul.f32.gmra.mxu0 %v2053
      %v2055 = vpop.f32.mrf.mxu0
      %v2056 = vadd.f32 %v625, %v2055
      %2057 = vdwg.mxu0
      %2058 = vmatpush.msra.mxu0 0.0
      %2059 = vmatpush.msra.mxu0 0.0
      %2060 = vmatpush.msra.mxu0 0.0
      %2061 = vmatpush.msra.mxu0 0.0
      %2062 = vmatpush.msra.mxu0 0.0
      %2063 = vmatpush.msra.mxu0 0.0
      %2064 = vmatpush.msra.mxu0 0.0
      %2065 = vmatpush.msra.mxu0 0.0
      %2066 = vmatpush.msra.mxu0 0.0
      %2067 = vmatpush.msra.mxu0 0.0
      %2068 = vmatpush.msra.mxu0 0.0
      %2069 = vmatpush.msra.mxu0 0.0
      %2070 = vmatpush.msra.mxu0 0.0
      %2071 = vmatpush.msra.mxu0 0.0
      %2072 = vmatpush.msra.mxu0 0.0
      %v2073 = vand.u32 %v716, 4294901760
      %v2074 = vsub.f32 %v716, %v2073
      %v2075 = vand.u32 %v2074, 4294901760
      %v2076 = vsub.f32 %v2074, %v2075
      %v2077 = vand.u32 %v2076, 4294901760
      %2078 = vmatpush.msra.mxu0 %v2077
      %v2079 = vand.u32 %v696, 4294901760
      %2080 = vmatmul.f32.gmra.mxu0 %v2079
      %v2081 = vpop.f32.mrf.mxu0
      %v2082 = vadd.f32 %v2040, %v2081
      %v2083 = vand.u32 %v699, 4294901760
      %2084 = vmatmul.f32.gmra.mxu0 %v2083
      %v2085 = vpop.f32.mrf.mxu0
      %v2086 = vadd.f32 %v2048, %v2085
      %v2087 = vand.u32 %v702, 4294901760
      %2088 = vmatmul.f32.gmra.mxu0 %v2087
      %v2089 = vpop.f32.mrf.mxu0
      %v2090 = vadd.f32 %v2056, %v2089
      %2091 = vdwg.mxu0
      %2092 = vmatpush.msra.mxu0 0.0
      %2093 = vmatpush.msra.mxu0 0.0
      %2094 = vmatpush.msra.mxu0 0.0
      %2095 = vmatpush.msra.mxu0 0.0
      %2096 = vmatpush.msra.mxu0 0.0
      %2097 = vmatpush.msra.mxu0 0.0
      %2098 = vmatpush.msra.mxu0 0.0
      %2099 = vmatpush.msra.mxu0 0.0
      %2100 = vmatpush.msra.mxu0 0.0
      %2101 = vmatpush.msra.mxu0 0.0
      %2102 = vmatpush.msra.mxu0 0.0
      %2103 = vmatpush.msra.mxu0 0.0
      %2104 = vmatpush.msra.mxu0 0.0
      %2105 = vmatpush.msra.mxu0 0.0
      %2106 = vmatpush.msra.mxu0 0.0
      %v2107 = vand.u32 %v716, 4294901760
      %v2108 = vsub.f32 %v716, %v2107
      %2109 = vmatpush.msra.mxu0 %v2108
      %v2110 = vand.u32 %v696, 4294901760
      %v2111 = vsub.f32 %v696, %v2110
      %2112 = vmatmul.f32.gmra.mxu0 %v2111
      %v2113 = vpop.f32.mrf.mxu0
      %v2114 = vadd.f32 %v2082, %v2113
      %v2115 = vand.u32 %v699, 4294901760
      %v2116 = vsub.f32 %v699, %v2115
      %2117 = vmatmul.f32.gmra.mxu0 %v2116
      %v2118 = vpop.f32.mrf.mxu0
      %v2119 = vadd.f32 %v2086, %v2118
      %v2120 = vand.u32 %v702, 4294901760
      %v2121 = vsub.f32 %v702, %v2120
      %2122 = vmatmul.f32.gmra.mxu0 %v2121
      %v2123 = vpop.f32.mrf.mxu0
      %v2124 = vadd.f32 %v2090, %v2123
      %2125 = vdwg.mxu0
      %2126 = vmatpush.msra.mxu0 0.0
      %2127 = vmatpush.msra.mxu0 0.0
      %2128 = vmatpush.msra.mxu0 0.0
      %2129 = vmatpush.msra.mxu0 0.0
      %2130 = vmatpush.msra.mxu0 0.0
      %2131 = vmatpush.msra.mxu0 0.0
      %2132 = vmatpush.msra.mxu0 0.0
      %2133 = vmatpush.msra.mxu0 0.0
      %2134 = vmatpush.msra.mxu0 0.0
      %2135 = vmatpush.msra.mxu0 0.0
      %2136 = vmatpush.msra.mxu0 0.0
      %2137 = vmatpush.msra.mxu0 0.0
      %2138 = vmatpush.msra.mxu0 0.0
      %2139 = vmatpush.msra.mxu0 0.0
      %2140 = vmatpush.msra.mxu0 0.0
      %v2141 = vand.u32 %v716, 4294901760
      %2142 = vmatpush.msra.mxu0 %v2141
      %v2143 = vand.u32 %v696, 4294901760
      %v2144 = vsub.f32 %v696, %v2143
      %v2145 = vand.u32 %v2144, 4294901760
      %2146 = vmatmul.f32.gmra.mxu0 %v2145
      %v2147 = vpop.f32.mrf.mxu0
      %v2148 = vadd.f32 %v2114, %v2147
      %v2149 = vand.u32 %v699, 4294901760
      %v2150 = vsub.f32 %v699, %v2149
      %v2151 = vand.u32 %v2150, 4294901760
      %2152 = vmatmul.f32.gmra.mxu0 %v2151
      %v2153 = vpop.f32.mrf.mxu0
      %v2154 = vadd.f32 %v2119, %v2153
      %v2155 = vand.u32 %v702, 4294901760
      %v2156 = vsub.f32 %v702, %v2155
      %v2157 = vand.u32 %v2156, 4294901760
      %2158 = vmatmul.f32.gmra.mxu0 %v2157
      %v2159 = vpop.f32.mrf.mxu0
      %v2160 = vadd.f32 %v2124, %v2159
      %2161 = vdwg.mxu0
      %2162 = vmatpush.msra.mxu0 0.0
      %2163 = vmatpush.msra.mxu0 0.0
      %2164 = vmatpush.msra.mxu0 0.0
      %2165 = vmatpush.msra.mxu0 0.0
      %2166 = vmatpush.msra.mxu0 0.0
      %2167 = vmatpush.msra.mxu0 0.0
      %2168 = vmatpush.msra.mxu0 0.0
      %2169 = vmatpush.msra.mxu0 0.0
      %2170 = vmatpush.msra.mxu0 0.0
      %2171 = vmatpush.msra.mxu0 0.0
      %2172 = vmatpush.msra.mxu0 0.0
      %2173 = vmatpush.msra.mxu0 0.0
      %2174 = vmatpush.msra.mxu0 0.0
      %2175 = vmatpush.msra.mxu0 0.0
      %2176 = vmatpush.msra.mxu0 0.0
      %v2177 = vand.u32 %v716, 4294901760
      %v2178 = vsub.f32 %v716, %v2177
      %v2179 = vand.u32 %v2178, 4294901760
      %2180 = vmatpush.msra.mxu0 %v2179
      %v2181 = vand.u32 %v696, 4294901760
      %2182 = vmatmul.f32.gmra.mxu0 %v2181
      %v2183 = vpop.f32.mrf.mxu0
      %v2184 = vadd.f32 %v2148, %v2183
      %v2185 = vand.u32 %v699, 4294901760
      %2186 = vmatmul.f32.gmra.mxu0 %v2185
      %v2187 = vpop.f32.mrf.mxu0
      %v2188 = vadd.f32 %v2154, %v2187
      %v2189 = vand.u32 %v702, 4294901760
      %2190 = vmatmul.f32.gmra.mxu0 %v2189
      %v2191 = vpop.f32.mrf.mxu0
      %v2192 = vadd.f32 %v2160, %v2191
      %2193 = vdwg.mxu0
      %2194 = vmatpush.msra.mxu0 0.0
      %2195 = vmatpush.msra.mxu0 0.0
      %2196 = vmatpush.msra.mxu0 0.0
      %2197 = vmatpush.msra.mxu0 0.0
      %2198 = vmatpush.msra.mxu0 0.0
      %2199 = vmatpush.msra.mxu0 0.0
      %2200 = vmatpush.msra.mxu0 0.0
      %2201 = vmatpush.msra.mxu0 0.0
      %2202 = vmatpush.msra.mxu0 0.0
      %2203 = vmatpush.msra.mxu0 0.0
      %2204 = vmatpush.msra.mxu0 0.0
      %2205 = vmatpush.msra.mxu0 0.0
      %2206 = vmatpush.msra.mxu0 0.0
      %2207 = vmatpush.msra.mxu0 0.0
      %2208 = vmatpush.msra.mxu0 0.0
      %v2209 = vand.u32 %v716, 4294901760
      %2210 = vmatpush.msra.mxu0 %v2209
      %v2211 = vand.u32 %v696, 4294901760
      %2212 = vmatmul.f32.gmra.mxu0 %v2211
      %v2213 = vpop.f32.mrf.mxu0
      %v2214 = vadd.f32 %v2184, %v2213
      %v2215 = vand.u32 %v699, 4294901760
      %2216 = vmatmul.f32.gmra.mxu0 %v2215
      %v2217 = vpop.f32.mrf.mxu0
      %v2218 = vadd.f32 %v2188, %v2217
      %v2219 = vand.u32 %v702, 4294901760
      %2220 = vmatmul.f32.gmra.mxu0 %v2219
      %v2221 = vpop.f32.mrf.mxu0
      %v2222 = vadd.f32 %v2192, %v2221
      %2223 = vdwg.mxu0
      %2224 = vmatpush.msra.mxu0 0.0
      %2225 = vmatpush.msra.mxu0 0.0
      %2226 = vmatpush.msra.mxu0 0.0
      %2227 = vmatpush.msra.mxu0 0.0
      %2228 = vmatpush.msra.mxu0 0.0
      %2229 = vmatpush.msra.mxu0 0.0
      %2230 = vmatpush.msra.mxu0 0.0
      %2231 = vmatpush.msra.mxu0 0.0
      %2232 = vmatpush.msra.mxu0 0.0
      %2233 = vmatpush.msra.mxu0 0.0
      %2234 = vmatpush.msra.mxu0 0.0
      %2235 = vmatpush.msra.mxu0 0.0
      %2236 = vmatpush.msra.mxu0 0.0
      %2237 = vmatpush.msra.mxu0 0.0
      %2238 = vmatpush.msra.mxu0 0.0
      %v2239 = vand.u32 %v718, 4294901760
      %2240 = vmatpush.msra.mxu0 %v2239
      %v2241 = vand.u32 %v696, 4294901760
      %v2242 = vsub.f32 %v696, %v2241
      %v2243 = vand.u32 %v2242, 4294901760
      %v2244 = vsub.f32 %v2242, %v2243
      %v2245 = vand.u32 %v2244, 4294901760
      %2246 = vmatmul.f32.gmra.mxu0 %v2245
      %v2247 = vpop.f32.mrf.mxu0
      %v2248 = vadd.f32 %v615, %v2247
      %v2249 = vand.u32 %v699, 4294901760
      %v2250 = vsub.f32 %v699, %v2249
      %v2251 = vand.u32 %v2250, 4294901760
      %v2252 = vsub.f32 %v2250, %v2251
      %v2253 = vand.u32 %v2252, 4294901760
      %2254 = vmatmul.f32.gmra.mxu0 %v2253
      %v2255 = vpop.f32.mrf.mxu0
      %v2256 = vadd.f32 %v620, %v2255
      %v2257 = vand.u32 %v702, 4294901760
      %v2258 = vsub.f32 %v702, %v2257
      %v2259 = vand.u32 %v2258, 4294901760
      %v2260 = vsub.f32 %v2258, %v2259
      %v2261 = vand.u32 %v2260, 4294901760
      %2262 = vmatmul.f32.gmra.mxu0 %v2261
      %v2263 = vpop.f32.mrf.mxu0
      %v2264 = vadd.f32 %v625, %v2263
      %2265 = vdwg.mxu0
      %2266 = vmatpush.msra.mxu0 0.0
      %2267 = vmatpush.msra.mxu0 0.0
      %2268 = vmatpush.msra.mxu0 0.0
      %2269 = vmatpush.msra.mxu0 0.0
      %2270 = vmatpush.msra.mxu0 0.0
      %2271 = vmatpush.msra.mxu0 0.0
      %2272 = vmatpush.msra.mxu0 0.0
      %2273 = vmatpush.msra.mxu0 0.0
      %2274 = vmatpush.msra.mxu0 0.0
      %2275 = vmatpush.msra.mxu0 0.0
      %2276 = vmatpush.msra.mxu0 0.0
      %2277 = vmatpush.msra.mxu0 0.0
      %2278 = vmatpush.msra.mxu0 0.0
      %2279 = vmatpush.msra.mxu0 0.0
      %2280 = vmatpush.msra.mxu0 0.0
      %v2281 = vand.u32 %v718, 4294901760
      %v2282 = vsub.f32 %v718, %v2281
      %v2283 = vand.u32 %v2282, 4294901760
      %v2284 = vsub.f32 %v2282, %v2283
      %v2285 = vand.u32 %v2284, 4294901760
      %2286 = vmatpush.msra.mxu0 %v2285
      %v2287 = vand.u32 %v696, 4294901760
      %2288 = vmatmul.f32.gmra.mxu0 %v2287
      %v2289 = vpop.f32.mrf.mxu0
      %v2290 = vadd.f32 %v2248, %v2289
      %v2291 = vand.u32 %v699, 4294901760
      %2292 = vmatmul.f32.gmra.mxu0 %v2291
      %v2293 = vpop.f32.mrf.mxu0
      %v2294 = vadd.f32 %v2256, %v2293
      %v2295 = vand.u32 %v702, 4294901760
      %2296 = vmatmul.f32.gmra.mxu0 %v2295
      %v2297 = vpop.f32.mrf.mxu0
      %v2298 = vadd.f32 %v2264, %v2297
      %2299 = vdwg.mxu0
      %2300 = vmatpush.msra.mxu0 0.0
      %2301 = vmatpush.msra.mxu0 0.0
      %2302 = vmatpush.msra.mxu0 0.0
      %2303 = vmatpush.msra.mxu0 0.0
      %2304 = vmatpush.msra.mxu0 0.0
      %2305 = vmatpush.msra.mxu0 0.0
      %2306 = vmatpush.msra.mxu0 0.0
      %2307 = vmatpush.msra.mxu0 0.0
      %2308 = vmatpush.msra.mxu0 0.0
      %2309 = vmatpush.msra.mxu0 0.0
      %2310 = vmatpush.msra.mxu0 0.0
      %2311 = vmatpush.msra.mxu0 0.0
      %2312 = vmatpush.msra.mxu0 0.0
      %2313 = vmatpush.msra.mxu0 0.0
      %2314 = vmatpush.msra.mxu0 0.0
      %v2315 = vand.u32 %v718, 4294901760
      %v2316 = vsub.f32 %v718, %v2315
      %2317 = vmatpush.msra.mxu0 %v2316
      %v2318 = vand.u32 %v696, 4294901760
      %v2319 = vsub.f32 %v696, %v2318
      %2320 = vmatmul.f32.gmra.mxu0 %v2319
      %v2321 = vpop.f32.mrf.mxu0
      %v2322 = vadd.f32 %v2290, %v2321
      %v2323 = vand.u32 %v699, 4294901760
      %v2324 = vsub.f32 %v699, %v2323
      %2325 = vmatmul.f32.gmra.mxu0 %v2324
      %v2326 = vpop.f32.mrf.mxu0
      %v2327 = vadd.f32 %v2294, %v2326
      %v2328 = vand.u32 %v702, 4294901760
      %v2329 = vsub.f32 %v702, %v2328
      %2330 = vmatmul.f32.gmra.mxu0 %v2329
      %v2331 = vpop.f32.mrf.mxu0
      %v2332 = vadd.f32 %v2298, %v2331
      %2333 = vdwg.mxu0
      %2334 = vmatpush.msra.mxu0 0.0
      %2335 = vmatpush.msra.mxu0 0.0
      %2336 = vmatpush.msra.mxu0 0.0
      %2337 = vmatpush.msra.mxu0 0.0
      %2338 = vmatpush.msra.mxu0 0.0
      %2339 = vmatpush.msra.mxu0 0.0
      %2340 = vmatpush.msra.mxu0 0.0
      %2341 = vmatpush.msra.mxu0 0.0
      %2342 = vmatpush.msra.mxu0 0.0
      %2343 = vmatpush.msra.mxu0 0.0
      %2344 = vmatpush.msra.mxu0 0.0
      %2345 = vmatpush.msra.mxu0 0.0
      %2346 = vmatpush.msra.mxu0 0.0
      %2347 = vmatpush.msra.mxu0 0.0
      %2348 = vmatpush.msra.mxu0 0.0
      %v2349 = vand.u32 %v718, 4294901760
      %2350 = vmatpush.msra.mxu0 %v2349
      %v2351 = vand.u32 %v696, 4294901760
      %v2352 = vsub.f32 %v696, %v2351
      %v2353 = vand.u32 %v2352, 4294901760
      %2354 = vmatmul.f32.gmra.mxu0 %v2353
      %v2355 = vpop.f32.mrf.mxu0
      %v2356 = vadd.f32 %v2322, %v2355
      %v2357 = vand.u32 %v699, 4294901760
      %v2358 = vsub.f32 %v699, %v2357
      %v2359 = vand.u32 %v2358, 4294901760
      %2360 = vmatmul.f32.gmra.mxu0 %v2359
      %v2361 = vpop.f32.mrf.mxu0
      %v2362 = vadd.f32 %v2327, %v2361
      %v2363 = vand.u32 %v702, 4294901760
      %v2364 = vsub.f32 %v702, %v2363
      %v2365 = vand.u32 %v2364, 4294901760
      %2366 = vmatmul.f32.gmra.mxu0 %v2365
      %v2367 = vpop.f32.mrf.mxu0
      %v2368 = vadd.f32 %v2332, %v2367
      %2369 = vdwg.mxu0
      %2370 = vmatpush.msra.mxu0 0.0
      %2371 = vmatpush.msra.mxu0 0.0
      %2372 = vmatpush.msra.mxu0 0.0
      %2373 = vmatpush.msra.mxu0 0.0
      %2374 = vmatpush.msra.mxu0 0.0
      %2375 = vmatpush.msra.mxu0 0.0
      %2376 = vmatpush.msra.mxu0 0.0
      %2377 = vmatpush.msra.mxu0 0.0
      %2378 = vmatpush.msra.mxu0 0.0
      %2379 = vmatpush.msra.mxu0 0.0
      %2380 = vmatpush.msra.mxu0 0.0
      %2381 = vmatpush.msra.mxu0 0.0
      %2382 = vmatpush.msra.mxu0 0.0
      %2383 = vmatpush.msra.mxu0 0.0
      %2384 = vmatpush.msra.mxu0 0.0
      %v2385 = vand.u32 %v718, 4294901760
      %v2386 = vsub.f32 %v718, %v2385
      %v2387 = vand.u32 %v2386, 4294901760
      %2388 = vmatpush.msra.mxu0 %v2387
      %v2389 = vand.u32 %v696, 4294901760
      %2390 = vmatmul.f32.gmra.mxu0 %v2389
      %v2391 = vpop.f32.mrf.mxu0
      %v2392 = vadd.f32 %v2356, %v2391
      %v2393 = vand.u32 %v699, 4294901760
      %2394 = vmatmul.f32.gmra.mxu0 %v2393
      %v2395 = vpop.f32.mrf.mxu0
      %v2396 = vadd.f32 %v2362, %v2395
      %v2397 = vand.u32 %v702, 4294901760
      %2398 = vmatmul.f32.gmra.mxu0 %v2397
      %v2399 = vpop.f32.mrf.mxu0
      %v2400 = vadd.f32 %v2368, %v2399
      %2401 = vdwg.mxu0
      %2402 = vmatpush.msra.mxu0 0.0
      %2403 = vmatpush.msra.mxu0 0.0
      %2404 = vmatpush.msra.mxu0 0.0
      %2405 = vmatpush.msra.mxu0 0.0
      %2406 = vmatpush.msra.mxu0 0.0
      %2407 = vmatpush.msra.mxu0 0.0
      %2408 = vmatpush.msra.mxu0 0.0
      %2409 = vmatpush.msra.mxu0 0.0
      %2410 = vmatpush.msra.mxu0 0.0
      %2411 = vmatpush.msra.mxu0 0.0
      %2412 = vmatpush.msra.mxu0 0.0
      %2413 = vmatpush.msra.mxu0 0.0
      %2414 = vmatpush.msra.mxu0 0.0
      %2415 = vmatpush.msra.mxu0 0.0
      %2416 = vmatpush.msra.mxu0 0.0
      %v2417 = vand.u32 %v718, 4294901760
      %2418 = vmatpush.msra.mxu0 %v2417
      %v2419 = vand.u32 %v696, 4294901760
      %2420 = vmatmul.f32.gmra.mxu0 %v2419
      %v2421 = vpop.f32.mrf.mxu0
      %v2422 = vadd.f32 %v2392, %v2421
      %v2423 = vand.u32 %v699, 4294901760
      %2424 = vmatmul.f32.gmra.mxu0 %v2423
      %v2425 = vpop.f32.mrf.mxu0
      %v2426 = vadd.f32 %v2396, %v2425
      %v2427 = vand.u32 %v702, 4294901760
      %2428 = vmatmul.f32.gmra.mxu0 %v2427
      %v2429 = vpop.f32.mrf.mxu0
      %v2430 = vadd.f32 %v2400, %v2429
      %2431 = vdwg.mxu0
      %2432 = vmatpush.msra.mxu0 0.0
      %2433 = vmatpush.msra.mxu0 0.0
      %2434 = vmatpush.msra.mxu0 0.0
      %2435 = vmatpush.msra.mxu0 0.0
      %2436 = vmatpush.msra.mxu0 0.0
      %2437 = vmatpush.msra.mxu0 0.0
      %2438 = vmatpush.msra.mxu0 0.0
      %2439 = vmatpush.msra.mxu0 0.0
      %2440 = vmatpush.msra.mxu0 0.0
      %2441 = vmatpush.msra.mxu0 0.0
      %2442 = vmatpush.msra.mxu0 0.0
      %2443 = vmatpush.msra.mxu0 0.0
      %2444 = vmatpush.msra.mxu0 0.0
      %2445 = vmatpush.msra.mxu0 0.0
      %2446 = vmatpush.msra.mxu0 0.0
      %v2447 = vand.u32 %v720, 4294901760
      %2448 = vmatpush.msra.mxu0 %v2447
      %v2449 = vand.u32 %v696, 4294901760
      %v2450 = vsub.f32 %v696, %v2449
      %v2451 = vand.u32 %v2450, 4294901760
      %v2452 = vsub.f32 %v2450, %v2451
      %v2453 = vand.u32 %v2452, 4294901760
      %2454 = vmatmul.f32.gmra.mxu0 %v2453
      %v2455 = vpop.f32.mrf.mxu0
      %v2456 = vadd.f32 %v615, %v2455
      %v2457 = vand.u32 %v699, 4294901760
      %v2458 = vsub.f32 %v699, %v2457
      %v2459 = vand.u32 %v2458, 4294901760
      %v2460 = vsub.f32 %v2458, %v2459
      %v2461 = vand.u32 %v2460, 4294901760
      %2462 = vmatmul.f32.gmra.mxu0 %v2461
      %v2463 = vpop.f32.mrf.mxu0
      %v2464 = vadd.f32 %v620, %v2463
      %v2465 = vand.u32 %v702, 4294901760
      %v2466 = vsub.f32 %v702, %v2465
      %v2467 = vand.u32 %v2466, 4294901760
      %v2468 = vsub.f32 %v2466, %v2467
      %v2469 = vand.u32 %v2468, 4294901760
      %2470 = vmatmul.f32.gmra.mxu0 %v2469
      %v2471 = vpop.f32.mrf.mxu0
      %v2472 = vadd.f32 %v625, %v2471
      %2473 = vdwg.mxu0
      %2474 = vmatpush.msra.mxu0 0.0
      %2475 = vmatpush.msra.mxu0 0.0
      %2476 = vmatpush.msra.mxu0 0.0
      %2477 = vmatpush.msra.mxu0 0.0
      %2478 = vmatpush.msra.mxu0 0.0
      %2479 = vmatpush.msra.mxu0 0.0
      %2480 = vmatpush.msra.mxu0 0.0
      %2481 = vmatpush.msra.mxu0 0.0
      %2482 = vmatpush.msra.mxu0 0.0
      %2483 = vmatpush.msra.mxu0 0.0
      %2484 = vmatpush.msra.mxu0 0.0
      %2485 = vmatpush.msra.mxu0 0.0
      %2486 = vmatpush.msra.mxu0 0.0
      %2487 = vmatpush.msra.mxu0 0.0
      %2488 = vmatpush.msra.mxu0 0.0
      %v2489 = vand.u32 %v720, 4294901760
      %v2490 = vsub.f32 %v720, %v2489
      %v2491 = vand.u32 %v2490, 4294901760
      %v2492 = vsub.f32 %v2490, %v2491
      %v2493 = vand.u32 %v2492, 4294901760
      %2494 = vmatpush.msra.mxu0 %v2493
      %v2495 = vand.u32 %v696, 4294901760
      %2496 = vmatmul.f32.gmra.mxu0 %v2495
      %v2497 = vpop.f32.mrf.mxu0
      %v2498 = vadd.f32 %v2456, %v2497
      %v2499 = vand.u32 %v699, 4294901760
      %2500 = vmatmul.f32.gmra.mxu0 %v2499
      %v2501 = vpop.f32.mrf.mxu0
      %v2502 = vadd.f32 %v2464, %v2501
      %v2503 = vand.u32 %v702, 4294901760
      %2504 = vmatmul.f32.gmra.mxu0 %v2503
      %v2505 = vpop.f32.mrf.mxu0
      %v2506 = vadd.f32 %v2472, %v2505
      %2507 = vdwg.mxu0
      %2508 = vmatpush.msra.mxu0 0.0
      %2509 = vmatpush.msra.mxu0 0.0
      %2510 = vmatpush.msra.mxu0 0.0
      %2511 = vmatpush.msra.mxu0 0.0
      %2512 = vmatpush.msra.mxu0 0.0
      %2513 = vmatpush.msra.mxu0 0.0
      %2514 = vmatpush.msra.mxu0 0.0
      %2515 = vmatpush.msra.mxu0 0.0
      %2516 = vmatpush.msra.mxu0 0.0
      %2517 = vmatpush.msra.mxu0 0.0
      %2518 = vmatpush.msra.mxu0 0.0
      %2519 = vmatpush.msra.mxu0 0.0
      %2520 = vmatpush.msra.mxu0 0.0
      %2521 = vmatpush.msra.mxu0 0.0
      %2522 = vmatpush.msra.mxu0 0.0
      %v2523 = vand.u32 %v720, 4294901760
      %v2524 = vsub.f32 %v720, %v2523
      %2525 = vmatpush.msra.mxu0 %v2524
      %v2526 = vand.u32 %v696, 4294901760
      %v2527 = vsub.f32 %v696, %v2526
      %2528 = vmatmul.f32.gmra.mxu0 %v2527
      %v2529 = vpop.f32.mrf.mxu0
      %v2530 = vadd.f32 %v2498, %v2529
      %v2531 = vand.u32 %v699, 4294901760
      %v2532 = vsub.f32 %v699, %v2531
      %2533 = vmatmul.f32.gmra.mxu0 %v2532
      %v2534 = vpop.f32.mrf.mxu0
      %v2535 = vadd.f32 %v2502, %v2534
      %v2536 = vand.u32 %v702, 4294901760
      %v2537 = vsub.f32 %v702, %v2536
      %2538 = vmatmul.f32.gmra.mxu0 %v2537
      %v2539 = vpop.f32.mrf.mxu0
      %v2540 = vadd.f32 %v2506, %v2539
      %2541 = vdwg.mxu0
      %2542 = vmatpush.msra.mxu0 0.0
      %2543 = vmatpush.msra.mxu0 0.0
      %2544 = vmatpush.msra.mxu0 0.0
      %2545 = vmatpush.msra.mxu0 0.0
      %2546 = vmatpush.msra.mxu0 0.0
      %2547 = vmatpush.msra.mxu0 0.0
      %2548 = vmatpush.msra.mxu0 0.0
      %2549 = vmatpush.msra.mxu0 0.0
      %2550 = vmatpush.msra.mxu0 0.0
      %2551 = vmatpush.msra.mxu0 0.0
      %2552 = vmatpush.msra.mxu0 0.0
      %2553 = vmatpush.msra.mxu0 0.0
      %2554 = vmatpush.msra.mxu0 0.0
      %2555 = vmatpush.msra.mxu0 0.0
      %2556 = vmatpush.msra.mxu0 0.0
      %v2557 = vand.u32 %v720, 4294901760
      %2558 = vmatpush.msra.mxu0 %v2557
      %v2559 = vand.u32 %v696, 4294901760
      %v2560 = vsub.f32 %v696, %v2559
      %v2561 = vand.u32 %v2560, 4294901760
      %2562 = vmatmul.f32.gmra.mxu0 %v2561
      %v2563 = vpop.f32.mrf.mxu0
      %v2564 = vadd.f32 %v2530, %v2563
      %v2565 = vand.u32 %v699, 4294901760
      %v2566 = vsub.f32 %v699, %v2565
      %v2567 = vand.u32 %v2566, 4294901760
      %2568 = vmatmul.f32.gmra.mxu0 %v2567
      %v2569 = vpop.f32.mrf.mxu0
      %v2570 = vadd.f32 %v2535, %v2569
      %v2571 = vand.u32 %v702, 4294901760
      %v2572 = vsub.f32 %v702, %v2571
      %v2573 = vand.u32 %v2572, 4294901760
      %2574 = vmatmul.f32.gmra.mxu0 %v2573
      %v2575 = vpop.f32.mrf.mxu0
      %v2576 = vadd.f32 %v2540, %v2575
      %2577 = vdwg.mxu0
      %2578 = vmatpush.msra.mxu0 0.0
      %2579 = vmatpush.msra.mxu0 0.0
      %2580 = vmatpush.msra.mxu0 0.0
      %2581 = vmatpush.msra.mxu0 0.0
      %2582 = vmatpush.msra.mxu0 0.0
      %2583 = vmatpush.msra.mxu0 0.0
      %2584 = vmatpush.msra.mxu0 0.0
      %2585 = vmatpush.msra.mxu0 0.0
      %2586 = vmatpush.msra.mxu0 0.0
      %2587 = vmatpush.msra.mxu0 0.0
      %2588 = vmatpush.msra.mxu0 0.0
      %2589 = vmatpush.msra.mxu0 0.0
      %2590 = vmatpush.msra.mxu0 0.0
      %2591 = vmatpush.msra.mxu0 0.0
      %2592 = vmatpush.msra.mxu0 0.0
      %v2593 = vand.u32 %v720, 4294901760
      %v2594 = vsub.f32 %v720, %v2593
      %v2595 = vand.u32 %v2594, 4294901760
      %2596 = vmatpush.msra.mxu0 %v2595
      %v2597 = vand.u32 %v696, 4294901760
      %2598 = vmatmul.f32.gmra.mxu0 %v2597
      %v2599 = vpop.f32.mrf.mxu0
      %v2600 = vadd.f32 %v2564, %v2599
      %v2601 = vand.u32 %v699, 4294901760
      %2602 = vmatmul.f32.gmra.mxu0 %v2601
      %v2603 = vpop.f32.mrf.mxu0
      %v2604 = vadd.f32 %v2570, %v2603
      %v2605 = vand.u32 %v702, 4294901760
      %2606 = vmatmul.f32.gmra.mxu0 %v2605
      %v2607 = vpop.f32.mrf.mxu0
      %v2608 = vadd.f32 %v2576, %v2607
      %2609 = vdwg.mxu0
      %2610 = vmatpush.msra.mxu0 0.0
      %2611 = vmatpush.msra.mxu0 0.0
      %2612 = vmatpush.msra.mxu0 0.0
      %2613 = vmatpush.msra.mxu0 0.0
      %2614 = vmatpush.msra.mxu0 0.0
      %2615 = vmatpush.msra.mxu0 0.0
      %2616 = vmatpush.msra.mxu0 0.0
      %2617 = vmatpush.msra.mxu0 0.0
      %2618 = vmatpush.msra.mxu0 0.0
      %2619 = vmatpush.msra.mxu0 0.0
      %2620 = vmatpush.msra.mxu0 0.0
      %2621 = vmatpush.msra.mxu0 0.0
      %2622 = vmatpush.msra.mxu0 0.0
      %2623 = vmatpush.msra.mxu0 0.0
      %2624 = vmatpush.msra.mxu0 0.0
      %v2625 = vand.u32 %v720, 4294901760
      %2626 = vmatpush.msra.mxu0 %v2625
      %v2627 = vand.u32 %v696, 4294901760
      %2628 = vmatmul.f32.gmra.mxu0 %v2627
      %v2629 = vpop.f32.mrf.mxu0
      %v2630 = vadd.f32 %v2600, %v2629
      %v2631 = vand.u32 %v699, 4294901760
      %2632 = vmatmul.f32.gmra.mxu0 %v2631
      %v2633 = vpop.f32.mrf.mxu0
      %v2634 = vadd.f32 %v2604, %v2633
      %v2635 = vand.u32 %v702, 4294901760
      %2636 = vmatmul.f32.gmra.mxu0 %v2635
      %v2637 = vpop.f32.mrf.mxu0
      %v2638 = vadd.f32 %v2608, %v2637
      %2639 = vdwg.mxu0
      %2640 = vmatpush.msra.mxu0 0.0
      %2641 = vmatpush.msra.mxu0 0.0
      %2642 = vmatpush.msra.mxu0 0.0
      %2643 = vmatpush.msra.mxu0 0.0
      %2644 = vmatpush.msra.mxu0 0.0
      %2645 = vmatpush.msra.mxu0 0.0
      %2646 = vmatpush.msra.mxu0 0.0
      %2647 = vmatpush.msra.mxu0 0.0
      %2648 = vmatpush.msra.mxu0 0.0
      %2649 = vmatpush.msra.mxu0 0.0
      %2650 = vmatpush.msra.mxu0 0.0
      %2651 = vmatpush.msra.mxu0 0.0
      %2652 = vmatpush.msra.mxu0 0.0
      %2653 = vmatpush.msra.mxu0 0.0
      %2654 = vmatpush.msra.mxu0 0.0
      %v2655 = vand.u32 %v722, 4294901760
      %2656 = vmatpush.msra.mxu0 %v2655
      %v2657 = vand.u32 %v696, 4294901760
      %v2658 = vsub.f32 %v696, %v2657
      %v2659 = vand.u32 %v2658, 4294901760
      %v2660 = vsub.f32 %v2658, %v2659
      %v2661 = vand.u32 %v2660, 4294901760
      %2662 = vmatmul.f32.gmra.mxu0 %v2661
      %v2663 = vpop.f32.mrf.mxu0
      %v2664 = vadd.f32 %v615, %v2663
      %v2665 = vand.u32 %v699, 4294901760
      %v2666 = vsub.f32 %v699, %v2665
      %v2667 = vand.u32 %v2666, 4294901760
      %v2668 = vsub.f32 %v2666, %v2667
      %v2669 = vand.u32 %v2668, 4294901760
      %2670 = vmatmul.f32.gmra.mxu0 %v2669
      %v2671 = vpop.f32.mrf.mxu0
      %v2672 = vadd.f32 %v620, %v2671
      %v2673 = vand.u32 %v702, 4294901760
      %v2674 = vsub.f32 %v702, %v2673
      %v2675 = vand.u32 %v2674, 4294901760
      %v2676 = vsub.f32 %v2674, %v2675
      %v2677 = vand.u32 %v2676, 4294901760
      %2678 = vmatmul.f32.gmra.mxu0 %v2677
      %v2679 = vpop.f32.mrf.mxu0
      %v2680 = vadd.f32 %v625, %v2679
      %2681 = vdwg.mxu0
      %2682 = vmatpush.msra.mxu0 0.0
      %2683 = vmatpush.msra.mxu0 0.0
      %2684 = vmatpush.msra.mxu0 0.0
      %2685 = vmatpush.msra.mxu0 0.0
      %2686 = vmatpush.msra.mxu0 0.0
      %2687 = vmatpush.msra.mxu0 0.0
      %2688 = vmatpush.msra.mxu0 0.0
      %2689 = vmatpush.msra.mxu0 0.0
      %2690 = vmatpush.msra.mxu0 0.0
      %2691 = vmatpush.msra.mxu0 0.0
      %2692 = vmatpush.msra.mxu0 0.0
      %2693 = vmatpush.msra.mxu0 0.0
      %2694 = vmatpush.msra.mxu0 0.0
      %2695 = vmatpush.msra.mxu0 0.0
      %2696 = vmatpush.msra.mxu0 0.0
      %v2697 = vand.u32 %v722, 4294901760
      %v2698 = vsub.f32 %v722, %v2697
      %v2699 = vand.u32 %v2698, 4294901760
      %v2700 = vsub.f32 %v2698, %v2699
      %v2701 = vand.u32 %v2700, 4294901760
      %2702 = vmatpush.msra.mxu0 %v2701
      %v2703 = vand.u32 %v696, 4294901760
      %2704 = vmatmul.f32.gmra.mxu0 %v2703
      %v2705 = vpop.f32.mrf.mxu0
      %v2706 = vadd.f32 %v2664, %v2705
      %v2707 = vand.u32 %v699, 4294901760
      %2708 = vmatmul.f32.gmra.mxu0 %v2707
      %v2709 = vpop.f32.mrf.mxu0
      %v2710 = vadd.f32 %v2672, %v2709
      %v2711 = vand.u32 %v702, 4294901760
      %2712 = vmatmul.f32.gmra.mxu0 %v2711
      %v2713 = vpop.f32.mrf.mxu0
      %v2714 = vadd.f32 %v2680, %v2713
      %2715 = vdwg.mxu0
      %2716 = vmatpush.msra.mxu0 0.0
      %2717 = vmatpush.msra.mxu0 0.0
      %2718 = vmatpush.msra.mxu0 0.0
      %2719 = vmatpush.msra.mxu0 0.0
      %2720 = vmatpush.msra.mxu0 0.0
      %2721 = vmatpush.msra.mxu0 0.0
      %2722 = vmatpush.msra.mxu0 0.0
      %2723 = vmatpush.msra.mxu0 0.0
      %2724 = vmatpush.msra.mxu0 0.0
      %2725 = vmatpush.msra.mxu0 0.0
      %2726 = vmatpush.msra.mxu0 0.0
      %2727 = vmatpush.msra.mxu0 0.0
      %2728 = vmatpush.msra.mxu0 0.0
      %2729 = vmatpush.msra.mxu0 0.0
      %2730 = vmatpush.msra.mxu0 0.0
      %v2731 = vand.u32 %v722, 4294901760
      %v2732 = vsub.f32 %v722, %v2731
      %2733 = vmatpush.msra.mxu0 %v2732
      %v2734 = vand.u32 %v696, 4294901760
      %v2735 = vsub.f32 %v696, %v2734
      %2736 = vmatmul.f32.gmra.mxu0 %v2735
      %v2737 = vpop.f32.mrf.mxu0
      %v2738 = vadd.f32 %v2706, %v2737
      %v2739 = vand.u32 %v699, 4294901760
      %v2740 = vsub.f32 %v699, %v2739
      %2741 = vmatmul.f32.gmra.mxu0 %v2740
      %v2742 = vpop.f32.mrf.mxu0
      %v2743 = vadd.f32 %v2710, %v2742
      %v2744 = vand.u32 %v702, 4294901760
      %v2745 = vsub.f32 %v702, %v2744
      %2746 = vmatmul.f32.gmra.mxu0 %v2745
      %v2747 = vpop.f32.mrf.mxu0
      %v2748 = vadd.f32 %v2714, %v2747
      %2749 = vdwg.mxu0
      %2750 = vmatpush.msra.mxu0 0.0
      %2751 = vmatpush.msra.mxu0 0.0
      %2752 = vmatpush.msra.mxu0 0.0
      %2753 = vmatpush.msra.mxu0 0.0
      %2754 = vmatpush.msra.mxu0 0.0
      %2755 = vmatpush.msra.mxu0 0.0
      %2756 = vmatpush.msra.mxu0 0.0
      %2757 = vmatpush.msra.mxu0 0.0
      %2758 = vmatpush.msra.mxu0 0.0
      %2759 = vmatpush.msra.mxu0 0.0
      %2760 = vmatpush.msra.mxu0 0.0
      %2761 = vmatpush.msra.mxu0 0.0
      %2762 = vmatpush.msra.mxu0 0.0
      %2763 = vmatpush.msra.mxu0 0.0
      %2764 = vmatpush.msra.mxu0 0.0
      %v2765 = vand.u32 %v722, 4294901760
      %2766 = vmatpush.msra.mxu0 %v2765
      %v2767 = vand.u32 %v696, 4294901760
      %v2768 = vsub.f32 %v696, %v2767
      %v2769 = vand.u32 %v2768, 4294901760
      %2770 = vmatmul.f32.gmra.mxu0 %v2769
      %v2771 = vpop.f32.mrf.mxu0
      %v2772 = vadd.f32 %v2738, %v2771
      %v2773 = vand.u32 %v699, 4294901760
      %v2774 = vsub.f32 %v699, %v2773
      %v2775 = vand.u32 %v2774, 4294901760
      %2776 = vmatmul.f32.gmra.mxu0 %v2775
      %v2777 = vpop.f32.mrf.mxu0
      %v2778 = vadd.f32 %v2743, %v2777
      %v2779 = vand.u32 %v702, 4294901760
      %v2780 = vsub.f32 %v702, %v2779
      %v2781 = vand.u32 %v2780, 4294901760
      %2782 = vmatmul.f32.gmra.mxu0 %v2781
      %v2783 = vpop.f32.mrf.mxu0
      %v2784 = vadd.f32 %v2748, %v2783
      %2785 = vdwg.mxu0
      %2786 = vmatpush.msra.mxu0 0.0
      %2787 = vmatpush.msra.mxu0 0.0
      %2788 = vmatpush.msra.mxu0 0.0
      %2789 = vmatpush.msra.mxu0 0.0
      %2790 = vmatpush.msra.mxu0 0.0
      %2791 = vmatpush.msra.mxu0 0.0
      %2792 = vmatpush.msra.mxu0 0.0
      %2793 = vmatpush.msra.mxu0 0.0
      %2794 = vmatpush.msra.mxu0 0.0
      %2795 = vmatpush.msra.mxu0 0.0
      %2796 = vmatpush.msra.mxu0 0.0
      %2797 = vmatpush.msra.mxu0 0.0
      %2798 = vmatpush.msra.mxu0 0.0
      %2799 = vmatpush.msra.mxu0 0.0
      %2800 = vmatpush.msra.mxu0 0.0
      %v2801 = vand.u32 %v722, 4294901760
      %v2802 = vsub.f32 %v722, %v2801
      %v2803 = vand.u32 %v2802, 4294901760
      %2804 = vmatpush.msra.mxu0 %v2803
      %v2805 = vand.u32 %v696, 4294901760
      %2806 = vmatmul.f32.gmra.mxu0 %v2805
      %v2807 = vpop.f32.mrf.mxu0
      %v2808 = vadd.f32 %v2772, %v2807
      %v2809 = vand.u32 %v699, 4294901760
      %2810 = vmatmul.f32.gmra.mxu0 %v2809
      %v2811 = vpop.f32.mrf.mxu0
      %v2812 = vadd.f32 %v2778, %v2811
      %v2813 = vand.u32 %v702, 4294901760
      %2814 = vmatmul.f32.gmra.mxu0 %v2813
      %v2815 = vpop.f32.mrf.mxu0
      %v2816 = vadd.f32 %v2784, %v2815
      %2817 = vdwg.mxu0
      %2818 = vmatpush.msra.mxu0 0.0
      %2819 = vmatpush.msra.mxu0 0.0
      %2820 = vmatpush.msra.mxu0 0.0
      %2821 = vmatpush.msra.mxu0 0.0
      %2822 = vmatpush.msra.mxu0 0.0
      %2823 = vmatpush.msra.mxu0 0.0
      %2824 = vmatpush.msra.mxu0 0.0
      %2825 = vmatpush.msra.mxu0 0.0
      %2826 = vmatpush.msra.mxu0 0.0
      %2827 = vmatpush.msra.mxu0 0.0
      %2828 = vmatpush.msra.mxu0 0.0
      %2829 = vmatpush.msra.mxu0 0.0
      %2830 = vmatpush.msra.mxu0 0.0
      %2831 = vmatpush.msra.mxu0 0.0
      %2832 = vmatpush.msra.mxu0 0.0
      %v2833 = vand.u32 %v722, 4294901760
      %2834 = vmatpush.msra.mxu0 %v2833
      %v2835 = vand.u32 %v696, 4294901760
      %2836 = vmatmul.f32.gmra.mxu0 %v2835
      %v2837 = vpop.f32.mrf.mxu0
      %v2838 = vadd.f32 %v2808, %v2837
      %v2839 = vand.u32 %v699, 4294901760
      %2840 = vmatmul.f32.gmra.mxu0 %v2839
      %v2841 = vpop.f32.mrf.mxu0
      %v2842 = vadd.f32 %v2812, %v2841
      %v2843 = vand.u32 %v702, 4294901760
      %2844 = vmatmul.f32.gmra.mxu0 %v2843
      %v2845 = vpop.f32.mrf.mxu0
      %v2846 = vadd.f32 %v2816, %v2845
      %2847 = vdwg.mxu0
      %2848 = vmatpush.msra.mxu0 0.0
      %2849 = vmatpush.msra.mxu0 0.0
      %2850 = vmatpush.msra.mxu0 0.0
      %2851 = vmatpush.msra.mxu0 0.0
      %2852 = vmatpush.msra.mxu0 0.0
      %2853 = vmatpush.msra.mxu0 0.0
      %2854 = vmatpush.msra.mxu0 0.0
      %2855 = vmatpush.msra.mxu0 0.0
      %2856 = vmatpush.msra.mxu0 0.0
      %2857 = vmatpush.msra.mxu0 0.0
      %2858 = vmatpush.msra.mxu0 0.0
      %2859 = vmatpush.msra.mxu0 0.0
      %2860 = vmatpush.msra.mxu0 0.0
      %2861 = vmatpush.msra.mxu0 0.0
      %2862 = vmatpush.msra.mxu0 0.0
      %v2863 = vand.u32 %v724, 4294901760
      %2864 = vmatpush.msra.mxu0 %v2863
      %v2865 = vand.u32 %v696, 4294901760
      %v2866 = vsub.f32 %v696, %v2865
      %v2867 = vand.u32 %v2866, 4294901760
      %v2868 = vsub.f32 %v2866, %v2867
      %v2869 = vand.u32 %v2868, 4294901760
      %2870 = vmatmul.f32.gmra.mxu0 %v2869
      %v2871 = vpop.f32.mrf.mxu0
      %v2872 = vadd.f32 %v615, %v2871
      %v2873 = vand.u32 %v699, 4294901760
      %v2874 = vsub.f32 %v699, %v2873
      %v2875 = vand.u32 %v2874, 4294901760
      %v2876 = vsub.f32 %v2874, %v2875
      %v2877 = vand.u32 %v2876, 4294901760
      %2878 = vmatmul.f32.gmra.mxu0 %v2877
      %v2879 = vpop.f32.mrf.mxu0
      %v2880 = vadd.f32 %v620, %v2879
      %v2881 = vand.u32 %v702, 4294901760
      %v2882 = vsub.f32 %v702, %v2881
      %v2883 = vand.u32 %v2882, 4294901760
      %v2884 = vsub.f32 %v2882, %v2883
      %v2885 = vand.u32 %v2884, 4294901760
      %2886 = vmatmul.f32.gmra.mxu0 %v2885
      %v2887 = vpop.f32.mrf.mxu0
      %v2888 = vadd.f32 %v625, %v2887
      %2889 = vdwg.mxu0
      %2890 = vmatpush.msra.mxu0 0.0
      %2891 = vmatpush.msra.mxu0 0.0
      %2892 = vmatpush.msra.mxu0 0.0
      %2893 = vmatpush.msra.mxu0 0.0
      %2894 = vmatpush.msra.mxu0 0.0
      %2895 = vmatpush.msra.mxu0 0.0
      %2896 = vmatpush.msra.mxu0 0.0
      %2897 = vmatpush.msra.mxu0 0.0
      %2898 = vmatpush.msra.mxu0 0.0
      %2899 = vmatpush.msra.mxu0 0.0
      %2900 = vmatpush.msra.mxu0 0.0
      %2901 = vmatpush.msra.mxu0 0.0
      %2902 = vmatpush.msra.mxu0 0.0
      %2903 = vmatpush.msra.mxu0 0.0
      %2904 = vmatpush.msra.mxu0 0.0
      %v2905 = vand.u32 %v724, 4294901760
      %v2906 = vsub.f32 %v724, %v2905
      %v2907 = vand.u32 %v2906, 4294901760
      %v2908 = vsub.f32 %v2906, %v2907
      %v2909 = vand.u32 %v2908, 4294901760
      %2910 = vmatpush.msra.mxu0 %v2909
      %v2911 = vand.u32 %v696, 4294901760
      %2912 = vmatmul.f32.gmra.mxu0 %v2911
      %v2913 = vpop.f32.mrf.mxu0
      %v2914 = vadd.f32 %v2872, %v2913
      %v2915 = vand.u32 %v699, 4294901760
      %2916 = vmatmul.f32.gmra.mxu0 %v2915
      %v2917 = vpop.f32.mrf.mxu0
      %v2918 = vadd.f32 %v2880, %v2917
      %v2919 = vand.u32 %v702, 4294901760
      %2920 = vmatmul.f32.gmra.mxu0 %v2919
      %v2921 = vpop.f32.mrf.mxu0
      %v2922 = vadd.f32 %v2888, %v2921
      %2923 = vdwg.mxu0
      %2924 = vmatpush.msra.mxu0 0.0
      %2925 = vmatpush.msra.mxu0 0.0
      %2926 = vmatpush.msra.mxu0 0.0
      %2927 = vmatpush.msra.mxu0 0.0
      %2928 = vmatpush.msra.mxu0 0.0
      %2929 = vmatpush.msra.mxu0 0.0
      %2930 = vmatpush.msra.mxu0 0.0
      %2931 = vmatpush.msra.mxu0 0.0
      %2932 = vmatpush.msra.mxu0 0.0
      %2933 = vmatpush.msra.mxu0 0.0
      %2934 = vmatpush.msra.mxu0 0.0
      %2935 = vmatpush.msra.mxu0 0.0
      %2936 = vmatpush.msra.mxu0 0.0
      %2937 = vmatpush.msra.mxu0 0.0
      %2938 = vmatpush.msra.mxu0 0.0
      %v2939 = vand.u32 %v724, 4294901760
      %v2940 = vsub.f32 %v724, %v2939
      %2941 = vmatpush.msra.mxu0 %v2940
      %v2942 = vand.u32 %v696, 4294901760
      %v2943 = vsub.f32 %v696, %v2942
      %2944 = vmatmul.f32.gmra.mxu0 %v2943
      %v2945 = vpop.f32.mrf.mxu0
      %v2946 = vadd.f32 %v2914, %v2945
      %v2947 = vand.u32 %v699, 4294901760
      %v2948 = vsub.f32 %v699, %v2947
      %2949 = vmatmul.f32.gmra.mxu0 %v2948
      %v2950 = vpop.f32.mrf.mxu0
      %v2951 = vadd.f32 %v2918, %v2950
      %v2952 = vand.u32 %v702, 4294901760
      %v2953 = vsub.f32 %v702, %v2952
      %2954 = vmatmul.f32.gmra.mxu0 %v2953
      %v2955 = vpop.f32.mrf.mxu0
      %v2956 = vadd.f32 %v2922, %v2955
      %2957 = vdwg.mxu0
      %2958 = vmatpush.msra.mxu0 0.0
      %2959 = vmatpush.msra.mxu0 0.0
      %2960 = vmatpush.msra.mxu0 0.0
      %2961 = vmatpush.msra.mxu0 0.0
      %2962 = vmatpush.msra.mxu0 0.0
      %2963 = vmatpush.msra.mxu0 0.0
      %2964 = vmatpush.msra.mxu0 0.0
      %2965 = vmatpush.msra.mxu0 0.0
      %2966 = vmatpush.msra.mxu0 0.0
      %2967 = vmatpush.msra.mxu0 0.0
      %2968 = vmatpush.msra.mxu0 0.0
      %2969 = vmatpush.msra.mxu0 0.0
      %2970 = vmatpush.msra.mxu0 0.0
      %2971 = vmatpush.msra.mxu0 0.0
      %2972 = vmatpush.msra.mxu0 0.0
      %v2973 = vand.u32 %v724, 4294901760
      %2974 = vmatpush.msra.mxu0 %v2973
      %v2975 = vand.u32 %v696, 4294901760
      %v2976 = vsub.f32 %v696, %v2975
      %v2977 = vand.u32 %v2976, 4294901760
      %2978 = vmatmul.f32.gmra.mxu0 %v2977
      %v2979 = vpop.f32.mrf.mxu0
      %v2980 = vadd.f32 %v2946, %v2979
      %v2981 = vand.u32 %v699, 4294901760
      %v2982 = vsub.f32 %v699, %v2981
      %v2983 = vand.u32 %v2982, 4294901760
      %2984 = vmatmul.f32.gmra.mxu0 %v2983
      %v2985 = vpop.f32.mrf.mxu0
      %v2986 = vadd.f32 %v2951, %v2985
      %v2987 = vand.u32 %v702, 4294901760
      %v2988 = vsub.f32 %v702, %v2987
      %v2989 = vand.u32 %v2988, 4294901760
      %2990 = vmatmul.f32.gmra.mxu0 %v2989
      %v2991 = vpop.f32.mrf.mxu0
      %v2992 = vadd.f32 %v2956, %v2991
      %2993 = vdwg.mxu0
      %2994 = vmatpush.msra.mxu0 0.0
      %2995 = vmatpush.msra.mxu0 0.0
      %2996 = vmatpush.msra.mxu0 0.0
      %2997 = vmatpush.msra.mxu0 0.0
      %2998 = vmatpush.msra.mxu0 0.0
      %2999 = vmatpush.msra.mxu0 0.0
      %3000 = vmatpush.msra.mxu0 0.0
      %3001 = vmatpush.msra.mxu0 0.0
      %3002 = vmatpush.msra.mxu0 0.0
      %3003 = vmatpush.msra.mxu0 0.0
      %3004 = vmatpush.msra.mxu0 0.0
      %3005 = vmatpush.msra.mxu0 0.0
      %3006 = vmatpush.msra.mxu0 0.0
      %3007 = vmatpush.msra.mxu0 0.0
      %3008 = vmatpush.msra.mxu0 0.0
      %v3009 = vand.u32 %v724, 4294901760
      %v3010 = vsub.f32 %v724, %v3009
      %v3011 = vand.u32 %v3010, 4294901760
      %3012 = vmatpush.msra.mxu0 %v3011
      %v3013 = vand.u32 %v696, 4294901760
      %3014 = vmatmul.f32.gmra.mxu0 %v3013
      %v3015 = vpop.f32.mrf.mxu0
      %v3016 = vadd.f32 %v2980, %v3015
      %v3017 = vand.u32 %v699, 4294901760
      %3018 = vmatmul.f32.gmra.mxu0 %v3017
      %v3019 = vpop.f32.mrf.mxu0
      %v3020 = vadd.f32 %v2986, %v3019
      %v3021 = vand.u32 %v702, 4294901760
      %3022 = vmatmul.f32.gmra.mxu0 %v3021
      %v3023 = vpop.f32.mrf.mxu0
      %v3024 = vadd.f32 %v2992, %v3023
      %3025 = vdwg.mxu0
      %3026 = vmatpush.msra.mxu0 0.0
      %3027 = vmatpush.msra.mxu0 0.0
      %3028 = vmatpush.msra.mxu0 0.0
      %3029 = vmatpush.msra.mxu0 0.0
      %3030 = vmatpush.msra.mxu0 0.0
      %3031 = vmatpush.msra.mxu0 0.0
      %3032 = vmatpush.msra.mxu0 0.0
      %3033 = vmatpush.msra.mxu0 0.0
      %3034 = vmatpush.msra.mxu0 0.0
      %3035 = vmatpush.msra.mxu0 0.0
      %3036 = vmatpush.msra.mxu0 0.0
      %3037 = vmatpush.msra.mxu0 0.0
      %3038 = vmatpush.msra.mxu0 0.0
      %3039 = vmatpush.msra.mxu0 0.0
      %3040 = vmatpush.msra.mxu0 0.0
      %v3041 = vand.u32 %v724, 4294901760
      %3042 = vmatpush.msra.mxu0 %v3041
      %v3043 = vand.u32 %v696, 4294901760
      %3044 = vmatmul.f32.gmra.mxu0 %v3043
      %v3045 = vpop.f32.mrf.mxu0
      %v3046 = vadd.f32 %v3016, %v3045
      %v3047 = vand.u32 %v699, 4294901760
      %3048 = vmatmul.f32.gmra.mxu0 %v3047
      %v3049 = vpop.f32.mrf.mxu0
      %v3050 = vadd.f32 %v3020, %v3049
      %v3051 = vand.u32 %v702, 4294901760
      %3052 = vmatmul.f32.gmra.mxu0 %v3051
      %v3053 = vpop.f32.mrf.mxu0
      %v3054 = vadd.f32 %v3024, %v3053
      %3055 = vdwg.mxu0
      %3056 = vmatpush.msra.mxu0 0.0
      %3057 = vmatpush.msra.mxu0 0.0
      %3058 = vmatpush.msra.mxu0 0.0
      %3059 = vmatpush.msra.mxu0 0.0
      %3060 = vmatpush.msra.mxu0 0.0
      %3061 = vmatpush.msra.mxu0 0.0
      %3062 = vmatpush.msra.mxu0 0.0
      %3063 = vmatpush.msra.mxu0 0.0
      %3064 = vmatpush.msra.mxu0 0.0
      %3065 = vmatpush.msra.mxu0 0.0
      %3066 = vmatpush.msra.mxu0 0.0
      %3067 = vmatpush.msra.mxu0 0.0
      %3068 = vmatpush.msra.mxu0 0.0
      %3069 = vmatpush.msra.mxu0 0.0
      %3070 = vmatpush.msra.mxu0 0.0
      %v3071 = vand.u32 %v726, 4294901760
      %3072 = vmatpush.msra.mxu0 %v3071
      %v3073 = vand.u32 %v696, 4294901760
      %v3074 = vsub.f32 %v696, %v3073
      %v3075 = vand.u32 %v3074, 4294901760
      %v3076 = vsub.f32 %v3074, %v3075
      %v3077 = vand.u32 %v3076, 4294901760
      %3078 = vmatmul.f32.gmra.mxu0 %v3077
      %v3079 = vpop.f32.mrf.mxu0
      %v3080 = vadd.f32 %v615, %v3079
      %v3081 = vand.u32 %v699, 4294901760
      %v3082 = vsub.f32 %v699, %v3081
      %v3083 = vand.u32 %v3082, 4294901760
      %v3084 = vsub.f32 %v3082, %v3083
      %v3085 = vand.u32 %v3084, 4294901760
      %3086 = vmatmul.f32.gmra.mxu0 %v3085
      %v3087 = vpop.f32.mrf.mxu0
      %v3088 = vadd.f32 %v620, %v3087
      %v3089 = vand.u32 %v702, 4294901760
      %v3090 = vsub.f32 %v702, %v3089
      %v3091 = vand.u32 %v3090, 4294901760
      %v3092 = vsub.f32 %v3090, %v3091
      %v3093 = vand.u32 %v3092, 4294901760
      %3094 = vmatmul.f32.gmra.mxu0 %v3093
      %v3095 = vpop.f32.mrf.mxu0
      %v3096 = vadd.f32 %v625, %v3095
      %3097 = vdwg.mxu0
      %3098 = vmatpush.msra.mxu0 0.0
      %3099 = vmatpush.msra.mxu0 0.0
      %3100 = vmatpush.msra.mxu0 0.0
      %3101 = vmatpush.msra.mxu0 0.0
      %3102 = vmatpush.msra.mxu0 0.0
      %3103 = vmatpush.msra.mxu0 0.0
      %3104 = vmatpush.msra.mxu0 0.0
      %3105 = vmatpush.msra.mxu0 0.0
      %3106 = vmatpush.msra.mxu0 0.0
      %3107 = vmatpush.msra.mxu0 0.0
      %3108 = vmatpush.msra.mxu0 0.0
      %3109 = vmatpush.msra.mxu0 0.0
      %3110 = vmatpush.msra.mxu0 0.0
      %3111 = vmatpush.msra.mxu0 0.0
      %3112 = vmatpush.msra.mxu0 0.0
      %v3113 = vand.u32 %v726, 4294901760
      %v3114 = vsub.f32 %v726, %v3113
      %v3115 = vand.u32 %v3114, 4294901760
      %v3116 = vsub.f32 %v3114, %v3115
      %v3117 = vand.u32 %v3116, 4294901760
      %3118 = vmatpush.msra.mxu0 %v3117
      %v3119 = vand.u32 %v696, 4294901760
      %3120 = vmatmul.f32.gmra.mxu0 %v3119
      %v3121 = vpop.f32.mrf.mxu0
      %v3122 = vadd.f32 %v3080, %v3121
      %v3123 = vand.u32 %v699, 4294901760
      %3124 = vmatmul.f32.gmra.mxu0 %v3123
      %v3125 = vpop.f32.mrf.mxu0
      %v3126 = vadd.f32 %v3088, %v3125
      %v3127 = vand.u32 %v702, 4294901760
      %3128 = vmatmul.f32.gmra.mxu0 %v3127
      %v3129 = vpop.f32.mrf.mxu0
      %v3130 = vadd.f32 %v3096, %v3129
      %3131 = vdwg.mxu0
      %3132 = vmatpush.msra.mxu0 0.0
      %3133 = vmatpush.msra.mxu0 0.0
      %3134 = vmatpush.msra.mxu0 0.0
      %3135 = vmatpush.msra.mxu0 0.0
      %3136 = vmatpush.msra.mxu0 0.0
      %3137 = vmatpush.msra.mxu0 0.0
      %3138 = vmatpush.msra.mxu0 0.0
      %3139 = vmatpush.msra.mxu0 0.0
      %3140 = vmatpush.msra.mxu0 0.0
      %3141 = vmatpush.msra.mxu0 0.0
      %3142 = vmatpush.msra.mxu0 0.0
      %3143 = vmatpush.msra.mxu0 0.0
      %3144 = vmatpush.msra.mxu0 0.0
      %3145 = vmatpush.msra.mxu0 0.0
      %3146 = vmatpush.msra.mxu0 0.0
      %v3147 = vand.u32 %v726, 4294901760
      %v3148 = vsub.f32 %v726, %v3147
      %3149 = vmatpush.msra.mxu0 %v3148
      %v3150 = vand.u32 %v696, 4294901760
      %v3151 = vsub.f32 %v696, %v3150
      %3152 = vmatmul.f32.gmra.mxu0 %v3151
      %v3153 = vpop.f32.mrf.mxu0
      %v3154 = vadd.f32 %v3122, %v3153
      %v3155 = vand.u32 %v699, 4294901760
      %v3156 = vsub.f32 %v699, %v3155
      %3157 = vmatmul.f32.gmra.mxu0 %v3156
      %v3158 = vpop.f32.mrf.mxu0
      %v3159 = vadd.f32 %v3126, %v3158
      %v3160 = vand.u32 %v702, 4294901760
      %v3161 = vsub.f32 %v702, %v3160
      %3162 = vmatmul.f32.gmra.mxu0 %v3161
      %v3163 = vpop.f32.mrf.mxu0
      %v3164 = vadd.f32 %v3130, %v3163
      %3165 = vdwg.mxu0
      %3166 = vmatpush.msra.mxu0 0.0
      %3167 = vmatpush.msra.mxu0 0.0
      %3168 = vmatpush.msra.mxu0 0.0
      %3169 = vmatpush.msra.mxu0 0.0
      %3170 = vmatpush.msra.mxu0 0.0
      %3171 = vmatpush.msra.mxu0 0.0
      %3172 = vmatpush.msra.mxu0 0.0
      %3173 = vmatpush.msra.mxu0 0.0
      %3174 = vmatpush.msra.mxu0 0.0
      %3175 = vmatpush.msra.mxu0 0.0
      %3176 = vmatpush.msra.mxu0 0.0
      %3177 = vmatpush.msra.mxu0 0.0
      %3178 = vmatpush.msra.mxu0 0.0
      %3179 = vmatpush.msra.mxu0 0.0
      %3180 = vmatpush.msra.mxu0 0.0
      %v3181 = vand.u32 %v726, 4294901760
      %3182 = vmatpush.msra.mxu0 %v3181
      %v3183 = vand.u32 %v696, 4294901760
      %v3184 = vsub.f32 %v696, %v3183
      %v3185 = vand.u32 %v3184, 4294901760
      %3186 = vmatmul.f32.gmra.mxu0 %v3185
      %v3187 = vpop.f32.mrf.mxu0
      %v3188 = vadd.f32 %v3154, %v3187
      %v3189 = vand.u32 %v699, 4294901760
      %v3190 = vsub.f32 %v699, %v3189
      %v3191 = vand.u32 %v3190, 4294901760
      %3192 = vmatmul.f32.gmra.mxu0 %v3191
      %v3193 = vpop.f32.mrf.mxu0
      %v3194 = vadd.f32 %v3159, %v3193
      %v3195 = vand.u32 %v702, 4294901760
      %v3196 = vsub.f32 %v702, %v3195
      %v3197 = vand.u32 %v3196, 4294901760
      %3198 = vmatmul.f32.gmra.mxu0 %v3197
      %v3199 = vpop.f32.mrf.mxu0
      %v3200 = vadd.f32 %v3164, %v3199
      %3201 = vdwg.mxu0
      %3202 = vmatpush.msra.mxu0 0.0
      %3203 = vmatpush.msra.mxu0 0.0
      %3204 = vmatpush.msra.mxu0 0.0
      %3205 = vmatpush.msra.mxu0 0.0
      %3206 = vmatpush.msra.mxu0 0.0
      %3207 = vmatpush.msra.mxu0 0.0
      %3208 = vmatpush.msra.mxu0 0.0
      %3209 = vmatpush.msra.mxu0 0.0
      %3210 = vmatpush.msra.mxu0 0.0
      %3211 = vmatpush.msra.mxu0 0.0
      %3212 = vmatpush.msra.mxu0 0.0
      %3213 = vmatpush.msra.mxu0 0.0
      %3214 = vmatpush.msra.mxu0 0.0
      %3215 = vmatpush.msra.mxu0 0.0
      %3216 = vmatpush.msra.mxu0 0.0
      %v3217 = vand.u32 %v726, 4294901760
      %v3218 = vsub.f32 %v726, %v3217
      %v3219 = vand.u32 %v3218, 4294901760
      %3220 = vmatpush.msra.mxu0 %v3219
      %v3221 = vand.u32 %v696, 4294901760
      %3222 = vmatmul.f32.gmra.mxu0 %v3221
      %v3223 = vpop.f32.mrf.mxu0
      %v3224 = vadd.f32 %v3188, %v3223
      %v3225 = vand.u32 %v699, 4294901760
      %3226 = vmatmul.f32.gmra.mxu0 %v3225
      %v3227 = vpop.f32.mrf.mxu0
      %v3228 = vadd.f32 %v3194, %v3227
      %v3229 = vand.u32 %v702, 4294901760
      %3230 = vmatmul.f32.gmra.mxu0 %v3229
      %v3231 = vpop.f32.mrf.mxu0
      %v3232 = vadd.f32 %v3200, %v3231
      %3233 = vdwg.mxu0
      %3234 = vmatpush.msra.mxu0 0.0
      %3235 = vmatpush.msra.mxu0 0.0
      %3236 = vmatpush.msra.mxu0 0.0
      %3237 = vmatpush.msra.mxu0 0.0
      %3238 = vmatpush.msra.mxu0 0.0
      %3239 = vmatpush.msra.mxu0 0.0
      %3240 = vmatpush.msra.mxu0 0.0
      %3241 = vmatpush.msra.mxu0 0.0
      %3242 = vmatpush.msra.mxu0 0.0
      %3243 = vmatpush.msra.mxu0 0.0
      %3244 = vmatpush.msra.mxu0 0.0
      %3245 = vmatpush.msra.mxu0 0.0
      %3246 = vmatpush.msra.mxu0 0.0
      %3247 = vmatpush.msra.mxu0 0.0
      %3248 = vmatpush.msra.mxu0 0.0
      %v3249 = vand.u32 %v726, 4294901760
      %3250 = vmatpush.msra.mxu0 %v3249
      %v3251 = vand.u32 %v696, 4294901760
      %3252 = vmatmul.f32.gmra.mxu0 %v3251
      %v3253 = vpop.f32.mrf.mxu0
      %v3254 = vadd.f32 %v3224, %v3253
      %v3255 = vand.u32 %v699, 4294901760
      %3256 = vmatmul.f32.gmra.mxu0 %v3255
      %v3257 = vpop.f32.mrf.mxu0
      %v3258 = vadd.f32 %v3228, %v3257
      %v3259 = vand.u32 %v702, 4294901760
      %3260 = vmatmul.f32.gmra.mxu0 %v3259
      %v3261 = vpop.f32.mrf.mxu0
      %v3262 = vadd.f32 %v3232, %v3261
      %3263 = vdwg.mxu0
      %3264 = vmatpush.msra.mxu0 0.0
      %3265 = vmatpush.msra.mxu0 0.0
      %3266 = vmatpush.msra.mxu0 0.0
      %3267 = vmatpush.msra.mxu0 0.0
      %3268 = vmatpush.msra.mxu0 0.0
      %3269 = vmatpush.msra.mxu0 0.0
      %3270 = vmatpush.msra.mxu0 0.0
      %3271 = vmatpush.msra.mxu0 0.0
      %3272 = vmatpush.msra.mxu0 0.0
      %3273 = vmatpush.msra.mxu0 0.0
      %3274 = vmatpush.msra.mxu0 0.0
      %3275 = vmatpush.msra.mxu0 0.0
      %3276 = vmatpush.msra.mxu0 0.0
      %3277 = vmatpush.msra.mxu0 0.0
      %3278 = vmatpush.msra.mxu0 0.0
      %v3279 = vand.u32 %v728, 4294901760
      %3280 = vmatpush.msra.mxu0 %v3279
      %v3281 = vand.u32 %v696, 4294901760
      %v3282 = vsub.f32 %v696, %v3281
      %v3283 = vand.u32 %v3282, 4294901760
      %v3284 = vsub.f32 %v3282, %v3283
      %v3285 = vand.u32 %v3284, 4294901760
      %3286 = vmatmul.f32.gmra.mxu0 %v3285
      %v3287 = vpop.f32.mrf.mxu0
      %v3288 = vadd.f32 %v615, %v3287
      %v3289 = vand.u32 %v699, 4294901760
      %v3290 = vsub.f32 %v699, %v3289
      %v3291 = vand.u32 %v3290, 4294901760
      %v3292 = vsub.f32 %v3290, %v3291
      %v3293 = vand.u32 %v3292, 4294901760
      %3294 = vmatmul.f32.gmra.mxu0 %v3293
      %v3295 = vpop.f32.mrf.mxu0
      %v3296 = vadd.f32 %v620, %v3295
      %v3297 = vand.u32 %v702, 4294901760
      %v3298 = vsub.f32 %v702, %v3297
      %v3299 = vand.u32 %v3298, 4294901760
      %v3300 = vsub.f32 %v3298, %v3299
      %v3301 = vand.u32 %v3300, 4294901760
      %3302 = vmatmul.f32.gmra.mxu0 %v3301
      %v3303 = vpop.f32.mrf.mxu0
      %v3304 = vadd.f32 %v625, %v3303
      %3305 = vdwg.mxu0
      %3306 = vmatpush.msra.mxu0 0.0
      %3307 = vmatpush.msra.mxu0 0.0
      %3308 = vmatpush.msra.mxu0 0.0
      %3309 = vmatpush.msra.mxu0 0.0
      %3310 = vmatpush.msra.mxu0 0.0
      %3311 = vmatpush.msra.mxu0 0.0
      %3312 = vmatpush.msra.mxu0 0.0
      %3313 = vmatpush.msra.mxu0 0.0
      %3314 = vmatpush.msra.mxu0 0.0
      %3315 = vmatpush.msra.mxu0 0.0
      %3316 = vmatpush.msra.mxu0 0.0
      %3317 = vmatpush.msra.mxu0 0.0
      %3318 = vmatpush.msra.mxu0 0.0
      %3319 = vmatpush.msra.mxu0 0.0
      %3320 = vmatpush.msra.mxu0 0.0
      %v3321 = vand.u32 %v728, 4294901760
      %v3322 = vsub.f32 %v728, %v3321
      %v3323 = vand.u32 %v3322, 4294901760
      %v3324 = vsub.f32 %v3322, %v3323
      %v3325 = vand.u32 %v3324, 4294901760
      %3326 = vmatpush.msra.mxu0 %v3325
      %v3327 = vand.u32 %v696, 4294901760
      %3328 = vmatmul.f32.gmra.mxu0 %v3327
      %v3329 = vpop.f32.mrf.mxu0
      %v3330 = vadd.f32 %v3288, %v3329
      %v3331 = vand.u32 %v699, 4294901760
      %3332 = vmatmul.f32.gmra.mxu0 %v3331
      %v3333 = vpop.f32.mrf.mxu0
      %v3334 = vadd.f32 %v3296, %v3333
      %v3335 = vand.u32 %v702, 4294901760
      %3336 = vmatmul.f32.gmra.mxu0 %v3335
      %v3337 = vpop.f32.mrf.mxu0
      %v3338 = vadd.f32 %v3304, %v3337
      %3339 = vdwg.mxu0
      %3340 = vmatpush.msra.mxu0 0.0
      %3341 = vmatpush.msra.mxu0 0.0
      %3342 = vmatpush.msra.mxu0 0.0
      %3343 = vmatpush.msra.mxu0 0.0
      %3344 = vmatpush.msra.mxu0 0.0
      %3345 = vmatpush.msra.mxu0 0.0
      %3346 = vmatpush.msra.mxu0 0.0
      %3347 = vmatpush.msra.mxu0 0.0
      %3348 = vmatpush.msra.mxu0 0.0
      %3349 = vmatpush.msra.mxu0 0.0
      %3350 = vmatpush.msra.mxu0 0.0
      %3351 = vmatpush.msra.mxu0 0.0
      %3352 = vmatpush.msra.mxu0 0.0
      %3353 = vmatpush.msra.mxu0 0.0
      %3354 = vmatpush.msra.mxu0 0.0
      %v3355 = vand.u32 %v728, 4294901760
      %v3356 = vsub.f32 %v728, %v3355
      %3357 = vmatpush.msra.mxu0 %v3356
      %v3358 = vand.u32 %v696, 4294901760
      %v3359 = vsub.f32 %v696, %v3358
      %3360 = vmatmul.f32.gmra.mxu0 %v3359
      %v3361 = vpop.f32.mrf.mxu0
      %v3362 = vadd.f32 %v3330, %v3361
      %v3363 = vand.u32 %v699, 4294901760
      %v3364 = vsub.f32 %v699, %v3363
      %3365 = vmatmul.f32.gmra.mxu0 %v3364
      %v3366 = vpop.f32.mrf.mxu0
      %v3367 = vadd.f32 %v3334, %v3366
      %v3368 = vand.u32 %v702, 4294901760
      %v3369 = vsub.f32 %v702, %v3368
      %3370 = vmatmul.f32.gmra.mxu0 %v3369
      %v3371 = vpop.f32.mrf.mxu0
      %v3372 = vadd.f32 %v3338, %v3371
      %3373 = vdwg.mxu0
      %3374 = vmatpush.msra.mxu0 0.0
      %3375 = vmatpush.msra.mxu0 0.0
      %3376 = vmatpush.msra.mxu0 0.0
      %3377 = vmatpush.msra.mxu0 0.0
      %3378 = vmatpush.msra.mxu0 0.0
      %3379 = vmatpush.msra.mxu0 0.0
      %3380 = vmatpush.msra.mxu0 0.0
      %3381 = vmatpush.msra.mxu0 0.0
      %3382 = vmatpush.msra.mxu0 0.0
      %3383 = vmatpush.msra.mxu0 0.0
      %3384 = vmatpush.msra.mxu0 0.0
      %3385 = vmatpush.msra.mxu0 0.0
      %3386 = vmatpush.msra.mxu0 0.0
      %3387 = vmatpush.msra.mxu0 0.0
      %3388 = vmatpush.msra.mxu0 0.0
      %v3389 = vand.u32 %v728, 4294901760
      %3390 = vmatpush.msra.mxu0 %v3389
      %v3391 = vand.u32 %v696, 4294901760
      %v3392 = vsub.f32 %v696, %v3391
      %v3393 = vand.u32 %v3392, 4294901760
      %3394 = vmatmul.f32.gmra.mxu0 %v3393
      %v3395 = vpop.f32.mrf.mxu0
      %v3396 = vadd.f32 %v3362, %v3395
      %v3397 = vand.u32 %v699, 4294901760
      %v3398 = vsub.f32 %v699, %v3397
      %v3399 = vand.u32 %v3398, 4294901760
      %3400 = vmatmul.f32.gmra.mxu0 %v3399
      %v3401 = vpop.f32.mrf.mxu0
      %v3402 = vadd.f32 %v3367, %v3401
      %v3403 = vand.u32 %v702, 4294901760
      %v3404 = vsub.f32 %v702, %v3403
      %v3405 = vand.u32 %v3404, 4294901760
      %3406 = vmatmul.f32.gmra.mxu0 %v3405
      %v3407 = vpop.f32.mrf.mxu0
      %v3408 = vadd.f32 %v3372, %v3407
      %3409 = vdwg.mxu0
      %3410 = vmatpush.msra.mxu0 0.0
      %3411 = vmatpush.msra.mxu0 0.0
      %3412 = vmatpush.msra.mxu0 0.0
      %3413 = vmatpush.msra.mxu0 0.0
      %3414 = vmatpush.msra.mxu0 0.0
      %3415 = vmatpush.msra.mxu0 0.0
      %3416 = vmatpush.msra.mxu0 0.0
      %3417 = vmatpush.msra.mxu0 0.0
      %3418 = vmatpush.msra.mxu0 0.0
      %3419 = vmatpush.msra.mxu0 0.0
      %3420 = vmatpush.msra.mxu0 0.0
      %3421 = vmatpush.msra.mxu0 0.0
      %3422 = vmatpush.msra.mxu0 0.0
      %3423 = vmatpush.msra.mxu0 0.0
      %3424 = vmatpush.msra.mxu0 0.0
      %v3425 = vand.u32 %v728, 4294901760
      %v3426 = vsub.f32 %v728, %v3425
      %v3427 = vand.u32 %v3426, 4294901760
      %3428 = vmatpush.msra.mxu0 %v3427
      %v3429 = vand.u32 %v696, 4294901760
      %3430 = vmatmul.f32.gmra.mxu0 %v3429
      %v3431 = vpop.f32.mrf.mxu0
      %v3432 = vadd.f32 %v3396, %v3431
      %v3433 = vand.u32 %v699, 4294901760
      %3434 = vmatmul.f32.gmra.mxu0 %v3433
      %v3435 = vpop.f32.mrf.mxu0
      %v3436 = vadd.f32 %v3402, %v3435
      %v3437 = vand.u32 %v702, 4294901760
      %3438 = vmatmul.f32.gmra.mxu0 %v3437
      %v3439 = vpop.f32.mrf.mxu0
      %v3440 = vadd.f32 %v3408, %v3439
      %3441 = vdwg.mxu0
      %3442 = vmatpush.msra.mxu0 0.0
      %3443 = vmatpush.msra.mxu0 0.0
      %3444 = vmatpush.msra.mxu0 0.0
      %3445 = vmatpush.msra.mxu0 0.0
      %3446 = vmatpush.msra.mxu0 0.0
      %3447 = vmatpush.msra.mxu0 0.0
      %3448 = vmatpush.msra.mxu0 0.0
      %3449 = vmatpush.msra.mxu0 0.0
      %3450 = vmatpush.msra.mxu0 0.0
      %3451 = vmatpush.msra.mxu0 0.0
      %3452 = vmatpush.msra.mxu0 0.0
      %3453 = vmatpush.msra.mxu0 0.0
      %3454 = vmatpush.msra.mxu0 0.0
      %3455 = vmatpush.msra.mxu0 0.0
      %3456 = vmatpush.msra.mxu0 0.0
      %v3457 = vand.u32 %v728, 4294901760
      %3458 = vmatpush.msra.mxu0 %v3457
      %v3459 = vand.u32 %v696, 4294901760
      %3460 = vmatmul.f32.gmra.mxu0 %v3459
      %v3461 = vpop.f32.mrf.mxu0
      %v3462 = vadd.f32 %v3432, %v3461
      %v3463 = vand.u32 %v699, 4294901760
      %3464 = vmatmul.f32.gmra.mxu0 %v3463
      %v3465 = vpop.f32.mrf.mxu0
      %v3466 = vadd.f32 %v3436, %v3465
      %v3467 = vand.u32 %v702, 4294901760
      %3468 = vmatmul.f32.gmra.mxu0 %v3467
      %v3469 = vpop.f32.mrf.mxu0
      %v3470 = vadd.f32 %v3440, %v3469
      %3471 = vdwg.mxu0
      %3472 = vmatpush.msra.mxu0 0.0
      %3473 = vmatpush.msra.mxu0 0.0
      %3474 = vmatpush.msra.mxu0 0.0
      %3475 = vmatpush.msra.mxu0 0.0
      %3476 = vmatpush.msra.mxu0 0.0
      %3477 = vmatpush.msra.mxu0 0.0
      %3478 = vmatpush.msra.mxu0 0.0
      %3479 = vmatpush.msra.mxu0 0.0
      %3480 = vmatpush.msra.mxu0 0.0
      %3481 = vmatpush.msra.mxu0 0.0
      %3482 = vmatpush.msra.mxu0 0.0
      %3483 = vmatpush.msra.mxu0 0.0
      %3484 = vmatpush.msra.mxu0 0.0
      %3485 = vmatpush.msra.mxu0 0.0
      %3486 = vmatpush.msra.mxu0 0.0
      %v3487 = vand.u32 %v730, 4294901760
      %3488 = vmatpush.msra.mxu0 %v3487
      %v3489 = vand.u32 %v696, 4294901760
      %v3490 = vsub.f32 %v696, %v3489
      %v3491 = vand.u32 %v3490, 4294901760
      %v3492 = vsub.f32 %v3490, %v3491
      %v3493 = vand.u32 %v3492, 4294901760
      %3494 = vmatmul.f32.gmra.mxu0 %v3493
      %v3495 = vpop.f32.mrf.mxu0
      %v3496 = vadd.f32 %v615, %v3495
      %v3497 = vand.u32 %v699, 4294901760
      %v3498 = vsub.f32 %v699, %v3497
      %v3499 = vand.u32 %v3498, 4294901760
      %v3500 = vsub.f32 %v3498, %v3499
      %v3501 = vand.u32 %v3500, 4294901760
      %3502 = vmatmul.f32.gmra.mxu0 %v3501
      %v3503 = vpop.f32.mrf.mxu0
      %v3504 = vadd.f32 %v620, %v3503
      %v3505 = vand.u32 %v702, 4294901760
      %v3506 = vsub.f32 %v702, %v3505
      %v3507 = vand.u32 %v3506, 4294901760
      %v3508 = vsub.f32 %v3506, %v3507
      %v3509 = vand.u32 %v3508, 4294901760
      %3510 = vmatmul.f32.gmra.mxu0 %v3509
      %v3511 = vpop.f32.mrf.mxu0
      %v3512 = vadd.f32 %v625, %v3511
      %3513 = vdwg.mxu0
      %3514 = vmatpush.msra.mxu0 0.0
      %3515 = vmatpush.msra.mxu0 0.0
      %3516 = vmatpush.msra.mxu0 0.0
      %3517 = vmatpush.msra.mxu0 0.0
      %3518 = vmatpush.msra.mxu0 0.0
      %3519 = vmatpush.msra.mxu0 0.0
      %3520 = vmatpush.msra.mxu0 0.0
      %3521 = vmatpush.msra.mxu0 0.0
      %3522 = vmatpush.msra.mxu0 0.0
      %3523 = vmatpush.msra.mxu0 0.0
      %3524 = vmatpush.msra.mxu0 0.0
      %3525 = vmatpush.msra.mxu0 0.0
      %3526 = vmatpush.msra.mxu0 0.0
      %3527 = vmatpush.msra.mxu0 0.0
      %3528 = vmatpush.msra.mxu0 0.0
      %v3529 = vand.u32 %v730, 4294901760
      %v3530 = vsub.f32 %v730, %v3529
      %v3531 = vand.u32 %v3530, 4294901760
      %v3532 = vsub.f32 %v3530, %v3531
      %v3533 = vand.u32 %v3532, 4294901760
      %3534 = vmatpush.msra.mxu0 %v3533
      %v3535 = vand.u32 %v696, 4294901760
      %3536 = vmatmul.f32.gmra.mxu0 %v3535
      %v3537 = vpop.f32.mrf.mxu0
      %v3538 = vadd.f32 %v3496, %v3537
      %v3539 = vand.u32 %v699, 4294901760
      %3540 = vmatmul.f32.gmra.mxu0 %v3539
      %v3541 = vpop.f32.mrf.mxu0
      %v3542 = vadd.f32 %v3504, %v3541
      %v3543 = vand.u32 %v702, 4294901760
      %3544 = vmatmul.f32.gmra.mxu0 %v3543
      %v3545 = vpop.f32.mrf.mxu0
      %v3546 = vadd.f32 %v3512, %v3545
      %3547 = vdwg.mxu0
      %3548 = vmatpush.msra.mxu0 0.0
      %3549 = vmatpush.msra.mxu0 0.0
      %3550 = vmatpush.msra.mxu0 0.0
      %3551 = vmatpush.msra.mxu0 0.0
      %3552 = vmatpush.msra.mxu0 0.0
      %3553 = vmatpush.msra.mxu0 0.0
      %3554 = vmatpush.msra.mxu0 0.0
      %3555 = vmatpush.msra.mxu0 0.0
      %3556 = vmatpush.msra.mxu0 0.0
      %3557 = vmatpush.msra.mxu0 0.0
      %3558 = vmatpush.msra.mxu0 0.0
      %3559 = vmatpush.msra.mxu0 0.0
      %3560 = vmatpush.msra.mxu0 0.0
      %3561 = vmatpush.msra.mxu0 0.0
      %3562 = vmatpush.msra.mxu0 0.0
      %v3563 = vand.u32 %v730, 4294901760
      %v3564 = vsub.f32 %v730, %v3563
      %3565 = vmatpush.msra.mxu0 %v3564
      %v3566 = vand.u32 %v696, 4294901760
      %v3567 = vsub.f32 %v696, %v3566
      %3568 = vmatmul.f32.gmra.mxu0 %v3567
      %v3569 = vpop.f32.mrf.mxu0
      %v3570 = vadd.f32 %v3538, %v3569
      %v3571 = vand.u32 %v699, 4294901760
      %v3572 = vsub.f32 %v699, %v3571
      %3573 = vmatmul.f32.gmra.mxu0 %v3572
      %v3574 = vpop.f32.mrf.mxu0
      %v3575 = vadd.f32 %v3542, %v3574
      %v3576 = vand.u32 %v702, 4294901760
      %v3577 = vsub.f32 %v702, %v3576
      %3578 = vmatmul.f32.gmra.mxu0 %v3577
      %v3579 = vpop.f32.mrf.mxu0
      %v3580 = vadd.f32 %v3546, %v3579
      %3581 = vdwg.mxu0
      %3582 = vmatpush.msra.mxu0 0.0
      %3583 = vmatpush.msra.mxu0 0.0
      %3584 = vmatpush.msra.mxu0 0.0
      %3585 = vmatpush.msra.mxu0 0.0
      %3586 = vmatpush.msra.mxu0 0.0
      %3587 = vmatpush.msra.mxu0 0.0
      %3588 = vmatpush.msra.mxu0 0.0
      %3589 = vmatpush.msra.mxu0 0.0
      %3590 = vmatpush.msra.mxu0 0.0
      %3591 = vmatpush.msra.mxu0 0.0
      %3592 = vmatpush.msra.mxu0 0.0
      %3593 = vmatpush.msra.mxu0 0.0
      %3594 = vmatpush.msra.mxu0 0.0
      %3595 = vmatpush.msra.mxu0 0.0
      %3596 = vmatpush.msra.mxu0 0.0
      %v3597 = vand.u32 %v730, 4294901760
      %3598 = vmatpush.msra.mxu0 %v3597
      %v3599 = vand.u32 %v696, 4294901760
      %v3600 = vsub.f32 %v696, %v3599
      %v3601 = vand.u32 %v3600, 4294901760
      %3602 = vmatmul.f32.gmra.mxu0 %v3601
      %v3603 = vpop.f32.mrf.mxu0
      %v3604 = vadd.f32 %v3570, %v3603
      %v3605 = vand.u32 %v699, 4294901760
      %v3606 = vsub.f32 %v699, %v3605
      %v3607 = vand.u32 %v3606, 4294901760
      %3608 = vmatmul.f32.gmra.mxu0 %v3607
      %v3609 = vpop.f32.mrf.mxu0
      %v3610 = vadd.f32 %v3575, %v3609
      %v3611 = vand.u32 %v702, 4294901760
      %v3612 = vsub.f32 %v702, %v3611
      %v3613 = vand.u32 %v3612, 4294901760
      %3614 = vmatmul.f32.gmra.mxu0 %v3613
      %v3615 = vpop.f32.mrf.mxu0
      %v3616 = vadd.f32 %v3580, %v3615
      %3617 = vdwg.mxu0
      %3618 = vmatpush.msra.mxu0 0.0
      %3619 = vmatpush.msra.mxu0 0.0
      %3620 = vmatpush.msra.mxu0 0.0
      %3621 = vmatpush.msra.mxu0 0.0
      %3622 = vmatpush.msra.mxu0 0.0
      %3623 = vmatpush.msra.mxu0 0.0
      %3624 = vmatpush.msra.mxu0 0.0
      %3625 = vmatpush.msra.mxu0 0.0
      %3626 = vmatpush.msra.mxu0 0.0
      %3627 = vmatpush.msra.mxu0 0.0
      %3628 = vmatpush.msra.mxu0 0.0
      %3629 = vmatpush.msra.mxu0 0.0
      %3630 = vmatpush.msra.mxu0 0.0
      %3631 = vmatpush.msra.mxu0 0.0
      %3632 = vmatpush.msra.mxu0 0.0
      %v3633 = vand.u32 %v730, 4294901760
      %v3634 = vsub.f32 %v730, %v3633
      %v3635 = vand.u32 %v3634, 4294901760
      %3636 = vmatpush.msra.mxu0 %v3635
      %v3637 = vand.u32 %v696, 4294901760
      %3638 = vmatmul.f32.gmra.mxu0 %v3637
      %v3639 = vpop.f32.mrf.mxu0
      %v3640 = vadd.f32 %v3604, %v3639
      %v3641 = vand.u32 %v699, 4294901760
      %3642 = vmatmul.f32.gmra.mxu0 %v3641
      %v3643 = vpop.f32.mrf.mxu0
      %v3644 = vadd.f32 %v3610, %v3643
      %v3645 = vand.u32 %v702, 4294901760
      %3646 = vmatmul.f32.gmra.mxu0 %v3645
      %v3647 = vpop.f32.mrf.mxu0
      %v3648 = vadd.f32 %v3616, %v3647
      %3649 = vdwg.mxu0
      %3650 = vmatpush.msra.mxu0 0.0
      %3651 = vmatpush.msra.mxu0 0.0
      %3652 = vmatpush.msra.mxu0 0.0
      %3653 = vmatpush.msra.mxu0 0.0
      %3654 = vmatpush.msra.mxu0 0.0
      %3655 = vmatpush.msra.mxu0 0.0
      %3656 = vmatpush.msra.mxu0 0.0
      %3657 = vmatpush.msra.mxu0 0.0
      %3658 = vmatpush.msra.mxu0 0.0
      %3659 = vmatpush.msra.mxu0 0.0
      %3660 = vmatpush.msra.mxu0 0.0
      %3661 = vmatpush.msra.mxu0 0.0
      %3662 = vmatpush.msra.mxu0 0.0
      %3663 = vmatpush.msra.mxu0 0.0
      %3664 = vmatpush.msra.mxu0 0.0
      %v3665 = vand.u32 %v730, 4294901760
      %3666 = vmatpush.msra.mxu0 %v3665
      %v3667 = vand.u32 %v696, 4294901760
      %3668 = vmatmul.f32.gmra.mxu0 %v3667
      %v3669 = vpop.f32.mrf.mxu0
      %v3670 = vadd.f32 %v3640, %v3669
      %v3671 = vand.u32 %v699, 4294901760
      %3672 = vmatmul.f32.gmra.mxu0 %v3671
      %v3673 = vpop.f32.mrf.mxu0
      %v3674 = vadd.f32 %v3644, %v3673
      %v3675 = vand.u32 %v702, 4294901760
      %3676 = vmatmul.f32.gmra.mxu0 %v3675
      %v3677 = vpop.f32.mrf.mxu0
      %v3678 = vadd.f32 %v3648, %v3677
      %3679 = vdwg.mxu0
      %3680 = vmatpush.msra.mxu0 0.0
      %3681 = vmatpush.msra.mxu0 0.0
      %3682 = vmatpush.msra.mxu0 0.0
      %3683 = vmatpush.msra.mxu0 0.0
      %3684 = vmatpush.msra.mxu0 0.0
      %3685 = vmatpush.msra.mxu0 0.0
      %3686 = vmatpush.msra.mxu0 0.0
      %3687 = vmatpush.msra.mxu0 0.0
      %3688 = vmatpush.msra.mxu0 0.0
      %3689 = vmatpush.msra.mxu0 0.0
      %3690 = vmatpush.msra.mxu0 0.0
      %3691 = vmatpush.msra.mxu0 0.0
      %3692 = vmatpush.msra.mxu0 0.0
      %3693 = vmatpush.msra.mxu0 0.0
      %3694 = vmatpush.msra.mxu0 0.0
      %v3695 = vand.u32 %v732, 4294901760
      %3696 = vmatpush.msra.mxu0 %v3695
      %v3697 = vand.u32 %v696, 4294901760
      %v3698 = vsub.f32 %v696, %v3697
      %v3699 = vand.u32 %v3698, 4294901760
      %v3700 = vsub.f32 %v3698, %v3699
      %v3701 = vand.u32 %v3700, 4294901760
      %3702 = vmatmul.f32.gmra.mxu0 %v3701
      %v3703 = vpop.f32.mrf.mxu0
      %v3704 = vadd.f32 %v615, %v3703
      %v3705 = vand.u32 %v699, 4294901760
      %v3706 = vsub.f32 %v699, %v3705
      %v3707 = vand.u32 %v3706, 4294901760
      %v3708 = vsub.f32 %v3706, %v3707
      %v3709 = vand.u32 %v3708, 4294901760
      %3710 = vmatmul.f32.gmra.mxu0 %v3709
      %v3711 = vpop.f32.mrf.mxu0
      %v3712 = vadd.f32 %v620, %v3711
      %v3713 = vand.u32 %v702, 4294901760
      %v3714 = vsub.f32 %v702, %v3713
      %v3715 = vand.u32 %v3714, 4294901760
      %v3716 = vsub.f32 %v3714, %v3715
      %v3717 = vand.u32 %v3716, 4294901760
      %3718 = vmatmul.f32.gmra.mxu0 %v3717
      %v3719 = vpop.f32.mrf.mxu0
      %v3720 = vadd.f32 %v625, %v3719
      %3721 = vdwg.mxu0
      %3722 = vmatpush.msra.mxu0 0.0
      %3723 = vmatpush.msra.mxu0 0.0
      %3724 = vmatpush.msra.mxu0 0.0
      %3725 = vmatpush.msra.mxu0 0.0
      %3726 = vmatpush.msra.mxu0 0.0
      %3727 = vmatpush.msra.mxu0 0.0
      %3728 = vmatpush.msra.mxu0 0.0
      %3729 = vmatpush.msra.mxu0 0.0
      %3730 = vmatpush.msra.mxu0 0.0
      %3731 = vmatpush.msra.mxu0 0.0
      %3732 = vmatpush.msra.mxu0 0.0
      %3733 = vmatpush.msra.mxu0 0.0
      %3734 = vmatpush.msra.mxu0 0.0
      %3735 = vmatpush.msra.mxu0 0.0
      %3736 = vmatpush.msra.mxu0 0.0
      %v3737 = vand.u32 %v732, 4294901760
      %v3738 = vsub.f32 %v732, %v3737
      %v3739 = vand.u32 %v3738, 4294901760
      %v3740 = vsub.f32 %v3738, %v3739
      %v3741 = vand.u32 %v3740, 4294901760
      %3742 = vmatpush.msra.mxu0 %v3741
      %v3743 = vand.u32 %v696, 4294901760
      %3744 = vmatmul.f32.gmra.mxu0 %v3743
      %v3745 = vpop.f32.mrf.mxu0
      %v3746 = vadd.f32 %v3704, %v3745
      %v3747 = vand.u32 %v699, 4294901760
      %3748 = vmatmul.f32.gmra.mxu0 %v3747
      %v3749 = vpop.f32.mrf.mxu0
      %v3750 = vadd.f32 %v3712, %v3749
      %v3751 = vand.u32 %v702, 4294901760
      %3752 = vmatmul.f32.gmra.mxu0 %v3751
      %v3753 = vpop.f32.mrf.mxu0
      %v3754 = vadd.f32 %v3720, %v3753
      %3755 = vdwg.mxu0
      %3756 = vmatpush.msra.mxu0 0.0
      %3757 = vmatpush.msra.mxu0 0.0
      %3758 = vmatpush.msra.mxu0 0.0
      %3759 = vmatpush.msra.mxu0 0.0
      %3760 = vmatpush.msra.mxu0 0.0
      %3761 = vmatpush.msra.mxu0 0.0
      %3762 = vmatpush.msra.mxu0 0.0
      %3763 = vmatpush.msra.mxu0 0.0
      %3764 = vmatpush.msra.mxu0 0.0
      %3765 = vmatpush.msra.mxu0 0.0
      %3766 = vmatpush.msra.mxu0 0.0
      %3767 = vmatpush.msra.mxu0 0.0
      %3768 = vmatpush.msra.mxu0 0.0
      %3769 = vmatpush.msra.mxu0 0.0
      %3770 = vmatpush.msra.mxu0 0.0
      %v3771 = vand.u32 %v732, 4294901760
      %v3772 = vsub.f32 %v732, %v3771
      %3773 = vmatpush.msra.mxu0 %v3772
      %v3774 = vand.u32 %v696, 4294901760
      %v3775 = vsub.f32 %v696, %v3774
      %3776 = vmatmul.f32.gmra.mxu0 %v3775
      %v3777 = vpop.f32.mrf.mxu0
      %v3778 = vadd.f32 %v3746, %v3777
      %v3779 = vand.u32 %v699, 4294901760
      %v3780 = vsub.f32 %v699, %v3779
      %3781 = vmatmul.f32.gmra.mxu0 %v3780
      %v3782 = vpop.f32.mrf.mxu0
      %v3783 = vadd.f32 %v3750, %v3782
      %v3784 = vand.u32 %v702, 4294901760
      %v3785 = vsub.f32 %v702, %v3784
      %3786 = vmatmul.f32.gmra.mxu0 %v3785
      %v3787 = vpop.f32.mrf.mxu0
      %v3788 = vadd.f32 %v3754, %v3787
      %3789 = vdwg.mxu0
      %3790 = vmatpush.msra.mxu0 0.0
      %3791 = vmatpush.msra.mxu0 0.0
      %3792 = vmatpush.msra.mxu0 0.0
      %3793 = vmatpush.msra.mxu0 0.0
      %3794 = vmatpush.msra.mxu0 0.0
      %3795 = vmatpush.msra.mxu0 0.0
      %3796 = vmatpush.msra.mxu0 0.0
      %3797 = vmatpush.msra.mxu0 0.0
      %3798 = vmatpush.msra.mxu0 0.0
      %3799 = vmatpush.msra.mxu0 0.0
      %3800 = vmatpush.msra.mxu0 0.0
      %3801 = vmatpush.msra.mxu0 0.0
      %3802 = vmatpush.msra.mxu0 0.0
      %3803 = vmatpush.msra.mxu0 0.0
      %3804 = vmatpush.msra.mxu0 0.0
      %v3805 = vand.u32 %v732, 4294901760
      %3806 = vmatpush.msra.mxu0 %v3805
      %v3807 = vand.u32 %v696, 4294901760
      %v3808 = vsub.f32 %v696, %v3807
      %v3809 = vand.u32 %v3808, 4294901760
      %3810 = vmatmul.f32.gmra.mxu0 %v3809
      %v3811 = vpop.f32.mrf.mxu0
      %v3812 = vadd.f32 %v3778, %v3811
      %v3813 = vand.u32 %v699, 4294901760
      %v3814 = vsub.f32 %v699, %v3813
      %v3815 = vand.u32 %v3814, 4294901760
      %3816 = vmatmul.f32.gmra.mxu0 %v3815
      %v3817 = vpop.f32.mrf.mxu0
      %v3818 = vadd.f32 %v3783, %v3817
      %v3819 = vand.u32 %v702, 4294901760
      %v3820 = vsub.f32 %v702, %v3819
      %v3821 = vand.u32 %v3820, 4294901760
      %3822 = vmatmul.f32.gmra.mxu0 %v3821
      %v3823 = vpop.f32.mrf.mxu0
      %v3824 = vadd.f32 %v3788, %v3823
      %3825 = vdwg.mxu0
      %3826 = vmatpush.msra.mxu0 0.0
      %3827 = vmatpush.msra.mxu0 0.0
      %3828 = vmatpush.msra.mxu0 0.0
      %3829 = vmatpush.msra.mxu0 0.0
      %3830 = vmatpush.msra.mxu0 0.0
      %3831 = vmatpush.msra.mxu0 0.0
      %3832 = vmatpush.msra.mxu0 0.0
      %3833 = vmatpush.msra.mxu0 0.0
      %3834 = vmatpush.msra.mxu0 0.0
      %3835 = vmatpush.msra.mxu0 0.0
      %3836 = vmatpush.msra.mxu0 0.0
      %3837 = vmatpush.msra.mxu0 0.0
      %3838 = vmatpush.msra.mxu0 0.0
      %3839 = vmatpush.msra.mxu0 0.0
      %3840 = vmatpush.msra.mxu0 0.0
      %v3841 = vand.u32 %v732, 4294901760
      %v3842 = vsub.f32 %v732, %v3841
      %v3843 = vand.u32 %v3842, 4294901760
      %3844 = vmatpush.msra.mxu0 %v3843
      %v3845 = vand.u32 %v696, 4294901760
      %3846 = vmatmul.f32.gmra.mxu0 %v3845
      %v3847 = vpop.f32.mrf.mxu0
      %v3848 = vadd.f32 %v3812, %v3847
      %v3849 = vand.u32 %v699, 4294901760
      %3850 = vmatmul.f32.gmra.mxu0 %v3849
      %v3851 = vpop.f32.mrf.mxu0
      %v3852 = vadd.f32 %v3818, %v3851
      %v3853 = vand.u32 %v702, 4294901760
      %3854 = vmatmul.f32.gmra.mxu0 %v3853
      %v3855 = vpop.f32.mrf.mxu0
      %v3856 = vadd.f32 %v3824, %v3855
      %3857 = vdwg.mxu0
      %3858 = vmatpush.msra.mxu0 0.0
      %3859 = vmatpush.msra.mxu0 0.0
      %3860 = vmatpush.msra.mxu0 0.0
      %3861 = vmatpush.msra.mxu0 0.0
      %3862 = vmatpush.msra.mxu0 0.0
      %3863 = vmatpush.msra.mxu0 0.0
      %3864 = vmatpush.msra.mxu0 0.0
      %3865 = vmatpush.msra.mxu0 0.0
      %3866 = vmatpush.msra.mxu0 0.0
      %3867 = vmatpush.msra.mxu0 0.0
      %3868 = vmatpush.msra.mxu0 0.0
      %3869 = vmatpush.msra.mxu0 0.0
      %3870 = vmatpush.msra.mxu0 0.0
      %3871 = vmatpush.msra.mxu0 0.0
      %3872 = vmatpush.msra.mxu0 0.0
      %v3873 = vand.u32 %v732, 4294901760
      %3874 = vmatpush.msra.mxu0 %v3873
      %v3875 = vand.u32 %v696, 4294901760
      %3876 = vmatmul.f32.gmra.mxu0 %v3875
      %v3877 = vpop.f32.mrf.mxu0
      %v3878 = vadd.f32 %v3848, %v3877
      %v3879 = vand.u32 %v699, 4294901760
      %3880 = vmatmul.f32.gmra.mxu0 %v3879
      %v3881 = vpop.f32.mrf.mxu0
      %v3882 = vadd.f32 %v3852, %v3881
      %v3883 = vand.u32 %v702, 4294901760
      %3884 = vmatmul.f32.gmra.mxu0 %v3883
      %v3885 = vpop.f32.mrf.mxu0
      %v3886 = vadd.f32 %v3856, %v3885
      %3887 = vdwg.mxu0
      %3888 = vmatpush.msra.mxu0 0.0
      %3889 = vmatpush.msra.mxu0 0.0
      %3890 = vmatpush.msra.mxu0 0.0
      %3891 = vmatpush.msra.mxu0 0.0
      %3892 = vmatpush.msra.mxu0 0.0
      %3893 = vmatpush.msra.mxu0 0.0
      %3894 = vmatpush.msra.mxu0 0.0
      %3895 = vmatpush.msra.mxu0 0.0
      %3896 = vmatpush.msra.mxu0 0.0
      %3897 = vmatpush.msra.mxu0 0.0
      %3898 = vmatpush.msra.mxu0 0.0
      %3899 = vmatpush.msra.mxu0 0.0
      %3900 = vmatpush.msra.mxu0 0.0
      %3901 = vmatpush.msra.mxu0 0.0
      %3902 = vmatpush.msra.mxu0 0.0
      %v3903 = vand.u32 %v734, 4294901760
      %3904 = vmatpush.msra.mxu0 %v3903
      %v3905 = vand.u32 %v696, 4294901760
      %v3906 = vsub.f32 %v696, %v3905
      %v3907 = vand.u32 %v3906, 4294901760
      %v3908 = vsub.f32 %v3906, %v3907
      %v3909 = vand.u32 %v3908, 4294901760
      %3910 = vmatmul.f32.gmra.mxu0 %v3909
      %v3911 = vpop.f32.mrf.mxu0
      %v3912 = vadd.f32 %v615, %v3911
      %v3913 = vand.u32 %v699, 4294901760
      %v3914 = vsub.f32 %v699, %v3913
      %v3915 = vand.u32 %v3914, 4294901760
      %v3916 = vsub.f32 %v3914, %v3915
      %v3917 = vand.u32 %v3916, 4294901760
      %3918 = vmatmul.f32.gmra.mxu0 %v3917
      %v3919 = vpop.f32.mrf.mxu0
      %v3920 = vadd.f32 %v620, %v3919
      %v3921 = vand.u32 %v702, 4294901760
      %v3922 = vsub.f32 %v702, %v3921
      %v3923 = vand.u32 %v3922, 4294901760
      %v3924 = vsub.f32 %v3922, %v3923
      %v3925 = vand.u32 %v3924, 4294901760
      %3926 = vmatmul.f32.gmra.mxu0 %v3925
      %v3927 = vpop.f32.mrf.mxu0
      %v3928 = vadd.f32 %v625, %v3927
      %3929 = vdwg.mxu0
      %3930 = vmatpush.msra.mxu0 0.0
      %3931 = vmatpush.msra.mxu0 0.0
      %3932 = vmatpush.msra.mxu0 0.0
      %3933 = vmatpush.msra.mxu0 0.0
      %3934 = vmatpush.msra.mxu0 0.0
      %3935 = vmatpush.msra.mxu0 0.0
      %3936 = vmatpush.msra.mxu0 0.0
      %3937 = vmatpush.msra.mxu0 0.0
      %3938 = vmatpush.msra.mxu0 0.0
      %3939 = vmatpush.msra.mxu0 0.0
      %3940 = vmatpush.msra.mxu0 0.0
      %3941 = vmatpush.msra.mxu0 0.0
      %3942 = vmatpush.msra.mxu0 0.0
      %3943 = vmatpush.msra.mxu0 0.0
      %3944 = vmatpush.msra.mxu0 0.0
      %v3945 = vand.u32 %v734, 4294901760
      %v3946 = vsub.f32 %v734, %v3945
      %v3947 = vand.u32 %v3946, 4294901760
      %v3948 = vsub.f32 %v3946, %v3947
      %v3949 = vand.u32 %v3948, 4294901760
      %3950 = vmatpush.msra.mxu0 %v3949
      %v3951 = vand.u32 %v696, 4294901760
      %3952 = vmatmul.f32.gmra.mxu0 %v3951
      %v3953 = vpop.f32.mrf.mxu0
      %v3954 = vadd.f32 %v3912, %v3953
      %v3955 = vand.u32 %v699, 4294901760
      %3956 = vmatmul.f32.gmra.mxu0 %v3955
      %v3957 = vpop.f32.mrf.mxu0
      %v3958 = vadd.f32 %v3920, %v3957
      %v3959 = vand.u32 %v702, 4294901760
      %3960 = vmatmul.f32.gmra.mxu0 %v3959
      %v3961 = vpop.f32.mrf.mxu0
      %v3962 = vadd.f32 %v3928, %v3961
      %3963 = vdwg.mxu0
      %3964 = vmatpush.msra.mxu0 0.0
      %3965 = vmatpush.msra.mxu0 0.0
      %3966 = vmatpush.msra.mxu0 0.0
      %3967 = vmatpush.msra.mxu0 0.0
      %3968 = vmatpush.msra.mxu0 0.0
      %3969 = vmatpush.msra.mxu0 0.0
      %3970 = vmatpush.msra.mxu0 0.0
      %3971 = vmatpush.msra.mxu0 0.0
      %3972 = vmatpush.msra.mxu0 0.0
      %3973 = vmatpush.msra.mxu0 0.0
      %3974 = vmatpush.msra.mxu0 0.0
      %3975 = vmatpush.msra.mxu0 0.0
      %3976 = vmatpush.msra.mxu0 0.0
      %3977 = vmatpush.msra.mxu0 0.0
      %3978 = vmatpush.msra.mxu0 0.0
      %v3979 = vand.u32 %v734, 4294901760
      %v3980 = vsub.f32 %v734, %v3979
      %3981 = vmatpush.msra.mxu0 %v3980
      %v3982 = vand.u32 %v696, 4294901760
      %v3983 = vsub.f32 %v696, %v3982
      %3984 = vmatmul.f32.gmra.mxu0 %v3983
      %v3985 = vpop.f32.mrf.mxu0
      %v3986 = vadd.f32 %v3954, %v3985
      %v3987 = vand.u32 %v699, 4294901760
      %v3988 = vsub.f32 %v699, %v3987
      %3989 = vmatmul.f32.gmra.mxu0 %v3988
      %v3990 = vpop.f32.mrf.mxu0
      %v3991 = vadd.f32 %v3958, %v3990
      %v3992 = vand.u32 %v702, 4294901760
      %v3993 = vsub.f32 %v702, %v3992
      %3994 = vmatmul.f32.gmra.mxu0 %v3993
      %v3995 = vpop.f32.mrf.mxu0
      %v3996 = vadd.f32 %v3962, %v3995
      %3997 = vdwg.mxu0
      %3998 = vmatpush.msra.mxu0 0.0
      %3999 = vmatpush.msra.mxu0 0.0
      %4000 = vmatpush.msra.mxu0 0.0
      %4001 = vmatpush.msra.mxu0 0.0
      %4002 = vmatpush.msra.mxu0 0.0
      %4003 = vmatpush.msra.mxu0 0.0
      %4004 = vmatpush.msra.mxu0 0.0
      %4005 = vmatpush.msra.mxu0 0.0
      %4006 = vmatpush.msra.mxu0 0.0
      %4007 = vmatpush.msra.mxu0 0.0
      %4008 = vmatpush.msra.mxu0 0.0
      %4009 = vmatpush.msra.mxu0 0.0
      %4010 = vmatpush.msra.mxu0 0.0
      %4011 = vmatpush.msra.mxu0 0.0
      %4012 = vmatpush.msra.mxu0 0.0
      %v4013 = vand.u32 %v734, 4294901760
      %4014 = vmatpush.msra.mxu0 %v4013
      %v4015 = vand.u32 %v696, 4294901760
      %v4016 = vsub.f32 %v696, %v4015
      %v4017 = vand.u32 %v4016, 4294901760
      %4018 = vmatmul.f32.gmra.mxu0 %v4017
      %v4019 = vpop.f32.mrf.mxu0
      %v4020 = vadd.f32 %v3986, %v4019
      %v4021 = vand.u32 %v699, 4294901760
      %v4022 = vsub.f32 %v699, %v4021
      %v4023 = vand.u32 %v4022, 4294901760
      %4024 = vmatmul.f32.gmra.mxu0 %v4023
      %v4025 = vpop.f32.mrf.mxu0
      %v4026 = vadd.f32 %v3991, %v4025
      %v4027 = vand.u32 %v702, 4294901760
      %v4028 = vsub.f32 %v702, %v4027
      %v4029 = vand.u32 %v4028, 4294901760
      %4030 = vmatmul.f32.gmra.mxu0 %v4029
      %v4031 = vpop.f32.mrf.mxu0
      %v4032 = vadd.f32 %v3996, %v4031
      %4033 = vdwg.mxu0
      %4034 = vmatpush.msra.mxu0 0.0
      %4035 = vmatpush.msra.mxu0 0.0
      %4036 = vmatpush.msra.mxu0 0.0
      %4037 = vmatpush.msra.mxu0 0.0
      %4038 = vmatpush.msra.mxu0 0.0
      %4039 = vmatpush.msra.mxu0 0.0
      %4040 = vmatpush.msra.mxu0 0.0
      %4041 = vmatpush.msra.mxu0 0.0
      %4042 = vmatpush.msra.mxu0 0.0
      %4043 = vmatpush.msra.mxu0 0.0
      %4044 = vmatpush.msra.mxu0 0.0
      %4045 = vmatpush.msra.mxu0 0.0
      %4046 = vmatpush.msra.mxu0 0.0
      %4047 = vmatpush.msra.mxu0 0.0
      %4048 = vmatpush.msra.mxu0 0.0
      %v4049 = vand.u32 %v734, 4294901760
      %v4050 = vsub.f32 %v734, %v4049
      %v4051 = vand.u32 %v4050, 4294901760
      %4052 = vmatpush.msra.mxu0 %v4051
      %v4053 = vand.u32 %v696, 4294901760
      %4054 = vmatmul.f32.gmra.mxu0 %v4053
      %v4055 = vpop.f32.mrf.mxu0
      %v4056 = vadd.f32 %v4020, %v4055
      %v4057 = vand.u32 %v699, 4294901760
      %4058 = vmatmul.f32.gmra.mxu0 %v4057
      %v4059 = vpop.f32.mrf.mxu0
      %v4060 = vadd.f32 %v4026, %v4059
      %v4061 = vand.u32 %v702, 4294901760
      %4062 = vmatmul.f32.gmra.mxu0 %v4061
      %v4063 = vpop.f32.mrf.mxu0
      %v4064 = vadd.f32 %v4032, %v4063
      %4065 = vdwg.mxu0
      %4066 = vmatpush.msra.mxu0 0.0
      %4067 = vmatpush.msra.mxu0 0.0
      %4068 = vmatpush.msra.mxu0 0.0
      %4069 = vmatpush.msra.mxu0 0.0
      %4070 = vmatpush.msra.mxu0 0.0
      %4071 = vmatpush.msra.mxu0 0.0
      %4072 = vmatpush.msra.mxu0 0.0
      %4073 = vmatpush.msra.mxu0 0.0
      %4074 = vmatpush.msra.mxu0 0.0
      %4075 = vmatpush.msra.mxu0 0.0
      %4076 = vmatpush.msra.mxu0 0.0
      %4077 = vmatpush.msra.mxu0 0.0
      %4078 = vmatpush.msra.mxu0 0.0
      %4079 = vmatpush.msra.mxu0 0.0
      %4080 = vmatpush.msra.mxu0 0.0
      %v4081 = vand.u32 %v734, 4294901760
      %4082 = vmatpush.msra.mxu0 %v4081
      %v4083 = vand.u32 %v696, 4294901760
      %4084 = vmatmul.f32.gmra.mxu0 %v4083
      %v4085 = vpop.f32.mrf.mxu0
      %v4086 = vadd.f32 %v4056, %v4085
      %v4087 = vand.u32 %v699, 4294901760
      %4088 = vmatmul.f32.gmra.mxu0 %v4087
      %v4089 = vpop.f32.mrf.mxu0
      %v4090 = vadd.f32 %v4060, %v4089
      %v4091 = vand.u32 %v702, 4294901760
      %4092 = vmatmul.f32.gmra.mxu0 %v4091
      %v4093 = vpop.f32.mrf.mxu0
      %v4094 = vadd.f32 %v4064, %v4093
      %4095 = vdwg.mxu0
      %4096 = vmatpush.msra.mxu0 0.0
      %4097 = vmatpush.msra.mxu0 0.0
      %4098 = vmatpush.msra.mxu0 0.0
      %4099 = vmatpush.msra.mxu0 0.0
      %4100 = vmatpush.msra.mxu0 0.0
      %4101 = vmatpush.msra.mxu0 0.0
      %4102 = vmatpush.msra.mxu0 0.0
      %4103 = vmatpush.msra.mxu0 0.0
      %4104 = vmatpush.msra.mxu0 0.0
      %4105 = vmatpush.msra.mxu0 0.0
      %4106 = vmatpush.msra.mxu0 0.0
      %4107 = vmatpush.msra.mxu0 0.0
      %4108 = vmatpush.msra.mxu0 0.0
      %4109 = vmatpush.msra.mxu0 0.0
      %4110 = vmatpush.msra.mxu0 0.0
      %v4111 = vand.u32 %v736, 4294901760
      %4112 = vmatpush.msra.mxu0 %v4111
      %v4113 = vand.u32 %v696, 4294901760
      %v4114 = vsub.f32 %v696, %v4113
      %v4115 = vand.u32 %v4114, 4294901760
      %v4116 = vsub.f32 %v4114, %v4115
      %v4117 = vand.u32 %v4116, 4294901760
      %4118 = vmatmul.f32.gmra.mxu0 %v4117
      %v4119 = vpop.f32.mrf.mxu0
      %v4120 = vadd.f32 %v615, %v4119
      %v4121 = vand.u32 %v699, 4294901760
      %v4122 = vsub.f32 %v699, %v4121
      %v4123 = vand.u32 %v4122, 4294901760
      %v4124 = vsub.f32 %v4122, %v4123
      %v4125 = vand.u32 %v4124, 4294901760
      %4126 = vmatmul.f32.gmra.mxu0 %v4125
      %v4127 = vpop.f32.mrf.mxu0
      %v4128 = vadd.f32 %v620, %v4127
      %v4129 = vand.u32 %v702, 4294901760
      %v4130 = vsub.f32 %v702, %v4129
      %v4131 = vand.u32 %v4130, 4294901760
      %v4132 = vsub.f32 %v4130, %v4131
      %v4133 = vand.u32 %v4132, 4294901760
      %4134 = vmatmul.f32.gmra.mxu0 %v4133
      %v4135 = vpop.f32.mrf.mxu0
      %v4136 = vadd.f32 %v625, %v4135
      %4137 = vdwg.mxu0
      %4138 = vmatpush.msra.mxu0 0.0
      %4139 = vmatpush.msra.mxu0 0.0
      %4140 = vmatpush.msra.mxu0 0.0
      %4141 = vmatpush.msra.mxu0 0.0
      %4142 = vmatpush.msra.mxu0 0.0
      %4143 = vmatpush.msra.mxu0 0.0
      %4144 = vmatpush.msra.mxu0 0.0
      %4145 = vmatpush.msra.mxu0 0.0
      %4146 = vmatpush.msra.mxu0 0.0
      %4147 = vmatpush.msra.mxu0 0.0
      %4148 = vmatpush.msra.mxu0 0.0
      %4149 = vmatpush.msra.mxu0 0.0
      %4150 = vmatpush.msra.mxu0 0.0
      %4151 = vmatpush.msra.mxu0 0.0
      %4152 = vmatpush.msra.mxu0 0.0
      %v4153 = vand.u32 %v736, 4294901760
      %v4154 = vsub.f32 %v736, %v4153
      %v4155 = vand.u32 %v4154, 4294901760
      %v4156 = vsub.f32 %v4154, %v4155
      %v4157 = vand.u32 %v4156, 4294901760
      %4158 = vmatpush.msra.mxu0 %v4157
      %v4159 = vand.u32 %v696, 4294901760
      %4160 = vmatmul.f32.gmra.mxu0 %v4159
      %v4161 = vpop.f32.mrf.mxu0
      %v4162 = vadd.f32 %v4120, %v4161
      %v4163 = vand.u32 %v699, 4294901760
      %4164 = vmatmul.f32.gmra.mxu0 %v4163
      %v4165 = vpop.f32.mrf.mxu0
      %v4166 = vadd.f32 %v4128, %v4165
      %v4167 = vand.u32 %v702, 4294901760
      %4168 = vmatmul.f32.gmra.mxu0 %v4167
      %v4169 = vpop.f32.mrf.mxu0
      %v4170 = vadd.f32 %v4136, %v4169
      %4171 = vdwg.mxu0
      %4172 = vmatpush.msra.mxu0 0.0
      %4173 = vmatpush.msra.mxu0 0.0
      %4174 = vmatpush.msra.mxu0 0.0
      %4175 = vmatpush.msra.mxu0 0.0
      %4176 = vmatpush.msra.mxu0 0.0
      %4177 = vmatpush.msra.mxu0 0.0
      %4178 = vmatpush.msra.mxu0 0.0
      %4179 = vmatpush.msra.mxu0 0.0
      %4180 = vmatpush.msra.mxu0 0.0
      %4181 = vmatpush.msra.mxu0 0.0
      %4182 = vmatpush.msra.mxu0 0.0
      %4183 = vmatpush.msra.mxu0 0.0
      %4184 = vmatpush.msra.mxu0 0.0
      %4185 = vmatpush.msra.mxu0 0.0
      %4186 = vmatpush.msra.mxu0 0.0
      %v4187 = vand.u32 %v736, 4294901760
      %v4188 = vsub.f32 %v736, %v4187
      %4189 = vmatpush.msra.mxu0 %v4188
      %v4190 = vand.u32 %v696, 4294901760
      %v4191 = vsub.f32 %v696, %v4190
      %4192 = vmatmul.f32.gmra.mxu0 %v4191
      %v4193 = vpop.f32.mrf.mxu0
      %v4194 = vadd.f32 %v4162, %v4193
      %v4195 = vand.u32 %v699, 4294901760
      %v4196 = vsub.f32 %v699, %v4195
      %4197 = vmatmul.f32.gmra.mxu0 %v4196
      %v4198 = vpop.f32.mrf.mxu0
      %v4199 = vadd.f32 %v4166, %v4198
      %v4200 = vand.u32 %v702, 4294901760
      %v4201 = vsub.f32 %v702, %v4200
      %4202 = vmatmul.f32.gmra.mxu0 %v4201
      %v4203 = vpop.f32.mrf.mxu0
      %v4204 = vadd.f32 %v4170, %v4203
      %4205 = vdwg.mxu0
      %4206 = vmatpush.msra.mxu0 0.0
      %4207 = vmatpush.msra.mxu0 0.0
      %4208 = vmatpush.msra.mxu0 0.0
      %4209 = vmatpush.msra.mxu0 0.0
      %4210 = vmatpush.msra.mxu0 0.0
      %4211 = vmatpush.msra.mxu0 0.0
      %4212 = vmatpush.msra.mxu0 0.0
      %4213 = vmatpush.msra.mxu0 0.0
      %4214 = vmatpush.msra.mxu0 0.0
      %4215 = vmatpush.msra.mxu0 0.0
      %4216 = vmatpush.msra.mxu0 0.0
      %4217 = vmatpush.msra.mxu0 0.0
      %4218 = vmatpush.msra.mxu0 0.0
      %4219 = vmatpush.msra.mxu0 0.0
      %4220 = vmatpush.msra.mxu0 0.0
      %v4221 = vand.u32 %v736, 4294901760
      %4222 = vmatpush.msra.mxu0 %v4221
      %v4223 = vand.u32 %v696, 4294901760
      %v4224 = vsub.f32 %v696, %v4223
      %v4225 = vand.u32 %v4224, 4294901760
      %4226 = vmatmul.f32.gmra.mxu0 %v4225
      %v4227 = vpop.f32.mrf.mxu0
      %v4228 = vadd.f32 %v4194, %v4227
      %v4229 = vand.u32 %v699, 4294901760
      %v4230 = vsub.f32 %v699, %v4229
      %v4231 = vand.u32 %v4230, 4294901760
      %4232 = vmatmul.f32.gmra.mxu0 %v4231
      %v4233 = vpop.f32.mrf.mxu0
      %v4234 = vadd.f32 %v4199, %v4233
      %v4235 = vand.u32 %v702, 4294901760
      %v4236 = vsub.f32 %v702, %v4235
      %v4237 = vand.u32 %v4236, 4294901760
      %4238 = vmatmul.f32.gmra.mxu0 %v4237
      %v4239 = vpop.f32.mrf.mxu0
      %v4240 = vadd.f32 %v4204, %v4239
      %4241 = vdwg.mxu0
      %4242 = vmatpush.msra.mxu0 0.0
      %4243 = vmatpush.msra.mxu0 0.0
      %4244 = vmatpush.msra.mxu0 0.0
      %4245 = vmatpush.msra.mxu0 0.0
      %4246 = vmatpush.msra.mxu0 0.0
      %4247 = vmatpush.msra.mxu0 0.0
      %4248 = vmatpush.msra.mxu0 0.0
      %4249 = vmatpush.msra.mxu0 0.0
      %4250 = vmatpush.msra.mxu0 0.0
      %4251 = vmatpush.msra.mxu0 0.0
      %4252 = vmatpush.msra.mxu0 0.0
      %4253 = vmatpush.msra.mxu0 0.0
      %4254 = vmatpush.msra.mxu0 0.0
      %4255 = vmatpush.msra.mxu0 0.0
      %4256 = vmatpush.msra.mxu0 0.0
      %v4257 = vand.u32 %v736, 4294901760
      %v4258 = vsub.f32 %v736, %v4257
      %v4259 = vand.u32 %v4258, 4294901760
      %4260 = vmatpush.msra.mxu0 %v4259
      %v4261 = vand.u32 %v696, 4294901760
      %4262 = vmatmul.f32.gmra.mxu0 %v4261
      %v4263 = vpop.f32.mrf.mxu0
      %v4264 = vadd.f32 %v4228, %v4263
      %v4265 = vand.u32 %v699, 4294901760
      %4266 = vmatmul.f32.gmra.mxu0 %v4265
      %v4267 = vpop.f32.mrf.mxu0
      %v4268 = vadd.f32 %v4234, %v4267
      %v4269 = vand.u32 %v702, 4294901760
      %4270 = vmatmul.f32.gmra.mxu0 %v4269
      %v4271 = vpop.f32.mrf.mxu0
      %v4272 = vadd.f32 %v4240, %v4271
      %4273 = vdwg.mxu0
      %4274 = vmatpush.msra.mxu0 0.0
      %4275 = vmatpush.msra.mxu0 0.0
      %4276 = vmatpush.msra.mxu0 0.0
      %4277 = vmatpush.msra.mxu0 0.0
      %4278 = vmatpush.msra.mxu0 0.0
      %4279 = vmatpush.msra.mxu0 0.0
      %4280 = vmatpush.msra.mxu0 0.0
      %4281 = vmatpush.msra.mxu0 0.0
      %4282 = vmatpush.msra.mxu0 0.0
      %4283 = vmatpush.msra.mxu0 0.0
      %4284 = vmatpush.msra.mxu0 0.0
      %4285 = vmatpush.msra.mxu0 0.0
      %4286 = vmatpush.msra.mxu0 0.0
      %4287 = vmatpush.msra.mxu0 0.0
      %4288 = vmatpush.msra.mxu0 0.0
      %v4289 = vand.u32 %v736, 4294901760
      %4290 = vmatpush.msra.mxu0 %v4289
      %v4291 = vand.u32 %v696, 4294901760
      %4292 = vmatmul.f32.gmra.mxu0 %v4291
      %v4293 = vpop.f32.mrf.mxu0
      %v4294 = vadd.f32 %v4264, %v4293
      %v4295 = vand.u32 %v699, 4294901760
      %4296 = vmatmul.f32.gmra.mxu0 %v4295
      %v4297 = vpop.f32.mrf.mxu0
      %v4298 = vadd.f32 %v4268, %v4297
      %v4299 = vand.u32 %v702, 4294901760
      %4300 = vmatmul.f32.gmra.mxu0 %v4299
      %v4301 = vpop.f32.mrf.mxu0
      %v4302 = vadd.f32 %v4272, %v4301
      %4303 = vdwg.mxu0
      %4304 = vmatpush.msra.mxu0 0.0
      %4305 = vmatpush.msra.mxu0 0.0
      %4306 = vmatpush.msra.mxu0 0.0
      %4307 = vmatpush.msra.mxu0 0.0
      %4308 = vmatpush.msra.mxu0 0.0
      %4309 = vmatpush.msra.mxu0 0.0
      %4310 = vmatpush.msra.mxu0 0.0
      %4311 = vmatpush.msra.mxu0 0.0
      %4312 = vmatpush.msra.mxu0 0.0
      %4313 = vmatpush.msra.mxu0 0.0
      %4314 = vmatpush.msra.mxu0 0.0
      %4315 = vmatpush.msra.mxu0 0.0
      %4316 = vmatpush.msra.mxu0 0.0
      %4317 = vmatpush.msra.mxu0 0.0
      %4318 = vmatpush.msra.mxu0 0.0
      %v4319 = vand.u32 %v738, 4294901760
      %4320 = vmatpush.msra.mxu0 %v4319
      %v4321 = vand.u32 %v696, 4294901760
      %v4322 = vsub.f32 %v696, %v4321
      %v4323 = vand.u32 %v4322, 4294901760
      %v4324 = vsub.f32 %v4322, %v4323
      %v4325 = vand.u32 %v4324, 4294901760
      %4326 = vmatmul.f32.gmra.mxu0 %v4325
      %v4327 = vpop.f32.mrf.mxu0
      %v4328 = vadd.f32 %v615, %v4327
      %v4329 = vand.u32 %v699, 4294901760
      %v4330 = vsub.f32 %v699, %v4329
      %v4331 = vand.u32 %v4330, 4294901760
      %v4332 = vsub.f32 %v4330, %v4331
      %v4333 = vand.u32 %v4332, 4294901760
      %4334 = vmatmul.f32.gmra.mxu0 %v4333
      %v4335 = vpop.f32.mrf.mxu0
      %v4336 = vadd.f32 %v620, %v4335
      %v4337 = vand.u32 %v702, 4294901760
      %v4338 = vsub.f32 %v702, %v4337
      %v4339 = vand.u32 %v4338, 4294901760
      %v4340 = vsub.f32 %v4338, %v4339
      %v4341 = vand.u32 %v4340, 4294901760
      %4342 = vmatmul.f32.gmra.mxu0 %v4341
      %v4343 = vpop.f32.mrf.mxu0
      %v4344 = vadd.f32 %v625, %v4343
      %4345 = vdwg.mxu0
      %4346 = vmatpush.msra.mxu0 0.0
      %4347 = vmatpush.msra.mxu0 0.0
      %4348 = vmatpush.msra.mxu0 0.0
      %4349 = vmatpush.msra.mxu0 0.0
      %4350 = vmatpush.msra.mxu0 0.0
      %4351 = vmatpush.msra.mxu0 0.0
      %4352 = vmatpush.msra.mxu0 0.0
      %4353 = vmatpush.msra.mxu0 0.0
      %4354 = vmatpush.msra.mxu0 0.0
      %4355 = vmatpush.msra.mxu0 0.0
      %4356 = vmatpush.msra.mxu0 0.0
      %4357 = vmatpush.msra.mxu0 0.0
      %4358 = vmatpush.msra.mxu0 0.0
      %4359 = vmatpush.msra.mxu0 0.0
      %4360 = vmatpush.msra.mxu0 0.0
      %v4361 = vand.u32 %v738, 4294901760
      %v4362 = vsub.f32 %v738, %v4361
      %v4363 = vand.u32 %v4362, 4294901760
      %v4364 = vsub.f32 %v4362, %v4363
      %v4365 = vand.u32 %v4364, 4294901760
      %4366 = vmatpush.msra.mxu0 %v4365
      %v4367 = vand.u32 %v696, 4294901760
      %4368 = vmatmul.f32.gmra.mxu0 %v4367
      %v4369 = vpop.f32.mrf.mxu0
      %v4370 = vadd.f32 %v4328, %v4369
      %v4371 = vand.u32 %v699, 4294901760
      %4372 = vmatmul.f32.gmra.mxu0 %v4371
      %v4373 = vpop.f32.mrf.mxu0
      %v4374 = vadd.f32 %v4336, %v4373
      %v4375 = vand.u32 %v702, 4294901760
      %4376 = vmatmul.f32.gmra.mxu0 %v4375
      %v4377 = vpop.f32.mrf.mxu0
      %v4378 = vadd.f32 %v4344, %v4377
      %4379 = vdwg.mxu0
      %4380 = vmatpush.msra.mxu0 0.0
      %4381 = vmatpush.msra.mxu0 0.0
      %4382 = vmatpush.msra.mxu0 0.0
      %4383 = vmatpush.msra.mxu0 0.0
      %4384 = vmatpush.msra.mxu0 0.0
      %4385 = vmatpush.msra.mxu0 0.0
      %4386 = vmatpush.msra.mxu0 0.0
      %4387 = vmatpush.msra.mxu0 0.0
      %4388 = vmatpush.msra.mxu0 0.0
      %4389 = vmatpush.msra.mxu0 0.0
      %4390 = vmatpush.msra.mxu0 0.0
      %4391 = vmatpush.msra.mxu0 0.0
      %4392 = vmatpush.msra.mxu0 0.0
      %4393 = vmatpush.msra.mxu0 0.0
      %4394 = vmatpush.msra.mxu0 0.0
      %v4395 = vand.u32 %v738, 4294901760
      %v4396 = vsub.f32 %v738, %v4395
      %4397 = vmatpush.msra.mxu0 %v4396
      %v4398 = vand.u32 %v696, 4294901760
      %v4399 = vsub.f32 %v696, %v4398
      %4400 = vmatmul.f32.gmra.mxu0 %v4399
      %v4401 = vpop.f32.mrf.mxu0
      %v4402 = vadd.f32 %v4370, %v4401
      %v4403 = vand.u32 %v699, 4294901760
      %v4404 = vsub.f32 %v699, %v4403
      %4405 = vmatmul.f32.gmra.mxu0 %v4404
      %v4406 = vpop.f32.mrf.mxu0
      %v4407 = vadd.f32 %v4374, %v4406
      %v4408 = vand.u32 %v702, 4294901760
      %v4409 = vsub.f32 %v702, %v4408
      %4410 = vmatmul.f32.gmra.mxu0 %v4409
      %v4411 = vpop.f32.mrf.mxu0
      %v4412 = vadd.f32 %v4378, %v4411
      %4413 = vdwg.mxu0
      %4414 = vmatpush.msra.mxu0 0.0
      %4415 = vmatpush.msra.mxu0 0.0
      %4416 = vmatpush.msra.mxu0 0.0
      %4417 = vmatpush.msra.mxu0 0.0
      %4418 = vmatpush.msra.mxu0 0.0
      %4419 = vmatpush.msra.mxu0 0.0
      %4420 = vmatpush.msra.mxu0 0.0
      %4421 = vmatpush.msra.mxu0 0.0
      %4422 = vmatpush.msra.mxu0 0.0
      %4423 = vmatpush.msra.mxu0 0.0
      %4424 = vmatpush.msra.mxu0 0.0
      %4425 = vmatpush.msra.mxu0 0.0
      %4426 = vmatpush.msra.mxu0 0.0
      %4427 = vmatpush.msra.mxu0 0.0
      %4428 = vmatpush.msra.mxu0 0.0
      %v4429 = vand.u32 %v738, 4294901760
      %4430 = vmatpush.msra.mxu0 %v4429
      %v4431 = vand.u32 %v696, 4294901760
      %v4432 = vsub.f32 %v696, %v4431
      %v4433 = vand.u32 %v4432, 4294901760
      %4434 = vmatmul.f32.gmra.mxu0 %v4433
      %v4435 = vpop.f32.mrf.mxu0
      %v4436 = vadd.f32 %v4402, %v4435
      %v4437 = vand.u32 %v699, 4294901760
      %v4438 = vsub.f32 %v699, %v4437
      %v4439 = vand.u32 %v4438, 4294901760
      %4440 = vmatmul.f32.gmra.mxu0 %v4439
      %v4441 = vpop.f32.mrf.mxu0
      %v4442 = vadd.f32 %v4407, %v4441
      %v4443 = vand.u32 %v702, 4294901760
      %v4444 = vsub.f32 %v702, %v4443
      %v4445 = vand.u32 %v4444, 4294901760
      %4446 = vmatmul.f32.gmra.mxu0 %v4445
      %v4447 = vpop.f32.mrf.mxu0
      %v4448 = vadd.f32 %v4412, %v4447
      %4449 = vdwg.mxu0
      %4450 = vmatpush.msra.mxu0 0.0
      %4451 = vmatpush.msra.mxu0 0.0
      %4452 = vmatpush.msra.mxu0 0.0
      %4453 = vmatpush.msra.mxu0 0.0
      %4454 = vmatpush.msra.mxu0 0.0
      %4455 = vmatpush.msra.mxu0 0.0
      %4456 = vmatpush.msra.mxu0 0.0
      %4457 = vmatpush.msra.mxu0 0.0
      %4458 = vmatpush.msra.mxu0 0.0
      %4459 = vmatpush.msra.mxu0 0.0
      %4460 = vmatpush.msra.mxu0 0.0
      %4461 = vmatpush.msra.mxu0 0.0
      %4462 = vmatpush.msra.mxu0 0.0
      %4463 = vmatpush.msra.mxu0 0.0
      %4464 = vmatpush.msra.mxu0 0.0
      %v4465 = vand.u32 %v738, 4294901760
      %v4466 = vsub.f32 %v738, %v4465
      %v4467 = vand.u32 %v4466, 4294901760
      %4468 = vmatpush.msra.mxu0 %v4467
      %v4469 = vand.u32 %v696, 4294901760
      %4470 = vmatmul.f32.gmra.mxu0 %v4469
      %v4471 = vpop.f32.mrf.mxu0
      %v4472 = vadd.f32 %v4436, %v4471
      %v4473 = vand.u32 %v699, 4294901760
      %4474 = vmatmul.f32.gmra.mxu0 %v4473
      %v4475 = vpop.f32.mrf.mxu0
      %v4476 = vadd.f32 %v4442, %v4475
      %v4477 = vand.u32 %v702, 4294901760
      %4478 = vmatmul.f32.gmra.mxu0 %v4477
      %v4479 = vpop.f32.mrf.mxu0
      %v4480 = vadd.f32 %v4448, %v4479
      %4481 = vdwg.mxu0
      %4482 = vmatpush.msra.mxu0 0.0
      %4483 = vmatpush.msra.mxu0 0.0
      %4484 = vmatpush.msra.mxu0 0.0
      %4485 = vmatpush.msra.mxu0 0.0
      %4486 = vmatpush.msra.mxu0 0.0
      %4487 = vmatpush.msra.mxu0 0.0
      %4488 = vmatpush.msra.mxu0 0.0
      %4489 = vmatpush.msra.mxu0 0.0
      %4490 = vmatpush.msra.mxu0 0.0
      %4491 = vmatpush.msra.mxu0 0.0
      %4492 = vmatpush.msra.mxu0 0.0
      %4493 = vmatpush.msra.mxu0 0.0
      %4494 = vmatpush.msra.mxu0 0.0
      %4495 = vmatpush.msra.mxu0 0.0
      %4496 = vmatpush.msra.mxu0 0.0
      %v4497 = vand.u32 %v738, 4294901760
      %4498 = vmatpush.msra.mxu0 %v4497
      %v4499 = vand.u32 %v696, 4294901760
      %4500 = vmatmul.f32.gmra.mxu0 %v4499
      %v4501 = vpop.f32.mrf.mxu0
      %v4502 = vadd.f32 %v4472, %v4501
      %v4503 = vand.u32 %v699, 4294901760
      %4504 = vmatmul.f32.gmra.mxu0 %v4503
      %v4505 = vpop.f32.mrf.mxu0
      %v4506 = vadd.f32 %v4476, %v4505
      %v4507 = vand.u32 %v702, 4294901760
      %4508 = vmatmul.f32.gmra.mxu0 %v4507
      %v4509 = vpop.f32.mrf.mxu0
      %v4510 = vadd.f32 %v4480, %v4509
      %4511 = vdwg.mxu0
      %4512 = vmatpush.msra.mxu0 0.0
      %4513 = vmatpush.msra.mxu0 0.0
      %4514 = vmatpush.msra.mxu0 0.0
      %4515 = vmatpush.msra.mxu0 0.0
      %4516 = vmatpush.msra.mxu0 0.0
      %4517 = vmatpush.msra.mxu0 0.0
      %4518 = vmatpush.msra.mxu0 0.0
      %4519 = vmatpush.msra.mxu0 0.0
      %4520 = vmatpush.msra.mxu0 0.0
      %4521 = vmatpush.msra.mxu0 0.0
      %4522 = vmatpush.msra.mxu0 0.0
      %4523 = vmatpush.msra.mxu0 0.0
      %4524 = vmatpush.msra.mxu0 0.0
      %4525 = vmatpush.msra.mxu0 0.0
      %4526 = vmatpush.msra.mxu0 0.0
      %v4527 = vand.u32 %v740, 4294901760
      %4528 = vmatpush.msra.mxu0 %v4527
      %v4529 = vand.u32 %v696, 4294901760
      %v4530 = vsub.f32 %v696, %v4529
      %v4531 = vand.u32 %v4530, 4294901760
      %v4532 = vsub.f32 %v4530, %v4531
      %v4533 = vand.u32 %v4532, 4294901760
      %4534 = vmatmul.f32.gmra.mxu0 %v4533
      %v4535 = vpop.f32.mrf.mxu0
      %v4536 = vadd.f32 %v615, %v4535
      %v4537 = vand.u32 %v699, 4294901760
      %v4538 = vsub.f32 %v699, %v4537
      %v4539 = vand.u32 %v4538, 4294901760
      %v4540 = vsub.f32 %v4538, %v4539
      %v4541 = vand.u32 %v4540, 4294901760
      %4542 = vmatmul.f32.gmra.mxu0 %v4541
      %v4543 = vpop.f32.mrf.mxu0
      %v4544 = vadd.f32 %v620, %v4543
      %v4545 = vand.u32 %v702, 4294901760
      %v4546 = vsub.f32 %v702, %v4545
      %v4547 = vand.u32 %v4546, 4294901760
      %v4548 = vsub.f32 %v4546, %v4547
      %v4549 = vand.u32 %v4548, 4294901760
      %4550 = vmatmul.f32.gmra.mxu0 %v4549
      %v4551 = vpop.f32.mrf.mxu0
      %v4552 = vadd.f32 %v625, %v4551
      %4553 = vdwg.mxu0
      %4554 = vmatpush.msra.mxu0 0.0
      %4555 = vmatpush.msra.mxu0 0.0
      %4556 = vmatpush.msra.mxu0 0.0
      %4557 = vmatpush.msra.mxu0 0.0
      %4558 = vmatpush.msra.mxu0 0.0
      %4559 = vmatpush.msra.mxu0 0.0
      %4560 = vmatpush.msra.mxu0 0.0
      %4561 = vmatpush.msra.mxu0 0.0
      %4562 = vmatpush.msra.mxu0 0.0
      %4563 = vmatpush.msra.mxu0 0.0
      %4564 = vmatpush.msra.mxu0 0.0
      %4565 = vmatpush.msra.mxu0 0.0
      %4566 = vmatpush.msra.mxu0 0.0
      %4567 = vmatpush.msra.mxu0 0.0
      %4568 = vmatpush.msra.mxu0 0.0
      %v4569 = vand.u32 %v740, 4294901760
      %v4570 = vsub.f32 %v740, %v4569
      %v4571 = vand.u32 %v4570, 4294901760
      %v4572 = vsub.f32 %v4570, %v4571
      %v4573 = vand.u32 %v4572, 4294901760
      %4574 = vmatpush.msra.mxu0 %v4573
      %v4575 = vand.u32 %v696, 4294901760
      %4576 = vmatmul.f32.gmra.mxu0 %v4575
      %v4577 = vpop.f32.mrf.mxu0
      %v4578 = vadd.f32 %v4536, %v4577
      %v4579 = vand.u32 %v699, 4294901760
      %4580 = vmatmul.f32.gmra.mxu0 %v4579
      %v4581 = vpop.f32.mrf.mxu0
      %v4582 = vadd.f32 %v4544, %v4581
      %v4583 = vand.u32 %v702, 4294901760
      %4584 = vmatmul.f32.gmra.mxu0 %v4583
      %v4585 = vpop.f32.mrf.mxu0
      %v4586 = vadd.f32 %v4552, %v4585
      %4587 = vdwg.mxu0
      %4588 = vmatpush.msra.mxu0 0.0
      %4589 = vmatpush.msra.mxu0 0.0
      %4590 = vmatpush.msra.mxu0 0.0
      %4591 = vmatpush.msra.mxu0 0.0
      %4592 = vmatpush.msra.mxu0 0.0
      %4593 = vmatpush.msra.mxu0 0.0
      %4594 = vmatpush.msra.mxu0 0.0
      %4595 = vmatpush.msra.mxu0 0.0
      %4596 = vmatpush.msra.mxu0 0.0
      %4597 = vmatpush.msra.mxu0 0.0
      %4598 = vmatpush.msra.mxu0 0.0
      %4599 = vmatpush.msra.mxu0 0.0
      %4600 = vmatpush.msra.mxu0 0.0
      %4601 = vmatpush.msra.mxu0 0.0
      %4602 = vmatpush.msra.mxu0 0.0
      %v4603 = vand.u32 %v740, 4294901760
      %v4604 = vsub.f32 %v740, %v4603
      %4605 = vmatpush.msra.mxu0 %v4604
      %v4606 = vand.u32 %v696, 4294901760
      %v4607 = vsub.f32 %v696, %v4606
      %4608 = vmatmul.f32.gmra.mxu0 %v4607
      %v4609 = vpop.f32.mrf.mxu0
      %v4610 = vadd.f32 %v4578, %v4609
      %v4611 = vand.u32 %v699, 4294901760
      %v4612 = vsub.f32 %v699, %v4611
      %4613 = vmatmul.f32.gmra.mxu0 %v4612
      %v4614 = vpop.f32.mrf.mxu0
      %v4615 = vadd.f32 %v4582, %v4614
      %v4616 = vand.u32 %v702, 4294901760
      %v4617 = vsub.f32 %v702, %v4616
      %4618 = vmatmul.f32.gmra.mxu0 %v4617
      %v4619 = vpop.f32.mrf.mxu0
      %v4620 = vadd.f32 %v4586, %v4619
      %4621 = vdwg.mxu0
      %4622 = vmatpush.msra.mxu0 0.0
      %4623 = vmatpush.msra.mxu0 0.0
      %4624 = vmatpush.msra.mxu0 0.0
      %4625 = vmatpush.msra.mxu0 0.0
      %4626 = vmatpush.msra.mxu0 0.0
      %4627 = vmatpush.msra.mxu0 0.0
      %4628 = vmatpush.msra.mxu0 0.0
      %4629 = vmatpush.msra.mxu0 0.0
      %4630 = vmatpush.msra.mxu0 0.0
      %4631 = vmatpush.msra.mxu0 0.0
      %4632 = vmatpush.msra.mxu0 0.0
      %4633 = vmatpush.msra.mxu0 0.0
      %4634 = vmatpush.msra.mxu0 0.0
      %4635 = vmatpush.msra.mxu0 0.0
      %4636 = vmatpush.msra.mxu0 0.0
      %v4637 = vand.u32 %v740, 4294901760
      %4638 = vmatpush.msra.mxu0 %v4637
      %v4639 = vand.u32 %v696, 4294901760
      %v4640 = vsub.f32 %v696, %v4639
      %v4641 = vand.u32 %v4640, 4294901760
      %4642 = vmatmul.f32.gmra.mxu0 %v4641
      %v4643 = vpop.f32.mrf.mxu0
      %v4644 = vadd.f32 %v4610, %v4643
      %v4645 = vand.u32 %v699, 4294901760
      %v4646 = vsub.f32 %v699, %v4645
      %v4647 = vand.u32 %v4646, 4294901760
      %4648 = vmatmul.f32.gmra.mxu0 %v4647
      %v4649 = vpop.f32.mrf.mxu0
      %v4650 = vadd.f32 %v4615, %v4649
      %v4651 = vand.u32 %v702, 4294901760
      %v4652 = vsub.f32 %v702, %v4651
      %v4653 = vand.u32 %v4652, 4294901760
      %4654 = vmatmul.f32.gmra.mxu0 %v4653
      %v4655 = vpop.f32.mrf.mxu0
      %v4656 = vadd.f32 %v4620, %v4655
      %4657 = vdwg.mxu0
      %4658 = vmatpush.msra.mxu0 0.0
      %4659 = vmatpush.msra.mxu0 0.0
      %4660 = vmatpush.msra.mxu0 0.0
      %4661 = vmatpush.msra.mxu0 0.0
      %4662 = vmatpush.msra.mxu0 0.0
      %4663 = vmatpush.msra.mxu0 0.0
      %4664 = vmatpush.msra.mxu0 0.0
      %4665 = vmatpush.msra.mxu0 0.0
      %4666 = vmatpush.msra.mxu0 0.0
      %4667 = vmatpush.msra.mxu0 0.0
      %4668 = vmatpush.msra.mxu0 0.0
      %4669 = vmatpush.msra.mxu0 0.0
      %4670 = vmatpush.msra.mxu0 0.0
      %4671 = vmatpush.msra.mxu0 0.0
      %4672 = vmatpush.msra.mxu0 0.0
      %v4673 = vand.u32 %v740, 4294901760
      %v4674 = vsub.f32 %v740, %v4673
      %v4675 = vand.u32 %v4674, 4294901760
      %4676 = vmatpush.msra.mxu0 %v4675
      %v4677 = vand.u32 %v696, 4294901760
      %4678 = vmatmul.f32.gmra.mxu0 %v4677
      %v4679 = vpop.f32.mrf.mxu0
      %v4680 = vadd.f32 %v4644, %v4679
      %v4681 = vand.u32 %v699, 4294901760
      %4682 = vmatmul.f32.gmra.mxu0 %v4681
      %v4683 = vpop.f32.mrf.mxu0
      %v4684 = vadd.f32 %v4650, %v4683
      %v4685 = vand.u32 %v702, 4294901760
      %4686 = vmatmul.f32.gmra.mxu0 %v4685
      %v4687 = vpop.f32.mrf.mxu0
      %v4688 = vadd.f32 %v4656, %v4687
      %4689 = vdwg.mxu0
      %4690 = vmatpush.msra.mxu0 0.0
      %4691 = vmatpush.msra.mxu0 0.0
      %4692 = vmatpush.msra.mxu0 0.0
      %4693 = vmatpush.msra.mxu0 0.0
      %4694 = vmatpush.msra.mxu0 0.0
      %4695 = vmatpush.msra.mxu0 0.0
      %4696 = vmatpush.msra.mxu0 0.0
      %4697 = vmatpush.msra.mxu0 0.0
      %4698 = vmatpush.msra.mxu0 0.0
      %4699 = vmatpush.msra.mxu0 0.0
      %4700 = vmatpush.msra.mxu0 0.0
      %4701 = vmatpush.msra.mxu0 0.0
      %4702 = vmatpush.msra.mxu0 0.0
      %4703 = vmatpush.msra.mxu0 0.0
      %4704 = vmatpush.msra.mxu0 0.0
      %v4705 = vand.u32 %v740, 4294901760
      %4706 = vmatpush.msra.mxu0 %v4705
      %v4707 = vand.u32 %v696, 4294901760
      %4708 = vmatmul.f32.gmra.mxu0 %v4707
      %v4709 = vpop.f32.mrf.mxu0
      %v4710 = vadd.f32 %v4680, %v4709
      %v4711 = vand.u32 %v699, 4294901760
      %4712 = vmatmul.f32.gmra.mxu0 %v4711
      %v4713 = vpop.f32.mrf.mxu0
      %v4714 = vadd.f32 %v4684, %v4713
      %v4715 = vand.u32 %v702, 4294901760
      %4716 = vmatmul.f32.gmra.mxu0 %v4715
      %v4717 = vpop.f32.mrf.mxu0
      %v4718 = vadd.f32 %v4688, %v4717
      %4719 = vdwg.mxu0
      %4720 = vmatpush.msra.mxu0 0.0
      %4721 = vmatpush.msra.mxu0 0.0
      %4722 = vmatpush.msra.mxu0 0.0
      %4723 = vmatpush.msra.mxu0 0.0
      %4724 = vmatpush.msra.mxu0 0.0
      %4725 = vmatpush.msra.mxu0 0.0
      %4726 = vmatpush.msra.mxu0 0.0
      %4727 = vmatpush.msra.mxu0 0.0
      %4728 = vmatpush.msra.mxu0 0.0
      %4729 = vmatpush.msra.mxu0 0.0
      %4730 = vmatpush.msra.mxu0 0.0
      %4731 = vmatpush.msra.mxu0 0.0
      %4732 = vmatpush.msra.mxu0 0.0
      %4733 = vmatpush.msra.mxu0 0.0
      %4734 = vmatpush.msra.mxu0 0.0
      %v4735 = vand.u32 %v742, 4294901760
      %4736 = vmatpush.msra.mxu0 %v4735
      %v4737 = vand.u32 %v696, 4294901760
      %v4738 = vsub.f32 %v696, %v4737
      %v4739 = vand.u32 %v4738, 4294901760
      %v4740 = vsub.f32 %v4738, %v4739
      %v4741 = vand.u32 %v4740, 4294901760
      %4742 = vmatmul.f32.gmra.mxu0 %v4741
      %v4743 = vpop.f32.mrf.mxu0
      %v4744 = vadd.f32 %v615, %v4743
      %v4745 = vand.u32 %v699, 4294901760
      %v4746 = vsub.f32 %v699, %v4745
      %v4747 = vand.u32 %v4746, 4294901760
      %v4748 = vsub.f32 %v4746, %v4747
      %v4749 = vand.u32 %v4748, 4294901760
      %4750 = vmatmul.f32.gmra.mxu0 %v4749
      %v4751 = vpop.f32.mrf.mxu0
      %v4752 = vadd.f32 %v620, %v4751
      %v4753 = vand.u32 %v702, 4294901760
      %v4754 = vsub.f32 %v702, %v4753
      %v4755 = vand.u32 %v4754, 4294901760
      %v4756 = vsub.f32 %v4754, %v4755
      %v4757 = vand.u32 %v4756, 4294901760
      %4758 = vmatmul.f32.gmra.mxu0 %v4757
      %v4759 = vpop.f32.mrf.mxu0
      %v4760 = vadd.f32 %v625, %v4759
      %4761 = vdwg.mxu0
      %4762 = vmatpush.msra.mxu0 0.0
      %4763 = vmatpush.msra.mxu0 0.0
      %4764 = vmatpush.msra.mxu0 0.0
      %4765 = vmatpush.msra.mxu0 0.0
      %4766 = vmatpush.msra.mxu0 0.0
      %4767 = vmatpush.msra.mxu0 0.0
      %4768 = vmatpush.msra.mxu0 0.0
      %4769 = vmatpush.msra.mxu0 0.0
      %4770 = vmatpush.msra.mxu0 0.0
      %4771 = vmatpush.msra.mxu0 0.0
      %4772 = vmatpush.msra.mxu0 0.0
      %4773 = vmatpush.msra.mxu0 0.0
      %4774 = vmatpush.msra.mxu0 0.0
      %4775 = vmatpush.msra.mxu0 0.0
      %4776 = vmatpush.msra.mxu0 0.0
      %v4777 = vand.u32 %v742, 4294901760
      %v4778 = vsub.f32 %v742, %v4777
      %v4779 = vand.u32 %v4778, 4294901760
      %v4780 = vsub.f32 %v4778, %v4779
      %v4781 = vand.u32 %v4780, 4294901760
      %4782 = vmatpush.msra.mxu0 %v4781
      %v4783 = vand.u32 %v696, 4294901760
      %4784 = vmatmul.f32.gmra.mxu0 %v4783
      %v4785 = vpop.f32.mrf.mxu0
      %v4786 = vadd.f32 %v4744, %v4785
      %v4787 = vand.u32 %v699, 4294901760
      %4788 = vmatmul.f32.gmra.mxu0 %v4787
      %v4789 = vpop.f32.mrf.mxu0
      %v4790 = vadd.f32 %v4752, %v4789
      %v4791 = vand.u32 %v702, 4294901760
      %4792 = vmatmul.f32.gmra.mxu0 %v4791
      %v4793 = vpop.f32.mrf.mxu0
      %v4794 = vadd.f32 %v4760, %v4793
      %4795 = vdwg.mxu0
      %4796 = vmatpush.msra.mxu0 0.0
      %4797 = vmatpush.msra.mxu0 0.0
      %4798 = vmatpush.msra.mxu0 0.0
      %4799 = vmatpush.msra.mxu0 0.0
      %4800 = vmatpush.msra.mxu0 0.0
      %4801 = vmatpush.msra.mxu0 0.0
      %4802 = vmatpush.msra.mxu0 0.0
      %4803 = vmatpush.msra.mxu0 0.0
      %4804 = vmatpush.msra.mxu0 0.0
      %4805 = vmatpush.msra.mxu0 0.0
      %4806 = vmatpush.msra.mxu0 0.0
      %4807 = vmatpush.msra.mxu0 0.0
      %4808 = vmatpush.msra.mxu0 0.0
      %4809 = vmatpush.msra.mxu0 0.0
      %4810 = vmatpush.msra.mxu0 0.0
      %v4811 = vand.u32 %v742, 4294901760
      %v4812 = vsub.f32 %v742, %v4811
      %4813 = vmatpush.msra.mxu0 %v4812
      %v4814 = vand.u32 %v696, 4294901760
      %v4815 = vsub.f32 %v696, %v4814
      %4816 = vmatmul.f32.gmra.mxu0 %v4815
      %v4817 = vpop.f32.mrf.mxu0
      %v4818 = vadd.f32 %v4786, %v4817
      %v4819 = vand.u32 %v699, 4294901760
      %v4820 = vsub.f32 %v699, %v4819
      %4821 = vmatmul.f32.gmra.mxu0 %v4820
      %v4822 = vpop.f32.mrf.mxu0
      %v4823 = vadd.f32 %v4790, %v4822
      %v4824 = vand.u32 %v702, 4294901760
      %v4825 = vsub.f32 %v702, %v4824
      %4826 = vmatmul.f32.gmra.mxu0 %v4825
      %v4827 = vpop.f32.mrf.mxu0
      %v4828 = vadd.f32 %v4794, %v4827
      %4829 = vdwg.mxu0
      %4830 = vmatpush.msra.mxu0 0.0
      %4831 = vmatpush.msra.mxu0 0.0
      %4832 = vmatpush.msra.mxu0 0.0
      %4833 = vmatpush.msra.mxu0 0.0
      %4834 = vmatpush.msra.mxu0 0.0
      %4835 = vmatpush.msra.mxu0 0.0
      %4836 = vmatpush.msra.mxu0 0.0
      %4837 = vmatpush.msra.mxu0 0.0
      %4838 = vmatpush.msra.mxu0 0.0
      %4839 = vmatpush.msra.mxu0 0.0
      %4840 = vmatpush.msra.mxu0 0.0
      %4841 = vmatpush.msra.mxu0 0.0
      %4842 = vmatpush.msra.mxu0 0.0
      %4843 = vmatpush.msra.mxu0 0.0
      %4844 = vmatpush.msra.mxu0 0.0
      %v4845 = vand.u32 %v742, 4294901760
      %4846 = vmatpush.msra.mxu0 %v4845
      %v4847 = vand.u32 %v696, 4294901760
      %v4848 = vsub.f32 %v696, %v4847
      %v4849 = vand.u32 %v4848, 4294901760
      %4850 = vmatmul.f32.gmra.mxu0 %v4849
      %v4851 = vpop.f32.mrf.mxu0
      %v4852 = vadd.f32 %v4818, %v4851
      %v4853 = vand.u32 %v699, 4294901760
      %v4854 = vsub.f32 %v699, %v4853
      %v4855 = vand.u32 %v4854, 4294901760
      %4856 = vmatmul.f32.gmra.mxu0 %v4855
      %v4857 = vpop.f32.mrf.mxu0
      %v4858 = vadd.f32 %v4823, %v4857
      %v4859 = vand.u32 %v702, 4294901760
      %v4860 = vsub.f32 %v702, %v4859
      %v4861 = vand.u32 %v4860, 4294901760
      %4862 = vmatmul.f32.gmra.mxu0 %v4861
      %v4863 = vpop.f32.mrf.mxu0
      %v4864 = vadd.f32 %v4828, %v4863
      %4865 = vdwg.mxu0
      %4866 = vmatpush.msra.mxu0 0.0
      %4867 = vmatpush.msra.mxu0 0.0
      %4868 = vmatpush.msra.mxu0 0.0
      %4869 = vmatpush.msra.mxu0 0.0
      %4870 = vmatpush.msra.mxu0 0.0
      %4871 = vmatpush.msra.mxu0 0.0
      %4872 = vmatpush.msra.mxu0 0.0
      %4873 = vmatpush.msra.mxu0 0.0
      %4874 = vmatpush.msra.mxu0 0.0
      %4875 = vmatpush.msra.mxu0 0.0
      %4876 = vmatpush.msra.mxu0 0.0
      %4877 = vmatpush.msra.mxu0 0.0
      %4878 = vmatpush.msra.mxu0 0.0
      %4879 = vmatpush.msra.mxu0 0.0
      %4880 = vmatpush.msra.mxu0 0.0
      %v4881 = vand.u32 %v742, 4294901760
      %v4882 = vsub.f32 %v742, %v4881
      %v4883 = vand.u32 %v4882, 4294901760
      %4884 = vmatpush.msra.mxu0 %v4883
      %v4885 = vand.u32 %v696, 4294901760
      %4886 = vmatmul.f32.gmra.mxu0 %v4885
      %v4887 = vpop.f32.mrf.mxu0
      %v4888 = vadd.f32 %v4852, %v4887
      %v4889 = vand.u32 %v699, 4294901760
      %4890 = vmatmul.f32.gmra.mxu0 %v4889
      %v4891 = vpop.f32.mrf.mxu0
      %v4892 = vadd.f32 %v4858, %v4891
      %v4893 = vand.u32 %v702, 4294901760
      %4894 = vmatmul.f32.gmra.mxu0 %v4893
      %v4895 = vpop.f32.mrf.mxu0
      %v4896 = vadd.f32 %v4864, %v4895
      %4897 = vdwg.mxu0
      %4898 = vmatpush.msra.mxu0 0.0
      %4899 = vmatpush.msra.mxu0 0.0
      %4900 = vmatpush.msra.mxu0 0.0
      %4901 = vmatpush.msra.mxu0 0.0
      %4902 = vmatpush.msra.mxu0 0.0
      %4903 = vmatpush.msra.mxu0 0.0
      %4904 = vmatpush.msra.mxu0 0.0
      %4905 = vmatpush.msra.mxu0 0.0
      %4906 = vmatpush.msra.mxu0 0.0
      %4907 = vmatpush.msra.mxu0 0.0
      %4908 = vmatpush.msra.mxu0 0.0
      %4909 = vmatpush.msra.mxu0 0.0
      %4910 = vmatpush.msra.mxu0 0.0
      %4911 = vmatpush.msra.mxu0 0.0
      %4912 = vmatpush.msra.mxu0 0.0
      %v4913 = vand.u32 %v742, 4294901760
      %4914 = vmatpush.msra.mxu0 %v4913
      %v4915 = vand.u32 %v696, 4294901760
      %4916 = vmatmul.f32.gmra.mxu0 %v4915
      %v4917 = vpop.f32.mrf.mxu0
      %v4918 = vadd.f32 %v4888, %v4917
      %v4919 = vand.u32 %v699, 4294901760
      %4920 = vmatmul.f32.gmra.mxu0 %v4919
      %v4921 = vpop.f32.mrf.mxu0
      %v4922 = vadd.f32 %v4892, %v4921
      %v4923 = vand.u32 %v702, 4294901760
      %4924 = vmatmul.f32.gmra.mxu0 %v4923
      %v4925 = vpop.f32.mrf.mxu0
      %v4926 = vadd.f32 %v4896, %v4925
      %4927 = vdwg.mxu0
      %4928 = vmatpush.msra.mxu0 0.0
      %4929 = vmatpush.msra.mxu0 0.0
      %4930 = vmatpush.msra.mxu0 0.0
      %4931 = vmatpush.msra.mxu0 0.0
      %4932 = vmatpush.msra.mxu0 0.0
      %4933 = vmatpush.msra.mxu0 0.0
      %4934 = vmatpush.msra.mxu0 0.0
      %4935 = vmatpush.msra.mxu0 0.0
      %4936 = vmatpush.msra.mxu0 0.0
      %4937 = vmatpush.msra.mxu0 0.0
      %4938 = vmatpush.msra.mxu0 0.0
      %4939 = vmatpush.msra.mxu0 0.0
      %4940 = vmatpush.msra.mxu0 0.0
      %4941 = vmatpush.msra.mxu0 0.0
      %4942 = vmatpush.msra.mxu0 0.0
      %v4943 = vand.u32 %v744, 4294901760
      %4944 = vmatpush.msra.mxu0 %v4943
      %v4945 = vand.u32 %v696, 4294901760
      %v4946 = vsub.f32 %v696, %v4945
      %v4947 = vand.u32 %v4946, 4294901760
      %v4948 = vsub.f32 %v4946, %v4947
      %v4949 = vand.u32 %v4948, 4294901760
      %4950 = vmatmul.f32.gmra.mxu0 %v4949
      %v4951 = vpop.f32.mrf.mxu0
      %v4952 = vadd.f32 %v615, %v4951
      %v4953 = vand.u32 %v699, 4294901760
      %v4954 = vsub.f32 %v699, %v4953
      %v4955 = vand.u32 %v4954, 4294901760
      %v4956 = vsub.f32 %v4954, %v4955
      %v4957 = vand.u32 %v4956, 4294901760
      %4958 = vmatmul.f32.gmra.mxu0 %v4957
      %v4959 = vpop.f32.mrf.mxu0
      %v4960 = vadd.f32 %v620, %v4959
      %v4961 = vand.u32 %v702, 4294901760
      %v4962 = vsub.f32 %v702, %v4961
      %v4963 = vand.u32 %v4962, 4294901760
      %v4964 = vsub.f32 %v4962, %v4963
      %v4965 = vand.u32 %v4964, 4294901760
      %4966 = vmatmul.f32.gmra.mxu0 %v4965
      %v4967 = vpop.f32.mrf.mxu0
      %v4968 = vadd.f32 %v625, %v4967
      %4969 = vdwg.mxu0
      %4970 = vmatpush.msra.mxu0 0.0
      %4971 = vmatpush.msra.mxu0 0.0
      %4972 = vmatpush.msra.mxu0 0.0
      %4973 = vmatpush.msra.mxu0 0.0
      %4974 = vmatpush.msra.mxu0 0.0
      %4975 = vmatpush.msra.mxu0 0.0
      %4976 = vmatpush.msra.mxu0 0.0
      %4977 = vmatpush.msra.mxu0 0.0
      %4978 = vmatpush.msra.mxu0 0.0
      %4979 = vmatpush.msra.mxu0 0.0
      %4980 = vmatpush.msra.mxu0 0.0
      %4981 = vmatpush.msra.mxu0 0.0
      %4982 = vmatpush.msra.mxu0 0.0
      %4983 = vmatpush.msra.mxu0 0.0
      %4984 = vmatpush.msra.mxu0 0.0
      %v4985 = vand.u32 %v744, 4294901760
      %v4986 = vsub.f32 %v744, %v4985
      %v4987 = vand.u32 %v4986, 4294901760
      %v4988 = vsub.f32 %v4986, %v4987
      %v4989 = vand.u32 %v4988, 4294901760
      %4990 = vmatpush.msra.mxu0 %v4989
      %v4991 = vand.u32 %v696, 4294901760
      %4992 = vmatmul.f32.gmra.mxu0 %v4991
      %v4993 = vpop.f32.mrf.mxu0
      %v4994 = vadd.f32 %v4952, %v4993
      %v4995 = vand.u32 %v699, 4294901760
      %4996 = vmatmul.f32.gmra.mxu0 %v4995
      %v4997 = vpop.f32.mrf.mxu0
      %v4998 = vadd.f32 %v4960, %v4997
      %v4999 = vand.u32 %v702, 4294901760
      %5000 = vmatmul.f32.gmra.mxu0 %v4999
      %v5001 = vpop.f32.mrf.mxu0
      %v5002 = vadd.f32 %v4968, %v5001
      %5003 = vdwg.mxu0
      %5004 = vmatpush.msra.mxu0 0.0
      %5005 = vmatpush.msra.mxu0 0.0
      %5006 = vmatpush.msra.mxu0 0.0
      %5007 = vmatpush.msra.mxu0 0.0
      %5008 = vmatpush.msra.mxu0 0.0
      %5009 = vmatpush.msra.mxu0 0.0
      %5010 = vmatpush.msra.mxu0 0.0
      %5011 = vmatpush.msra.mxu0 0.0
      %5012 = vmatpush.msra.mxu0 0.0
      %5013 = vmatpush.msra.mxu0 0.0
      %5014 = vmatpush.msra.mxu0 0.0
      %5015 = vmatpush.msra.mxu0 0.0
      %5016 = vmatpush.msra.mxu0 0.0
      %5017 = vmatpush.msra.mxu0 0.0
      %5018 = vmatpush.msra.mxu0 0.0
      %v5019 = vand.u32 %v744, 4294901760
      %v5020 = vsub.f32 %v744, %v5019
      %5021 = vmatpush.msra.mxu0 %v5020
      %v5022 = vand.u32 %v696, 4294901760
      %v5023 = vsub.f32 %v696, %v5022
      %5024 = vmatmul.f32.gmra.mxu0 %v5023
      %v5025 = vpop.f32.mrf.mxu0
      %v5026 = vadd.f32 %v4994, %v5025
      %v5027 = vand.u32 %v699, 4294901760
      %v5028 = vsub.f32 %v699, %v5027
      %5029 = vmatmul.f32.gmra.mxu0 %v5028
      %v5030 = vpop.f32.mrf.mxu0
      %v5031 = vadd.f32 %v4998, %v5030
      %v5032 = vand.u32 %v702, 4294901760
      %v5033 = vsub.f32 %v702, %v5032
      %5034 = vmatmul.f32.gmra.mxu0 %v5033
      %v5035 = vpop.f32.mrf.mxu0
      %v5036 = vadd.f32 %v5002, %v5035
      %5037 = vdwg.mxu0
      %5038 = vmatpush.msra.mxu0 0.0
      %5039 = vmatpush.msra.mxu0 0.0
      %5040 = vmatpush.msra.mxu0 0.0
      %5041 = vmatpush.msra.mxu0 0.0
      %5042 = vmatpush.msra.mxu0 0.0
      %5043 = vmatpush.msra.mxu0 0.0
      %5044 = vmatpush.msra.mxu0 0.0
      %5045 = vmatpush.msra.mxu0 0.0
      %5046 = vmatpush.msra.mxu0 0.0
      %5047 = vmatpush.msra.mxu0 0.0
      %5048 = vmatpush.msra.mxu0 0.0
      %5049 = vmatpush.msra.mxu0 0.0
      %5050 = vmatpush.msra.mxu0 0.0
      %5051 = vmatpush.msra.mxu0 0.0
      %5052 = vmatpush.msra.mxu0 0.0
      %v5053 = vand.u32 %v744, 4294901760
      %5054 = vmatpush.msra.mxu0 %v5053
      %v5055 = vand.u32 %v696, 4294901760
      %v5056 = vsub.f32 %v696, %v5055
      %v5057 = vand.u32 %v5056, 4294901760
      %5058 = vmatmul.f32.gmra.mxu0 %v5057
      %v5059 = vpop.f32.mrf.mxu0
      %v5060 = vadd.f32 %v5026, %v5059
      %v5061 = vand.u32 %v699, 4294901760
      %v5062 = vsub.f32 %v699, %v5061
      %v5063 = vand.u32 %v5062, 4294901760
      %5064 = vmatmul.f32.gmra.mxu0 %v5063
      %v5065 = vpop.f32.mrf.mxu0
      %v5066 = vadd.f32 %v5031, %v5065
      %v5067 = vand.u32 %v702, 4294901760
      %v5068 = vsub.f32 %v702, %v5067
      %v5069 = vand.u32 %v5068, 4294901760
      %5070 = vmatmul.f32.gmra.mxu0 %v5069
      %v5071 = vpop.f32.mrf.mxu0
      %v5072 = vadd.f32 %v5036, %v5071
      %5073 = vdwg.mxu0
      %5074 = vmatpush.msra.mxu0 0.0
      %5075 = vmatpush.msra.mxu0 0.0
      %5076 = vmatpush.msra.mxu0 0.0
      %5077 = vmatpush.msra.mxu0 0.0
      %5078 = vmatpush.msra.mxu0 0.0
      %5079 = vmatpush.msra.mxu0 0.0
      %5080 = vmatpush.msra.mxu0 0.0
      %5081 = vmatpush.msra.mxu0 0.0
      %5082 = vmatpush.msra.mxu0 0.0
      %5083 = vmatpush.msra.mxu0 0.0
      %5084 = vmatpush.msra.mxu0 0.0
      %5085 = vmatpush.msra.mxu0 0.0
      %5086 = vmatpush.msra.mxu0 0.0
      %5087 = vmatpush.msra.mxu0 0.0
      %5088 = vmatpush.msra.mxu0 0.0
      %v5089 = vand.u32 %v744, 4294901760
      %v5090 = vsub.f32 %v744, %v5089
      %v5091 = vand.u32 %v5090, 4294901760
      %5092 = vmatpush.msra.mxu0 %v5091
      %v5093 = vand.u32 %v696, 4294901760
      %5094 = vmatmul.f32.gmra.mxu0 %v5093
      %v5095 = vpop.f32.mrf.mxu0
      %v5096 = vadd.f32 %v5060, %v5095
      %v5097 = vand.u32 %v699, 4294901760
      %5098 = vmatmul.f32.gmra.mxu0 %v5097
      %v5099 = vpop.f32.mrf.mxu0
      %v5100 = vadd.f32 %v5066, %v5099
      %v5101 = vand.u32 %v702, 4294901760
      %5102 = vmatmul.f32.gmra.mxu0 %v5101
      %v5103 = vpop.f32.mrf.mxu0
      %v5104 = vadd.f32 %v5072, %v5103
      %5105 = vdwg.mxu0
      %5106 = vmatpush.msra.mxu0 0.0
      %5107 = vmatpush.msra.mxu0 0.0
      %5108 = vmatpush.msra.mxu0 0.0
      %5109 = vmatpush.msra.mxu0 0.0
      %5110 = vmatpush.msra.mxu0 0.0
      %5111 = vmatpush.msra.mxu0 0.0
      %5112 = vmatpush.msra.mxu0 0.0
      %5113 = vmatpush.msra.mxu0 0.0
      %5114 = vmatpush.msra.mxu0 0.0
      %5115 = vmatpush.msra.mxu0 0.0
      %5116 = vmatpush.msra.mxu0 0.0
      %5117 = vmatpush.msra.mxu0 0.0
      %5118 = vmatpush.msra.mxu0 0.0
      %5119 = vmatpush.msra.mxu0 0.0
      %5120 = vmatpush.msra.mxu0 0.0
      %v5121 = vand.u32 %v744, 4294901760
      %5122 = vmatpush.msra.mxu0 %v5121
      %v5123 = vand.u32 %v696, 4294901760
      %5124 = vmatmul.f32.gmra.mxu0 %v5123
      %v5125 = vpop.f32.mrf.mxu0
      %v5126 = vadd.f32 %v5096, %v5125
      %v5127 = vand.u32 %v699, 4294901760
      %5128 = vmatmul.f32.gmra.mxu0 %v5127
      %v5129 = vpop.f32.mrf.mxu0
      %v5130 = vadd.f32 %v5100, %v5129
      %v5131 = vand.u32 %v702, 4294901760
      %5132 = vmatmul.f32.gmra.mxu0 %v5131
      %v5133 = vpop.f32.mrf.mxu0
      %v5134 = vadd.f32 %v5104, %v5133
      %5135 = vdwg.mxu0
      %5136 = vmatpush.msra.mxu0 0.0
      %5137 = vmatpush.msra.mxu0 0.0
      %5138 = vmatpush.msra.mxu0 0.0
      %5139 = vmatpush.msra.mxu0 0.0
      %5140 = vmatpush.msra.mxu0 0.0
      %5141 = vmatpush.msra.mxu0 0.0
      %5142 = vmatpush.msra.mxu0 0.0
      %5143 = vmatpush.msra.mxu0 0.0
      %5144 = vmatpush.msra.mxu0 0.0
      %5145 = vmatpush.msra.mxu0 0.0
      %5146 = vmatpush.msra.mxu0 0.0
      %5147 = vmatpush.msra.mxu0 0.0
      %5148 = vmatpush.msra.mxu0 0.0
      %5149 = vmatpush.msra.mxu0 0.0
      %5150 = vmatpush.msra.mxu0 0.0
      %v5151 = vand.u32 %v746, 4294901760
      %5152 = vmatpush.msra.mxu0 %v5151
      %v5153 = vand.u32 %v696, 4294901760
      %v5154 = vsub.f32 %v696, %v5153
      %v5155 = vand.u32 %v5154, 4294901760
      %v5156 = vsub.f32 %v5154, %v5155
      %v5157 = vand.u32 %v5156, 4294901760
      %5158 = vmatmul.f32.gmra.mxu0 %v5157
      %v5159 = vpop.f32.mrf.mxu0
      %v5160 = vadd.f32 %v615, %v5159
      %v5161 = vand.u32 %v699, 4294901760
      %v5162 = vsub.f32 %v699, %v5161
      %v5163 = vand.u32 %v5162, 4294901760
      %v5164 = vsub.f32 %v5162, %v5163
      %v5165 = vand.u32 %v5164, 4294901760
      %5166 = vmatmul.f32.gmra.mxu0 %v5165
      %v5167 = vpop.f32.mrf.mxu0
      %v5168 = vadd.f32 %v620, %v5167
      %v5169 = vand.u32 %v702, 4294901760
      %v5170 = vsub.f32 %v702, %v5169
      %v5171 = vand.u32 %v5170, 4294901760
      %v5172 = vsub.f32 %v5170, %v5171
      %v5173 = vand.u32 %v5172, 4294901760
      %5174 = vmatmul.f32.gmra.mxu0 %v5173
      %v5175 = vpop.f32.mrf.mxu0
      %v5176 = vadd.f32 %v625, %v5175
      %5177 = vdwg.mxu0
      %5178 = vmatpush.msra.mxu0 0.0
      %5179 = vmatpush.msra.mxu0 0.0
      %5180 = vmatpush.msra.mxu0 0.0
      %5181 = vmatpush.msra.mxu0 0.0
      %5182 = vmatpush.msra.mxu0 0.0
      %5183 = vmatpush.msra.mxu0 0.0
      %5184 = vmatpush.msra.mxu0 0.0
      %5185 = vmatpush.msra.mxu0 0.0
      %5186 = vmatpush.msra.mxu0 0.0
      %5187 = vmatpush.msra.mxu0 0.0
      %5188 = vmatpush.msra.mxu0 0.0
      %5189 = vmatpush.msra.mxu0 0.0
      %5190 = vmatpush.msra.mxu0 0.0
      %5191 = vmatpush.msra.mxu0 0.0
      %5192 = vmatpush.msra.mxu0 0.0
      %v5193 = vand.u32 %v746, 4294901760
      %v5194 = vsub.f32 %v746, %v5193
      %v5195 = vand.u32 %v5194, 4294901760
      %v5196 = vsub.f32 %v5194, %v5195
      %v5197 = vand.u32 %v5196, 4294901760
      %5198 = vmatpush.msra.mxu0 %v5197
      %v5199 = vand.u32 %v696, 4294901760
      %5200 = vmatmul.f32.gmra.mxu0 %v5199
      %v5201 = vpop.f32.mrf.mxu0
      %v5202 = vadd.f32 %v5160, %v5201
      %v5203 = vand.u32 %v699, 4294901760
      %5204 = vmatmul.f32.gmra.mxu0 %v5203
      %v5205 = vpop.f32.mrf.mxu0
      %v5206 = vadd.f32 %v5168, %v5205
      %v5207 = vand.u32 %v702, 4294901760
      %5208 = vmatmul.f32.gmra.mxu0 %v5207
      %v5209 = vpop.f32.mrf.mxu0
      %v5210 = vadd.f32 %v5176, %v5209
      %5211 = vdwg.mxu0
      %5212 = vmatpush.msra.mxu0 0.0
      %5213 = vmatpush.msra.mxu0 0.0
      %5214 = vmatpush.msra.mxu0 0.0
      %5215 = vmatpush.msra.mxu0 0.0
      %5216 = vmatpush.msra.mxu0 0.0
      %5217 = vmatpush.msra.mxu0 0.0
      %5218 = vmatpush.msra.mxu0 0.0
      %5219 = vmatpush.msra.mxu0 0.0
      %5220 = vmatpush.msra.mxu0 0.0
      %5221 = vmatpush.msra.mxu0 0.0
      %5222 = vmatpush.msra.mxu0 0.0
      %5223 = vmatpush.msra.mxu0 0.0
      %5224 = vmatpush.msra.mxu0 0.0
      %5225 = vmatpush.msra.mxu0 0.0
      %5226 = vmatpush.msra.mxu0 0.0
      %v5227 = vand.u32 %v746, 4294901760
      %v5228 = vsub.f32 %v746, %v5227
      %5229 = vmatpush.msra.mxu0 %v5228
      %v5230 = vand.u32 %v696, 4294901760
      %v5231 = vsub.f32 %v696, %v5230
      %5232 = vmatmul.f32.gmra.mxu0 %v5231
      %v5233 = vpop.f32.mrf.mxu0
      %v5234 = vadd.f32 %v5202, %v5233
      %v5235 = vand.u32 %v699, 4294901760
      %v5236 = vsub.f32 %v699, %v5235
      %5237 = vmatmul.f32.gmra.mxu0 %v5236
      %v5238 = vpop.f32.mrf.mxu0
      %v5239 = vadd.f32 %v5206, %v5238
      %v5240 = vand.u32 %v702, 4294901760
      %v5241 = vsub.f32 %v702, %v5240
      %5242 = vmatmul.f32.gmra.mxu0 %v5241
      %v5243 = vpop.f32.mrf.mxu0
      %v5244 = vadd.f32 %v5210, %v5243
      %5245 = vdwg.mxu0
      %5246 = vmatpush.msra.mxu0 0.0
      %5247 = vmatpush.msra.mxu0 0.0
      %5248 = vmatpush.msra.mxu0 0.0
      %5249 = vmatpush.msra.mxu0 0.0
      %5250 = vmatpush.msra.mxu0 0.0
      %5251 = vmatpush.msra.mxu0 0.0
      %5252 = vmatpush.msra.mxu0 0.0
      %5253 = vmatpush.msra.mxu0 0.0
      %5254 = vmatpush.msra.mxu0 0.0
      %5255 = vmatpush.msra.mxu0 0.0
      %5256 = vmatpush.msra.mxu0 0.0
      %5257 = vmatpush.msra.mxu0 0.0
      %5258 = vmatpush.msra.mxu0 0.0
      %5259 = vmatpush.msra.mxu0 0.0
      %5260 = vmatpush.msra.mxu0 0.0
      %v5261 = vand.u32 %v746, 4294901760
      %5262 = vmatpush.msra.mxu0 %v5261
      %v5263 = vand.u32 %v696, 4294901760
      %v5264 = vsub.f32 %v696, %v5263
      %v5265 = vand.u32 %v5264, 4294901760
      %5266 = vmatmul.f32.gmra.mxu0 %v5265
      %v5267 = vpop.f32.mrf.mxu0
      %v5268 = vadd.f32 %v5234, %v5267
      %v5269 = vand.u32 %v699, 4294901760
      %v5270 = vsub.f32 %v699, %v5269
      %v5271 = vand.u32 %v5270, 4294901760
      %5272 = vmatmul.f32.gmra.mxu0 %v5271
      %v5273 = vpop.f32.mrf.mxu0
      %v5274 = vadd.f32 %v5239, %v5273
      %v5275 = vand.u32 %v702, 4294901760
      %v5276 = vsub.f32 %v702, %v5275
      %v5277 = vand.u32 %v5276, 4294901760
      %5278 = vmatmul.f32.gmra.mxu0 %v5277
      %v5279 = vpop.f32.mrf.mxu0
      %v5280 = vadd.f32 %v5244, %v5279
      %5281 = vdwg.mxu0
      %5282 = vmatpush.msra.mxu0 0.0
      %5283 = vmatpush.msra.mxu0 0.0
      %5284 = vmatpush.msra.mxu0 0.0
      %5285 = vmatpush.msra.mxu0 0.0
      %5286 = vmatpush.msra.mxu0 0.0
      %5287 = vmatpush.msra.mxu0 0.0
      %5288 = vmatpush.msra.mxu0 0.0
      %5289 = vmatpush.msra.mxu0 0.0
      %5290 = vmatpush.msra.mxu0 0.0
      %5291 = vmatpush.msra.mxu0 0.0
      %5292 = vmatpush.msra.mxu0 0.0
      %5293 = vmatpush.msra.mxu0 0.0
      %5294 = vmatpush.msra.mxu0 0.0
      %5295 = vmatpush.msra.mxu0 0.0
      %5296 = vmatpush.msra.mxu0 0.0
      %v5297 = vand.u32 %v746, 4294901760
      %v5298 = vsub.f32 %v746, %v5297
      %v5299 = vand.u32 %v5298, 4294901760
      %5300 = vmatpush.msra.mxu0 %v5299
      %v5301 = vand.u32 %v696, 4294901760
      %5302 = vmatmul.f32.gmra.mxu0 %v5301
      %v5303 = vpop.f32.mrf.mxu0
      %v5304 = vadd.f32 %v5268, %v5303
      %v5305 = vand.u32 %v699, 4294901760
      %5306 = vmatmul.f32.gmra.mxu0 %v5305
      %v5307 = vpop.f32.mrf.mxu0
      %v5308 = vadd.f32 %v5274, %v5307
      %v5309 = vand.u32 %v702, 4294901760
      %5310 = vmatmul.f32.gmra.mxu0 %v5309
      %v5311 = vpop.f32.mrf.mxu0
      %v5312 = vadd.f32 %v5280, %v5311
      %5313 = vdwg.mxu0
      %5314 = vmatpush.msra.mxu0 0.0
      %5315 = vmatpush.msra.mxu0 0.0
      %5316 = vmatpush.msra.mxu0 0.0
      %5317 = vmatpush.msra.mxu0 0.0
      %5318 = vmatpush.msra.mxu0 0.0
      %5319 = vmatpush.msra.mxu0 0.0
      %5320 = vmatpush.msra.mxu0 0.0
      %5321 = vmatpush.msra.mxu0 0.0
      %5322 = vmatpush.msra.mxu0 0.0
      %5323 = vmatpush.msra.mxu0 0.0
      %5324 = vmatpush.msra.mxu0 0.0
      %5325 = vmatpush.msra.mxu0 0.0
      %5326 = vmatpush.msra.mxu0 0.0
      %5327 = vmatpush.msra.mxu0 0.0
      %5328 = vmatpush.msra.mxu0 0.0
      %v5329 = vand.u32 %v746, 4294901760
      %5330 = vmatpush.msra.mxu0 %v5329
      %v5331 = vand.u32 %v696, 4294901760
      %5332 = vmatmul.f32.gmra.mxu0 %v5331
      %v5333 = vpop.f32.mrf.mxu0
      %v5334 = vadd.f32 %v5304, %v5333
      %v5335 = vand.u32 %v699, 4294901760
      %5336 = vmatmul.f32.gmra.mxu0 %v5335
      %v5337 = vpop.f32.mrf.mxu0
      %v5338 = vadd.f32 %v5308, %v5337
      %v5339 = vand.u32 %v702, 4294901760
      %5340 = vmatmul.f32.gmra.mxu0 %v5339
      %v5341 = vpop.f32.mrf.mxu0
      %v5342 = vadd.f32 %v5312, %v5341
      %5343 = vdwg.mxu0
      %5344 = vmatpush.msra.mxu0 0.0
      %5345 = vmatpush.msra.mxu0 0.0
      %5346 = vmatpush.msra.mxu0 0.0
      %5347 = vmatpush.msra.mxu0 0.0
      %5348 = vmatpush.msra.mxu0 0.0
      %5349 = vmatpush.msra.mxu0 0.0
      %5350 = vmatpush.msra.mxu0 0.0
      %5351 = vmatpush.msra.mxu0 0.0
      %5352 = vmatpush.msra.mxu0 0.0
      %5353 = vmatpush.msra.mxu0 0.0
      %5354 = vmatpush.msra.mxu0 0.0
      %5355 = vmatpush.msra.mxu0 0.0
      %5356 = vmatpush.msra.mxu0 0.0
      %5357 = vmatpush.msra.mxu0 0.0
      %5358 = vmatpush.msra.mxu0 0.0
      %v5359 = vand.u32 %v748, 4294901760
      %5360 = vmatpush.msra.mxu0 %v5359
      %v5361 = vand.u32 %v696, 4294901760
      %v5362 = vsub.f32 %v696, %v5361
      %v5363 = vand.u32 %v5362, 4294901760
      %v5364 = vsub.f32 %v5362, %v5363
      %v5365 = vand.u32 %v5364, 4294901760
      %5366 = vmatmul.f32.gmra.mxu0 %v5365
      %v5367 = vpop.f32.mrf.mxu0
      %v5368 = vadd.f32 %v615, %v5367
      %v5369 = vand.u32 %v699, 4294901760
      %v5370 = vsub.f32 %v699, %v5369
      %v5371 = vand.u32 %v5370, 4294901760
      %v5372 = vsub.f32 %v5370, %v5371
      %v5373 = vand.u32 %v5372, 4294901760
      %5374 = vmatmul.f32.gmra.mxu0 %v5373
      %v5375 = vpop.f32.mrf.mxu0
      %v5376 = vadd.f32 %v620, %v5375
      %v5377 = vand.u32 %v702, 4294901760
      %v5378 = vsub.f32 %v702, %v5377
      %v5379 = vand.u32 %v5378, 4294901760
      %v5380 = vsub.f32 %v5378, %v5379
      %v5381 = vand.u32 %v5380, 4294901760
      %5382 = vmatmul.f32.gmra.mxu0 %v5381
      %v5383 = vpop.f32.mrf.mxu0
      %v5384 = vadd.f32 %v625, %v5383
      %5385 = vdwg.mxu0
      %5386 = vmatpush.msra.mxu0 0.0
      %5387 = vmatpush.msra.mxu0 0.0
      %5388 = vmatpush.msra.mxu0 0.0
      %5389 = vmatpush.msra.mxu0 0.0
      %5390 = vmatpush.msra.mxu0 0.0
      %5391 = vmatpush.msra.mxu0 0.0
      %5392 = vmatpush.msra.mxu0 0.0
      %5393 = vmatpush.msra.mxu0 0.0
      %5394 = vmatpush.msra.mxu0 0.0
      %5395 = vmatpush.msra.mxu0 0.0
      %5396 = vmatpush.msra.mxu0 0.0
      %5397 = vmatpush.msra.mxu0 0.0
      %5398 = vmatpush.msra.mxu0 0.0
      %5399 = vmatpush.msra.mxu0 0.0
      %5400 = vmatpush.msra.mxu0 0.0
      %v5401 = vand.u32 %v748, 4294901760
      %v5402 = vsub.f32 %v748, %v5401
      %v5403 = vand.u32 %v5402, 4294901760
      %v5404 = vsub.f32 %v5402, %v5403
      %v5405 = vand.u32 %v5404, 4294901760
      %5406 = vmatpush.msra.mxu0 %v5405
      %v5407 = vand.u32 %v696, 4294901760
      %5408 = vmatmul.f32.gmra.mxu0 %v5407
      %v5409 = vpop.f32.mrf.mxu0
      %v5410 = vadd.f32 %v5368, %v5409
      %v5411 = vand.u32 %v699, 4294901760
      %5412 = vmatmul.f32.gmra.mxu0 %v5411
      %v5413 = vpop.f32.mrf.mxu0
      %v5414 = vadd.f32 %v5376, %v5413
      %v5415 = vand.u32 %v702, 4294901760
      %5416 = vmatmul.f32.gmra.mxu0 %v5415
      %v5417 = vpop.f32.mrf.mxu0
      %v5418 = vadd.f32 %v5384, %v5417
      %5419 = vdwg.mxu0
      %5420 = vmatpush.msra.mxu0 0.0
      %5421 = vmatpush.msra.mxu0 0.0
      %5422 = vmatpush.msra.mxu0 0.0
      %5423 = vmatpush.msra.mxu0 0.0
      %5424 = vmatpush.msra.mxu0 0.0
      %5425 = vmatpush.msra.mxu0 0.0
      %5426 = vmatpush.msra.mxu0 0.0
      %5427 = vmatpush.msra.mxu0 0.0
      %5428 = vmatpush.msra.mxu0 0.0
      %5429 = vmatpush.msra.mxu0 0.0
      %5430 = vmatpush.msra.mxu0 0.0
      %5431 = vmatpush.msra.mxu0 0.0
      %5432 = vmatpush.msra.mxu0 0.0
      %5433 = vmatpush.msra.mxu0 0.0
      %5434 = vmatpush.msra.mxu0 0.0
      %v5435 = vand.u32 %v748, 4294901760
      %v5436 = vsub.f32 %v748, %v5435
      %5437 = vmatpush.msra.mxu0 %v5436
      %v5438 = vand.u32 %v696, 4294901760
      %v5439 = vsub.f32 %v696, %v5438
      %5440 = vmatmul.f32.gmra.mxu0 %v5439
      %v5441 = vpop.f32.mrf.mxu0
      %v5442 = vadd.f32 %v5410, %v5441
      %v5443 = vand.u32 %v699, 4294901760
      %v5444 = vsub.f32 %v699, %v5443
      %5445 = vmatmul.f32.gmra.mxu0 %v5444
      %v5446 = vpop.f32.mrf.mxu0
      %v5447 = vadd.f32 %v5414, %v5446
      %v5448 = vand.u32 %v702, 4294901760
      %v5449 = vsub.f32 %v702, %v5448
      %5450 = vmatmul.f32.gmra.mxu0 %v5449
      %v5451 = vpop.f32.mrf.mxu0
      %v5452 = vadd.f32 %v5418, %v5451
      %5453 = vdwg.mxu0
      %5454 = vmatpush.msra.mxu0 0.0
      %5455 = vmatpush.msra.mxu0 0.0
      %5456 = vmatpush.msra.mxu0 0.0
      %5457 = vmatpush.msra.mxu0 0.0
      %5458 = vmatpush.msra.mxu0 0.0
      %5459 = vmatpush.msra.mxu0 0.0
      %5460 = vmatpush.msra.mxu0 0.0
      %5461 = vmatpush.msra.mxu0 0.0
      %5462 = vmatpush.msra.mxu0 0.0
      %5463 = vmatpush.msra.mxu0 0.0
      %5464 = vmatpush.msra.mxu0 0.0
      %5465 = vmatpush.msra.mxu0 0.0
      %5466 = vmatpush.msra.mxu0 0.0
      %5467 = vmatpush.msra.mxu0 0.0
      %5468 = vmatpush.msra.mxu0 0.0
      %v5469 = vand.u32 %v748, 4294901760
      %5470 = vmatpush.msra.mxu0 %v5469
      %v5471 = vand.u32 %v696, 4294901760
      %v5472 = vsub.f32 %v696, %v5471
      %v5473 = vand.u32 %v5472, 4294901760
      %5474 = vmatmul.f32.gmra.mxu0 %v5473
      %v5475 = vpop.f32.mrf.mxu0
      %v5476 = vadd.f32 %v5442, %v5475
      %v5477 = vand.u32 %v699, 4294901760
      %v5478 = vsub.f32 %v699, %v5477
      %v5479 = vand.u32 %v5478, 4294901760
      %5480 = vmatmul.f32.gmra.mxu0 %v5479
      %v5481 = vpop.f32.mrf.mxu0
      %v5482 = vadd.f32 %v5447, %v5481
      %v5483 = vand.u32 %v702, 4294901760
      %v5484 = vsub.f32 %v702, %v5483
      %v5485 = vand.u32 %v5484, 4294901760
      %5486 = vmatmul.f32.gmra.mxu0 %v5485
      %v5487 = vpop.f32.mrf.mxu0
      %v5488 = vadd.f32 %v5452, %v5487
      %5489 = vdwg.mxu0
      %5490 = vmatpush.msra.mxu0 0.0
      %5491 = vmatpush.msra.mxu0 0.0
      %5492 = vmatpush.msra.mxu0 0.0
      %5493 = vmatpush.msra.mxu0 0.0
      %5494 = vmatpush.msra.mxu0 0.0
      %5495 = vmatpush.msra.mxu0 0.0
      %5496 = vmatpush.msra.mxu0 0.0
      %5497 = vmatpush.msra.mxu0 0.0
      %5498 = vmatpush.msra.mxu0 0.0
      %5499 = vmatpush.msra.mxu0 0.0
      %5500 = vmatpush.msra.mxu0 0.0
      %5501 = vmatpush.msra.mxu0 0.0
      %5502 = vmatpush.msra.mxu0 0.0
      %5503 = vmatpush.msra.mxu0 0.0
      %5504 = vmatpush.msra.mxu0 0.0
      %v5505 = vand.u32 %v748, 4294901760
      %v5506 = vsub.f32 %v748, %v5505
      %v5507 = vand.u32 %v5506, 4294901760
      %5508 = vmatpush.msra.mxu0 %v5507
      %v5509 = vand.u32 %v696, 4294901760
      %5510 = vmatmul.f32.gmra.mxu0 %v5509
      %v5511 = vpop.f32.mrf.mxu0
      %v5512 = vadd.f32 %v5476, %v5511
      %v5513 = vand.u32 %v699, 4294901760
      %5514 = vmatmul.f32.gmra.mxu0 %v5513
      %v5515 = vpop.f32.mrf.mxu0
      %v5516 = vadd.f32 %v5482, %v5515
      %v5517 = vand.u32 %v702, 4294901760
      %5518 = vmatmul.f32.gmra.mxu0 %v5517
      %v5519 = vpop.f32.mrf.mxu0
      %v5520 = vadd.f32 %v5488, %v5519
      %5521 = vdwg.mxu0
      %5522 = vmatpush.msra.mxu0 0.0
      %5523 = vmatpush.msra.mxu0 0.0
      %5524 = vmatpush.msra.mxu0 0.0
      %5525 = vmatpush.msra.mxu0 0.0
      %5526 = vmatpush.msra.mxu0 0.0
      %5527 = vmatpush.msra.mxu0 0.0
      %5528 = vmatpush.msra.mxu0 0.0
      %5529 = vmatpush.msra.mxu0 0.0
      %5530 = vmatpush.msra.mxu0 0.0
      %5531 = vmatpush.msra.mxu0 0.0
      %5532 = vmatpush.msra.mxu0 0.0
      %5533 = vmatpush.msra.mxu0 0.0
      %5534 = vmatpush.msra.mxu0 0.0
      %5535 = vmatpush.msra.mxu0 0.0
      %5536 = vmatpush.msra.mxu0 0.0
      %v5537 = vand.u32 %v748, 4294901760
      %5538 = vmatpush.msra.mxu0 %v5537
      %v5539 = vand.u32 %v696, 4294901760
      %5540 = vmatmul.f32.gmra.mxu0 %v5539
      %v5541 = vpop.f32.mrf.mxu0
      %v5542 = vadd.f32 %v5512, %v5541
      %v5543 = vand.u32 %v699, 4294901760
      %5544 = vmatmul.f32.gmra.mxu0 %v5543
      %v5545 = vpop.f32.mrf.mxu0
      %v5546 = vadd.f32 %v5516, %v5545
      %v5547 = vand.u32 %v702, 4294901760
      %5548 = vmatmul.f32.gmra.mxu0 %v5547
      %v5549 = vpop.f32.mrf.mxu0
      %v5550 = vadd.f32 %v5520, %v5549
      %5551 = vdwg.mxu0
      %5552 = vmatpush.msra.mxu0 0.0
      %5553 = vmatpush.msra.mxu0 0.0
      %5554 = vmatpush.msra.mxu0 0.0
      %5555 = vmatpush.msra.mxu0 0.0
      %5556 = vmatpush.msra.mxu0 0.0
      %5557 = vmatpush.msra.mxu0 0.0
      %5558 = vmatpush.msra.mxu0 0.0
      %5559 = vmatpush.msra.mxu0 0.0
      %5560 = vmatpush.msra.mxu0 0.0
      %5561 = vmatpush.msra.mxu0 0.0
      %5562 = vmatpush.msra.mxu0 0.0
      %5563 = vmatpush.msra.mxu0 0.0
      %5564 = vmatpush.msra.mxu0 0.0
      %5565 = vmatpush.msra.mxu0 0.0
      %5566 = vmatpush.msra.mxu0 0.0
      %v5567 = vand.u32 %v750, 4294901760
      %5568 = vmatpush.msra.mxu0 %v5567
      %v5569 = vand.u32 %v696, 4294901760
      %v5570 = vsub.f32 %v696, %v5569
      %v5571 = vand.u32 %v5570, 4294901760
      %v5572 = vsub.f32 %v5570, %v5571
      %v5573 = vand.u32 %v5572, 4294901760
      %5574 = vmatmul.f32.gmra.mxu0 %v5573
      %v5575 = vpop.f32.mrf.mxu0
      %v5576 = vadd.f32 %v615, %v5575
      %v5577 = vand.u32 %v699, 4294901760
      %v5578 = vsub.f32 %v699, %v5577
      %v5579 = vand.u32 %v5578, 4294901760
      %v5580 = vsub.f32 %v5578, %v5579
      %v5581 = vand.u32 %v5580, 4294901760
      %5582 = vmatmul.f32.gmra.mxu0 %v5581
      %v5583 = vpop.f32.mrf.mxu0
      %v5584 = vadd.f32 %v620, %v5583
      %v5585 = vand.u32 %v702, 4294901760
      %v5586 = vsub.f32 %v702, %v5585
      %v5587 = vand.u32 %v5586, 4294901760
      %v5588 = vsub.f32 %v5586, %v5587
      %v5589 = vand.u32 %v5588, 4294901760
      %5590 = vmatmul.f32.gmra.mxu0 %v5589
      %v5591 = vpop.f32.mrf.mxu0
      %v5592 = vadd.f32 %v625, %v5591
      %5593 = vdwg.mxu0
      %5594 = vmatpush.msra.mxu0 0.0
      %5595 = vmatpush.msra.mxu0 0.0
      %5596 = vmatpush.msra.mxu0 0.0
      %5597 = vmatpush.msra.mxu0 0.0
      %5598 = vmatpush.msra.mxu0 0.0
      %5599 = vmatpush.msra.mxu0 0.0
      %5600 = vmatpush.msra.mxu0 0.0
      %5601 = vmatpush.msra.mxu0 0.0
      %5602 = vmatpush.msra.mxu0 0.0
      %5603 = vmatpush.msra.mxu0 0.0
      %5604 = vmatpush.msra.mxu0 0.0
      %5605 = vmatpush.msra.mxu0 0.0
      %5606 = vmatpush.msra.mxu0 0.0
      %5607 = vmatpush.msra.mxu0 0.0
      %5608 = vmatpush.msra.mxu0 0.0
      %v5609 = vand.u32 %v750, 4294901760
      %v5610 = vsub.f32 %v750, %v5609
      %v5611 = vand.u32 %v5610, 4294901760
      %v5612 = vsub.f32 %v5610, %v5611
      %v5613 = vand.u32 %v5612, 4294901760
      %5614 = vmatpush.msra.mxu0 %v5613
      %v5615 = vand.u32 %v696, 4294901760
      %5616 = vmatmul.f32.gmra.mxu0 %v5615
      %v5617 = vpop.f32.mrf.mxu0
      %v5618 = vadd.f32 %v5576, %v5617
      %v5619 = vand.u32 %v699, 4294901760
      %5620 = vmatmul.f32.gmra.mxu0 %v5619
      %v5621 = vpop.f32.mrf.mxu0
      %v5622 = vadd.f32 %v5584, %v5621
      %v5623 = vand.u32 %v702, 4294901760
      %5624 = vmatmul.f32.gmra.mxu0 %v5623
      %v5625 = vpop.f32.mrf.mxu0
      %v5626 = vadd.f32 %v5592, %v5625
      %5627 = vdwg.mxu0
      %5628 = vmatpush.msra.mxu0 0.0
      %5629 = vmatpush.msra.mxu0 0.0
      %5630 = vmatpush.msra.mxu0 0.0
      %5631 = vmatpush.msra.mxu0 0.0
      %5632 = vmatpush.msra.mxu0 0.0
      %5633 = vmatpush.msra.mxu0 0.0
      %5634 = vmatpush.msra.mxu0 0.0
      %5635 = vmatpush.msra.mxu0 0.0
      %5636 = vmatpush.msra.mxu0 0.0
      %5637 = vmatpush.msra.mxu0 0.0
      %5638 = vmatpush.msra.mxu0 0.0
      %5639 = vmatpush.msra.mxu0 0.0
      %5640 = vmatpush.msra.mxu0 0.0
      %5641 = vmatpush.msra.mxu0 0.0
      %5642 = vmatpush.msra.mxu0 0.0
      %v5643 = vand.u32 %v750, 4294901760
      %v5644 = vsub.f32 %v750, %v5643
      %5645 = vmatpush.msra.mxu0 %v5644
      %v5646 = vand.u32 %v696, 4294901760
      %v5647 = vsub.f32 %v696, %v5646
      %5648 = vmatmul.f32.gmra.mxu0 %v5647
      %v5649 = vpop.f32.mrf.mxu0
      %v5650 = vadd.f32 %v5618, %v5649
      %v5651 = vand.u32 %v699, 4294901760
      %v5652 = vsub.f32 %v699, %v5651
      %5653 = vmatmul.f32.gmra.mxu0 %v5652
      %v5654 = vpop.f32.mrf.mxu0
      %v5655 = vadd.f32 %v5622, %v5654
      %v5656 = vand.u32 %v702, 4294901760
      %v5657 = vsub.f32 %v702, %v5656
      %5658 = vmatmul.f32.gmra.mxu0 %v5657
      %v5659 = vpop.f32.mrf.mxu0
      %v5660 = vadd.f32 %v5626, %v5659
      %5661 = vdwg.mxu0
      %5662 = vmatpush.msra.mxu0 0.0
      %5663 = vmatpush.msra.mxu0 0.0
      %5664 = vmatpush.msra.mxu0 0.0
      %5665 = vmatpush.msra.mxu0 0.0
      %5666 = vmatpush.msra.mxu0 0.0
      %5667 = vmatpush.msra.mxu0 0.0
      %5668 = vmatpush.msra.mxu0 0.0
      %5669 = vmatpush.msra.mxu0 0.0
      %5670 = vmatpush.msra.mxu0 0.0
      %5671 = vmatpush.msra.mxu0 0.0
      %5672 = vmatpush.msra.mxu0 0.0
      %5673 = vmatpush.msra.mxu0 0.0
      %5674 = vmatpush.msra.mxu0 0.0
      %5675 = vmatpush.msra.mxu0 0.0
      %5676 = vmatpush.msra.mxu0 0.0
      %v5677 = vand.u32 %v750, 4294901760
      %5678 = vmatpush.msra.mxu0 %v5677
      %v5679 = vand.u32 %v696, 4294901760
      %v5680 = vsub.f32 %v696, %v5679
      %v5681 = vand.u32 %v5680, 4294901760
      %5682 = vmatmul.f32.gmra.mxu0 %v5681
      %v5683 = vpop.f32.mrf.mxu0
      %v5684 = vadd.f32 %v5650, %v5683
      %v5685 = vand.u32 %v699, 4294901760
      %v5686 = vsub.f32 %v699, %v5685
      %v5687 = vand.u32 %v5686, 4294901760
      %5688 = vmatmul.f32.gmra.mxu0 %v5687
      %v5689 = vpop.f32.mrf.mxu0
      %v5690 = vadd.f32 %v5655, %v5689
      %v5691 = vand.u32 %v702, 4294901760
      %v5692 = vsub.f32 %v702, %v5691
      %v5693 = vand.u32 %v5692, 4294901760
      %5694 = vmatmul.f32.gmra.mxu0 %v5693
      %v5695 = vpop.f32.mrf.mxu0
      %v5696 = vadd.f32 %v5660, %v5695
      %5697 = vdwg.mxu0
      %5698 = vmatpush.msra.mxu0 0.0
      %5699 = vmatpush.msra.mxu0 0.0
      %5700 = vmatpush.msra.mxu0 0.0
      %5701 = vmatpush.msra.mxu0 0.0
      %5702 = vmatpush.msra.mxu0 0.0
      %5703 = vmatpush.msra.mxu0 0.0
      %5704 = vmatpush.msra.mxu0 0.0
      %5705 = vmatpush.msra.mxu0 0.0
      %5706 = vmatpush.msra.mxu0 0.0
      %5707 = vmatpush.msra.mxu0 0.0
      %5708 = vmatpush.msra.mxu0 0.0
      %5709 = vmatpush.msra.mxu0 0.0
      %5710 = vmatpush.msra.mxu0 0.0
      %5711 = vmatpush.msra.mxu0 0.0
      %5712 = vmatpush.msra.mxu0 0.0
      %v5713 = vand.u32 %v750, 4294901760
      %v5714 = vsub.f32 %v750, %v5713
      %v5715 = vand.u32 %v5714, 4294901760
      %5716 = vmatpush.msra.mxu0 %v5715
      %v5717 = vand.u32 %v696, 4294901760
      %5718 = vmatmul.f32.gmra.mxu0 %v5717
      %v5719 = vpop.f32.mrf.mxu0
      %v5720 = vadd.f32 %v5684, %v5719
      %v5721 = vand.u32 %v699, 4294901760
      %5722 = vmatmul.f32.gmra.mxu0 %v5721
      %v5723 = vpop.f32.mrf.mxu0
      %v5724 = vadd.f32 %v5690, %v5723
      %v5725 = vand.u32 %v702, 4294901760
      %5726 = vmatmul.f32.gmra.mxu0 %v5725
      %v5727 = vpop.f32.mrf.mxu0
      %v5728 = vadd.f32 %v5696, %v5727
      %5729 = vdwg.mxu0
      %5730 = vmatpush.msra.mxu0 0.0
      %5731 = vmatpush.msra.mxu0 0.0
      %5732 = vmatpush.msra.mxu0 0.0
      %5733 = vmatpush.msra.mxu0 0.0
      %5734 = vmatpush.msra.mxu0 0.0
      %5735 = vmatpush.msra.mxu0 0.0
      %5736 = vmatpush.msra.mxu0 0.0
      %5737 = vmatpush.msra.mxu0 0.0
      %5738 = vmatpush.msra.mxu0 0.0
      %5739 = vmatpush.msra.mxu0 0.0
      %5740 = vmatpush.msra.mxu0 0.0
      %5741 = vmatpush.msra.mxu0 0.0
      %5742 = vmatpush.msra.mxu0 0.0
      %5743 = vmatpush.msra.mxu0 0.0
      %5744 = vmatpush.msra.mxu0 0.0
      %v5745 = vand.u32 %v750, 4294901760
      %5746 = vmatpush.msra.mxu0 %v5745
      %v5747 = vand.u32 %v696, 4294901760
      %5748 = vmatmul.f32.gmra.mxu0 %v5747
      %v5749 = vpop.f32.mrf.mxu0
      %v5750 = vadd.f32 %v5720, %v5749
      %v5751 = vand.u32 %v699, 4294901760
      %5752 = vmatmul.f32.gmra.mxu0 %v5751
      %v5753 = vpop.f32.mrf.mxu0
      %v5754 = vadd.f32 %v5724, %v5753
      %v5755 = vand.u32 %v702, 4294901760
      %5756 = vmatmul.f32.gmra.mxu0 %v5755
      %v5757 = vpop.f32.mrf.mxu0
      %v5758 = vadd.f32 %v5728, %v5757
      %5759 = vdwg.mxu0
      %5760 = vmatpush.msra.mxu0 0.0
      %5761 = vmatpush.msra.mxu0 0.0
      %5762 = vmatpush.msra.mxu0 0.0
      %5763 = vmatpush.msra.mxu0 0.0
      %5764 = vmatpush.msra.mxu0 0.0
      %5765 = vmatpush.msra.mxu0 0.0
      %5766 = vmatpush.msra.mxu0 0.0
      %5767 = vmatpush.msra.mxu0 0.0
      %5768 = vmatpush.msra.mxu0 0.0
      %5769 = vmatpush.msra.mxu0 0.0
      %5770 = vmatpush.msra.mxu0 0.0
      %5771 = vmatpush.msra.mxu0 0.0
      %5772 = vmatpush.msra.mxu0 0.0
      %5773 = vmatpush.msra.mxu0 0.0
      %5774 = vmatpush.msra.mxu0 0.0
      %v5775 = vand.u32 %v752, 4294901760
      %5776 = vmatpush.msra.mxu0 %v5775
      %v5777 = vand.u32 %v696, 4294901760
      %v5778 = vsub.f32 %v696, %v5777
      %v5779 = vand.u32 %v5778, 4294901760
      %v5780 = vsub.f32 %v5778, %v5779
      %v5781 = vand.u32 %v5780, 4294901760
      %5782 = vmatmul.f32.gmra.mxu0 %v5781
      %v5783 = vpop.f32.mrf.mxu0
      %v5784 = vadd.f32 %v615, %v5783
      %v5785 = vand.u32 %v699, 4294901760
      %v5786 = vsub.f32 %v699, %v5785
      %v5787 = vand.u32 %v5786, 4294901760
      %v5788 = vsub.f32 %v5786, %v5787
      %v5789 = vand.u32 %v5788, 4294901760
      %5790 = vmatmul.f32.gmra.mxu0 %v5789
      %v5791 = vpop.f32.mrf.mxu0
      %v5792 = vadd.f32 %v620, %v5791
      %v5793 = vand.u32 %v702, 4294901760
      %v5794 = vsub.f32 %v702, %v5793
      %v5795 = vand.u32 %v5794, 4294901760
      %v5796 = vsub.f32 %v5794, %v5795
      %v5797 = vand.u32 %v5796, 4294901760
      %5798 = vmatmul.f32.gmra.mxu0 %v5797
      %v5799 = vpop.f32.mrf.mxu0
      %v5800 = vadd.f32 %v625, %v5799
      %5801 = vdwg.mxu0
      %5802 = vmatpush.msra.mxu0 0.0
      %5803 = vmatpush.msra.mxu0 0.0
      %5804 = vmatpush.msra.mxu0 0.0
      %5805 = vmatpush.msra.mxu0 0.0
      %5806 = vmatpush.msra.mxu0 0.0
      %5807 = vmatpush.msra.mxu0 0.0
      %5808 = vmatpush.msra.mxu0 0.0
      %5809 = vmatpush.msra.mxu0 0.0
      %5810 = vmatpush.msra.mxu0 0.0
      %5811 = vmatpush.msra.mxu0 0.0
      %5812 = vmatpush.msra.mxu0 0.0
      %5813 = vmatpush.msra.mxu0 0.0
      %5814 = vmatpush.msra.mxu0 0.0
      %5815 = vmatpush.msra.mxu0 0.0
      %5816 = vmatpush.msra.mxu0 0.0
      %v5817 = vand.u32 %v752, 4294901760
      %v5818 = vsub.f32 %v752, %v5817
      %v5819 = vand.u32 %v5818, 4294901760
      %v5820 = vsub.f32 %v5818, %v5819
      %v5821 = vand.u32 %v5820, 4294901760
      %5822 = vmatpush.msra.mxu0 %v5821
      %v5823 = vand.u32 %v696, 4294901760
      %5824 = vmatmul.f32.gmra.mxu0 %v5823
      %v5825 = vpop.f32.mrf.mxu0
      %v5826 = vadd.f32 %v5784, %v5825
      %v5827 = vand.u32 %v699, 4294901760
      %5828 = vmatmul.f32.gmra.mxu0 %v5827
      %v5829 = vpop.f32.mrf.mxu0
      %v5830 = vadd.f32 %v5792, %v5829
      %v5831 = vand.u32 %v702, 4294901760
      %5832 = vmatmul.f32.gmra.mxu0 %v5831
      %v5833 = vpop.f32.mrf.mxu0
      %v5834 = vadd.f32 %v5800, %v5833
      %5835 = vdwg.mxu0
      %5836 = vmatpush.msra.mxu0 0.0
      %5837 = vmatpush.msra.mxu0 0.0
      %5838 = vmatpush.msra.mxu0 0.0
      %5839 = vmatpush.msra.mxu0 0.0
      %5840 = vmatpush.msra.mxu0 0.0
      %5841 = vmatpush.msra.mxu0 0.0
      %5842 = vmatpush.msra.mxu0 0.0
      %5843 = vmatpush.msra.mxu0 0.0
      %5844 = vmatpush.msra.mxu0 0.0
      %5845 = vmatpush.msra.mxu0 0.0
      %5846 = vmatpush.msra.mxu0 0.0
      %5847 = vmatpush.msra.mxu0 0.0
      %5848 = vmatpush.msra.mxu0 0.0
      %5849 = vmatpush.msra.mxu0 0.0
      %5850 = vmatpush.msra.mxu0 0.0
      %v5851 = vand.u32 %v752, 4294901760
      %v5852 = vsub.f32 %v752, %v5851
      %5853 = vmatpush.msra.mxu0 %v5852
      %v5854 = vand.u32 %v696, 4294901760
      %v5855 = vsub.f32 %v696, %v5854
      %5856 = vmatmul.f32.gmra.mxu0 %v5855
      %v5857 = vpop.f32.mrf.mxu0
      %v5858 = vadd.f32 %v5826, %v5857
      %v5859 = vand.u32 %v699, 4294901760
      %v5860 = vsub.f32 %v699, %v5859
      %5861 = vmatmul.f32.gmra.mxu0 %v5860
      %v5862 = vpop.f32.mrf.mxu0
      %v5863 = vadd.f32 %v5830, %v5862
      %v5864 = vand.u32 %v702, 4294901760
      %v5865 = vsub.f32 %v702, %v5864
      %5866 = vmatmul.f32.gmra.mxu0 %v5865
      %v5867 = vpop.f32.mrf.mxu0
      %v5868 = vadd.f32 %v5834, %v5867
      %5869 = vdwg.mxu0
      %5870 = vmatpush.msra.mxu0 0.0
      %5871 = vmatpush.msra.mxu0 0.0
      %5872 = vmatpush.msra.mxu0 0.0
      %5873 = vmatpush.msra.mxu0 0.0
      %5874 = vmatpush.msra.mxu0 0.0
      %5875 = vmatpush.msra.mxu0 0.0
      %5876 = vmatpush.msra.mxu0 0.0
      %5877 = vmatpush.msra.mxu0 0.0
      %5878 = vmatpush.msra.mxu0 0.0
      %5879 = vmatpush.msra.mxu0 0.0
      %5880 = vmatpush.msra.mxu0 0.0
      %5881 = vmatpush.msra.mxu0 0.0
      %5882 = vmatpush.msra.mxu0 0.0
      %5883 = vmatpush.msra.mxu0 0.0
      %5884 = vmatpush.msra.mxu0 0.0
      %v5885 = vand.u32 %v752, 4294901760
      %5886 = vmatpush.msra.mxu0 %v5885
      %v5887 = vand.u32 %v696, 4294901760
      %v5888 = vsub.f32 %v696, %v5887
      %v5889 = vand.u32 %v5888, 4294901760
      %5890 = vmatmul.f32.gmra.mxu0 %v5889
      %v5891 = vpop.f32.mrf.mxu0
      %v5892 = vadd.f32 %v5858, %v5891
      %v5893 = vand.u32 %v699, 4294901760
      %v5894 = vsub.f32 %v699, %v5893
      %v5895 = vand.u32 %v5894, 4294901760
      %5896 = vmatmul.f32.gmra.mxu0 %v5895
      %v5897 = vpop.f32.mrf.mxu0
      %v5898 = vadd.f32 %v5863, %v5897
      %v5899 = vand.u32 %v702, 4294901760
      %v5900 = vsub.f32 %v702, %v5899
      %v5901 = vand.u32 %v5900, 4294901760
      %5902 = vmatmul.f32.gmra.mxu0 %v5901
      %v5903 = vpop.f32.mrf.mxu0
      %v5904 = vadd.f32 %v5868, %v5903
      %5905 = vdwg.mxu0
      %5906 = vmatpush.msra.mxu0 0.0
      %5907 = vmatpush.msra.mxu0 0.0
      %5908 = vmatpush.msra.mxu0 0.0
      %5909 = vmatpush.msra.mxu0 0.0
      %5910 = vmatpush.msra.mxu0 0.0
      %5911 = vmatpush.msra.mxu0 0.0
      %5912 = vmatpush.msra.mxu0 0.0
      %5913 = vmatpush.msra.mxu0 0.0
      %5914 = vmatpush.msra.mxu0 0.0
      %5915 = vmatpush.msra.mxu0 0.0
      %5916 = vmatpush.msra.mxu0 0.0
      %5917 = vmatpush.msra.mxu0 0.0
      %5918 = vmatpush.msra.mxu0 0.0
      %5919 = vmatpush.msra.mxu0 0.0
      %5920 = vmatpush.msra.mxu0 0.0
      %v5921 = vand.u32 %v752, 4294901760
      %v5922 = vsub.f32 %v752, %v5921
      %v5923 = vand.u32 %v5922, 4294901760
      %5924 = vmatpush.msra.mxu0 %v5923
      %v5925 = vand.u32 %v696, 4294901760
      %5926 = vmatmul.f32.gmra.mxu0 %v5925
      %v5927 = vpop.f32.mrf.mxu0
      %v5928 = vadd.f32 %v5892, %v5927
      %v5929 = vand.u32 %v699, 4294901760
      %5930 = vmatmul.f32.gmra.mxu0 %v5929
      %v5931 = vpop.f32.mrf.mxu0
      %v5932 = vadd.f32 %v5898, %v5931
      %v5933 = vand.u32 %v702, 4294901760
      %5934 = vmatmul.f32.gmra.mxu0 %v5933
      %v5935 = vpop.f32.mrf.mxu0
      %v5936 = vadd.f32 %v5904, %v5935
      %5937 = vdwg.mxu0
      %5938 = vmatpush.msra.mxu0 0.0
      %5939 = vmatpush.msra.mxu0 0.0
      %5940 = vmatpush.msra.mxu0 0.0
      %5941 = vmatpush.msra.mxu0 0.0
      %5942 = vmatpush.msra.mxu0 0.0
      %5943 = vmatpush.msra.mxu0 0.0
      %5944 = vmatpush.msra.mxu0 0.0
      %5945 = vmatpush.msra.mxu0 0.0
      %5946 = vmatpush.msra.mxu0 0.0
      %5947 = vmatpush.msra.mxu0 0.0
      %5948 = vmatpush.msra.mxu0 0.0
      %5949 = vmatpush.msra.mxu0 0.0
      %5950 = vmatpush.msra.mxu0 0.0
      %5951 = vmatpush.msra.mxu0 0.0
      %5952 = vmatpush.msra.mxu0 0.0
      %v5953 = vand.u32 %v752, 4294901760
      %5954 = vmatpush.msra.mxu0 %v5953
      %v5955 = vand.u32 %v696, 4294901760
      %5956 = vmatmul.f32.gmra.mxu0 %v5955
      %v5957 = vpop.f32.mrf.mxu0
      %v5958 = vadd.f32 %v5928, %v5957
      %v5959 = vand.u32 %v699, 4294901760
      %5960 = vmatmul.f32.gmra.mxu0 %v5959
      %v5961 = vpop.f32.mrf.mxu0
      %v5962 = vadd.f32 %v5932, %v5961
      %v5963 = vand.u32 %v702, 4294901760
      %5964 = vmatmul.f32.gmra.mxu0 %v5963
      %v5965 = vpop.f32.mrf.mxu0
      %v5966 = vadd.f32 %v5936, %v5965
      %5967 = vdwg.mxu0
      %5968 = vmatpush.msra.mxu0 0.0
      %5969 = vmatpush.msra.mxu0 0.0
      %5970 = vmatpush.msra.mxu0 0.0
      %5971 = vmatpush.msra.mxu0 0.0
      %5972 = vmatpush.msra.mxu0 0.0
      %5973 = vmatpush.msra.mxu0 0.0
      %5974 = vmatpush.msra.mxu0 0.0
      %5975 = vmatpush.msra.mxu0 0.0
      %5976 = vmatpush.msra.mxu0 0.0
      %5977 = vmatpush.msra.mxu0 0.0
      %5978 = vmatpush.msra.mxu0 0.0
      %5979 = vmatpush.msra.mxu0 0.0
      %5980 = vmatpush.msra.mxu0 0.0
      %5981 = vmatpush.msra.mxu0 0.0
      %5982 = vmatpush.msra.mxu0 0.0
      %v5983 = vand.u32 %v754, 4294901760
      %5984 = vmatpush.msra.mxu0 %v5983
      %v5985 = vand.u32 %v696, 4294901760
      %v5986 = vsub.f32 %v696, %v5985
      %v5987 = vand.u32 %v5986, 4294901760
      %v5988 = vsub.f32 %v5986, %v5987
      %v5989 = vand.u32 %v5988, 4294901760
      %5990 = vmatmul.f32.gmra.mxu0 %v5989
      %v5991 = vpop.f32.mrf.mxu0
      %v5992 = vadd.f32 %v615, %v5991
      %v5993 = vand.u32 %v699, 4294901760
      %v5994 = vsub.f32 %v699, %v5993
      %v5995 = vand.u32 %v5994, 4294901760
      %v5996 = vsub.f32 %v5994, %v5995
      %v5997 = vand.u32 %v5996, 4294901760
      %5998 = vmatmul.f32.gmra.mxu0 %v5997
      %v5999 = vpop.f32.mrf.mxu0
      %v6000 = vadd.f32 %v620, %v5999
      %v6001 = vand.u32 %v702, 4294901760
      %v6002 = vsub.f32 %v702, %v6001
      %v6003 = vand.u32 %v6002, 4294901760
      %v6004 = vsub.f32 %v6002, %v6003
      %v6005 = vand.u32 %v6004, 4294901760
      %6006 = vmatmul.f32.gmra.mxu0 %v6005
      %v6007 = vpop.f32.mrf.mxu0
      %v6008 = vadd.f32 %v625, %v6007
      %6009 = vdwg.mxu0
      %6010 = vmatpush.msra.mxu0 0.0
      %6011 = vmatpush.msra.mxu0 0.0
      %6012 = vmatpush.msra.mxu0 0.0
      %6013 = vmatpush.msra.mxu0 0.0
      %6014 = vmatpush.msra.mxu0 0.0
      %6015 = vmatpush.msra.mxu0 0.0
      %6016 = vmatpush.msra.mxu0 0.0
      %6017 = vmatpush.msra.mxu0 0.0
      %6018 = vmatpush.msra.mxu0 0.0
      %6019 = vmatpush.msra.mxu0 0.0
      %6020 = vmatpush.msra.mxu0 0.0
      %6021 = vmatpush.msra.mxu0 0.0
      %6022 = vmatpush.msra.mxu0 0.0
      %6023 = vmatpush.msra.mxu0 0.0
      %6024 = vmatpush.msra.mxu0 0.0
      %v6025 = vand.u32 %v754, 4294901760
      %v6026 = vsub.f32 %v754, %v6025
      %v6027 = vand.u32 %v6026, 4294901760
      %v6028 = vsub.f32 %v6026, %v6027
      %v6029 = vand.u32 %v6028, 4294901760
      %6030 = vmatpush.msra.mxu0 %v6029
      %v6031 = vand.u32 %v696, 4294901760
      %6032 = vmatmul.f32.gmra.mxu0 %v6031
      %v6033 = vpop.f32.mrf.mxu0
      %v6034 = vadd.f32 %v5992, %v6033
      %v6035 = vand.u32 %v699, 4294901760
      %6036 = vmatmul.f32.gmra.mxu0 %v6035
      %v6037 = vpop.f32.mrf.mxu0
      %v6038 = vadd.f32 %v6000, %v6037
      %v6039 = vand.u32 %v702, 4294901760
      %6040 = vmatmul.f32.gmra.mxu0 %v6039
      %v6041 = vpop.f32.mrf.mxu0
      %v6042 = vadd.f32 %v6008, %v6041
      %6043 = vdwg.mxu0
      %6044 = vmatpush.msra.mxu0 0.0
      %6045 = vmatpush.msra.mxu0 0.0
      %6046 = vmatpush.msra.mxu0 0.0
      %6047 = vmatpush.msra.mxu0 0.0
      %6048 = vmatpush.msra.mxu0 0.0
      %6049 = vmatpush.msra.mxu0 0.0
      %6050 = vmatpush.msra.mxu0 0.0
      %6051 = vmatpush.msra.mxu0 0.0
      %6052 = vmatpush.msra.mxu0 0.0
      %6053 = vmatpush.msra.mxu0 0.0
      %6054 = vmatpush.msra.mxu0 0.0
      %6055 = vmatpush.msra.mxu0 0.0
      %6056 = vmatpush.msra.mxu0 0.0
      %6057 = vmatpush.msra.mxu0 0.0
      %6058 = vmatpush.msra.mxu0 0.0
      %v6059 = vand.u32 %v754, 4294901760
      %v6060 = vsub.f32 %v754, %v6059
      %6061 = vmatpush.msra.mxu0 %v6060
      %v6062 = vand.u32 %v696, 4294901760
      %v6063 = vsub.f32 %v696, %v6062
      %6064 = vmatmul.f32.gmra.mxu0 %v6063
      %v6065 = vpop.f32.mrf.mxu0
      %v6066 = vadd.f32 %v6034, %v6065
      %v6067 = vand.u32 %v699, 4294901760
      %v6068 = vsub.f32 %v699, %v6067
      %6069 = vmatmul.f32.gmra.mxu0 %v6068
      %v6070 = vpop.f32.mrf.mxu0
      %v6071 = vadd.f32 %v6038, %v6070
      %v6072 = vand.u32 %v702, 4294901760
      %v6073 = vsub.f32 %v702, %v6072
      %6074 = vmatmul.f32.gmra.mxu0 %v6073
      %v6075 = vpop.f32.mrf.mxu0
      %v6076 = vadd.f32 %v6042, %v6075
      %6077 = vdwg.mxu0
      %6078 = vmatpush.msra.mxu0 0.0
      %6079 = vmatpush.msra.mxu0 0.0
      %6080 = vmatpush.msra.mxu0 0.0
      %6081 = vmatpush.msra.mxu0 0.0
      %6082 = vmatpush.msra.mxu0 0.0
      %6083 = vmatpush.msra.mxu0 0.0
      %6084 = vmatpush.msra.mxu0 0.0
      %6085 = vmatpush.msra.mxu0 0.0
      %6086 = vmatpush.msra.mxu0 0.0
      %6087 = vmatpush.msra.mxu0 0.0
      %6088 = vmatpush.msra.mxu0 0.0
      %6089 = vmatpush.msra.mxu0 0.0
      %6090 = vmatpush.msra.mxu0 0.0
      %6091 = vmatpush.msra.mxu0 0.0
      %6092 = vmatpush.msra.mxu0 0.0
      %v6093 = vand.u32 %v754, 4294901760
      %6094 = vmatpush.msra.mxu0 %v6093
      %v6095 = vand.u32 %v696, 4294901760
      %v6096 = vsub.f32 %v696, %v6095
      %v6097 = vand.u32 %v6096, 4294901760
      %6098 = vmatmul.f32.gmra.mxu0 %v6097
      %v6099 = vpop.f32.mrf.mxu0
      %v6100 = vadd.f32 %v6066, %v6099
      %v6101 = vand.u32 %v699, 4294901760
      %v6102 = vsub.f32 %v699, %v6101
      %v6103 = vand.u32 %v6102, 4294901760
      %6104 = vmatmul.f32.gmra.mxu0 %v6103
      %v6105 = vpop.f32.mrf.mxu0
      %v6106 = vadd.f32 %v6071, %v6105
      %v6107 = vand.u32 %v702, 4294901760
      %v6108 = vsub.f32 %v702, %v6107
      %v6109 = vand.u32 %v6108, 4294901760
      %6110 = vmatmul.f32.gmra.mxu0 %v6109
      %v6111 = vpop.f32.mrf.mxu0
      %v6112 = vadd.f32 %v6076, %v6111
      %6113 = vdwg.mxu0
      %6114 = vmatpush.msra.mxu0 0.0
      %6115 = vmatpush.msra.mxu0 0.0
      %6116 = vmatpush.msra.mxu0 0.0
      %6117 = vmatpush.msra.mxu0 0.0
      %6118 = vmatpush.msra.mxu0 0.0
      %6119 = vmatpush.msra.mxu0 0.0
      %6120 = vmatpush.msra.mxu0 0.0
      %6121 = vmatpush.msra.mxu0 0.0
      %6122 = vmatpush.msra.mxu0 0.0
      %6123 = vmatpush.msra.mxu0 0.0
      %6124 = vmatpush.msra.mxu0 0.0
      %6125 = vmatpush.msra.mxu0 0.0
      %6126 = vmatpush.msra.mxu0 0.0
      %6127 = vmatpush.msra.mxu0 0.0
      %6128 = vmatpush.msra.mxu0 0.0
      %v6129 = vand.u32 %v754, 4294901760
      %v6130 = vsub.f32 %v754, %v6129
      %v6131 = vand.u32 %v6130, 4294901760
      %6132 = vmatpush.msra.mxu0 %v6131
      %v6133 = vand.u32 %v696, 4294901760
      %6134 = vmatmul.f32.gmra.mxu0 %v6133
      %v6135 = vpop.f32.mrf.mxu0
      %v6136 = vadd.f32 %v6100, %v6135
      %v6137 = vand.u32 %v699, 4294901760
      %6138 = vmatmul.f32.gmra.mxu0 %v6137
      %v6139 = vpop.f32.mrf.mxu0
      %v6140 = vadd.f32 %v6106, %v6139
      %v6141 = vand.u32 %v702, 4294901760
      %6142 = vmatmul.f32.gmra.mxu0 %v6141
      %v6143 = vpop.f32.mrf.mxu0
      %v6144 = vadd.f32 %v6112, %v6143
      %6145 = vdwg.mxu0
      %6146 = vmatpush.msra.mxu0 0.0
      %6147 = vmatpush.msra.mxu0 0.0
      %6148 = vmatpush.msra.mxu0 0.0
      %6149 = vmatpush.msra.mxu0 0.0
      %6150 = vmatpush.msra.mxu0 0.0
      %6151 = vmatpush.msra.mxu0 0.0
      %6152 = vmatpush.msra.mxu0 0.0
      %6153 = vmatpush.msra.mxu0 0.0
      %6154 = vmatpush.msra.mxu0 0.0
      %6155 = vmatpush.msra.mxu0 0.0
      %6156 = vmatpush.msra.mxu0 0.0
      %6157 = vmatpush.msra.mxu0 0.0
      %6158 = vmatpush.msra.mxu0 0.0
      %6159 = vmatpush.msra.mxu0 0.0
      %6160 = vmatpush.msra.mxu0 0.0
      %v6161 = vand.u32 %v754, 4294901760
      %6162 = vmatpush.msra.mxu0 %v6161
      %v6163 = vand.u32 %v696, 4294901760
      %6164 = vmatmul.f32.gmra.mxu0 %v6163
      %v6165 = vpop.f32.mrf.mxu0
      %v6166 = vadd.f32 %v6136, %v6165
      %v6167 = vand.u32 %v699, 4294901760
      %6168 = vmatmul.f32.gmra.mxu0 %v6167
      %v6169 = vpop.f32.mrf.mxu0
      %v6170 = vadd.f32 %v6140, %v6169
      %v6171 = vand.u32 %v702, 4294901760
      %6172 = vmatmul.f32.gmra.mxu0 %v6171
      %v6173 = vpop.f32.mrf.mxu0
      %v6174 = vadd.f32 %v6144, %v6173
      %6175 = vdwg.mxu0
      %6176 = vmatpush.msra.mxu0 0.0
      %6177 = vmatpush.msra.mxu0 0.0
      %6178 = vmatpush.msra.mxu0 0.0
      %6179 = vmatpush.msra.mxu0 0.0
      %6180 = vmatpush.msra.mxu0 0.0
      %6181 = vmatpush.msra.mxu0 0.0
      %6182 = vmatpush.msra.mxu0 0.0
      %6183 = vmatpush.msra.mxu0 0.0
      %6184 = vmatpush.msra.mxu0 0.0
      %6185 = vmatpush.msra.mxu0 0.0
      %6186 = vmatpush.msra.mxu0 0.0
      %6187 = vmatpush.msra.mxu0 0.0
      %6188 = vmatpush.msra.mxu0 0.0
      %6189 = vmatpush.msra.mxu0 0.0
      %6190 = vmatpush.msra.mxu0 0.0
      %v6191 = vand.u32 %v756, 4294901760
      %6192 = vmatpush.msra.mxu0 %v6191
      %v6193 = vand.u32 %v696, 4294901760
      %v6194 = vsub.f32 %v696, %v6193
      %v6195 = vand.u32 %v6194, 4294901760
      %v6196 = vsub.f32 %v6194, %v6195
      %v6197 = vand.u32 %v6196, 4294901760
      %6198 = vmatmul.f32.gmra.mxu0 %v6197
      %v6199 = vpop.f32.mrf.mxu0
      %v6200 = vadd.f32 %v615, %v6199
      %v6201 = vand.u32 %v699, 4294901760
      %v6202 = vsub.f32 %v699, %v6201
      %v6203 = vand.u32 %v6202, 4294901760
      %v6204 = vsub.f32 %v6202, %v6203
      %v6205 = vand.u32 %v6204, 4294901760
      %6206 = vmatmul.f32.gmra.mxu0 %v6205
      %v6207 = vpop.f32.mrf.mxu0
      %v6208 = vadd.f32 %v620, %v6207
      %v6209 = vand.u32 %v702, 4294901760
      %v6210 = vsub.f32 %v702, %v6209
      %v6211 = vand.u32 %v6210, 4294901760
      %v6212 = vsub.f32 %v6210, %v6211
      %v6213 = vand.u32 %v6212, 4294901760
      %6214 = vmatmul.f32.gmra.mxu0 %v6213
      %v6215 = vpop.f32.mrf.mxu0
      %v6216 = vadd.f32 %v625, %v6215
      %6217 = vdwg.mxu0
      %6218 = vmatpush.msra.mxu0 0.0
      %6219 = vmatpush.msra.mxu0 0.0
      %6220 = vmatpush.msra.mxu0 0.0
      %6221 = vmatpush.msra.mxu0 0.0
      %6222 = vmatpush.msra.mxu0 0.0
      %6223 = vmatpush.msra.mxu0 0.0
      %6224 = vmatpush.msra.mxu0 0.0
      %6225 = vmatpush.msra.mxu0 0.0
      %6226 = vmatpush.msra.mxu0 0.0
      %6227 = vmatpush.msra.mxu0 0.0
      %6228 = vmatpush.msra.mxu0 0.0
      %6229 = vmatpush.msra.mxu0 0.0
      %6230 = vmatpush.msra.mxu0 0.0
      %6231 = vmatpush.msra.mxu0 0.0
      %6232 = vmatpush.msra.mxu0 0.0
      %v6233 = vand.u32 %v756, 4294901760
      %v6234 = vsub.f32 %v756, %v6233
      %v6235 = vand.u32 %v6234, 4294901760
      %v6236 = vsub.f32 %v6234, %v6235
      %v6237 = vand.u32 %v6236, 4294901760
      %6238 = vmatpush.msra.mxu0 %v6237
      %v6239 = vand.u32 %v696, 4294901760
      %6240 = vmatmul.f32.gmra.mxu0 %v6239
      %v6241 = vpop.f32.mrf.mxu0
      %v6242 = vadd.f32 %v6200, %v6241
      %v6243 = vand.u32 %v699, 4294901760
      %6244 = vmatmul.f32.gmra.mxu0 %v6243
      %v6245 = vpop.f32.mrf.mxu0
      %v6246 = vadd.f32 %v6208, %v6245
      %v6247 = vand.u32 %v702, 4294901760
      %6248 = vmatmul.f32.gmra.mxu0 %v6247
      %v6249 = vpop.f32.mrf.mxu0
      %v6250 = vadd.f32 %v6216, %v6249
      %6251 = vdwg.mxu0
      %6252 = vmatpush.msra.mxu0 0.0
      %6253 = vmatpush.msra.mxu0 0.0
      %6254 = vmatpush.msra.mxu0 0.0
      %6255 = vmatpush.msra.mxu0 0.0
      %6256 = vmatpush.msra.mxu0 0.0
      %6257 = vmatpush.msra.mxu0 0.0
      %6258 = vmatpush.msra.mxu0 0.0
      %6259 = vmatpush.msra.mxu0 0.0
      %6260 = vmatpush.msra.mxu0 0.0
      %6261 = vmatpush.msra.mxu0 0.0
      %6262 = vmatpush.msra.mxu0 0.0
      %6263 = vmatpush.msra.mxu0 0.0
      %6264 = vmatpush.msra.mxu0 0.0
      %6265 = vmatpush.msra.mxu0 0.0
      %6266 = vmatpush.msra.mxu0 0.0
      %v6267 = vand.u32 %v756, 4294901760
      %v6268 = vsub.f32 %v756, %v6267
      %6269 = vmatpush.msra.mxu0 %v6268
      %v6270 = vand.u32 %v696, 4294901760
      %v6271 = vsub.f32 %v696, %v6270
      %6272 = vmatmul.f32.gmra.mxu0 %v6271
      %v6273 = vpop.f32.mrf.mxu0
      %v6274 = vadd.f32 %v6242, %v6273
      %v6275 = vand.u32 %v699, 4294901760
      %v6276 = vsub.f32 %v699, %v6275
      %6277 = vmatmul.f32.gmra.mxu0 %v6276
      %v6278 = vpop.f32.mrf.mxu0
      %v6279 = vadd.f32 %v6246, %v6278
      %v6280 = vand.u32 %v702, 4294901760
      %v6281 = vsub.f32 %v702, %v6280
      %6282 = vmatmul.f32.gmra.mxu0 %v6281
      %v6283 = vpop.f32.mrf.mxu0
      %v6284 = vadd.f32 %v6250, %v6283
      %6285 = vdwg.mxu0
      %6286 = vmatpush.msra.mxu0 0.0
      %6287 = vmatpush.msra.mxu0 0.0
      %6288 = vmatpush.msra.mxu0 0.0
      %6289 = vmatpush.msra.mxu0 0.0
      %6290 = vmatpush.msra.mxu0 0.0
      %6291 = vmatpush.msra.mxu0 0.0
      %6292 = vmatpush.msra.mxu0 0.0
      %6293 = vmatpush.msra.mxu0 0.0
      %6294 = vmatpush.msra.mxu0 0.0
      %6295 = vmatpush.msra.mxu0 0.0
      %6296 = vmatpush.msra.mxu0 0.0
      %6297 = vmatpush.msra.mxu0 0.0
      %6298 = vmatpush.msra.mxu0 0.0
      %6299 = vmatpush.msra.mxu0 0.0
      %6300 = vmatpush.msra.mxu0 0.0
      %v6301 = vand.u32 %v756, 4294901760
      %6302 = vmatpush.msra.mxu0 %v6301
      %v6303 = vand.u32 %v696, 4294901760
      %v6304 = vsub.f32 %v696, %v6303
      %v6305 = vand.u32 %v6304, 4294901760
      %6306 = vmatmul.f32.gmra.mxu0 %v6305
      %v6307 = vpop.f32.mrf.mxu0
      %v6308 = vadd.f32 %v6274, %v6307
      %v6309 = vand.u32 %v699, 4294901760
      %v6310 = vsub.f32 %v699, %v6309
      %v6311 = vand.u32 %v6310, 4294901760
      %6312 = vmatmul.f32.gmra.mxu0 %v6311
      %v6313 = vpop.f32.mrf.mxu0
      %v6314 = vadd.f32 %v6279, %v6313
      %v6315 = vand.u32 %v702, 4294901760
      %v6316 = vsub.f32 %v702, %v6315
      %v6317 = vand.u32 %v6316, 4294901760
      %6318 = vmatmul.f32.gmra.mxu0 %v6317
      %v6319 = vpop.f32.mrf.mxu0
      %v6320 = vadd.f32 %v6284, %v6319
      %6321 = vdwg.mxu0
      %6322 = vmatpush.msra.mxu0 0.0
      %6323 = vmatpush.msra.mxu0 0.0
      %6324 = vmatpush.msra.mxu0 0.0
      %6325 = vmatpush.msra.mxu0 0.0
      %6326 = vmatpush.msra.mxu0 0.0
      %6327 = vmatpush.msra.mxu0 0.0
      %6328 = vmatpush.msra.mxu0 0.0
      %6329 = vmatpush.msra.mxu0 0.0
      %6330 = vmatpush.msra.mxu0 0.0
      %6331 = vmatpush.msra.mxu0 0.0
      %6332 = vmatpush.msra.mxu0 0.0
      %6333 = vmatpush.msra.mxu0 0.0
      %6334 = vmatpush.msra.mxu0 0.0
      %6335 = vmatpush.msra.mxu0 0.0
      %6336 = vmatpush.msra.mxu0 0.0
      %v6337 = vand.u32 %v756, 4294901760
      %v6338 = vsub.f32 %v756, %v6337
      %v6339 = vand.u32 %v6338, 4294901760
      %6340 = vmatpush.msra.mxu0 %v6339
      %v6341 = vand.u32 %v696, 4294901760
      %6342 = vmatmul.f32.gmra.mxu0 %v6341
      %v6343 = vpop.f32.mrf.mxu0
      %v6344 = vadd.f32 %v6308, %v6343
      %v6345 = vand.u32 %v699, 4294901760
      %6346 = vmatmul.f32.gmra.mxu0 %v6345
      %v6347 = vpop.f32.mrf.mxu0
      %v6348 = vadd.f32 %v6314, %v6347
      %v6349 = vand.u32 %v702, 4294901760
      %6350 = vmatmul.f32.gmra.mxu0 %v6349
      %v6351 = vpop.f32.mrf.mxu0
      %v6352 = vadd.f32 %v6320, %v6351
      %6353 = vdwg.mxu0
      %6354 = vmatpush.msra.mxu0 0.0
      %6355 = vmatpush.msra.mxu0 0.0
      %6356 = vmatpush.msra.mxu0 0.0
      %6357 = vmatpush.msra.mxu0 0.0
      %6358 = vmatpush.msra.mxu0 0.0
      %6359 = vmatpush.msra.mxu0 0.0
      %6360 = vmatpush.msra.mxu0 0.0
      %6361 = vmatpush.msra.mxu0 0.0
      %6362 = vmatpush.msra.mxu0 0.0
      %6363 = vmatpush.msra.mxu0 0.0
      %6364 = vmatpush.msra.mxu0 0.0
      %6365 = vmatpush.msra.mxu0 0.0
      %6366 = vmatpush.msra.mxu0 0.0
      %6367 = vmatpush.msra.mxu0 0.0
      %6368 = vmatpush.msra.mxu0 0.0
      %v6369 = vand.u32 %v756, 4294901760
      %6370 = vmatpush.msra.mxu0 %v6369
      %v6371 = vand.u32 %v696, 4294901760
      %6372 = vmatmul.f32.gmra.mxu0 %v6371
      %v6373 = vpop.f32.mrf.mxu0
      %v6374 = vadd.f32 %v6344, %v6373
      %v6375 = vand.u32 %v699, 4294901760
      %6376 = vmatmul.f32.gmra.mxu0 %v6375
      %v6377 = vpop.f32.mrf.mxu0
      %v6378 = vadd.f32 %v6348, %v6377
      %v6379 = vand.u32 %v702, 4294901760
      %6380 = vmatmul.f32.gmra.mxu0 %v6379
      %v6381 = vpop.f32.mrf.mxu0
      %v6382 = vadd.f32 %v6352, %v6381
      %6383 = vdwg.mxu0
      %6384 = vmatpush.msra.mxu0 0.0
      %6385 = vmatpush.msra.mxu0 0.0
      %6386 = vmatpush.msra.mxu0 0.0
      %6387 = vmatpush.msra.mxu0 0.0
      %6388 = vmatpush.msra.mxu0 0.0
      %6389 = vmatpush.msra.mxu0 0.0
      %6390 = vmatpush.msra.mxu0 0.0
      %6391 = vmatpush.msra.mxu0 0.0
      %6392 = vmatpush.msra.mxu0 0.0
      %6393 = vmatpush.msra.mxu0 0.0
      %6394 = vmatpush.msra.mxu0 0.0
      %6395 = vmatpush.msra.mxu0 0.0
      %6396 = vmatpush.msra.mxu0 0.0
      %6397 = vmatpush.msra.mxu0 0.0
      %6398 = vmatpush.msra.mxu0 0.0
      %v6399 = vand.u32 %v758, 4294901760
      %6400 = vmatpush.msra.mxu0 %v6399
      %v6401 = vand.u32 %v696, 4294901760
      %v6402 = vsub.f32 %v696, %v6401
      %v6403 = vand.u32 %v6402, 4294901760
      %v6404 = vsub.f32 %v6402, %v6403
      %v6405 = vand.u32 %v6404, 4294901760
      %6406 = vmatmul.f32.gmra.mxu0 %v6405
      %v6407 = vpop.f32.mrf.mxu0
      %v6408 = vadd.f32 %v615, %v6407
      %v6409 = vand.u32 %v699, 4294901760
      %v6410 = vsub.f32 %v699, %v6409
      %v6411 = vand.u32 %v6410, 4294901760
      %v6412 = vsub.f32 %v6410, %v6411
      %v6413 = vand.u32 %v6412, 4294901760
      %6414 = vmatmul.f32.gmra.mxu0 %v6413
      %v6415 = vpop.f32.mrf.mxu0
      %v6416 = vadd.f32 %v620, %v6415
      %v6417 = vand.u32 %v702, 4294901760
      %v6418 = vsub.f32 %v702, %v6417
      %v6419 = vand.u32 %v6418, 4294901760
      %v6420 = vsub.f32 %v6418, %v6419
      %v6421 = vand.u32 %v6420, 4294901760
      %6422 = vmatmul.f32.gmra.mxu0 %v6421
      %v6423 = vpop.f32.mrf.mxu0
      %v6424 = vadd.f32 %v625, %v6423
      %6425 = vdwg.mxu0
      %6426 = vmatpush.msra.mxu0 0.0
      %6427 = vmatpush.msra.mxu0 0.0
      %6428 = vmatpush.msra.mxu0 0.0
      %6429 = vmatpush.msra.mxu0 0.0
      %6430 = vmatpush.msra.mxu0 0.0
      %6431 = vmatpush.msra.mxu0 0.0
      %6432 = vmatpush.msra.mxu0 0.0
      %6433 = vmatpush.msra.mxu0 0.0
      %6434 = vmatpush.msra.mxu0 0.0
      %6435 = vmatpush.msra.mxu0 0.0
      %6436 = vmatpush.msra.mxu0 0.0
      %6437 = vmatpush.msra.mxu0 0.0
      %6438 = vmatpush.msra.mxu0 0.0
      %6439 = vmatpush.msra.mxu0 0.0
      %6440 = vmatpush.msra.mxu0 0.0
      %v6441 = vand.u32 %v758, 4294901760
      %v6442 = vsub.f32 %v758, %v6441
      %v6443 = vand.u32 %v6442, 4294901760
      %v6444 = vsub.f32 %v6442, %v6443
      %v6445 = vand.u32 %v6444, 4294901760
      %6446 = vmatpush.msra.mxu0 %v6445
      %v6447 = vand.u32 %v696, 4294901760
      %6448 = vmatmul.f32.gmra.mxu0 %v6447
      %v6449 = vpop.f32.mrf.mxu0
      %v6450 = vadd.f32 %v6408, %v6449
      %v6451 = vand.u32 %v699, 4294901760
      %6452 = vmatmul.f32.gmra.mxu0 %v6451
      %v6453 = vpop.f32.mrf.mxu0
      %v6454 = vadd.f32 %v6416, %v6453
      %v6455 = vand.u32 %v702, 4294901760
      %6456 = vmatmul.f32.gmra.mxu0 %v6455
      %v6457 = vpop.f32.mrf.mxu0
      %v6458 = vadd.f32 %v6424, %v6457
      %6459 = vdwg.mxu0
      %6460 = vmatpush.msra.mxu0 0.0
      %6461 = vmatpush.msra.mxu0 0.0
      %6462 = vmatpush.msra.mxu0 0.0
      %6463 = vmatpush.msra.mxu0 0.0
      %6464 = vmatpush.msra.mxu0 0.0
      %6465 = vmatpush.msra.mxu0 0.0
      %6466 = vmatpush.msra.mxu0 0.0
      %6467 = vmatpush.msra.mxu0 0.0
      %6468 = vmatpush.msra.mxu0 0.0
      %6469 = vmatpush.msra.mxu0 0.0
      %6470 = vmatpush.msra.mxu0 0.0
      %6471 = vmatpush.msra.mxu0 0.0
      %6472 = vmatpush.msra.mxu0 0.0
      %6473 = vmatpush.msra.mxu0 0.0
      %6474 = vmatpush.msra.mxu0 0.0
      %v6475 = vand.u32 %v758, 4294901760
      %v6476 = vsub.f32 %v758, %v6475
      %6477 = vmatpush.msra.mxu0 %v6476
      %v6478 = vand.u32 %v696, 4294901760
      %v6479 = vsub.f32 %v696, %v6478
      %6480 = vmatmul.f32.gmra.mxu0 %v6479
      %v6481 = vpop.f32.mrf.mxu0
      %v6482 = vadd.f32 %v6450, %v6481
      %v6483 = vand.u32 %v699, 4294901760
      %v6484 = vsub.f32 %v699, %v6483
      %6485 = vmatmul.f32.gmra.mxu0 %v6484
      %v6486 = vpop.f32.mrf.mxu0
      %v6487 = vadd.f32 %v6454, %v6486
      %v6488 = vand.u32 %v702, 4294901760
      %v6489 = vsub.f32 %v702, %v6488
      %6490 = vmatmul.f32.gmra.mxu0 %v6489
      %v6491 = vpop.f32.mrf.mxu0
      %v6492 = vadd.f32 %v6458, %v6491
      %6493 = vdwg.mxu0
      %6494 = vmatpush.msra.mxu0 0.0
      %6495 = vmatpush.msra.mxu0 0.0
      %6496 = vmatpush.msra.mxu0 0.0
      %6497 = vmatpush.msra.mxu0 0.0
      %6498 = vmatpush.msra.mxu0 0.0
      %6499 = vmatpush.msra.mxu0 0.0
      %6500 = vmatpush.msra.mxu0 0.0
      %6501 = vmatpush.msra.mxu0 0.0
      %6502 = vmatpush.msra.mxu0 0.0
      %6503 = vmatpush.msra.mxu0 0.0
      %6504 = vmatpush.msra.mxu0 0.0
      %6505 = vmatpush.msra.mxu0 0.0
      %6506 = vmatpush.msra.mxu0 0.0
      %6507 = vmatpush.msra.mxu0 0.0
      %6508 = vmatpush.msra.mxu0 0.0
      %v6509 = vand.u32 %v758, 4294901760
      %6510 = vmatpush.msra.mxu0 %v6509
      %v6511 = vand.u32 %v696, 4294901760
      %v6512 = vsub.f32 %v696, %v6511
      %v6513 = vand.u32 %v6512, 4294901760
      %6514 = vmatmul.f32.gmra.mxu0 %v6513
      %v6515 = vpop.f32.mrf.mxu0
      %v6516 = vadd.f32 %v6482, %v6515
      %v6517 = vand.u32 %v699, 4294901760
      %v6518 = vsub.f32 %v699, %v6517
      %v6519 = vand.u32 %v6518, 4294901760
      %6520 = vmatmul.f32.gmra.mxu0 %v6519
      %v6521 = vpop.f32.mrf.mxu0
      %v6522 = vadd.f32 %v6487, %v6521
      %v6523 = vand.u32 %v702, 4294901760
      %v6524 = vsub.f32 %v702, %v6523
      %v6525 = vand.u32 %v6524, 4294901760
      %6526 = vmatmul.f32.gmra.mxu0 %v6525
      %v6527 = vpop.f32.mrf.mxu0
      %v6528 = vadd.f32 %v6492, %v6527
      %6529 = vdwg.mxu0
      %6530 = vmatpush.msra.mxu0 0.0
      %6531 = vmatpush.msra.mxu0 0.0
      %6532 = vmatpush.msra.mxu0 0.0
      %6533 = vmatpush.msra.mxu0 0.0
      %6534 = vmatpush.msra.mxu0 0.0
      %6535 = vmatpush.msra.mxu0 0.0
      %6536 = vmatpush.msra.mxu0 0.0
      %6537 = vmatpush.msra.mxu0 0.0
      %6538 = vmatpush.msra.mxu0 0.0
      %6539 = vmatpush.msra.mxu0 0.0
      %6540 = vmatpush.msra.mxu0 0.0
      %6541 = vmatpush.msra.mxu0 0.0
      %6542 = vmatpush.msra.mxu0 0.0
      %6543 = vmatpush.msra.mxu0 0.0
      %6544 = vmatpush.msra.mxu0 0.0
      %v6545 = vand.u32 %v758, 4294901760
      %v6546 = vsub.f32 %v758, %v6545
      %v6547 = vand.u32 %v6546, 4294901760
      %6548 = vmatpush.msra.mxu0 %v6547
      %v6549 = vand.u32 %v696, 4294901760
      %6550 = vmatmul.f32.gmra.mxu0 %v6549
      %v6551 = vpop.f32.mrf.mxu0
      %v6552 = vadd.f32 %v6516, %v6551
      %v6553 = vand.u32 %v699, 4294901760
      %6554 = vmatmul.f32.gmra.mxu0 %v6553
      %v6555 = vpop.f32.mrf.mxu0
      %v6556 = vadd.f32 %v6522, %v6555
      %v6557 = vand.u32 %v702, 4294901760
      %6558 = vmatmul.f32.gmra.mxu0 %v6557
      %v6559 = vpop.f32.mrf.mxu0
      %v6560 = vadd.f32 %v6528, %v6559
      %6561 = vdwg.mxu0
      %6562 = vmatpush.msra.mxu0 0.0
      %6563 = vmatpush.msra.mxu0 0.0
      %6564 = vmatpush.msra.mxu0 0.0
      %6565 = vmatpush.msra.mxu0 0.0
      %6566 = vmatpush.msra.mxu0 0.0
      %6567 = vmatpush.msra.mxu0 0.0
      %6568 = vmatpush.msra.mxu0 0.0
      %6569 = vmatpush.msra.mxu0 0.0
      %6570 = vmatpush.msra.mxu0 0.0
      %6571 = vmatpush.msra.mxu0 0.0
      %6572 = vmatpush.msra.mxu0 0.0
      %6573 = vmatpush.msra.mxu0 0.0
      %6574 = vmatpush.msra.mxu0 0.0
      %6575 = vmatpush.msra.mxu0 0.0
      %6576 = vmatpush.msra.mxu0 0.0
      %v6577 = vand.u32 %v758, 4294901760
      %6578 = vmatpush.msra.mxu0 %v6577
      %v6579 = vand.u32 %v696, 4294901760
      %6580 = vmatmul.f32.gmra.mxu0 %v6579
      %v6581 = vpop.f32.mrf.mxu0
      %v6582 = vadd.f32 %v6552, %v6581
      %v6583 = vand.u32 %v699, 4294901760
      %6584 = vmatmul.f32.gmra.mxu0 %v6583
      %v6585 = vpop.f32.mrf.mxu0
      %v6586 = vadd.f32 %v6556, %v6585
      %v6587 = vand.u32 %v702, 4294901760
      %6588 = vmatmul.f32.gmra.mxu0 %v6587
      %v6589 = vpop.f32.mrf.mxu0
      %v6590 = vadd.f32 %v6560, %v6589
      %6591 = vdwg.mxu0
      %6592 = vmatpush.msra.mxu0 0.0
      %6593 = vmatpush.msra.mxu0 0.0
      %6594 = vmatpush.msra.mxu0 0.0
      %6595 = vmatpush.msra.mxu0 0.0
      %6596 = vmatpush.msra.mxu0 0.0
      %6597 = vmatpush.msra.mxu0 0.0
      %6598 = vmatpush.msra.mxu0 0.0
      %6599 = vmatpush.msra.mxu0 0.0
      %6600 = vmatpush.msra.mxu0 0.0
      %6601 = vmatpush.msra.mxu0 0.0
      %6602 = vmatpush.msra.mxu0 0.0
      %6603 = vmatpush.msra.mxu0 0.0
      %6604 = vmatpush.msra.mxu0 0.0
      %6605 = vmatpush.msra.mxu0 0.0
      %6606 = vmatpush.msra.mxu0 0.0
      %v6607 = vand.u32 %v760, 4294901760
      %6608 = vmatpush.msra.mxu0 %v6607
      %v6609 = vand.u32 %v696, 4294901760
      %v6610 = vsub.f32 %v696, %v6609
      %v6611 = vand.u32 %v6610, 4294901760
      %v6612 = vsub.f32 %v6610, %v6611
      %v6613 = vand.u32 %v6612, 4294901760
      %6614 = vmatmul.f32.gmra.mxu0 %v6613
      %v6615 = vpop.f32.mrf.mxu0
      %v6616 = vadd.f32 %v615, %v6615
      %v6617 = vand.u32 %v699, 4294901760
      %v6618 = vsub.f32 %v699, %v6617
      %v6619 = vand.u32 %v6618, 4294901760
      %v6620 = vsub.f32 %v6618, %v6619
      %v6621 = vand.u32 %v6620, 4294901760
      %6622 = vmatmul.f32.gmra.mxu0 %v6621
      %v6623 = vpop.f32.mrf.mxu0
      %v6624 = vadd.f32 %v620, %v6623
      %v6625 = vand.u32 %v702, 4294901760
      %v6626 = vsub.f32 %v702, %v6625
      %v6627 = vand.u32 %v6626, 4294901760
      %v6628 = vsub.f32 %v6626, %v6627
      %v6629 = vand.u32 %v6628, 4294901760
      %6630 = vmatmul.f32.gmra.mxu0 %v6629
      %v6631 = vpop.f32.mrf.mxu0
      %v6632 = vadd.f32 %v625, %v6631
      %6633 = vdwg.mxu0
      %6634 = vmatpush.msra.mxu0 0.0
      %6635 = vmatpush.msra.mxu0 0.0
      %6636 = vmatpush.msra.mxu0 0.0
      %6637 = vmatpush.msra.mxu0 0.0
      %6638 = vmatpush.msra.mxu0 0.0
      %6639 = vmatpush.msra.mxu0 0.0
      %6640 = vmatpush.msra.mxu0 0.0
      %6641 = vmatpush.msra.mxu0 0.0
      %6642 = vmatpush.msra.mxu0 0.0
      %6643 = vmatpush.msra.mxu0 0.0
      %6644 = vmatpush.msra.mxu0 0.0
      %6645 = vmatpush.msra.mxu0 0.0
      %6646 = vmatpush.msra.mxu0 0.0
      %6647 = vmatpush.msra.mxu0 0.0
      %6648 = vmatpush.msra.mxu0 0.0
      %v6649 = vand.u32 %v760, 4294901760
      %v6650 = vsub.f32 %v760, %v6649
      %v6651 = vand.u32 %v6650, 4294901760
      %v6652 = vsub.f32 %v6650, %v6651
      %v6653 = vand.u32 %v6652, 4294901760
      %6654 = vmatpush.msra.mxu0 %v6653
      %v6655 = vand.u32 %v696, 4294901760
      %6656 = vmatmul.f32.gmra.mxu0 %v6655
      %v6657 = vpop.f32.mrf.mxu0
      %v6658 = vadd.f32 %v6616, %v6657
      %v6659 = vand.u32 %v699, 4294901760
      %6660 = vmatmul.f32.gmra.mxu0 %v6659
      %v6661 = vpop.f32.mrf.mxu0
      %v6662 = vadd.f32 %v6624, %v6661
      %v6663 = vand.u32 %v702, 4294901760
      %6664 = vmatmul.f32.gmra.mxu0 %v6663
      %v6665 = vpop.f32.mrf.mxu0
      %v6666 = vadd.f32 %v6632, %v6665
      %6667 = vdwg.mxu0
      %6668 = vmatpush.msra.mxu0 0.0
      %6669 = vmatpush.msra.mxu0 0.0
      %6670 = vmatpush.msra.mxu0 0.0
      %6671 = vmatpush.msra.mxu0 0.0
      %6672 = vmatpush.msra.mxu0 0.0
      %6673 = vmatpush.msra.mxu0 0.0
      %6674 = vmatpush.msra.mxu0 0.0
      %6675 = vmatpush.msra.mxu0 0.0
      %6676 = vmatpush.msra.mxu0 0.0
      %6677 = vmatpush.msra.mxu0 0.0
      %6678 = vmatpush.msra.mxu0 0.0
      %6679 = vmatpush.msra.mxu0 0.0
      %6680 = vmatpush.msra.mxu0 0.0
      %6681 = vmatpush.msra.mxu0 0.0
      %6682 = vmatpush.msra.mxu0 0.0
      %v6683 = vand.u32 %v760, 4294901760
      %v6684 = vsub.f32 %v760, %v6683
      %6685 = vmatpush.msra.mxu0 %v6684
      %v6686 = vand.u32 %v696, 4294901760
      %v6687 = vsub.f32 %v696, %v6686
      %6688 = vmatmul.f32.gmra.mxu0 %v6687
      %v6689 = vpop.f32.mrf.mxu0
      %v6690 = vadd.f32 %v6658, %v6689
      %v6691 = vand.u32 %v699, 4294901760
      %v6692 = vsub.f32 %v699, %v6691
      %6693 = vmatmul.f32.gmra.mxu0 %v6692
      %v6694 = vpop.f32.mrf.mxu0
      %v6695 = vadd.f32 %v6662, %v6694
      %v6696 = vand.u32 %v702, 4294901760
      %v6697 = vsub.f32 %v702, %v6696
      %6698 = vmatmul.f32.gmra.mxu0 %v6697
      %v6699 = vpop.f32.mrf.mxu0
      %v6700 = vadd.f32 %v6666, %v6699
      %6701 = vdwg.mxu0
      %6702 = vmatpush.msra.mxu0 0.0
      %6703 = vmatpush.msra.mxu0 0.0
      %6704 = vmatpush.msra.mxu0 0.0
      %6705 = vmatpush.msra.mxu0 0.0
      %6706 = vmatpush.msra.mxu0 0.0
      %6707 = vmatpush.msra.mxu0 0.0
      %6708 = vmatpush.msra.mxu0 0.0
      %6709 = vmatpush.msra.mxu0 0.0
      %6710 = vmatpush.msra.mxu0 0.0
      %6711 = vmatpush.msra.mxu0 0.0
      %6712 = vmatpush.msra.mxu0 0.0
      %6713 = vmatpush.msra.mxu0 0.0
      %6714 = vmatpush.msra.mxu0 0.0
      %6715 = vmatpush.msra.mxu0 0.0
      %6716 = vmatpush.msra.mxu0 0.0
      %v6717 = vand.u32 %v760, 4294901760
      %6718 = vmatpush.msra.mxu0 %v6717
      %v6719 = vand.u32 %v696, 4294901760
      %v6720 = vsub.f32 %v696, %v6719
      %v6721 = vand.u32 %v6720, 4294901760
      %6722 = vmatmul.f32.gmra.mxu0 %v6721
      %v6723 = vpop.f32.mrf.mxu0
      %v6724 = vadd.f32 %v6690, %v6723
      %v6725 = vand.u32 %v699, 4294901760
      %v6726 = vsub.f32 %v699, %v6725
      %v6727 = vand.u32 %v6726, 4294901760
      %6728 = vmatmul.f32.gmra.mxu0 %v6727
      %v6729 = vpop.f32.mrf.mxu0
      %v6730 = vadd.f32 %v6695, %v6729
      %v6731 = vand.u32 %v702, 4294901760
      %v6732 = vsub.f32 %v702, %v6731
      %v6733 = vand.u32 %v6732, 4294901760
      %6734 = vmatmul.f32.gmra.mxu0 %v6733
      %v6735 = vpop.f32.mrf.mxu0
      %v6736 = vadd.f32 %v6700, %v6735
      %6737 = vdwg.mxu0
      %6738 = vmatpush.msra.mxu0 0.0
      %6739 = vmatpush.msra.mxu0 0.0
      %6740 = vmatpush.msra.mxu0 0.0
      %6741 = vmatpush.msra.mxu0 0.0
      %6742 = vmatpush.msra.mxu0 0.0
      %6743 = vmatpush.msra.mxu0 0.0
      %6744 = vmatpush.msra.mxu0 0.0
      %6745 = vmatpush.msra.mxu0 0.0
      %6746 = vmatpush.msra.mxu0 0.0
      %6747 = vmatpush.msra.mxu0 0.0
      %6748 = vmatpush.msra.mxu0 0.0
      %6749 = vmatpush.msra.mxu0 0.0
      %6750 = vmatpush.msra.mxu0 0.0
      %6751 = vmatpush.msra.mxu0 0.0
      %6752 = vmatpush.msra.mxu0 0.0
      %v6753 = vand.u32 %v760, 4294901760
      %v6754 = vsub.f32 %v760, %v6753
      %v6755 = vand.u32 %v6754, 4294901760
      %6756 = vmatpush.msra.mxu0 %v6755
      %v6757 = vand.u32 %v696, 4294901760
      %6758 = vmatmul.f32.gmra.mxu0 %v6757
      %v6759 = vpop.f32.mrf.mxu0
      %v6760 = vadd.f32 %v6724, %v6759
      %v6761 = vand.u32 %v699, 4294901760
      %6762 = vmatmul.f32.gmra.mxu0 %v6761
      %v6763 = vpop.f32.mrf.mxu0
      %v6764 = vadd.f32 %v6730, %v6763
      %v6765 = vand.u32 %v702, 4294901760
      %6766 = vmatmul.f32.gmra.mxu0 %v6765
      %v6767 = vpop.f32.mrf.mxu0
      %v6768 = vadd.f32 %v6736, %v6767
      %6769 = vdwg.mxu0
      %6770 = vmatpush.msra.mxu0 0.0
      %6771 = vmatpush.msra.mxu0 0.0
      %6772 = vmatpush.msra.mxu0 0.0
      %6773 = vmatpush.msra.mxu0 0.0
      %6774 = vmatpush.msra.mxu0 0.0
      %6775 = vmatpush.msra.mxu0 0.0
      %6776 = vmatpush.msra.mxu0 0.0
      %6777 = vmatpush.msra.mxu0 0.0
      %6778 = vmatpush.msra.mxu0 0.0
      %6779 = vmatpush.msra.mxu0 0.0
      %6780 = vmatpush.msra.mxu0 0.0
      %6781 = vmatpush.msra.mxu0 0.0
      %6782 = vmatpush.msra.mxu0 0.0
      %6783 = vmatpush.msra.mxu0 0.0
      %6784 = vmatpush.msra.mxu0 0.0
      %v6785 = vand.u32 %v760, 4294901760
      %6786 = vmatpush.msra.mxu0 %v6785
      %v6787 = vand.u32 %v696, 4294901760
      %6788 = vmatmul.f32.gmra.mxu0 %v6787
      %v6789 = vpop.f32.mrf.mxu0
      %v6790 = vadd.f32 %v6760, %v6789
      %v6791 = vand.u32 %v699, 4294901760
      %6792 = vmatmul.f32.gmra.mxu0 %v6791
      %v6793 = vpop.f32.mrf.mxu0
      %v6794 = vadd.f32 %v6764, %v6793
      %v6795 = vand.u32 %v702, 4294901760
      %6796 = vmatmul.f32.gmra.mxu0 %v6795
      %v6797 = vpop.f32.mrf.mxu0
      %v6798 = vadd.f32 %v6768, %v6797
      %6799 = vdwg.mxu0
      %6800 = vmatpush.msra.mxu0 0.0
      %6801 = vmatpush.msra.mxu0 0.0
      %6802 = vmatpush.msra.mxu0 0.0
      %6803 = vmatpush.msra.mxu0 0.0
      %6804 = vmatpush.msra.mxu0 0.0
      %6805 = vmatpush.msra.mxu0 0.0
      %6806 = vmatpush.msra.mxu0 0.0
      %6807 = vmatpush.msra.mxu0 0.0
      %6808 = vmatpush.msra.mxu0 0.0
      %6809 = vmatpush.msra.mxu0 0.0
      %6810 = vmatpush.msra.mxu0 0.0
      %6811 = vmatpush.msra.mxu0 0.0
      %6812 = vmatpush.msra.mxu0 0.0
      %6813 = vmatpush.msra.mxu0 0.0
      %6814 = vmatpush.msra.mxu0 0.0
      %v6815 = vand.u32 %v762, 4294901760
      %6816 = vmatpush.msra.mxu0 %v6815
      %v6817 = vand.u32 %v696, 4294901760
      %v6818 = vsub.f32 %v696, %v6817
      %v6819 = vand.u32 %v6818, 4294901760
      %v6820 = vsub.f32 %v6818, %v6819
      %v6821 = vand.u32 %v6820, 4294901760
      %6822 = vmatmul.f32.gmra.mxu0 %v6821
      %v6823 = vpop.f32.mrf.mxu0
      %v6824 = vadd.f32 %v615, %v6823
      %v6825 = vand.u32 %v699, 4294901760
      %v6826 = vsub.f32 %v699, %v6825
      %v6827 = vand.u32 %v6826, 4294901760
      %v6828 = vsub.f32 %v6826, %v6827
      %v6829 = vand.u32 %v6828, 4294901760
      %6830 = vmatmul.f32.gmra.mxu0 %v6829
      %v6831 = vpop.f32.mrf.mxu0
      %v6832 = vadd.f32 %v620, %v6831
      %v6833 = vand.u32 %v702, 4294901760
      %v6834 = vsub.f32 %v702, %v6833
      %v6835 = vand.u32 %v6834, 4294901760
      %v6836 = vsub.f32 %v6834, %v6835
      %v6837 = vand.u32 %v6836, 4294901760
      %6838 = vmatmul.f32.gmra.mxu0 %v6837
      %v6839 = vpop.f32.mrf.mxu0
      %v6840 = vadd.f32 %v625, %v6839
      %6841 = vdwg.mxu0
      %6842 = vmatpush.msra.mxu0 0.0
      %6843 = vmatpush.msra.mxu0 0.0
      %6844 = vmatpush.msra.mxu0 0.0
      %6845 = vmatpush.msra.mxu0 0.0
      %6846 = vmatpush.msra.mxu0 0.0
      %6847 = vmatpush.msra.mxu0 0.0
      %6848 = vmatpush.msra.mxu0 0.0
      %6849 = vmatpush.msra.mxu0 0.0
      %6850 = vmatpush.msra.mxu0 0.0
      %6851 = vmatpush.msra.mxu0 0.0
      %6852 = vmatpush.msra.mxu0 0.0
      %6853 = vmatpush.msra.mxu0 0.0
      %6854 = vmatpush.msra.mxu0 0.0
      %6855 = vmatpush.msra.mxu0 0.0
      %6856 = vmatpush.msra.mxu0 0.0
      %v6857 = vand.u32 %v762, 4294901760
      %v6858 = vsub.f32 %v762, %v6857
      %v6859 = vand.u32 %v6858, 4294901760
      %v6860 = vsub.f32 %v6858, %v6859
      %v6861 = vand.u32 %v6860, 4294901760
      %6862 = vmatpush.msra.mxu0 %v6861
      %v6863 = vand.u32 %v696, 4294901760
      %6864 = vmatmul.f32.gmra.mxu0 %v6863
      %v6865 = vpop.f32.mrf.mxu0
      %v6866 = vadd.f32 %v6824, %v6865
      %v6867 = vand.u32 %v699, 4294901760
      %6868 = vmatmul.f32.gmra.mxu0 %v6867
      %v6869 = vpop.f32.mrf.mxu0
      %v6870 = vadd.f32 %v6832, %v6869
      %v6871 = vand.u32 %v702, 4294901760
      %6872 = vmatmul.f32.gmra.mxu0 %v6871
      %v6873 = vpop.f32.mrf.mxu0
      %v6874 = vadd.f32 %v6840, %v6873
      %6875 = vdwg.mxu0
      %6876 = vmatpush.msra.mxu0 0.0
      %6877 = vmatpush.msra.mxu0 0.0
      %6878 = vmatpush.msra.mxu0 0.0
      %6879 = vmatpush.msra.mxu0 0.0
      %6880 = vmatpush.msra.mxu0 0.0
      %6881 = vmatpush.msra.mxu0 0.0
      %6882 = vmatpush.msra.mxu0 0.0
      %6883 = vmatpush.msra.mxu0 0.0
      %6884 = vmatpush.msra.mxu0 0.0
      %6885 = vmatpush.msra.mxu0 0.0
      %6886 = vmatpush.msra.mxu0 0.0
      %6887 = vmatpush.msra.mxu0 0.0
      %6888 = vmatpush.msra.mxu0 0.0
      %6889 = vmatpush.msra.mxu0 0.0
      %6890 = vmatpush.msra.mxu0 0.0
      %v6891 = vand.u32 %v762, 4294901760
      %v6892 = vsub.f32 %v762, %v6891
      %6893 = vmatpush.msra.mxu0 %v6892
      %v6894 = vand.u32 %v696, 4294901760
      %v6895 = vsub.f32 %v696, %v6894
      %6896 = vmatmul.f32.gmra.mxu0 %v6895
      %v6897 = vpop.f32.mrf.mxu0
      %v6898 = vadd.f32 %v6866, %v6897
      %v6899 = vand.u32 %v699, 4294901760
      %v6900 = vsub.f32 %v699, %v6899
      %6901 = vmatmul.f32.gmra.mxu0 %v6900
      %v6902 = vpop.f32.mrf.mxu0
      %v6903 = vadd.f32 %v6870, %v6902
      %v6904 = vand.u32 %v702, 4294901760
      %v6905 = vsub.f32 %v702, %v6904
      %6906 = vmatmul.f32.gmra.mxu0 %v6905
      %v6907 = vpop.f32.mrf.mxu0
      %v6908 = vadd.f32 %v6874, %v6907
      %6909 = vdwg.mxu0
      %6910 = vmatpush.msra.mxu0 0.0
      %6911 = vmatpush.msra.mxu0 0.0
      %6912 = vmatpush.msra.mxu0 0.0
      %6913 = vmatpush.msra.mxu0 0.0
      %6914 = vmatpush.msra.mxu0 0.0
      %6915 = vmatpush.msra.mxu0 0.0
      %6916 = vmatpush.msra.mxu0 0.0
      %6917 = vmatpush.msra.mxu0 0.0
      %6918 = vmatpush.msra.mxu0 0.0
      %6919 = vmatpush.msra.mxu0 0.0
      %6920 = vmatpush.msra.mxu0 0.0
      %6921 = vmatpush.msra.mxu0 0.0
      %6922 = vmatpush.msra.mxu0 0.0
      %6923 = vmatpush.msra.mxu0 0.0
      %6924 = vmatpush.msra.mxu0 0.0
      %v6925 = vand.u32 %v762, 4294901760
      %6926 = vmatpush.msra.mxu0 %v6925
      %v6927 = vand.u32 %v696, 4294901760
      %v6928 = vsub.f32 %v696, %v6927
      %v6929 = vand.u32 %v6928, 4294901760
      %6930 = vmatmul.f32.gmra.mxu0 %v6929
      %v6931 = vpop.f32.mrf.mxu0
      %v6932 = vadd.f32 %v6898, %v6931
      %v6933 = vand.u32 %v699, 4294901760
      %v6934 = vsub.f32 %v699, %v6933
      %v6935 = vand.u32 %v6934, 4294901760
      %6936 = vmatmul.f32.gmra.mxu0 %v6935
      %v6937 = vpop.f32.mrf.mxu0
      %v6938 = vadd.f32 %v6903, %v6937
      %v6939 = vand.u32 %v702, 4294901760
      %v6940 = vsub.f32 %v702, %v6939
      %v6941 = vand.u32 %v6940, 4294901760
      %6942 = vmatmul.f32.gmra.mxu0 %v6941
      %v6943 = vpop.f32.mrf.mxu0
      %v6944 = vadd.f32 %v6908, %v6943
      %6945 = vdwg.mxu0
      %6946 = vmatpush.msra.mxu0 0.0
      %6947 = vmatpush.msra.mxu0 0.0
      %6948 = vmatpush.msra.mxu0 0.0
      %6949 = vmatpush.msra.mxu0 0.0
      %6950 = vmatpush.msra.mxu0 0.0
      %6951 = vmatpush.msra.mxu0 0.0
      %6952 = vmatpush.msra.mxu0 0.0
      %6953 = vmatpush.msra.mxu0 0.0
      %6954 = vmatpush.msra.mxu0 0.0
      %6955 = vmatpush.msra.mxu0 0.0
      %6956 = vmatpush.msra.mxu0 0.0
      %6957 = vmatpush.msra.mxu0 0.0
      %6958 = vmatpush.msra.mxu0 0.0
      %6959 = vmatpush.msra.mxu0 0.0
      %6960 = vmatpush.msra.mxu0 0.0
      %v6961 = vand.u32 %v762, 4294901760
      %v6962 = vsub.f32 %v762, %v6961
      %v6963 = vand.u32 %v6962, 4294901760
      %6964 = vmatpush.msra.mxu0 %v6963
      %v6965 = vand.u32 %v696, 4294901760
      %6966 = vmatmul.f32.gmra.mxu0 %v6965
      %v6967 = vpop.f32.mrf.mxu0
      %v6968 = vadd.f32 %v6932, %v6967
      %v6969 = vand.u32 %v699, 4294901760
      %6970 = vmatmul.f32.gmra.mxu0 %v6969
      %v6971 = vpop.f32.mrf.mxu0
      %v6972 = vadd.f32 %v6938, %v6971
      %v6973 = vand.u32 %v702, 4294901760
      %6974 = vmatmul.f32.gmra.mxu0 %v6973
      %v6975 = vpop.f32.mrf.mxu0
      %v6976 = vadd.f32 %v6944, %v6975
      %6977 = vdwg.mxu0
      %6978 = vmatpush.msra.mxu0 0.0
      %6979 = vmatpush.msra.mxu0 0.0
      %6980 = vmatpush.msra.mxu0 0.0
      %6981 = vmatpush.msra.mxu0 0.0
      %6982 = vmatpush.msra.mxu0 0.0
      %6983 = vmatpush.msra.mxu0 0.0
      %6984 = vmatpush.msra.mxu0 0.0
      %6985 = vmatpush.msra.mxu0 0.0
      %6986 = vmatpush.msra.mxu0 0.0
      %6987 = vmatpush.msra.mxu0 0.0
      %6988 = vmatpush.msra.mxu0 0.0
      %6989 = vmatpush.msra.mxu0 0.0
      %6990 = vmatpush.msra.mxu0 0.0
      %6991 = vmatpush.msra.mxu0 0.0
      %6992 = vmatpush.msra.mxu0 0.0
      %v6993 = vand.u32 %v762, 4294901760
      %6994 = vmatpush.msra.mxu0 %v6993
      %v6995 = vand.u32 %v696, 4294901760
      %6996 = vmatmul.f32.gmra.mxu0 %v6995
      %v6997 = vpop.f32.mrf.mxu0
      %v6998 = vadd.f32 %v6968, %v6997
      %v6999 = vand.u32 %v699, 4294901760
      %7000 = vmatmul.f32.gmra.mxu0 %v6999
      %v7001 = vpop.f32.mrf.mxu0
      %v7002 = vadd.f32 %v6972, %v7001
      %v7003 = vand.u32 %v702, 4294901760
      %7004 = vmatmul.f32.gmra.mxu0 %v7003
      %v7005 = vpop.f32.mrf.mxu0
      %v7006 = vadd.f32 %v6976, %v7005
      %7007 = vdwg.mxu0
      %7008 = vmatpush.msra.mxu0 0.0
      %7009 = vmatpush.msra.mxu0 0.0
      %7010 = vmatpush.msra.mxu0 0.0
      %7011 = vmatpush.msra.mxu0 0.0
      %7012 = vmatpush.msra.mxu0 0.0
      %7013 = vmatpush.msra.mxu0 0.0
      %7014 = vmatpush.msra.mxu0 0.0
      %7015 = vmatpush.msra.mxu0 0.0
      %7016 = vmatpush.msra.mxu0 0.0
      %7017 = vmatpush.msra.mxu0 0.0
      %7018 = vmatpush.msra.mxu0 0.0
      %7019 = vmatpush.msra.mxu0 0.0
      %7020 = vmatpush.msra.mxu0 0.0
      %7021 = vmatpush.msra.mxu0 0.0
      %7022 = vmatpush.msra.mxu0 0.0
      %v7023 = vand.u32 %v764, 4294901760
      %7024 = vmatpush.msra.mxu0 %v7023
      %v7025 = vand.u32 %v696, 4294901760
      %v7026 = vsub.f32 %v696, %v7025
      %v7027 = vand.u32 %v7026, 4294901760
      %v7028 = vsub.f32 %v7026, %v7027
      %v7029 = vand.u32 %v7028, 4294901760
      %7030 = vmatmul.f32.gmra.mxu0 %v7029
      %v7031 = vpop.f32.mrf.mxu0
      %v7032 = vadd.f32 %v615, %v7031
      %v7033 = vand.u32 %v699, 4294901760
      %v7034 = vsub.f32 %v699, %v7033
      %v7035 = vand.u32 %v7034, 4294901760
      %v7036 = vsub.f32 %v7034, %v7035
      %v7037 = vand.u32 %v7036, 4294901760
      %7038 = vmatmul.f32.gmra.mxu0 %v7037
      %v7039 = vpop.f32.mrf.mxu0
      %v7040 = vadd.f32 %v620, %v7039
      %v7041 = vand.u32 %v702, 4294901760
      %v7042 = vsub.f32 %v702, %v7041
      %v7043 = vand.u32 %v7042, 4294901760
      %v7044 = vsub.f32 %v7042, %v7043
      %v7045 = vand.u32 %v7044, 4294901760
      %7046 = vmatmul.f32.gmra.mxu0 %v7045
      %v7047 = vpop.f32.mrf.mxu0
      %v7048 = vadd.f32 %v625, %v7047
      %7049 = vdwg.mxu0
      %7050 = vmatpush.msra.mxu0 0.0
      %7051 = vmatpush.msra.mxu0 0.0
      %7052 = vmatpush.msra.mxu0 0.0
      %7053 = vmatpush.msra.mxu0 0.0
      %7054 = vmatpush.msra.mxu0 0.0
      %7055 = vmatpush.msra.mxu0 0.0
      %7056 = vmatpush.msra.mxu0 0.0
      %7057 = vmatpush.msra.mxu0 0.0
      %7058 = vmatpush.msra.mxu0 0.0
      %7059 = vmatpush.msra.mxu0 0.0
      %7060 = vmatpush.msra.mxu0 0.0
      %7061 = vmatpush.msra.mxu0 0.0
      %7062 = vmatpush.msra.mxu0 0.0
      %7063 = vmatpush.msra.mxu0 0.0
      %7064 = vmatpush.msra.mxu0 0.0
      %v7065 = vand.u32 %v764, 4294901760
      %v7066 = vsub.f32 %v764, %v7065
      %v7067 = vand.u32 %v7066, 4294901760
      %v7068 = vsub.f32 %v7066, %v7067
      %v7069 = vand.u32 %v7068, 4294901760
      %7070 = vmatpush.msra.mxu0 %v7069
      %v7071 = vand.u32 %v696, 4294901760
      %7072 = vmatmul.f32.gmra.mxu0 %v7071
      %v7073 = vpop.f32.mrf.mxu0
      %v7074 = vadd.f32 %v7032, %v7073
      %v7075 = vand.u32 %v699, 4294901760
      %7076 = vmatmul.f32.gmra.mxu0 %v7075
      %v7077 = vpop.f32.mrf.mxu0
      %v7078 = vadd.f32 %v7040, %v7077
      %v7079 = vand.u32 %v702, 4294901760
      %7080 = vmatmul.f32.gmra.mxu0 %v7079
      %v7081 = vpop.f32.mrf.mxu0
      %v7082 = vadd.f32 %v7048, %v7081
      %7083 = vdwg.mxu0
      %7084 = vmatpush.msra.mxu0 0.0
      %7085 = vmatpush.msra.mxu0 0.0
      %7086 = vmatpush.msra.mxu0 0.0
      %7087 = vmatpush.msra.mxu0 0.0
      %7088 = vmatpush.msra.mxu0 0.0
      %7089 = vmatpush.msra.mxu0 0.0
      %7090 = vmatpush.msra.mxu0 0.0
      %7091 = vmatpush.msra.mxu0 0.0
      %7092 = vmatpush.msra.mxu0 0.0
      %7093 = vmatpush.msra.mxu0 0.0
      %7094 = vmatpush.msra.mxu0 0.0
      %7095 = vmatpush.msra.mxu0 0.0
      %7096 = vmatpush.msra.mxu0 0.0
      %7097 = vmatpush.msra.mxu0 0.0
      %7098 = vmatpush.msra.mxu0 0.0
      %v7099 = vand.u32 %v764, 4294901760
      %v7100 = vsub.f32 %v764, %v7099
      %7101 = vmatpush.msra.mxu0 %v7100
      %v7102 = vand.u32 %v696, 4294901760
      %v7103 = vsub.f32 %v696, %v7102
      %7104 = vmatmul.f32.gmra.mxu0 %v7103
      %v7105 = vpop.f32.mrf.mxu0
      %v7106 = vadd.f32 %v7074, %v7105
      %v7107 = vand.u32 %v699, 4294901760
      %v7108 = vsub.f32 %v699, %v7107
      %7109 = vmatmul.f32.gmra.mxu0 %v7108
      %v7110 = vpop.f32.mrf.mxu0
      %v7111 = vadd.f32 %v7078, %v7110
      %v7112 = vand.u32 %v702, 4294901760
      %v7113 = vsub.f32 %v702, %v7112
      %7114 = vmatmul.f32.gmra.mxu0 %v7113
      %v7115 = vpop.f32.mrf.mxu0
      %v7116 = vadd.f32 %v7082, %v7115
      %7117 = vdwg.mxu0
      %7118 = vmatpush.msra.mxu0 0.0
      %7119 = vmatpush.msra.mxu0 0.0
      %7120 = vmatpush.msra.mxu0 0.0
      %7121 = vmatpush.msra.mxu0 0.0
      %7122 = vmatpush.msra.mxu0 0.0
      %7123 = vmatpush.msra.mxu0 0.0
      %7124 = vmatpush.msra.mxu0 0.0
      %7125 = vmatpush.msra.mxu0 0.0
      %7126 = vmatpush.msra.mxu0 0.0
      %7127 = vmatpush.msra.mxu0 0.0
      %7128 = vmatpush.msra.mxu0 0.0
      %7129 = vmatpush.msra.mxu0 0.0
      %7130 = vmatpush.msra.mxu0 0.0
      %7131 = vmatpush.msra.mxu0 0.0
      %7132 = vmatpush.msra.mxu0 0.0
      %v7133 = vand.u32 %v764, 4294901760
      %7134 = vmatpush.msra.mxu0 %v7133
      %v7135 = vand.u32 %v696, 4294901760
      %v7136 = vsub.f32 %v696, %v7135
      %v7137 = vand.u32 %v7136, 4294901760
      %7138 = vmatmul.f32.gmra.mxu0 %v7137
      %v7139 = vpop.f32.mrf.mxu0
      %v7140 = vadd.f32 %v7106, %v7139
      %v7141 = vand.u32 %v699, 4294901760
      %v7142 = vsub.f32 %v699, %v7141
      %v7143 = vand.u32 %v7142, 4294901760
      %7144 = vmatmul.f32.gmra.mxu0 %v7143
      %v7145 = vpop.f32.mrf.mxu0
      %v7146 = vadd.f32 %v7111, %v7145
      %v7147 = vand.u32 %v702, 4294901760
      %v7148 = vsub.f32 %v702, %v7147
      %v7149 = vand.u32 %v7148, 4294901760
      %7150 = vmatmul.f32.gmra.mxu0 %v7149
      %v7151 = vpop.f32.mrf.mxu0
      %v7152 = vadd.f32 %v7116, %v7151
      %7153 = vdwg.mxu0
      %7154 = vmatpush.msra.mxu0 0.0
      %7155 = vmatpush.msra.mxu0 0.0
      %7156 = vmatpush.msra.mxu0 0.0
      %7157 = vmatpush.msra.mxu0 0.0
      %7158 = vmatpush.msra.mxu0 0.0
      %7159 = vmatpush.msra.mxu0 0.0
      %7160 = vmatpush.msra.mxu0 0.0
      %7161 = vmatpush.msra.mxu0 0.0
      %7162 = vmatpush.msra.mxu0 0.0
      %7163 = vmatpush.msra.mxu0 0.0
      %7164 = vmatpush.msra.mxu0 0.0
      %7165 = vmatpush.msra.mxu0 0.0
      %7166 = vmatpush.msra.mxu0 0.0
      %7167 = vmatpush.msra.mxu0 0.0
      %7168 = vmatpush.msra.mxu0 0.0
      %v7169 = vand.u32 %v764, 4294901760
      %v7170 = vsub.f32 %v764, %v7169
      %v7171 = vand.u32 %v7170, 4294901760
      %7172 = vmatpush.msra.mxu0 %v7171
      %v7173 = vand.u32 %v696, 4294901760
      %7174 = vmatmul.f32.gmra.mxu0 %v7173
      %v7175 = vpop.f32.mrf.mxu0
      %v7176 = vadd.f32 %v7140, %v7175
      %v7177 = vand.u32 %v699, 4294901760
      %7178 = vmatmul.f32.gmra.mxu0 %v7177
      %v7179 = vpop.f32.mrf.mxu0
      %v7180 = vadd.f32 %v7146, %v7179
      %v7181 = vand.u32 %v702, 4294901760
      %7182 = vmatmul.f32.gmra.mxu0 %v7181
      %v7183 = vpop.f32.mrf.mxu0
      %v7184 = vadd.f32 %v7152, %v7183
      %7185 = vdwg.mxu0
      %7186 = vmatpush.msra.mxu0 0.0
      %7187 = vmatpush.msra.mxu0 0.0
      %7188 = vmatpush.msra.mxu0 0.0
      %7189 = vmatpush.msra.mxu0 0.0
      %7190 = vmatpush.msra.mxu0 0.0
      %7191 = vmatpush.msra.mxu0 0.0
      %7192 = vmatpush.msra.mxu0 0.0
      %7193 = vmatpush.msra.mxu0 0.0
      %7194 = vmatpush.msra.mxu0 0.0
      %7195 = vmatpush.msra.mxu0 0.0
      %7196 = vmatpush.msra.mxu0 0.0
      %7197 = vmatpush.msra.mxu0 0.0
      %7198 = vmatpush.msra.mxu0 0.0
      %7199 = vmatpush.msra.mxu0 0.0
      %7200 = vmatpush.msra.mxu0 0.0
      %v7201 = vand.u32 %v764, 4294901760
      %7202 = vmatpush.msra.mxu0 %v7201
      %v7203 = vand.u32 %v696, 4294901760
      %7204 = vmatmul.f32.gmra.mxu0 %v7203
      %v7205 = vpop.f32.mrf.mxu0
      %v7206 = vadd.f32 %v7176, %v7205
      %v7207 = vand.u32 %v699, 4294901760
      %7208 = vmatmul.f32.gmra.mxu0 %v7207
      %v7209 = vpop.f32.mrf.mxu0
      %v7210 = vadd.f32 %v7180, %v7209
      %v7211 = vand.u32 %v702, 4294901760
      %7212 = vmatmul.f32.gmra.mxu0 %v7211
      %v7213 = vpop.f32.mrf.mxu0
      %v7214 = vadd.f32 %v7184, %v7213
      %7215 = vdwg.mxu0
      %7216 = vmatpush.msra.mxu0 0.0
      %7217 = vmatpush.msra.mxu0 0.0
      %7218 = vmatpush.msra.mxu0 0.0
      %7219 = vmatpush.msra.mxu0 0.0
      %7220 = vmatpush.msra.mxu0 0.0
      %7221 = vmatpush.msra.mxu0 0.0
      %7222 = vmatpush.msra.mxu0 0.0
      %7223 = vmatpush.msra.mxu0 0.0
      %7224 = vmatpush.msra.mxu0 0.0
      %7225 = vmatpush.msra.mxu0 0.0
      %7226 = vmatpush.msra.mxu0 0.0
      %7227 = vmatpush.msra.mxu0 0.0
      %7228 = vmatpush.msra.mxu0 0.0
      %7229 = vmatpush.msra.mxu0 0.0
      %7230 = vmatpush.msra.mxu0 0.0
      %v7231 = vand.u32 %v766, 4294901760
      %7232 = vmatpush.msra.mxu0 %v7231
      %v7233 = vand.u32 %v696, 4294901760
      %v7234 = vsub.f32 %v696, %v7233
      %v7235 = vand.u32 %v7234, 4294901760
      %v7236 = vsub.f32 %v7234, %v7235
      %v7237 = vand.u32 %v7236, 4294901760
      %7238 = vmatmul.f32.gmra.mxu0 %v7237
      %v7239 = vpop.f32.mrf.mxu0
      %v7240 = vadd.f32 %v615, %v7239
      %v7241 = vand.u32 %v699, 4294901760
      %v7242 = vsub.f32 %v699, %v7241
      %v7243 = vand.u32 %v7242, 4294901760
      %v7244 = vsub.f32 %v7242, %v7243
      %v7245 = vand.u32 %v7244, 4294901760
      %7246 = vmatmul.f32.gmra.mxu0 %v7245
      %v7247 = vpop.f32.mrf.mxu0
      %v7248 = vadd.f32 %v620, %v7247
      %v7249 = vand.u32 %v702, 4294901760
      %v7250 = vsub.f32 %v702, %v7249
      %v7251 = vand.u32 %v7250, 4294901760
      %v7252 = vsub.f32 %v7250, %v7251
      %v7253 = vand.u32 %v7252, 4294901760
      %7254 = vmatmul.f32.gmra.mxu0 %v7253
      %v7255 = vpop.f32.mrf.mxu0
      %v7256 = vadd.f32 %v625, %v7255
      %7257 = vdwg.mxu0
      %7258 = vmatpush.msra.mxu0 0.0
      %7259 = vmatpush.msra.mxu0 0.0
      %7260 = vmatpush.msra.mxu0 0.0
      %7261 = vmatpush.msra.mxu0 0.0
      %7262 = vmatpush.msra.mxu0 0.0
      %7263 = vmatpush.msra.mxu0 0.0
      %7264 = vmatpush.msra.mxu0 0.0
      %7265 = vmatpush.msra.mxu0 0.0
      %7266 = vmatpush.msra.mxu0 0.0
      %7267 = vmatpush.msra.mxu0 0.0
      %7268 = vmatpush.msra.mxu0 0.0
      %7269 = vmatpush.msra.mxu0 0.0
      %7270 = vmatpush.msra.mxu0 0.0
      %7271 = vmatpush.msra.mxu0 0.0
      %7272 = vmatpush.msra.mxu0 0.0
      %v7273 = vand.u32 %v766, 4294901760
      %v7274 = vsub.f32 %v766, %v7273
      %v7275 = vand.u32 %v7274, 4294901760
      %v7276 = vsub.f32 %v7274, %v7275
      %v7277 = vand.u32 %v7276, 4294901760
      %7278 = vmatpush.msra.mxu0 %v7277
      %v7279 = vand.u32 %v696, 4294901760
      %7280 = vmatmul.f32.gmra.mxu0 %v7279
      %v7281 = vpop.f32.mrf.mxu0
      %v7282 = vadd.f32 %v7240, %v7281
      %v7283 = vand.u32 %v699, 4294901760
      %7284 = vmatmul.f32.gmra.mxu0 %v7283
      %v7285 = vpop.f32.mrf.mxu0
      %v7286 = vadd.f32 %v7248, %v7285
      %v7287 = vand.u32 %v702, 4294901760
      %7288 = vmatmul.f32.gmra.mxu0 %v7287
      %v7289 = vpop.f32.mrf.mxu0
      %v7290 = vadd.f32 %v7256, %v7289
      %7291 = vdwg.mxu0
      %7292 = vmatpush.msra.mxu0 0.0
      %7293 = vmatpush.msra.mxu0 0.0
      %7294 = vmatpush.msra.mxu0 0.0
      %7295 = vmatpush.msra.mxu0 0.0
      %7296 = vmatpush.msra.mxu0 0.0
      %7297 = vmatpush.msra.mxu0 0.0
      %7298 = vmatpush.msra.mxu0 0.0
      %7299 = vmatpush.msra.mxu0 0.0
      %7300 = vmatpush.msra.mxu0 0.0
      %7301 = vmatpush.msra.mxu0 0.0
      %7302 = vmatpush.msra.mxu0 0.0
      %7303 = vmatpush.msra.mxu0 0.0
      %7304 = vmatpush.msra.mxu0 0.0
      %7305 = vmatpush.msra.mxu0 0.0
      %7306 = vmatpush.msra.mxu0 0.0
      %v7307 = vand.u32 %v766, 4294901760
      %v7308 = vsub.f32 %v766, %v7307
      %7309 = vmatpush.msra.mxu0 %v7308
      %v7310 = vand.u32 %v696, 4294901760
      %v7311 = vsub.f32 %v696, %v7310
      %7312 = vmatmul.f32.gmra.mxu0 %v7311
      %v7313 = vpop.f32.mrf.mxu0
      %v7314 = vadd.f32 %v7282, %v7313
      %v7315 = vand.u32 %v699, 4294901760
      %v7316 = vsub.f32 %v699, %v7315
      %7317 = vmatmul.f32.gmra.mxu0 %v7316
      %v7318 = vpop.f32.mrf.mxu0
      %v7319 = vadd.f32 %v7286, %v7318
      %v7320 = vand.u32 %v702, 4294901760
      %v7321 = vsub.f32 %v702, %v7320
      %7322 = vmatmul.f32.gmra.mxu0 %v7321
      %v7323 = vpop.f32.mrf.mxu0
      %v7324 = vadd.f32 %v7290, %v7323
      %7325 = vdwg.mxu0
      %7326 = vmatpush.msra.mxu0 0.0
      %7327 = vmatpush.msra.mxu0 0.0
      %7328 = vmatpush.msra.mxu0 0.0
      %7329 = vmatpush.msra.mxu0 0.0
      %7330 = vmatpush.msra.mxu0 0.0
      %7331 = vmatpush.msra.mxu0 0.0
      %7332 = vmatpush.msra.mxu0 0.0
      %7333 = vmatpush.msra.mxu0 0.0
      %7334 = vmatpush.msra.mxu0 0.0
      %7335 = vmatpush.msra.mxu0 0.0
      %7336 = vmatpush.msra.mxu0 0.0
      %7337 = vmatpush.msra.mxu0 0.0
      %7338 = vmatpush.msra.mxu0 0.0
      %7339 = vmatpush.msra.mxu0 0.0
      %7340 = vmatpush.msra.mxu0 0.0
      %v7341 = vand.u32 %v766, 4294901760
      %7342 = vmatpush.msra.mxu0 %v7341
      %v7343 = vand.u32 %v696, 4294901760
      %v7344 = vsub.f32 %v696, %v7343
      %v7345 = vand.u32 %v7344, 4294901760
      %7346 = vmatmul.f32.gmra.mxu0 %v7345
      %v7347 = vpop.f32.mrf.mxu0
      %v7348 = vadd.f32 %v7314, %v7347
      %v7349 = vand.u32 %v699, 4294901760
      %v7350 = vsub.f32 %v699, %v7349
      %v7351 = vand.u32 %v7350, 4294901760
      %7352 = vmatmul.f32.gmra.mxu0 %v7351
      %v7353 = vpop.f32.mrf.mxu0
      %v7354 = vadd.f32 %v7319, %v7353
      %v7355 = vand.u32 %v702, 4294901760
      %v7356 = vsub.f32 %v702, %v7355
      %v7357 = vand.u32 %v7356, 4294901760
      %7358 = vmatmul.f32.gmra.mxu0 %v7357
      %v7359 = vpop.f32.mrf.mxu0
      %v7360 = vadd.f32 %v7324, %v7359
      %7361 = vdwg.mxu0
      %7362 = vmatpush.msra.mxu0 0.0
      %7363 = vmatpush.msra.mxu0 0.0
      %7364 = vmatpush.msra.mxu0 0.0
      %7365 = vmatpush.msra.mxu0 0.0
      %7366 = vmatpush.msra.mxu0 0.0
      %7367 = vmatpush.msra.mxu0 0.0
      %7368 = vmatpush.msra.mxu0 0.0
      %7369 = vmatpush.msra.mxu0 0.0
      %7370 = vmatpush.msra.mxu0 0.0
      %7371 = vmatpush.msra.mxu0 0.0
      %7372 = vmatpush.msra.mxu0 0.0
      %7373 = vmatpush.msra.mxu0 0.0
      %7374 = vmatpush.msra.mxu0 0.0
      %7375 = vmatpush.msra.mxu0 0.0
      %7376 = vmatpush.msra.mxu0 0.0
      %v7377 = vand.u32 %v766, 4294901760
      %v7378 = vsub.f32 %v766, %v7377
      %v7379 = vand.u32 %v7378, 4294901760
      %7380 = vmatpush.msra.mxu0 %v7379
      %v7381 = vand.u32 %v696, 4294901760
      %7382 = vmatmul.f32.gmra.mxu0 %v7381
      %v7383 = vpop.f32.mrf.mxu0
      %v7384 = vadd.f32 %v7348, %v7383
      %v7385 = vand.u32 %v699, 4294901760
      %7386 = vmatmul.f32.gmra.mxu0 %v7385
      %v7387 = vpop.f32.mrf.mxu0
      %v7388 = vadd.f32 %v7354, %v7387
      %v7389 = vand.u32 %v702, 4294901760
      %7390 = vmatmul.f32.gmra.mxu0 %v7389
      %v7391 = vpop.f32.mrf.mxu0
      %v7392 = vadd.f32 %v7360, %v7391
      %7393 = vdwg.mxu0
      %7394 = vmatpush.msra.mxu0 0.0
      %7395 = vmatpush.msra.mxu0 0.0
      %7396 = vmatpush.msra.mxu0 0.0
      %7397 = vmatpush.msra.mxu0 0.0
      %7398 = vmatpush.msra.mxu0 0.0
      %7399 = vmatpush.msra.mxu0 0.0
      %7400 = vmatpush.msra.mxu0 0.0
      %7401 = vmatpush.msra.mxu0 0.0
      %7402 = vmatpush.msra.mxu0 0.0
      %7403 = vmatpush.msra.mxu0 0.0
      %7404 = vmatpush.msra.mxu0 0.0
      %7405 = vmatpush.msra.mxu0 0.0
      %7406 = vmatpush.msra.mxu0 0.0
      %7407 = vmatpush.msra.mxu0 0.0
      %7408 = vmatpush.msra.mxu0 0.0
      %v7409 = vand.u32 %v766, 4294901760
      %7410 = vmatpush.msra.mxu0 %v7409
      %v7411 = vand.u32 %v696, 4294901760
      %7412 = vmatmul.f32.gmra.mxu0 %v7411
      %v7413 = vpop.f32.mrf.mxu0
      %v7414 = vadd.f32 %v7384, %v7413
      %v7415 = vand.u32 %v699, 4294901760
      %7416 = vmatmul.f32.gmra.mxu0 %v7415
      %v7417 = vpop.f32.mrf.mxu0
      %v7418 = vadd.f32 %v7388, %v7417
      %v7419 = vand.u32 %v702, 4294901760
      %7420 = vmatmul.f32.gmra.mxu0 %v7419
      %v7421 = vpop.f32.mrf.mxu0
      %v7422 = vadd.f32 %v7392, %v7421
      %7423 = vdwg.mxu0
      %v7424 = vadd.f32 %v966, %v388
      %v7425 = vadd.f32 %v1174, %v395
      %v7426 = vadd.f32 %v1382, %v402
      %v7427 = vadd.f32 %v1590, %v409
      %v7428 = vadd.f32 %v1798, %v416
      %v7429 = vadd.f32 %v2006, %v423
      %v7430 = vadd.f32 %v2214, %v430
      %v7431 = vadd.f32 %v2422, %v437
      %v7432 = vadd.f32 %v2630, %v444
      %v7433 = vadd.f32 %v2838, %v451
      %v7434 = vadd.f32 %v3046, %v458
      %v7435 = vadd.f32 %v3254, %v465
      %v7436 = vadd.f32 %v3462, %v472
      %v7437 = vadd.f32 %v3670, %v479
      %v7438 = vadd.f32 %v3878, %v486
      %v7439 = vadd.f32 %v4086, %v493
      %v7440 = vadd.f32 %v4294, %v500
      %v7441 = vadd.f32 %v4502, %v507
      %v7442 = vadd.f32 %v4710, %v514
      %v7443 = vadd.f32 %v4918, %v521
      %v7444 = vadd.f32 %v5126, %v528
      %v7445 = vadd.f32 %v5334, %v535
      %v7446 = vadd.f32 %v5542, %v542
      %v7447 = vadd.f32 %v5750, %v549
      %v7448 = vadd.f32 %v5958, %v556
      %v7449 = vadd.f32 %v6166, %v563
      %v7450 = vadd.f32 %v6374, %v570
      %v7451 = vadd.f32 %v6582, %v577
      %v7452 = vadd.f32 %v6790, %v584
      %v7453 = vadd.f32 %v6998, %v591
      %v7454 = vadd.f32 %v7206, %v598
      %v7455 = vadd.f32 %v7414, %v605
      %v7456 = vadd.f32 %v970, %v388
      %v7457 = vadd.f32 %v1178, %v395
      %v7458 = vadd.f32 %v1386, %v402
      %v7459 = vadd.f32 %v1594, %v409
      %v7460 = vadd.f32 %v1802, %v416
      %v7461 = vadd.f32 %v2010, %v423
      %v7462 = vadd.f32 %v2218, %v430
      %v7463 = vadd.f32 %v2426, %v437
      %v7464 = vadd.f32 %v2634, %v444
      %v7465 = vadd.f32 %v2842, %v451
      %v7466 = vadd.f32 %v3050, %v458
      %v7467 = vadd.f32 %v3258, %v465
      %v7468 = vadd.f32 %v3466, %v472
      %v7469 = vadd.f32 %v3674, %v479
      %v7470 = vadd.f32 %v3882, %v486
      %v7471 = vadd.f32 %v4090, %v493
      %v7472 = vadd.f32 %v4298, %v500
      %v7473 = vadd.f32 %v4506, %v507
      %v7474 = vadd.f32 %v4714, %v514
      %v7475 = vadd.f32 %v4922, %v521
      %v7476 = vadd.f32 %v5130, %v528
      %v7477 = vadd.f32 %v5338, %v535
      %v7478 = vadd.f32 %v5546, %v542
      %v7479 = vadd.f32 %v5754, %v549
      %v7480 = vadd.f32 %v5962, %v556
      %v7481 = vadd.f32 %v6170, %v563
      %v7482 = vadd.f32 %v6378, %v570
      %v7483 = vadd.f32 %v6586, %v577
      %v7484 = vadd.f32 %v6794, %v584
      %v7485 = vadd.f32 %v7002, %v591
      %v7486 = vadd.f32 %v7210, %v598
      %v7487 = vadd.f32 %v7418, %v605
      %v7488 = vadd.f32 %v974, %v388
      %v7489 = vadd.f32 %v1182, %v395
      %v7490 = vadd.f32 %v1390, %v402
      %v7491 = vadd.f32 %v1598, %v409
      %v7492 = vadd.f32 %v1806, %v416
      %v7493 = vadd.f32 %v2014, %v423
      %v7494 = vadd.f32 %v2222, %v430
      %v7495 = vadd.f32 %v2430, %v437
      %v7496 = vadd.f32 %v2638, %v444
      %v7497 = vadd.f32 %v2846, %v451
      %v7498 = vadd.f32 %v3054, %v458
      %v7499 = vadd.f32 %v3262, %v465
      %v7500 = vadd.f32 %v3470, %v472
      %v7501 = vadd.f32 %v3678, %v479
      %v7502 = vadd.f32 %v3886, %v486
      %v7503 = vadd.f32 %v4094, %v493
      %v7504 = vadd.f32 %v4302, %v500
      %v7505 = vadd.f32 %v4510, %v507
      %v7506 = vadd.f32 %v4718, %v514
      %v7507 = vadd.f32 %v4926, %v521
      %v7508 = vadd.f32 %v5134, %v528
      %v7509 = vadd.f32 %v5342, %v535
      %v7510 = vadd.f32 %v5550, %v542
      %v7511 = vadd.f32 %v5758, %v549
      %v7512 = vadd.f32 %v5966, %v556
      %v7513 = vadd.f32 %v6174, %v563
      %v7514 = vadd.f32 %v6382, %v570
      %v7515 = vadd.f32 %v6590, %v577
      %v7516 = vadd.f32 %v6798, %v584
      %v7517 = vadd.f32 %v7006, %v591
      %v7518 = vadd.f32 %v7214, %v598
      %v7519 = vadd.f32 %v7422, %v605
      %7520 = vst [vmem:[%s248] sm:$0xff] %v7424
      %7521 = vst [vmem:[%s248 + $0x8] sm:$0xff] %v7425
      %7522 = vst [vmem:[%s248 + $0x10] sm:$0xff] %v7426
      %7523 = vst [vmem:[%s248 + $0x18] sm:$0xff] %v7427
      %7524 = vst [vmem:[%s248 + $0x20] sm:$0xff] %v7428
      %7525 = vst [vmem:[%s248 + $0x28] sm:$0xff] %v7429
      %7526 = vst [vmem:[%s248 + $0x30] sm:$0xff] %v7430
      %7527 = vst [vmem:[%s248 + $0x38] sm:$0xff] %v7431
      %7528 = vst [vmem:[%s248 + $0x40] sm:$0xff] %v7432
      %7529 = vst [vmem:[%s248 + $0x48] sm:$0xff] %v7433
      %7530 = vst [vmem:[%s248 + $0x50] sm:$0xff] %v7434
      %7531 = vst [vmem:[%s248 + $0x58] sm:$0xff] %v7435
      %7532 = vst [vmem:[%s248 + $0x60] sm:$0xff] %v7436
      %7533 = vst [vmem:[%s248 + $0x68] sm:$0xff] %v7437
      %7534 = vst [vmem:[%s248 + $0x70] sm:$0xff] %v7438
      %7535 = vst [vmem:[%s248 + $0x78] sm:$0xff] %v7439
      %7536 = vst [vmem:[%s248 + $0x80] sm:$0xff] %v7440
      %7537 = vst [vmem:[%s248 + $0x88] sm:$0xff] %v7441
      %7538 = vst [vmem:[%s248 + $0x90] sm:$0xff] %v7442
      %7539 = vst [vmem:[%s248 + $0x98] sm:$0xff] %v7443
      %7540 = vst [vmem:[%s248 + $0xa0] sm:$0xff] %v7444
      %7541 = vst [vmem:[%s248 + $0xa8] sm:$0xff] %v7445
      %7542 = vst [vmem:[%s248 + $0xb0] sm:$0xff] %v7446
      %7543 = vst [vmem:[%s248 + $0xb8] sm:$0xff] %v7447
      %7544 = vst [vmem:[%s248 + $0xc0] sm:$0xff] %v7448
      %7545 = vst [vmem:[%s248 + $0xc8] sm:$0xff] %v7449
      %7546 = vst [vmem:[%s248 + $0xd0] sm:$0xff] %v7450
      %7547 = vst [vmem:[%s248 + $0xd8] sm:$0xff] %v7451
      %7548 = vst [vmem:[%s248 + $0xe0] sm:$0xff] %v7452
      %7549 = vst [vmem:[%s248 + $0xe8] sm:$0xff] %v7453
      %7550 = vst [vmem:[%s248 + $0xf0] sm:$0xff] %v7454
      %7551 = vst [vmem:[%s248 + $0xf8] sm:$0xff] %v7455
      %7552 = vst [vmem:[%s248 + $0x100] sm:$0xff] %v7456
      %7553 = vst [vmem:[%s248 + $0x108] sm:$0xff] %v7457
      %7554 = vst [vmem:[%s248 + $0x110] sm:$0xff] %v7458
      %7555 = vst [vmem:[%s248 + $0x118] sm:$0xff] %v7459
      %7556 = vst [vmem:[%s248 + $0x120] sm:$0xff] %v7460
      %7557 = vst [vmem:[%s248 + $0x128] sm:$0xff] %v7461
      %7558 = vst [vmem:[%s248 + $0x130] sm:$0xff] %v7462
      %7559 = vst [vmem:[%s248 + $0x138] sm:$0xff] %v7463
      %7560 = vst [vmem:[%s248 + $0x140] sm:$0xff] %v7464
      %7561 = vst [vmem:[%s248 + $0x148] sm:$0xff] %v7465
      %7562 = vst [vmem:[%s248 + $0x150] sm:$0xff] %v7466
      %7563 = vst [vmem:[%s248 + $0x158] sm:$0xff] %v7467
      %7564 = vst [vmem:[%s248 + $0x160] sm:$0xff] %v7468
      %7565 = vst [vmem:[%s248 + $0x168] sm:$0xff] %v7469
      %7566 = vst [vmem:[%s248 + $0x170] sm:$0xff] %v7470
      %7567 = vst [vmem:[%s248 + $0x178] sm:$0xff] %v7471
      %7568 = vst [vmem:[%s248 + $0x180] sm:$0xff] %v7472
      %7569 = vst [vmem:[%s248 + $0x188] sm:$0xff] %v7473
      %7570 = vst [vmem:[%s248 + $0x190] sm:$0xff] %v7474
      %7571 = vst [vmem:[%s248 + $0x198] sm:$0xff] %v7475
      %7572 = vst [vmem:[%s248 + $0x1a0] sm:$0xff] %v7476
      %7573 = vst [vmem:[%s248 + $0x1a8] sm:$0xff] %v7477
      %7574 = vst [vmem:[%s248 + $0x1b0] sm:$0xff] %v7478
      %7575 = vst [vmem:[%s248 + $0x1b8] sm:$0xff] %v7479
      %7576 = vst [vmem:[%s248 + $0x1c0] sm:$0xff] %v7480
      %7577 = vst [vmem:[%s248 + $0x1c8] sm:$0xff] %v7481
      %7578 = vst [vmem:[%s248 + $0x1d0] sm:$0xff] %v7482
      %7579 = vst [vmem:[%s248 + $0x1d8] sm:$0xff] %v7483
      %7580 = vst [vmem:[%s248 + $0x1e0] sm:$0xff] %v7484
      %7581 = vst [vmem:[%s248 + $0x1e8] sm:$0xff] %v7485
      %7582 = vst [vmem:[%s248 + $0x1f0] sm:$0xff] %v7486
      %7583 = vst [vmem:[%s248 + $0x1f8] sm:$0xff] %v7487
      %7584 = vst [vmem:[%s248 + $0x200] sm:$0x1f] %v7488
      %7585 = vst [vmem:[%s248 + $0x208] sm:$0x1f] %v7489
      %7586 = vst [vmem:[%s248 + $0x210] sm:$0x1f] %v7490
      %7587 = vst [vmem:[%s248 + $0x218] sm:$0x1f] %v7491
      %7588 = vst [vmem:[%s248 + $0x220] sm:$0x1f] %v7492
      %7589 = vst [vmem:[%s248 + $0x228] sm:$0x1f] %v7493
      %7590 = vst [vmem:[%s248 + $0x230] sm:$0x1f] %v7494
      %7591 = vst [vmem:[%s248 + $0x238] sm:$0x1f] %v7495
      %7592 = vst [vmem:[%s248 + $0x240] sm:$0x1f] %v7496
      %7593 = vst [vmem:[%s248 + $0x248] sm:$0x1f] %v7497
      %7594 = vst [vmem:[%s248 + $0x250] sm:$0x1f] %v7498
      %7595 = vst [vmem:[%s248 + $0x258] sm:$0x1f] %v7499
      %7596 = vst [vmem:[%s248 + $0x260] sm:$0x1f] %v7500
      %7597 = vst [vmem:[%s248 + $0x268] sm:$0x1f] %v7501
      %7598 = vst [vmem:[%s248 + $0x270] sm:$0x1f] %v7502
      %7599 = vst [vmem:[%s248 + $0x278] sm:$0x1f] %v7503
      %7600 = vst [vmem:[%s248 + $0x280] sm:$0x1f] %v7504
      %7601 = vst [vmem:[%s248 + $0x288] sm:$0x1f] %v7505
      %7602 = vst [vmem:[%s248 + $0x290] sm:$0x1f] %v7506
      %7603 = vst [vmem:[%s248 + $0x298] sm:$0x1f] %v7507
      %7604 = vst [vmem:[%s248 + $0x2a0] sm:$0x1f] %v7508
      %7605 = vst [vmem:[%s248 + $0x2a8] sm:$0x1f] %v7509
      %7606 = vst [vmem:[%s248 + $0x2b0] sm:$0x1f] %v7510
      %7607 = vst [vmem:[%s248 + $0x2b8] sm:$0x1f] %v7511
      %7608 = vst [vmem:[%s248 + $0x2c0] sm:$0x1f] %v7512
      %7609 = vst [vmem:[%s248 + $0x2c8] sm:$0x1f] %v7513
      %7610 = vst [vmem:[%s248 + $0x2d0] sm:$0x1f] %v7514
      %7611 = vst [vmem:[%s248 + $0x2d8] sm:$0x1f] %v7515
      %7612 = vst [vmem:[%s248 + $0x2e0] sm:$0x1f] %v7516
      %7613 = vst [vmem:[%s248 + $0x2e8] sm:$0x1f] %v7517
      %7614 = vst [vmem:[%s248 + $0x2f0] sm:$0x1f] %v7518
      %7615 = vst [vmem:[%s248 + $0x2f8] sm:$0x1f] %v7519
      %s7616 = smul.u32 32, %s19
      %p7617 = scmp.lt.s32.totalorder %s18, 1
      %s7618 = scalar_select %p7617, %s18, 1
      %p7619 = scmp.lt.s32.totalorder %s7616, 31
      %s7620 = scalar_select %p7619, %s7616, 31
      %s7621 = smul.addr %s7618, 96
      %s7622 = sadd.s32 %s7620, %s7621
      %s7623 = smul.addr %s7622, 8
      %s7624 = scalar_lea.vmem %s3, %s7623
      // Predicated region
      $region33: #{tpu_custom_call.1} parent=31 // pred_check
        %p7625 = pneg %p126
      $region34: #{tpu_custom_call.1} parent=31 // pred_check_branch
        %7627 = sbr.rel (%p7625) target = $region36
      $region35: #{tpu_custom_call.1} parent=31 // pred_region
        %s7628 = smul.u32 32, %s19
      $region36: #{tpu_custom_call.1} parent=31 // pred_fallthru
        _
    $region32: #{tpu_custom_call.1} parent=5 // pred_fallthru
      _
    %p7629 = scmp.le.s32.totalorder 2, %s9
    // Predicated region
    $region37: #{tpu_custom_call.1} parent=5 // pred_check
      %p7630 = pneg %p7629
    $region38: #{tpu_custom_call.1} parent=5 // pred_check_branch
      %7632 = sbr.rel (%p7630) target = $region40
    $region39: #{tpu_custom_call.1} parent=5 // pred_region
      %s7633 = ssub.s32 %s9, 2
      // Predicated region
      $region41: #{tpu_custom_call.1} parent=39 // pred_check
        %p7634 = pneg %p132
      $region42: #{tpu_custom_call.1} parent=39 // pred_check_branch
        %7636 = sbr.rel (%p7634) target = $region44
      $region43: #{tpu_custom_call.1} parent=39 // pred_region
        %s7637 = smul.u32 32, %s21
        %p7638 = scmp.lt.s32.totalorder %s20, 1
        %s7639 = scalar_select %p7638, %s20, 1
        %p7640 = scmp.lt.s32.totalorder %s7637, 31
        %s7641 = scalar_select %p7640, %s7637, 31
        %s7642 = smul.addr %s7639, 96
        %s7643 = sadd.s32 %s7641, %s7642
        %s7644 = smul.addr %s7643, 8
        %s7645 = scalar_lea.vmem %s3, %s7644
      $region44: #{tpu_custom_call.1} parent=39 // pred_fallthru
        _
    $region40: #{tpu_custom_call.1} parent=5 // pred_fallthru
      _
  $region6: #{tpu_custom_call.1} parent=0 // loop_footer
    %s13 = sadd.s32 1, %s9
  $region7: #{tpu_custom_call.1} parent=0 // loop_footer_branch
    %8 = sbr.rel target = $region3
  $region8: #{tpu_custom_call.1} parent=0 // loop_exit
    _

</llo_original>
